<compile_context>
chip_gen: v7x
topology: tpu7x:2x2x1
jax: 0.10.0
libtpu: 0.0.40
codegen_flags: <defaults>
</compile_context>

<pallas_src>
import functools

import numpy as np
import jax
import jax.numpy as jnp
from jax import lax
from jax.experimental import pallas as pl
from jax.experimental.pallas import tpu as pltpu

VMEM_SPEC = pl.BlockSpec(memory_space=pltpu.MemorySpace.VMEM)


# ----------------------------------------------------------------------------
# Precomputed "same"-padding time-shift operator for the conv taps.
# S[k] is (L*B, L*B) with S[k][r, r'] = 1 iff r' = r + (k*dilation - padding)*B
# and the shifted time index is in range (rows are ordered t*B + b, so a time
# shift is a row shift by a multiple of B; out-of-range rows read zero).
# Built once per (K, dilation, padding, L, B) on the host; suited to the short
# sequences this model uses.
# ----------------------------------------------------------------------------
@functools.lru_cache(maxsize=None)
def _shift_operator(K, dilation, padding, L, B):
    LB = L * B
    S = np.zeros((K, LB, LB), np.float32)
    for k in range(K):
        o = k * dilation - padding
        for t in range(L):
            tp = t + o
            if 0 <= tp < L:
                for b in range(B):
                    S[k, t * B + b, tp * B + b] = 1.0
    return jnp.asarray(S)


# ----------------------------------------------------------------------------
# Fused forward kernel.
# Ref order: x2d, S, [conv_w, conv_b] * n_conv, [wih, whh, bih, bhh] * n_gru,
#            w1, b1, w2, b2, w3_pad, b3_pad, out_slab
# ----------------------------------------------------------------------------
def _dmdnn_fused_kernel(*refs, B, L, n_conv, n_gru, H, G, O):
    idx = 0
    x_ref = refs[idx]; idx += 1
    s_ref = refs[idx]; idx += 1
    conv_refs = []
    for _ in range(n_conv):
        conv_refs.append((refs[idx], refs[idx + 1])); idx += 2
    gru_refs = []
    for _ in range(n_gru):
        gru_refs.append(tuple(refs[idx:idx + 4])); idx += 4
    w1_ref, b1_ref, w2_ref, b2_ref, w3_ref, b3_ref = refs[idx:idx + 6]; idx += 6
    out_ref = refs[idx]

    f32 = jnp.float32
    LB = L * B
    K = s_ref.shape[0]

    # ---- Conv1d ("same") + bias + ReLU per layer (dropout = identity). ----
    act = x_ref[...].astype(f32)                       # (LB, C_in)
    for (w_ref, b_ref) in conv_refs:                   # w: (K, C_in, C_out), b: (1, C_out)
        c_out = w_ref.shape[2]
        y = jnp.zeros((LB, c_out), f32)
        for k in range(K):                             # static tap loop
            shifted = jnp.dot(s_ref[k], act, preferred_element_type=f32)   # time shift
            y = y + jnp.dot(shifted, w_ref[k], preferred_element_type=f32)
        act = jnp.maximum(y + b_ref[...], 0.0)         # (LB, C_out)

    # ---- GRU layers (PyTorch gate order r, z, n), zero initial state. ----
    # Input projection hoisted out of the serial loop; per-gate weights so gate
    # extraction is a leading-axis index; time loop fully unrolled (L static);
    # no per-timestep stores (only the last hidden state is needed downstream).
    h = jnp.zeros((B, H), f32)
    for li, (wih_ref, whh_ref, bih_ref, bhh_ref) in enumerate(gru_refs):
        gx = [jnp.dot(act, wih_ref[g], preferred_element_type=f32) + bih_ref[g]
              for g in range(3)]                       # each (LB, H)
        h = jnp.zeros((B, H), f32)
        need_seq = li < n_gru - 1
        hs = []
        for t in range(L):                             # static, fully unrolled recurrence
            r0 = t * B
            gh_r = jnp.dot(h, whh_ref[0], preferred_element_type=f32) + bhh_ref[0]
            gh_z = jnp.dot(h, whh_ref[1], preferred_element_type=f32) + bhh_ref[1]
            gh_n = jnp.dot(h, whh_ref[2], preferred_element_type=f32) + bhh_ref[2]
            r = jax.nn.sigmoid(gx[0][r0:r0 + B] + gh_r)
            z = jax.nn.sigmoid(gx[1][r0:r0 + B] + gh_z)
            n = jnp.tanh(gx[2][r0:r0 + B] + r * gh_n)
            h = (1.0 - z) * n + z * h
            if need_seq:
                hs.append(h)
        if need_seq:                                   # feed full sequence to next layer
            act = jnp.concatenate(hs, axis=0)          # (LB, H), rows t*B + b

    # ---- Dense(2x ReLU) + linear on the last timestep + fused MDN split. ----
    # TODO(synk): F.dropout in the reference forward runs in training mode; it is
    # treated as identity here for deterministic inference semantics.
    d1 = jnp.maximum(jnp.dot(h, w1_ref[...], preferred_element_type=f32) + b1_ref[...], 0.0)
    d2 = jnp.maximum(jnp.dot(d1, w2_ref[...], preferred_element_type=f32) + b2_ref[...], 0.0)
    hid = jnp.dot(d2, w3_ref[...], preferred_element_type=f32) + b3_ref[...]   # (B, OUT_PAD)

    cols = lax.broadcasted_iota(jnp.int32, hid.shape, 1)
    pi_mask = cols < G
    sig_mask = (cols >= G * (O + 1)) & (cols < G * (2 * O + 1))
    m = jnp.max(jnp.where(pi_mask, hid, -1e30), axis=1, keepdims=True)
    e = jnp.where(pi_mask, jnp.exp(hid - m), 0.0)
    denom = jnp.sum(e, axis=1, keepdims=True)
    pi_vals = e / denom                                # exact divide: sum(pi) == 1 in f32
    sig_vals = jnp.exp(jnp.where(sig_mask, hid, 0.0))
    out = jnp.where(pi_mask, pi_vals, jnp.where(sig_mask, sig_vals, hid))
    out_ref[...] = out.astype(out_ref.dtype)           # single lane-dense store


# ----------------------------------------------------------------------------
# Forward wrapper: one pallas_call, then a trivial split of the output slab.
# ----------------------------------------------------------------------------
def dmdnn_forward(x, params, *, kernel_size, dilation_size, num_Gaussians, num_outputs):
    B, C_in, L = x.shape
    padding = int((kernel_size - 1) * dilation_size / 2)
    # This fused formulation assumes "same" output length (true for odd K).
    assert L + 2 * padding - dilation_size * (kernel_size - 1) == L

    G, O = num_Gaussians, num_outputs
    conv, gru, head = params["conv"], params["gru"], params["head"]
    n_conv, n_gru = len(conv), len(gru)
    H = gru[0][1].shape[1]                              # whh packed (3, H, H)
    out_pad = head[-1].shape[-1]                        # b3_pad (1, OUT_PAD)

    # Only per-call layout op: NCW -> (L*B, C_in) time-major rows (tiny input).
    x2d = jnp.transpose(x, (2, 0, 1)).reshape(L * B, C_in)
    S = _shift_operator(kernel_size, dilation_size, padding, L, B)

    inputs = [x2d, S]
    for (w, b) in conv:
        inputs += [w, b]
    for layer in gru:
        inputs += list(layer)
    inputs += list(head)

    kernel = functools.partial(_dmdnn_fused_kernel, B=B, L=L, n_conv=n_conv,
                               n_gru=n_gru, H=H, G=G, O=O)
    slab = pl.pallas_call(
        kernel,
        out_shape=jax.ShapeDtypeStruct((B, out_pad), jnp.float32),
        in_specs=[VMEM_SPEC] * len(inputs),
        out_specs=VMEM_SPEC,
    )(*inputs)

    pi = slab[:, :G]
    mu = slab[:, G:G * (O + 1)].reshape(B, G, O)
    sigma = slab[:, G * (O + 1):G * (2 * O + 1)].reshape(B, G, O)
    return pi, mu, sigma


# ----------------------------------------------------------------------------
# Deterministic parameter init; all packing/transposes done here (not per call).
# Shapes follow the PyTorch __init__; weight_norm is folded into the effective
# conv weight (forward semantics unchanged).
# ----------------------------------------------------------------------------
def init_params(key, *, num_Gaussians, num_inputs, num_channels, rnn_hidden,
                rnn_layers, num_outputs, h_dim, kernel_size):
    keys = iter(jax.random.split(key, 64))
    params = {}

    # Conv1dNet: weight ~ N(0, 0.01) (init_weights); packed as (K, C_in, C_out).
    conv = []
    in_c = num_inputs
    for out_c in num_channels:
        w = 0.01 * jax.random.normal(next(keys), (out_c, in_c, kernel_size), jnp.float32)
        b = 0.01 * jax.random.normal(next(keys), (out_c,), jnp.float32)
        conv.append((jnp.transpose(w, (2, 1, 0)), b.reshape(1, out_c)))
        in_c = out_c
    params["conv"] = conv

    # GRU: uniform(-1/sqrt(H), 1/sqrt(H)); PyTorch gate order (r, z, n);
    # packed per-gate: wih (3, I, H), whh (3, H, H), biases (3, 1, H).
    gru = []
    bound = 1.0 / float(rnn_hidden) ** 0.5
    in_sz = num_channels[-1]
    for _ in range(rnn_layers):
        wih = jax.random.uniform(next(keys), (3 * rnn_hidden, in_sz), jnp.float32, -bound, bound)
        whh = jax.random.uniform(next(keys), (3 * rnn_hidden, rnn_hidden), jnp.float32, -bound, bound)
        bih = jax.random.uniform(next(keys), (3 * rnn_hidden,), jnp.float32, -bound, bound)
        bhh = jax.random.uniform(next(keys), (3 * rnn_hidden,), jnp.float32, -bound, bound)
        gru.append((jnp.transpose(wih.reshape(3, rnn_hidden, in_sz), (0, 2, 1)),
                    jnp.transpose(whh.reshape(3, rnn_hidden, rnn_hidden), (0, 2, 1)),
                    bih.reshape(3, 1, rnn_hidden),
                    bhh.reshape(3, 1, rnn_hidden)))
        in_sz = rnn_hidden
    params["gru"] = gru

    # Dense (2 layers) + final linear; stored transposed (in, out); final layer
    # zero-padded to a lane-dense multiple of 128 so the kernel's single output
    # store is unmasked.
    out_dim = int(num_Gaussians * (2 * num_outputs + 1))
    out_pad = ((out_dim + 127) // 128) * 128

    def linear_init(k, fan_in, fan_out):
        bnd = 1.0 / float(fan_in) ** 0.5
        kw, kb = jax.random.split(k)
        return (jax.random.uniform(kw, (fan_in, fan_out), jnp.float32, -bnd, bnd),
                jax.random.uniform(kb, (fan_out,), jnp.float32, -bnd, bnd))

    w1, b1 = linear_init(next(keys), rnn_hidden, h_dim)
    w2, b2 = linear_init(next(keys), h_dim, h_dim)
    w3, b3 = linear_init(next(keys), h_dim, out_dim)
    w3p = jnp.zeros((h_dim, out_pad), jnp.float32).at[:, :out_dim].set(w3)
    b3p = jnp.zeros((1, out_pad), jnp.float32).at[:, :out_dim].set(b3)
    params["head"] = (w1, b1.reshape(1, -1), w2, b2.reshape(1, -1), w3p, b3p)
    return params


if __name__ == "__main__":
    # Small shapes consistent with the module's forward.
    B, num_inputs, L = 2, 4, 16
    num_channels = (8, 16)
    rnn_hidden, rnn_layers = 32, 1
    h_dim = 32
    num_Gaussians, num_outputs = 3, 2
    kernel_size, dilation_size, dropout = 3, 1, 0.2

    key = jax.random.PRNGKey(0)
    kx, kp = jax.random.split(key)
    x = jax.random.normal(kx, (B, num_inputs, L), jnp.float32)   # layout: NCW

    params = init_params(
        kp,
        num_Gaussians=num_Gaussians, num_inputs=num_inputs, num_channels=num_channels,
        rnn_hidden=rnn_hidden, rnn_layers=rnn_layers, num_outputs=num_outputs,
        h_dim=h_dim, kernel_size=kernel_size)

    fwd = jax.jit(functools.partial(
        dmdnn_forward,
        kernel_size=kernel_size, dilation_size=dilation_size,
        num_Gaussians=num_Gaussians, num_outputs=num_outputs))

    pi, mu, sigma = fwd(x, params)
    jax.block_until_ready((pi, mu, sigma))

    assert pi.shape == (B, num_Gaussians)
    assert mu.shape == (B, num_Gaussians, num_outputs)
    assert sigma.shape == (B, num_Gaussians, num_outputs)
    assert bool(jnp.allclose(jnp.sum(pi, axis=1), 1.0, atol=1e-3))
    assert bool(jnp.all(sigma > 0.0))
    assert bool(jnp.all(jnp.isfinite(mu)))
    print("KERNEL_OK")
</pallas_src>

<mosaic_0001>
module attributes {stable_mosaic.version = 11 : i64} {
  func.func @_dmdnn_fused_kernel(%arg0: memref<32x4xf32, #tpu.memory_space<vmem>>, %arg1: memref<3x32x32xf32, #tpu.memory_space<vmem>>, %arg2: memref<3x4x8xf32, #tpu.memory_space<vmem>>, %arg3: memref<1x8xf32, #tpu.memory_space<vmem>>, %arg4: memref<3x8x16xf32, #tpu.memory_space<vmem>>, %arg5: memref<1x16xf32, #tpu.memory_space<vmem>>, %arg6: memref<3x16x32xf32, #tpu.memory_space<vmem>>, %arg7: memref<3x32x32xf32, #tpu.memory_space<vmem>>, %arg8: memref<3x1x32xf32, #tpu.memory_space<vmem>>, %arg9: memref<3x1x32xf32, #tpu.memory_space<vmem>>, %arg10: memref<32x32xf32, #tpu.memory_space<vmem>>, %arg11: memref<1x32xf32, #tpu.memory_space<vmem>>, %arg12: memref<32x32xf32, #tpu.memory_space<vmem>>, %arg13: memref<1x32xf32, #tpu.memory_space<vmem>>, %arg14: memref<32x128xf32, #tpu.memory_space<vmem>>, %arg15: memref<1x128xf32, #tpu.memory_space<vmem>>, %arg16: memref<2x128xf32, #tpu.memory_space<vmem>>) attributes {dimension_semantics = [], scalar_prefetch = 0 : i64, scratch_operands = 0 : i64, tpu.core_type = #tpu.core_type<tc>} {
    %c0 = arith.constant 0 : index
    %c0_0 = arith.constant 0 : index
    %0 = vector.load %arg0[%c0, %c0_0] : memref<32x4xf32, #tpu.memory_space<vmem>>, vector<32x4xf32>
    %cst = arith.constant 0.000000e+00 : f32
    %1 = vector.broadcast %cst : f32 to vector<32x8xf32>
    %c0_1 = arith.constant 0 : index
    %c0_2 = arith.constant 0 : index
    %c0_3 = arith.constant 0 : index
    %2 = vector.load %arg1[%c0_1, %c0_2, %c0_3] : memref<3x32x32xf32, #tpu.memory_space<vmem>>, vector<1x32x32xf32>
    %3 = vector.shape_cast %2 : vector<1x32x32xf32> to vector<32x32xf32>
    %cst_4 = arith.constant dense<0.000000e+00> : vector<32x4xf32>
    %4 = tpu.matmul %3, %0, %cst_4 {dimension_numbers = #tpu.dot_dimension_numbers<[1], [0], [0], [1], [0, 0, 1, 1], [], []>} : vector<32x32xf32>, vector<32x4xf32>, vector<32x4xf32> -> vector<32x4xf32>
    %c0_5 = arith.constant 0 : index
    %c0_6 = arith.constant 0 : index
    %c0_7 = arith.constant 0 : index
    %5 = vector.load %arg2[%c0_5, %c0_6, %c0_7] : memref<3x4x8xf32, #tpu.memory_space<vmem>>, vector<1x4x8xf32>
    %6 = vector.shape_cast %5 : vector<1x4x8xf32> to vector<4x8xf32>
    %cst_8 = arith.constant dense<0.000000e+00> : vector<32x8xf32>
    %7 = tpu.matmul %4, %6, %cst_8 {dimension_numbers = #tpu.dot_dimension_numbers<[1], [0], [0], [1], [0, 0, 1, 1], [], []>} : vector<32x4xf32>, vector<4x8xf32>, vector<32x8xf32> -> vector<32x8xf32>
    %8 = arith.addf %1, %7 : vector<32x8xf32>
    %c1 = arith.constant 1 : index
    %c0_9 = arith.constant 0 : index
    %c0_10 = arith.constant 0 : index
    %9 = vector.load %arg1[%c1, %c0_9, %c0_10] : memref<3x32x32xf32, #tpu.memory_space<vmem>>, vector<1x32x32xf32>
    %10 = vector.shape_cast %9 : vector<1x32x32xf32> to vector<32x32xf32>
    %cst_11 = arith.constant dense<0.000000e+00> : vector<32x4xf32>
    %11 = tpu.matmul %10, %0, %cst_11 {dimension_numbers = #tpu.dot_dimension_numbers<[1], [0], [0], [1], [0, 0, 1, 1], [], []>} : vector<32x32xf32>, vector<32x4xf32>, vector<32x4xf32> -> vector<32x4xf32>
    %c1_12 = arith.constant 1 : index
    %c0_13 = arith.constant 0 : index
    %c0_14 = arith.constant 0 : index
    %12 = vector.load %arg2[%c1_12, %c0_13, %c0_14] : memref<3x4x8xf32, #tpu.memory_space<vmem>>, vector<1x4x8xf32>
    %13 = vector.shape_cast %12 : vector<1x4x8xf32> to vector<4x8xf32>
    %cst_15 = arith.constant dense<0.000000e+00> : vector<32x8xf32>
    %14 = tpu.matmul %11, %13, %cst_15 {dimension_numbers = #tpu.dot_dimension_numbers<[1], [0], [0], [1], [0, 0, 1, 1], [], []>} : vector<32x4xf32>, vector<4x8xf32>, vector<32x8xf32> -> vector<32x8xf32>
    %15 = arith.addf %8, %14 : vector<32x8xf32>
    %c2 = arith.constant 2 : index
    %c0_16 = arith.constant 0 : index
    %c0_17 = arith.constant 0 : index
    %16 = vector.load %arg1[%c2, %c0_16, %c0_17] : memref<3x32x32xf32, #tpu.memory_space<vmem>>, vector<1x32x32xf32>
    %17 = vector.shape_cast %16 : vector<1x32x32xf32> to vector<32x32xf32>
    %cst_18 = arith.constant dense<0.000000e+00> : vector<32x4xf32>
    %18 = tpu.matmul %17, %0, %cst_18 {dimension_numbers = #tpu.dot_dimension_numbers<[1], [0], [0], [1], [0, 0, 1, 1], [], []>} : vector<32x32xf32>, vector<32x4xf32>, vector<32x4xf32> -> vector<32x4xf32>
    %c2_19 = arith.constant 2 : index
    %c0_20 = arith.constant 0 : index
    %c0_21 = arith.constant 0 : index
    %19 = vector.load %arg2[%c2_19, %c0_20, %c0_21] : memref<3x4x8xf32, #tpu.memory_space<vmem>>, vector<1x4x8xf32>
    %20 = vector.shape_cast %19 : vector<1x4x8xf32> to vector<4x8xf32>
    %cst_22 = arith.constant dense<0.000000e+00> : vector<32x8xf32>
    %21 = tpu.matmul %18, %20, %cst_22 {dimension_numbers = #tpu.dot_dimension_numbers<[1], [0], [0], [1], [0, 0, 1, 1], [], []>} : vector<32x4xf32>, vector<4x8xf32>, vector<32x8xf32> -> vector<32x8xf32>
    %22 = arith.addf %15, %21 : vector<32x8xf32>
    %c0_23 = arith.constant 0 : index
    %c0_24 = arith.constant 0 : index
    %23 = vector.load %arg3[%c0_23, %c0_24] : memref<1x8xf32, #tpu.memory_space<vmem>>, vector<1x8xf32>
    %24 = vector.broadcast %23 : vector<1x8xf32> to vector<32x8xf32>
    %25 = arith.addf %22, %24 : vector<32x8xf32>
    %cst_25 = arith.constant 0.000000e+00 : f32
    %26 = vector.broadcast %cst_25 : f32 to vector<32x8xf32>
    %27 = arith.maximumf %25, %26 : vector<32x8xf32>
    %cst_26 = arith.constant 0.000000e+00 : f32
    %28 = vector.broadcast %cst_26 : f32 to vector<32x16xf32>
    %c0_27 = arith.constant 0 : index
    %c0_28 = arith.constant 0 : index
    %c0_29 = arith.constant 0 : index
    %29 = vector.load %arg1[%c0_27, %c0_28, %c0_29] : memref<3x32x32xf32, #tpu.memory_space<vmem>>, vector<1x32x32xf32>
    %30 = vector.shape_cast %29 : vector<1x32x32xf32> to vector<32x32xf32>
    %cst_30 = arith.constant dense<0.000000e+00> : vector<32x8xf32>
    %31 = tpu.matmul %30, %27, %cst_30 {dimension_numbers = #tpu.dot_dimension_numbers<[1], [0], [0], [1], [0, 0, 1, 1], [], []>} : vector<32x32xf32>, vector<32x8xf32>, vector<32x8xf32> -> vector<32x8xf32>
    %c0_31 = arith.constant 0 : index
    %c0_32 = arith.constant 0 : index
    %c0_33 = arith.constant 0 : index
    %32 = vector.load %arg4[%c0_31, %c0_32, %c0_33] : memref<3x8x16xf32, #tpu.memory_space<vmem>>, vector<1x8x16xf32>
    %33 = vector.shape_cast %32 : vector<1x8x16xf32> to vector<8x16xf32>
    %cst_34 = arith.constant dense<0.000000e+00> : vector<32x16xf32>
    %34 = tpu.matmul %31, %33, %cst_34 {dimension_numbers = #tpu.dot_dimension_numbers<[1], [0], [0], [1], [0, 0, 1, 1], [], []>} : vector<32x8xf32>, vector<8x16xf32>, vector<32x16xf32> -> vector<32x16xf32>
    %35 = arith.addf %28, %34 : vector<32x16xf32>
    %c1_35 = arith.constant 1 : index
    %c0_36 = arith.constant 0 : index
    %c0_37 = arith.constant 0 : index
    %36 = vector.load %arg1[%c1_35, %c0_36, %c0_37] : memref<3x32x32xf32, #tpu.memory_space<vmem>>, vector<1x32x32xf32>
    %37 = vector.shape_cast %36 : vector<1x32x32xf32> to vector<32x32xf32>
    %cst_38 = arith.constant dense<0.000000e+00> : vector<32x8xf32>
    %38 = tpu.matmul %37, %27, %cst_38 {dimension_numbers = #tpu.dot_dimension_numbers<[1], [0], [0], [1], [0, 0, 1, 1], [], []>} : vector<32x32xf32>, vector<32x8xf32>, vector<32x8xf32> -> vector<32x8xf32>
    %c1_39 = arith.constant 1 : index
    %c0_40 = arith.constant 0 : index
    %c0_41 = arith.constant 0 : index
    %39 = vector.load %arg4[%c1_39, %c0_40, %c0_41] : memref<3x8x16xf32, #tpu.memory_space<vmem>>, vector<1x8x16xf32>
    %40 = vector.shape_cast %39 : vector<1x8x16xf32> to vector<8x16xf32>
    %cst_42 = arith.constant dense<0.000000e+00> : vector<32x16xf32>
    %41 = tpu.matmul %38, %40, %cst_42 {dimension_numbers = #tpu.dot_dimension_numbers<[1], [0], [0], [1], [0, 0, 1, 1], [], []>} : vector<32x8xf32>, vector<8x16xf32>, vector<32x16xf32> -> vector<32x16xf32>
    %42 = arith.addf %35, %41 : vector<32x16xf32>
    %c2_43 = arith.constant 2 : index
    %c0_44 = arith.constant 0 : index
    %c0_45 = arith.constant 0 : index
    %43 = vector.load %arg1[%c2_43, %c0_44, %c0_45] : memref<3x32x32xf32, #tpu.memory_space<vmem>>, vector<1x32x32xf32>
    %44 = vector.shape_cast %43 : vector<1x32x32xf32> to vector<32x32xf32>
    %cst_46 = arith.constant dense<0.000000e+00> : vector<32x8xf32>
    %45 = tpu.matmul %44, %27, %cst_46 {dimension_numbers = #tpu.dot_dimension_numbers<[1], [0], [0], [1], [0, 0, 1, 1], [], []>} : vector<32x32xf32>, vector<32x8xf32>, vector<32x8xf32> -> vector<32x8xf32>
    %c2_47 = arith.constant 2 : index
    %c0_48 = arith.constant 0 : index
    %c0_49 = arith.constant 0 : index
    %46 = vector.load %arg4[%c2_47, %c0_48, %c0_49] : memref<3x8x16xf32, #tpu.memory_space<vmem>>, vector<1x8x16xf32>
    %47 = vector.shape_cast %46 : vector<1x8x16xf32> to vector<8x16xf32>
    %cst_50 = arith.constant dense<0.000000e+00> : vector<32x16xf32>
    %48 = tpu.matmul %45, %47, %cst_50 {dimension_numbers = #tpu.dot_dimension_numbers<[1], [0], [0], [1], [0, 0, 1, 1], [], []>} : vector<32x8xf32>, vector<8x16xf32>, vector<32x16xf32> -> vector<32x16xf32>
    %49 = arith.addf %42, %48 : vector<32x16xf32>
    %c0_51 = arith.constant 0 : index
    %c0_52 = arith.constant 0 : index
    %50 = vector.load %arg5[%c0_51, %c0_52] : memref<1x16xf32, #tpu.memory_space<vmem>>, vector<1x16xf32>
    %51 = vector.broadcast %50 : vector<1x16xf32> to vector<32x16xf32>
    %52 = arith.addf %49, %51 : vector<32x16xf32>
    %cst_53 = arith.constant 0.000000e+00 : f32
    %53 = vector.broadcast %cst_53 : f32 to vector<32x16xf32>
    %54 = arith.maximumf %52, %53 : vector<32x16xf32>
    %c0_54 = arith.constant 0 : index
    %c0_55 = arith.constant 0 : index
    %c0_56 = arith.constant 0 : index
    %55 = vector.load %arg6[%c0_54, %c0_55, %c0_56] : memref<3x16x32xf32, #tpu.memory_space<vmem>>, vector<1x16x32xf32>
    %56 = vector.shape_cast %55 : vector<1x16x32xf32> to vector<16x32xf32>
    %cst_57 = arith.constant dense<0.000000e+00> : vector<32x32xf32>
    %57 = tpu.matmul %54, %56, %cst_57 {dimension_numbers = #tpu.dot_dimension_numbers<[1], [0], [0], [1], [0, 0, 1, 1], [], []>} : vector<32x16xf32>, vector<16x32xf32>, vector<32x32xf32> -> vector<32x32xf32>
    %c0_58 = arith.constant 0 : index
    %c0_59 = arith.constant 0 : index
    %c0_60 = arith.constant 0 : index
    %58 = vector.load %arg8[%c0_58, %c0_59, %c0_60] : memref<3x1x32xf32, #tpu.memory_space<vmem>>, vector<1x1x32xf32>
    %59 = vector.shape_cast %58 : vector<1x1x32xf32> to vector<1x32xf32>
    %60 = vector.broadcast %59 : vector<1x32xf32> to vector<32x32xf32>
    %61 = arith.addf %57, %60 : vector<32x32xf32>
    %c1_61 = arith.constant 1 : index
    %c0_62 = arith.constant 0 : index
    %c0_63 = arith.constant 0 : index
    %62 = vector.load %arg6[%c1_61, %c0_62, %c0_63] : memref<3x16x32xf32, #tpu.memory_space<vmem>>, vector<1x16x32xf32>
    %63 = vector.shape_cast %62 : vector<1x16x32xf32> to vector<16x32xf32>
    %cst_64 = arith.constant dense<0.000000e+00> : vector<32x32xf32>
    %64 = tpu.matmul %54, %63, %cst_64 {dimension_numbers = #tpu.dot_dimension_numbers<[1], [0], [0], [1], [0, 0, 1, 1], [], []>} : vector<32x16xf32>, vector<16x32xf32>, vector<32x32xf32> -> vector<32x32xf32>
    %c1_65 = arith.constant 1 : index
    %c0_66 = arith.constant 0 : index
    %c0_67 = arith.constant 0 : index
    %65 = vector.load %arg8[%c1_65, %c0_66, %c0_67] : memref<3x1x32xf32, #tpu.memory_space<vmem>>, vector<1x1x32xf32>
    %66 = vector.shape_cast %65 : vector<1x1x32xf32> to vector<1x32xf32>
    %67 = vector.broadcast %66 : vector<1x32xf32> to vector<32x32xf32>
    %68 = arith.addf %64, %67 : vector<32x32xf32>
    %c2_68 = arith.constant 2 : index
    %c0_69 = arith.constant 0 : index
    %c0_70 = arith.constant 0 : index
    %69 = vector.load %arg6[%c2_68, %c0_69, %c0_70] : memref<3x16x32xf32, #tpu.memory_space<vmem>>, vector<1x16x32xf32>
    %70 = vector.shape_cast %69 : vector<1x16x32xf32> to vector<16x32xf32>
    %cst_71 = arith.constant dense<0.000000e+00> : vector<32x32xf32>
    %71 = tpu.matmul %54, %70, %cst_71 {dimension_numbers = #tpu.dot_dimension_numbers<[1], [0], [0], [1], [0, 0, 1, 1], [], []>} : vector<32x16xf32>, vector<16x32xf32>, vector<32x32xf32> -> vector<32x32xf32>
    %c2_72 = arith.constant 2 : index
    %c0_73 = arith.constant 0 : index
    %c0_74 = arith.constant 0 : index
    %72 = vector.load %arg8[%c2_72, %c0_73, %c0_74] : memref<3x1x32xf32, #tpu.memory_space<vmem>>, vector<1x1x32xf32>
    %73 = vector.shape_cast %72 : vector<1x1x32xf32> to vector<1x32xf32>
    %74 = vector.broadcast %73 : vector<1x32xf32> to vector<32x32xf32>
    %75 = arith.addf %71, %74 : vector<32x32xf32>
    %cst_75 = arith.constant 0.000000e+00 : f32
    %76 = vector.broadcast %cst_75 : f32 to vector<2x32xf32>
    %c0_76 = arith.constant 0 : index
    %c0_77 = arith.constant 0 : index
    %c0_78 = arith.constant 0 : index
    %77 = vector.load %arg7[%c0_76, %c0_77, %c0_78] : memref<3x32x32xf32, #tpu.memory_space<vmem>>, vector<1x32x32xf32>
    %78 = vector.shape_cast %77 : vector<1x32x32xf32> to vector<32x32xf32>
    %cst_79 = arith.constant dense<0.000000e+00> : vector<2x32xf32>
    %79 = tpu.matmul %76, %78, %cst_79 {dimension_numbers = #tpu.dot_dimension_numbers<[1], [0], [0], [1], [0, 0, 1, 1], [], []>} : vector<2x32xf32>, vector<32x32xf32>, vector<2x32xf32> -> vector<2x32xf32>
    %c0_80 = arith.constant 0 : index
    %c0_81 = arith.constant 0 : index
    %c0_82 = arith.constant 0 : index
    %80 = vector.load %arg9[%c0_80, %c0_81, %c0_82] : memref<3x1x32xf32, #tpu.memory_space<vmem>>, vector<1x1x32xf32>
    %81 = vector.shape_cast %80 : vector<1x1x32xf32> to vector<1x32xf32>
    %82 = vector.broadcast %81 : vector<1x32xf32> to vector<2x32xf32>
    %83 = arith.addf %79, %82 : vector<2x32xf32>
    %c1_83 = arith.constant 1 : index
    %c0_84 = arith.constant 0 : index
    %c0_85 = arith.constant 0 : index
    %84 = vector.load %arg7[%c1_83, %c0_84, %c0_85] : memref<3x32x32xf32, #tpu.memory_space<vmem>>, vector<1x32x32xf32>
    %85 = vector.shape_cast %84 : vector<1x32x32xf32> to vector<32x32xf32>
    %cst_86 = arith.constant dense<0.000000e+00> : vector<2x32xf32>
    %86 = tpu.matmul %76, %85, %cst_86 {dimension_numbers = #tpu.dot_dimension_numbers<[1], [0], [0], [1], [0, 0, 1, 1], [], []>} : vector<2x32xf32>, vector<32x32xf32>, vector<2x32xf32> -> vector<2x32xf32>
    %c1_87 = arith.constant 1 : index
    %c0_88 = arith.constant 0 : index
    %c0_89 = arith.constant 0 : index
    %87 = vector.load %arg9[%c1_87, %c0_88, %c0_89] : memref<3x1x32xf32, #tpu.memory_space<vmem>>, vector<1x1x32xf32>
    %88 = vector.shape_cast %87 : vector<1x1x32xf32> to vector<1x32xf32>
    %89 = vector.broadcast %88 : vector<1x32xf32> to vector<2x32xf32>
    %90 = arith.addf %86, %89 : vector<2x32xf32>
    %c2_90 = arith.constant 2 : index
    %c0_91 = arith.constant 0 : index
    %c0_92 = arith.constant 0 : index
    %91 = vector.load %arg7[%c2_90, %c0_91, %c0_92] : memref<3x32x32xf32, #tpu.memory_space<vmem>>, vector<1x32x32xf32>
    %92 = vector.shape_cast %91 : vector<1x32x32xf32> to vector<32x32xf32>
    %cst_93 = arith.constant dense<0.000000e+00> : vector<2x32xf32>
    %93 = tpu.matmul %76, %92, %cst_93 {dimension_numbers = #tpu.dot_dimension_numbers<[1], [0], [0], [1], [0, 0, 1, 1], [], []>} : vector<2x32xf32>, vector<32x32xf32>, vector<2x32xf32> -> vector<2x32xf32>
    %c2_94 = arith.constant 2 : index
    %c0_95 = arith.constant 0 : index
    %c0_96 = arith.constant 0 : index
    %94 = vector.load %arg9[%c2_94, %c0_95, %c0_96] : memref<3x1x32xf32, #tpu.memory_space<vmem>>, vector<1x1x32xf32>
    %95 = vector.shape_cast %94 : vector<1x1x32xf32> to vector<1x32xf32>
    %96 = vector.broadcast %95 : vector<1x32xf32> to vector<2x32xf32>
    %97 = arith.addf %93, %96 : vector<2x32xf32>
    %98 = vector.extract_strided_slice %61 {offsets = [0, 0], sizes = [2, 32], strides = [1, 1]} : vector<32x32xf32> to vector<2x32xf32>
    %99 = arith.addf %98, %83 : vector<2x32xf32>
    %100 = arith.negf %99 : vector<2x32xf32>
    %101 = math.exp %100 : vector<2x32xf32>
    %cst_97 = arith.constant 1.000000e+00 : f32
    %102 = vector.broadcast %cst_97 : f32 to vector<2x32xf32>
    %103 = arith.addf %102, %101 : vector<2x32xf32>
    %104 = arith.divf %102, %103 : vector<2x32xf32>
    %105 = vector.extract_strided_slice %68 {offsets = [0, 0], sizes = [2, 32], strides = [1, 1]} : vector<32x32xf32> to vector<2x32xf32>
    %106 = arith.addf %105, %90 : vector<2x32xf32>
    %107 = arith.negf %106 : vector<2x32xf32>
    %108 = math.exp %107 : vector<2x32xf32>
    %cst_98 = arith.constant 1.000000e+00 : f32
    %109 = vector.broadcast %cst_98 : f32 to vector<2x32xf32>
    %110 = arith.addf %109, %108 : vector<2x32xf32>
    %111 = arith.divf %109, %110 : vector<2x32xf32>
    %112 = vector.extract_strided_slice %75 {offsets = [0, 0], sizes = [2, 32], strides = [1, 1]} : vector<32x32xf32> to vector<2x32xf32>
    %113 = arith.mulf %104, %97 : vector<2x32xf32>
    %114 = arith.addf %112, %113 : vector<2x32xf32>
    %115 = math.tanh %114 : vector<2x32xf32>
    %cst_99 = arith.constant 1.000000e+00 : f32
    %116 = vector.broadcast %cst_99 : f32 to vector<2x32xf32>
    %117 = arith.subf %116, %111 : vector<2x32xf32>
    %118 = arith.mulf %117, %115 : vector<2x32xf32>
    %119 = arith.mulf %111, %76 : vector<2x32xf32>
    %120 = arith.addf %118, %119 : vector<2x32xf32>
    %c0_100 = arith.constant 0 : index
    %c0_101 = arith.constant 0 : index
    %c0_102 = arith.constant 0 : index
    %121 = vector.load %arg7[%c0_100, %c0_101, %c0_102] : memref<3x32x32xf32, #tpu.memory_space<vmem>>, vector<1x32x32xf32>
    %122 = vector.shape_cast %121 : vector<1x32x32xf32> to vector<32x32xf32>
    %cst_103 = arith.constant dense<0.000000e+00> : vector<2x32xf32>
    %123 = tpu.matmul %120, %122, %cst_103 {dimension_numbers = #tpu.dot_dimension_numbers<[1], [0], [0], [1], [0, 0, 1, 1], [], []>} : vector<2x32xf32>, vector<32x32xf32>, vector<2x32xf32> -> vector<2x32xf32>
    %c0_104 = arith.constant 0 : index
    %c0_105 = arith.constant 0 : index
    %c0_106 = arith.constant 0 : index
    %124 = vector.load %arg9[%c0_104, %c0_105, %c0_106] : memref<3x1x32xf32, #tpu.memory_space<vmem>>, vector<1x1x32xf32>
    %125 = vector.shape_cast %124 : vector<1x1x32xf32> to vector<1x32xf32>
    %126 = vector.broadcast %125 : vector<1x32xf32> to vector<2x32xf32>
    %127 = arith.addf %123, %126 : vector<2x32xf32>
    %c1_107 = arith.constant 1 : index
    %c0_108 = arith.constant 0 : index
    %c0_109 = arith.constant 0 : index
    %128 = vector.load %arg7[%c1_107, %c0_108, %c0_109] : memref<3x32x32xf32, #tpu.memory_space<vmem>>, vector<1x32x32xf32>
    %129 = vector.shape_cast %128 : vector<1x32x32xf32> to vector<32x32xf32>
    %cst_110 = arith.constant dense<0.000000e+00> : vector<2x32xf32>
    %130 = tpu.matmul %120, %129, %cst_110 {dimension_numbers = #tpu.dot_dimension_numbers<[1], [0], [0], [1], [0, 0, 1, 1], [], []>} : vector<2x32xf32>, vector<32x32xf32>, vector<2x32xf32> -> vector<2x32xf32>
    %c1_111 = arith.constant 1 : index
    %c0_112 = arith.constant 0 : index
    %c0_113 = arith.constant 0 : index
    %131 = vector.load %arg9[%c1_111, %c0_112, %c0_113] : memref<3x1x32xf32, #tpu.memory_space<vmem>>, vector<1x1x32xf32>
    %132 = vector.shape_cast %131 : vector<1x1x32xf32> to vector<1x32xf32>
    %133 = vector.broadcast %132 : vector<1x32xf32> to vector<2x32xf32>
    %134 = arith.addf %130, %133 : vector<2x32xf32>
    %c2_114 = arith.constant 2 : index
    %c0_115 = arith.constant 0 : index
    %c0_116 = arith.constant 0 : index
    %135 = vector.load %arg7[%c2_114, %c0_115, %c0_116] : memref<3x32x32xf32, #tpu.memory_space<vmem>>, vector<1x32x32xf32>
    %136 = vector.shape_cast %135 : vector<1x32x32xf32> to vector<32x32xf32>
    %cst_117 = arith.constant dense<0.000000e+00> : vector<2x32xf32>
    %137 = tpu.matmul %120, %136, %cst_117 {dimension_numbers = #tpu.dot_dimension_numbers<[1], [0], [0], [1], [0, 0, 1, 1], [], []>} : vector<2x32xf32>, vector<32x32xf32>, vector<2x32xf32> -> vector<2x32xf32>
    %c2_118 = arith.constant 2 : index
    %c0_119 = arith.constant 0 : index
    %c0_120 = arith.constant 0 : index
    %138 = vector.load %arg9[%c2_118, %c0_119, %c0_120] : memref<3x1x32xf32, #tpu.memory_space<vmem>>, vector<1x1x32xf32>
    %139 = vector.shape_cast %138 : vector<1x1x32xf32> to vector<1x32xf32>
    %140 = vector.broadcast %139 : vector<1x32xf32> to vector<2x32xf32>
    %141 = arith.addf %137, %140 : vector<2x32xf32>
    %142 = vector.extract_strided_slice %61 {offsets = [2, 0], sizes = [2, 32], strides = [1, 1]} : vector<32x32xf32> to vector<2x32xf32>
    %143 = arith.addf %142, %127 : vector<2x32xf32>
    %144 = arith.negf %143 : vector<2x32xf32>
    %145 = math.exp %144 : vector<2x32xf32>
    %cst_121 = arith.constant 1.000000e+00 : f32
    %146 = vector.broadcast %cst_121 : f32 to vector<2x32xf32>
    %147 = arith.addf %146, %145 : vector<2x32xf32>
    %148 = arith.divf %146, %147 : vector<2x32xf32>
    %149 = vector.extract_strided_slice %68 {offsets = [2, 0], sizes = [2, 32], strides = [1, 1]} : vector<32x32xf32> to vector<2x32xf32>
    %150 = arith.addf %149, %134 : vector<2x32xf32>
    %151 = arith.negf %150 : vector<2x32xf32>
    %152 = math.exp %151 : vector<2x32xf32>
    %cst_122 = arith.constant 1.000000e+00 : f32
    %153 = vector.broadcast %cst_122 : f32 to vector<2x32xf32>
    %154 = arith.addf %153, %152 : vector<2x32xf32>
    %155 = arith.divf %153, %154 : vector<2x32xf32>
    %156 = vector.extract_strided_slice %75 {offsets = [2, 0], sizes = [2, 32], strides = [1, 1]} : vector<32x32xf32> to vector<2x32xf32>
    %157 = arith.mulf %148, %141 : vector<2x32xf32>
    %158 = arith.addf %156, %157 : vector<2x32xf32>
    %159 = math.tanh %158 : vector<2x32xf32>
    %cst_123 = arith.constant 1.000000e+00 : f32
    %160 = vector.broadcast %cst_123 : f32 to vector<2x32xf32>
    %161 = arith.subf %160, %155 : vector<2x32xf32>
    %162 = arith.mulf %161, %159 : vector<2x32xf32>
    %163 = arith.mulf %155, %120 : vector<2x32xf32>
    %164 = arith.addf %162, %163 : vector<2x32xf32>
    %c0_124 = arith.constant 0 : index
    %c0_125 = arith.constant 0 : index
    %c0_126 = arith.constant 0 : index
    %165 = vector.load %arg7[%c0_124, %c0_125, %c0_126] : memref<3x32x32xf32, #tpu.memory_space<vmem>>, vector<1x32x32xf32>
    %166 = vector.shape_cast %165 : vector<1x32x32xf32> to vector<32x32xf32>
    %cst_127 = arith.constant dense<0.000000e+00> : vector<2x32xf32>
    %167 = tpu.matmul %164, %166, %cst_127 {dimension_numbers = #tpu.dot_dimension_numbers<[1], [0], [0], [1], [0, 0, 1, 1], [], []>} : vector<2x32xf32>, vector<32x32xf32>, vector<2x32xf32> -> vector<2x32xf32>
    %c0_128 = arith.constant 0 : index
    %c0_129 = arith.constant 0 : index
    %c0_130 = arith.constant 0 : index
    %168 = vector.load %arg9[%c0_128, %c0_129, %c0_130] : memref<3x1x32xf32, #tpu.memory_space<vmem>>, vector<1x1x32xf32>
    %169 = vector.shape_cast %168 : vector<1x1x32xf32> to vector<1x32xf32>
    %170 = vector.broadcast %169 : vector<1x32xf32> to vector<2x32xf32>
    %171 = arith.addf %167, %170 : vector<2x32xf32>
    %c1_131 = arith.constant 1 : index
    %c0_132 = arith.constant 0 : index
    %c0_133 = arith.constant 0 : index
    %172 = vector.load %arg7[%c1_131, %c0_132, %c0_133] : memref<3x32x32xf32, #tpu.memory_space<vmem>>, vector<1x32x32xf32>
    %173 = vector.shape_cast %172 : vector<1x32x32xf32> to vector<32x32xf32>
    %cst_134 = arith.constant dense<0.000000e+00> : vector<2x32xf32>
    %174 = tpu.matmul %164, %173, %cst_134 {dimension_numbers = #tpu.dot_dimension_numbers<[1], [0], [0], [1], [0, 0, 1, 1], [], []>} : vector<2x32xf32>, vector<32x32xf32>, vector<2x32xf32> -> vector<2x32xf32>
    %c1_135 = arith.constant 1 : index
    %c0_136 = arith.constant 0 : index
    %c0_137 = arith.constant 0 : index
    %175 = vector.load %arg9[%c1_135, %c0_136, %c0_137] : memref<3x1x32xf32, #tpu.memory_space<vmem>>, vector<1x1x32xf32>
    %176 = vector.shape_cast %175 : vector<1x1x32xf32> to vector<1x32xf32>
    %177 = vector.broadcast %176 : vector<1x32xf32> to vector<2x32xf32>
    %178 = arith.addf %174, %177 : vector<2x32xf32>
    %c2_138 = arith.constant 2 : index
    %c0_139 = arith.constant 0 : index
    %c0_140 = arith.constant 0 : index
    %179 = vector.load %arg7[%c2_138, %c0_139, %c0_140] : memref<3x32x32xf32, #tpu.memory_space<vmem>>, vector<1x32x32xf32>
    %180 = vector.shape_cast %179 : vector<1x32x32xf32> to vector<32x32xf32>
    %cst_141 = arith.constant dense<0.000000e+00> : vector<2x32xf32>
    %181 = tpu.matmul %164, %180, %cst_141 {dimension_numbers = #tpu.dot_dimension_numbers<[1], [0], [0], [1], [0, 0, 1, 1], [], []>} : vector<2x32xf32>, vector<32x32xf32>, vector<2x32xf32> -> vector<2x32xf32>
    %c2_142 = arith.constant 2 : index
    %c0_143 = arith.constant 0 : index
    %c0_144 = arith.constant 0 : index
    %182 = vector.load %arg9[%c2_142, %c0_143, %c0_144] : memref<3x1x32xf32, #tpu.memory_space<vmem>>, vector<1x1x32xf32>
    %183 = vector.shape_cast %182 : vector<1x1x32xf32> to vector<1x32xf32>
    %184 = vector.broadcast %183 : vector<1x32xf32> to vector<2x32xf32>
    %185 = arith.addf %181, %184 : vector<2x32xf32>
    %186 = vector.extract_strided_slice %61 {offsets = [4, 0], sizes = [2, 32], strides = [1, 1]} : vector<32x32xf32> to vector<2x32xf32>
    %187 = arith.addf %186, %171 : vector<2x32xf32>
    %188 = arith.negf %187 : vector<2x32xf32>
    %189 = math.exp %188 : vector<2x32xf32>
    %cst_145 = arith.constant 1.000000e+00 : f32
    %190 = vector.broadcast %cst_145 : f32 to vector<2x32xf32>
    %191 = arith.addf %190, %189 : vector<2x32xf32>
    %192 = arith.divf %190, %191 : vector<2x32xf32>
    %193 = vector.extract_strided_slice %68 {offsets = [4, 0], sizes = [2, 32], strides = [1, 1]} : vector<32x32xf32> to vector<2x32xf32>
    %194 = arith.addf %193, %178 : vector<2x32xf32>
    %195 = arith.negf %194 : vector<2x32xf32>
    %196 = math.exp %195 : vector<2x32xf32>
    %cst_146 = arith.constant 1.000000e+00 : f32
    %197 = vector.broadcast %cst_146 : f32 to vector<2x32xf32>
    %198 = arith.addf %197, %196 : vector<2x32xf32>
    %199 = arith.divf %197, %198 : vector<2x32xf32>
    %200 = vector.extract_strided_slice %75 {offsets = [4, 0], sizes = [2, 32], strides = [1, 1]} : vector<32x32xf32> to vector<2x32xf32>
    %201 = arith.mulf %192, %185 : vector<2x32xf32>
    %202 = arith.addf %200, %201 : vector<2x32xf32>
    %203 = math.tanh %202 : vector<2x32xf32>
    %cst_147 = arith.constant 1.000000e+00 : f32
    %204 = vector.broadcast %cst_147 : f32 to vector<2x32xf32>
    %205 = arith.subf %204, %199 : vector<2x32xf32>
    %206 = arith.mulf %205, %203 : vector<2x32xf32>
    %207 = arith.mulf %199, %164 : vector<2x32xf32>
    %208 = arith.addf %206, %207 : vector<2x32xf32>
    %c0_148 = arith.constant 0 : index
    %c0_149 = arith.constant 0 : index
    %c0_150 = arith.constant 0 : index
    %209 = vector.load %arg7[%c0_148, %c0_149, %c0_150] : memref<3x32x32xf32, #tpu.memory_space<vmem>>, vector<1x32x32xf32>
    %210 = vector.shape_cast %209 : vector<1x32x32xf32> to vector<32x32xf32>
    %cst_151 = arith.constant dense<0.000000e+00> : vector<2x32xf32>
    %211 = tpu.matmul %208, %210, %cst_151 {dimension_numbers = #tpu.dot_dimension_numbers<[1], [0], [0], [1], [0, 0, 1, 1], [], []>} : vector<2x32xf32>, vector<32x32xf32>, vector<2x32xf32> -> vector<2x32xf32>
    %c0_152 = arith.constant 0 : index
    %c0_153 = arith.constant 0 : index
    %c0_154 = arith.constant 0 : index
    %212 = vector.load %arg9[%c0_152, %c0_153, %c0_154] : memref<3x1x32xf32, #tpu.memory_space<vmem>>, vector<1x1x32xf32>
    %213 = vector.shape_cast %212 : vector<1x1x32xf32> to vector<1x32xf32>
    %214 = vector.broadcast %213 : vector<1x32xf32> to vector<2x32xf32>
    %215 = arith.addf %211, %214 : vector<2x32xf32>
    %c1_155 = arith.constant 1 : index
    %c0_156 = arith.constant 0 : index
    %c0_157 = arith.constant 0 : index
    %216 = vector.load %arg7[%c1_155, %c0_156, %c0_157] : memref<3x32x32xf32, #tpu.memory_space<vmem>>, vector<1x32x32xf32>
    %217 = vector.shape_cast %216 : vector<1x32x32xf32> to vector<32x32xf32>
    %cst_158 = arith.constant dense<0.000000e+00> : vector<2x32xf32>
    %218 = tpu.matmul %208, %217, %cst_158 {dimension_numbers = #tpu.dot_dimension_numbers<[1], [0], [0], [1], [0, 0, 1, 1], [], []>} : vector<2x32xf32>, vector<32x32xf32>, vector<2x32xf32> -> vector<2x32xf32>
    %c1_159 = arith.constant 1 : index
    %c0_160 = arith.constant 0 : index
    %c0_161 = arith.constant 0 : index
    %219 = vector.load %arg9[%c1_159, %c0_160, %c0_161] : memref<3x1x32xf32, #tpu.memory_space<vmem>>, vector<1x1x32xf32>
    %220 = vector.shape_cast %219 : vector<1x1x32xf32> to vector<1x32xf32>
    %221 = vector.broadcast %220 : vector<1x32xf32> to vector<2x32xf32>
    %222 = arith.addf %218, %221 : vector<2x32xf32>
    %c2_162 = arith.constant 2 : index
    %c0_163 = arith.constant 0 : index
    %c0_164 = arith.constant 0 : index
    %223 = vector.load %arg7[%c2_162, %c0_163, %c0_164] : memref<3x32x32xf32, #tpu.memory_space<vmem>>, vector<1x32x32xf32>
    %224 = vector.shape_cast %223 : vector<1x32x32xf32> to vector<32x32xf32>
    %cst_165 = arith.constant dense<0.000000e+00> : vector<2x32xf32>
    %225 = tpu.matmul %208, %224, %cst_165 {dimension_numbers = #tpu.dot_dimension_numbers<[1], [0], [0], [1], [0, 0, 1, 1], [], []>} : vector<2x32xf32>, vector<32x32xf32>, vector<2x32xf32> -> vector<2x32xf32>
    %c2_166 = arith.constant 2 : index
    %c0_167 = arith.constant 0 : index
    %c0_168 = arith.constant 0 : index
    %226 = vector.load %arg9[%c2_166, %c0_167, %c0_168] : memref<3x1x32xf32, #tpu.memory_space<vmem>>, vector<1x1x32xf32>
    %227 = vector.shape_cast %226 : vector<1x1x32xf32> to vector<1x32xf32>
    %228 = vector.broadcast %227 : vector<1x32xf32> to vector<2x32xf32>
    %229 = arith.addf %225, %228 : vector<2x32xf32>
    %230 = vector.extract_strided_slice %61 {offsets = [6, 0], sizes = [2, 32], strides = [1, 1]} : vector<32x32xf32> to vector<2x32xf32>
    %231 = arith.addf %230, %215 : vector<2x32xf32>
    %232 = arith.negf %231 : vector<2x32xf32>
    %233 = math.exp %232 : vector<2x32xf32>
    %cst_169 = arith.constant 1.000000e+00 : f32
    %234 = vector.broadcast %cst_169 : f32 to vector<2x32xf32>
    %235 = arith.addf %234, %233 : vector<2x32xf32>
    %236 = arith.divf %234, %235 : vector<2x32xf32>
    %237 = vector.extract_strided_slice %68 {offsets = [6, 0], sizes = [2, 32], strides = [1, 1]} : vector<32x32xf32> to vector<2x32xf32>
    %238 = arith.addf %237, %222 : vector<2x32xf32>
    %239 = arith.negf %238 : vector<2x32xf32>
    %240 = math.exp %239 : vector<2x32xf32>
    %cst_170 = arith.constant 1.000000e+00 : f32
    %241 = vector.broadcast %cst_170 : f32 to vector<2x32xf32>
    %242 = arith.addf %241, %240 : vector<2x32xf32>
    %243 = arith.divf %241, %242 : vector<2x32xf32>
    %244 = vector.extract_strided_slice %75 {offsets = [6, 0], sizes = [2, 32], strides = [1, 1]} : vector<32x32xf32> to vector<2x32xf32>
    %245 = arith.mulf %236, %229 : vector<2x32xf32>
    %246 = arith.addf %244, %245 : vector<2x32xf32>
    %247 = math.tanh %246 : vector<2x32xf32>
    %cst_171 = arith.constant 1.000000e+00 : f32
    %248 = vector.broadcast %cst_171 : f32 to vector<2x32xf32>
    %249 = arith.subf %248, %243 : vector<2x32xf32>
    %250 = arith.mulf %249, %247 : vector<2x32xf32>
    %251 = arith.mulf %243, %208 : vector<2x32xf32>
    %252 = arith.addf %250, %251 : vector<2x32xf32>
    %c0_172 = arith.constant 0 : index
    %c0_173 = arith.constant 0 : index
    %c0_174 = arith.constant 0 : index
    %253 = vector.load %arg7[%c0_172, %c0_173, %c0_174] : memref<3x32x32xf32, #tpu.memory_space<vmem>>, vector<1x32x32xf32>
    %254 = vector.shape_cast %253 : vector<1x32x32xf32> to vector<32x32xf32>
    %cst_175 = arith.constant dense<0.000000e+00> : vector<2x32xf32>
    %255 = tpu.matmul %252, %254, %cst_175 {dimension_numbers = #tpu.dot_dimension_numbers<[1], [0], [0], [1], [0, 0, 1, 1], [], []>} : vector<2x32xf32>, vector<32x32xf32>, vector<2x32xf32> -> vector<2x32xf32>
    %c0_176 = arith.constant 0 : index
    %c0_177 = arith.constant 0 : index
    %c0_178 = arith.constant 0 : index
    %256 = vector.load %arg9[%c0_176, %c0_177, %c0_178] : memref<3x1x32xf32, #tpu.memory_space<vmem>>, vector<1x1x32xf32>
    %257 = vector.shape_cast %256 : vector<1x1x32xf32> to vector<1x32xf32>
    %258 = vector.broadcast %257 : vector<1x32xf32> to vector<2x32xf32>
    %259 = arith.addf %255, %258 : vector<2x32xf32>
    %c1_179 = arith.constant 1 : index
    %c0_180 = arith.constant 0 : index
    %c0_181 = arith.constant 0 : index
    %260 = vector.load %arg7[%c1_179, %c0_180, %c0_181] : memref<3x32x32xf32, #tpu.memory_space<vmem>>, vector<1x32x32xf32>
    %261 = vector.shape_cast %260 : vector<1x32x32xf32> to vector<32x32xf32>
    %cst_182 = arith.constant dense<0.000000e+00> : vector<2x32xf32>
    %262 = tpu.matmul %252, %261, %cst_182 {dimension_numbers = #tpu.dot_dimension_numbers<[1], [0], [0], [1], [0, 0, 1, 1], [], []>} : vector<2x32xf32>, vector<32x32xf32>, vector<2x32xf32> -> vector<2x32xf32>
    %c1_183 = arith.constant 1 : index
    %c0_184 = arith.constant 0 : index
    %c0_185 = arith.constant 0 : index
    %263 = vector.load %arg9[%c1_183, %c0_184, %c0_185] : memref<3x1x32xf32, #tpu.memory_space<vmem>>, vector<1x1x32xf32>
    %264 = vector.shape_cast %263 : vector<1x1x32xf32> to vector<1x32xf32>
    %265 = vector.broadcast %264 : vector<1x32xf32> to vector<2x32xf32>
    %266 = arith.addf %262, %265 : vector<2x32xf32>
    %c2_186 = arith.constant 2 : index
    %c0_187 = arith.constant 0 : index
    %c0_188 = arith.constant 0 : index
    %267 = vector.load %arg7[%c2_186, %c0_187, %c0_188] : memref<3x32x32xf32, #tpu.memory_space<vmem>>, vector<1x32x32xf32>
    %268 = vector.shape_cast %267 : vector<1x32x32xf32> to vector<32x32xf32>
    %cst_189 = arith.constant dense<0.000000e+00> : vector<2x32xf32>
    %269 = tpu.matmul %252, %268, %cst_189 {dimension_numbers = #tpu.dot_dimension_numbers<[1], [0], [0], [1], [0, 0, 1, 1], [], []>} : vector<2x32xf32>, vector<32x32xf32>, vector<2x32xf32> -> vector<2x32xf32>
    %c2_190 = arith.constant 2 : index
    %c0_191 = arith.constant 0 : index
    %c0_192 = arith.constant 0 : index
    %270 = vector.load %arg9[%c2_190, %c0_191, %c0_192] : memref<3x1x32xf32, #tpu.memory_space<vmem>>, vector<1x1x32xf32>
    %271 = vector.shape_cast %270 : vector<1x1x32xf32> to vector<1x32xf32>
    %272 = vector.broadcast %271 : vector<1x32xf32> to vector<2x32xf32>
    %273 = arith.addf %269, %272 : vector<2x32xf32>
    %274 = vector.extract_strided_slice %61 {offsets = [8, 0], sizes = [2, 32], strides = [1, 1]} : vector<32x32xf32> to vector<2x32xf32>
    %275 = arith.addf %274, %259 : vector<2x32xf32>
    %276 = arith.negf %275 : vector<2x32xf32>
    %277 = math.exp %276 : vector<2x32xf32>
    %cst_193 = arith.constant 1.000000e+00 : f32
    %278 = vector.broadcast %cst_193 : f32 to vector<2x32xf32>
    %279 = arith.addf %278, %277 : vector<2x32xf32>
    %280 = arith.divf %278, %279 : vector<2x32xf32>
    %281 = vector.extract_strided_slice %68 {offsets = [8, 0], sizes = [2, 32], strides = [1, 1]} : vector<32x32xf32> to vector<2x32xf32>
    %282 = arith.addf %281, %266 : vector<2x32xf32>
    %283 = arith.negf %282 : vector<2x32xf32>
    %284 = math.exp %283 : vector<2x32xf32>
    %cst_194 = arith.constant 1.000000e+00 : f32
    %285 = vector.broadcast %cst_194 : f32 to vector<2x32xf32>
    %286 = arith.addf %285, %284 : vector<2x32xf32>
    %287 = arith.divf %285, %286 : vector<2x32xf32>
    %288 = vector.extract_strided_slice %75 {offsets = [8, 0], sizes = [2, 32], strides = [1, 1]} : vector<32x32xf32> to vector<2x32xf32>
    %289 = arith.mulf %280, %273 : vector<2x32xf32>
    %290 = arith.addf %288, %289 : vector<2x32xf32>
    %291 = math.tanh %290 : vector<2x32xf32>
    %cst_195 = arith.constant 1.000000e+00 : f32
    %292 = vector.broadcast %cst_195 : f32 to vector<2x32xf32>
    %293 = arith.subf %292, %287 : vector<2x32xf32>
    %294 = arith.mulf %293, %291 : vector<2x32xf32>
    %295 = arith.mulf %287, %252 : vector<2x32xf32>
    %296 = arith.addf %294, %295 : vector<2x32xf32>
    %c0_196 = arith.constant 0 : index
    %c0_197 = arith.constant 0 : index
    %c0_198 = arith.constant 0 : index
    %297 = vector.load %arg7[%c0_196, %c0_197, %c0_198] : memref<3x32x32xf32, #tpu.memory_space<vmem>>, vector<1x32x32xf32>
    %298 = vector.shape_cast %297 : vector<1x32x32xf32> to vector<32x32xf32>
    %cst_199 = arith.constant dense<0.000000e+00> : vector<2x32xf32>
    %299 = tpu.matmul %296, %298, %cst_199 {dimension_numbers = #tpu.dot_dimension_numbers<[1], [0], [0], [1], [0, 0, 1, 1], [], []>} : vector<2x32xf32>, vector<32x32xf32>, vector<2x32xf32> -> vector<2x32xf32>
    %c0_200 = arith.constant 0 : index
    %c0_201 = arith.constant 0 : index
    %c0_202 = arith.constant 0 : index
    %300 = vector.load %arg9[%c0_200, %c0_201, %c0_202] : memref<3x1x32xf32, #tpu.memory_space<vmem>>, vector<1x1x32xf32>
    %301 = vector.shape_cast %300 : vector<1x1x32xf32> to vector<1x32xf32>
    %302 = vector.broadcast %301 : vector<1x32xf32> to vector<2x32xf32>
    %303 = arith.addf %299, %302 : vector<2x32xf32>
    %c1_203 = arith.constant 1 : index
    %c0_204 = arith.constant 0 : index
    %c0_205 = arith.constant 0 : index
    %304 = vector.load %arg7[%c1_203, %c0_204, %c0_205] : memref<3x32x32xf32, #tpu.memory_space<vmem>>, vector<1x32x32xf32>
    %305 = vector.shape_cast %304 : vector<1x32x32xf32> to vector<32x32xf32>
    %cst_206 = arith.constant dense<0.000000e+00> : vector<2x32xf32>
    %306 = tpu.matmul %296, %305, %cst_206 {dimension_numbers = #tpu.dot_dimension_numbers<[1], [0], [0], [1], [0, 0, 1, 1], [], []>} : vector<2x32xf32>, vector<32x32xf32>, vector<2x32xf32> -> vector<2x32xf32>
    %c1_207 = arith.constant 1 : index
    %c0_208 = arith.constant 0 : index
    %c0_209 = arith.constant 0 : index
    %307 = vector.load %arg9[%c1_207, %c0_208, %c0_209] : memref<3x1x32xf32, #tpu.memory_space<vmem>>, vector<1x1x32xf32>
    %308 = vector.shape_cast %307 : vector<1x1x32xf32> to vector<1x32xf32>
    %309 = vector.broadcast %308 : vector<1x32xf32> to vector<2x32xf32>
    %310 = arith.addf %306, %309 : vector<2x32xf32>
    %c2_210 = arith.constant 2 : index
    %c0_211 = arith.constant 0 : index
    %c0_212 = arith.constant 0 : index
    %311 = vector.load %arg7[%c2_210, %c0_211, %c0_212] : memref<3x32x32xf32, #tpu.memory_space<vmem>>, vector<1x32x32xf32>
    %312 = vector.shape_cast %311 : vector<1x32x32xf32> to vector<32x32xf32>
    %cst_213 = arith.constant dense<0.000000e+00> : vector<2x32xf32>
    %313 = tpu.matmul %296, %312, %cst_213 {dimension_numbers = #tpu.dot_dimension_numbers<[1], [0], [0], [1], [0, 0, 1, 1], [], []>} : vector<2x32xf32>, vector<32x32xf32>, vector<2x32xf32> -> vector<2x32xf32>
    %c2_214 = arith.constant 2 : index
    %c0_215 = arith.constant 0 : index
    %c0_216 = arith.constant 0 : index
    %314 = vector.load %arg9[%c2_214, %c0_215, %c0_216] : memref<3x1x32xf32, #tpu.memory_space<vmem>>, vector<1x1x32xf32>
    %315 = vector.shape_cast %314 : vector<1x1x32xf32> to vector<1x32xf32>
    %316 = vector.broadcast %315 : vector<1x32xf32> to vector<2x32xf32>
    %317 = arith.addf %313, %316 : vector<2x32xf32>
    %318 = vector.extract_strided_slice %61 {offsets = [10, 0], sizes = [2, 32], strides = [1, 1]} : vector<32x32xf32> to vector<2x32xf32>
    %319 = arith.addf %318, %303 : vector<2x32xf32>
    %320 = arith.negf %319 : vector<2x32xf32>
    %321 = math.exp %320 : vector<2x32xf32>
    %cst_217 = arith.constant 1.000000e+00 : f32
    %322 = vector.broadcast %cst_217 : f32 to vector<2x32xf32>
    %323 = arith.addf %322, %321 : vector<2x32xf32>
    %324 = arith.divf %322, %323 : vector<2x32xf32>
    %325 = vector.extract_strided_slice %68 {offsets = [10, 0], sizes = [2, 32], strides = [1, 1]} : vector<32x32xf32> to vector<2x32xf32>
    %326 = arith.addf %325, %310 : vector<2x32xf32>
    %327 = arith.negf %326 : vector<2x32xf32>
    %328 = math.exp %327 : vector<2x32xf32>
    %cst_218 = arith.constant 1.000000e+00 : f32
    %329 = vector.broadcast %cst_218 : f32 to vector<2x32xf32>
    %330 = arith.addf %329, %328 : vector<2x32xf32>
    %331 = arith.divf %329, %330 : vector<2x32xf32>
    %332 = vector.extract_strided_slice %75 {offsets = [10, 0], sizes = [2, 32], strides = [1, 1]} : vector<32x32xf32> to vector<2x32xf32>
    %333 = arith.mulf %324, %317 : vector<2x32xf32>
    %334 = arith.addf %332, %333 : vector<2x32xf32>
    %335 = math.tanh %334 : vector<2x32xf32>
    %cst_219 = arith.constant 1.000000e+00 : f32
    %336 = vector.broadcast %cst_219 : f32 to vector<2x32xf32>
    %337 = arith.subf %336, %331 : vector<2x32xf32>
    %338 = arith.mulf %337, %335 : vector<2x32xf32>
    %339 = arith.mulf %331, %296 : vector<2x32xf32>
    %340 = arith.addf %338, %339 : vector<2x32xf32>
    %c0_220 = arith.constant 0 : index
    %c0_221 = arith.constant 0 : index
    %c0_222 = arith.constant 0 : index
    %341 = vector.load %arg7[%c0_220, %c0_221, %c0_222] : memref<3x32x32xf32, #tpu.memory_space<vmem>>, vector<1x32x32xf32>
    %342 = vector.shape_cast %341 : vector<1x32x32xf32> to vector<32x32xf32>
    %cst_223 = arith.constant dense<0.000000e+00> : vector<2x32xf32>
    %343 = tpu.matmul %340, %342, %cst_223 {dimension_numbers = #tpu.dot_dimension_numbers<[1], [0], [0], [1], [0, 0, 1, 1], [], []>} : vector<2x32xf32>, vector<32x32xf32>, vector<2x32xf32> -> vector<2x32xf32>
    %c0_224 = arith.constant 0 : index
    %c0_225 = arith.constant 0 : index
    %c0_226 = arith.constant 0 : index
    %344 = vector.load %arg9[%c0_224, %c0_225, %c0_226] : memref<3x1x32xf32, #tpu.memory_space<vmem>>, vector<1x1x32xf32>
    %345 = vector.shape_cast %344 : vector<1x1x32xf32> to vector<1x32xf32>
    %346 = vector.broadcast %345 : vector<1x32xf32> to vector<2x32xf32>
    %347 = arith.addf %343, %346 : vector<2x32xf32>
    %c1_227 = arith.constant 1 : index
    %c0_228 = arith.constant 0 : index
    %c0_229 = arith.constant 0 : index
    %348 = vector.load %arg7[%c1_227, %c0_228, %c0_229] : memref<3x32x32xf32, #tpu.memory_space<vmem>>, vector<1x32x32xf32>
    %349 = vector.shape_cast %348 : vector<1x32x32xf32> to vector<32x32xf32>
    %cst_230 = arith.constant dense<0.000000e+00> : vector<2x32xf32>
    %350 = tpu.matmul %340, %349, %cst_230 {dimension_numbers = #tpu.dot_dimension_numbers<[1], [0], [0], [1], [0, 0, 1, 1], [], []>} : vector<2x32xf32>, vector<32x32xf32>, vector<2x32xf32> -> vector<2x32xf32>
    %c1_231 = arith.constant 1 : index
    %c0_232 = arith.constant 0 : index
    %c0_233 = arith.constant 0 : index
    %351 = vector.load %arg9[%c1_231, %c0_232, %c0_233] : memref<3x1x32xf32, #tpu.memory_space<vmem>>, vector<1x1x32xf32>
    %352 = vector.shape_cast %351 : vector<1x1x32xf32> to vector<1x32xf32>
    %353 = vector.broadcast %352 : vector<1x32xf32> to vector<2x32xf32>
    %354 = arith.addf %350, %353 : vector<2x32xf32>
    %c2_234 = arith.constant 2 : index
    %c0_235 = arith.constant 0 : index
    %c0_236 = arith.constant 0 : index
    %355 = vector.load %arg7[%c2_234, %c0_235, %c0_236] : memref<3x32x32xf32, #tpu.memory_space<vmem>>, vector<1x32x32xf32>
    %356 = vector.shape_cast %355 : vector<1x32x32xf32> to vector<32x32xf32>
    %cst_237 = arith.constant dense<0.000000e+00> : vector<2x32xf32>
    %357 = tpu.matmul %340, %356, %cst_237 {dimension_numbers = #tpu.dot_dimension_numbers<[1], [0], [0], [1], [0, 0, 1, 1], [], []>} : vector<2x32xf32>, vector<32x32xf32>, vector<2x32xf32> -> vector<2x32xf32>
    %c2_238 = arith.constant 2 : index
    %c0_239 = arith.constant 0 : index
    %c0_240 = arith.constant 0 : index
    %358 = vector.load %arg9[%c2_238, %c0_239, %c0_240] : memref<3x1x32xf32, #tpu.memory_space<vmem>>, vector<1x1x32xf32>
    %359 = vector.shape_cast %358 : vector<1x1x32xf32> to vector<1x32xf32>
    %360 = vector.broadcast %359 : vector<1x32xf32> to vector<2x32xf32>
    %361 = arith.addf %357, %360 : vector<2x32xf32>
    %362 = vector.extract_strided_slice %61 {offsets = [12, 0], sizes = [2, 32], strides = [1, 1]} : vector<32x32xf32> to vector<2x32xf32>
    %363 = arith.addf %362, %347 : vector<2x32xf32>
    %364 = arith.negf %363 : vector<2x32xf32>
    %365 = math.exp %364 : vector<2x32xf32>
    %cst_241 = arith.constant 1.000000e+00 : f32
    %366 = vector.broadcast %cst_241 : f32 to vector<2x32xf32>
    %367 = arith.addf %366, %365 : vector<2x32xf32>
    %368 = arith.divf %366, %367 : vector<2x32xf32>
    %369 = vector.extract_strided_slice %68 {offsets = [12, 0], sizes = [2, 32], strides = [1, 1]} : vector<32x32xf32> to vector<2x32xf32>
    %370 = arith.addf %369, %354 : vector<2x32xf32>
    %371 = arith.negf %370 : vector<2x32xf32>
    %372 = math.exp %371 : vector<2x32xf32>
    %cst_242 = arith.constant 1.000000e+00 : f32
    %373 = vector.broadcast %cst_242 : f32 to vector<2x32xf32>
    %374 = arith.addf %373, %372 : vector<2x32xf32>
    %375 = arith.divf %373, %374 : vector<2x32xf32>
    %376 = vector.extract_strided_slice %75 {offsets = [12, 0], sizes = [2, 32], strides = [1, 1]} : vector<32x32xf32> to vector<2x32xf32>
    %377 = arith.mulf %368, %361 : vector<2x32xf32>
    %378 = arith.addf %376, %377 : vector<2x32xf32>
    %379 = math.tanh %378 : vector<2x32xf32>
    %cst_243 = arith.constant 1.000000e+00 : f32
    %380 = vector.broadcast %cst_243 : f32 to vector<2x32xf32>
    %381 = arith.subf %380, %375 : vector<2x32xf32>
    %382 = arith.mulf %381, %379 : vector<2x32xf32>
    %383 = arith.mulf %375, %340 : vector<2x32xf32>
    %384 = arith.addf %382, %383 : vector<2x32xf32>
    %c0_244 = arith.constant 0 : index
    %c0_245 = arith.constant 0 : index
    %c0_246 = arith.constant 0 : index
    %385 = vector.load %arg7[%c0_244, %c0_245, %c0_246] : memref<3x32x32xf32, #tpu.memory_space<vmem>>, vector<1x32x32xf32>
    %386 = vector.shape_cast %385 : vector<1x32x32xf32> to vector<32x32xf32>
    %cst_247 = arith.constant dense<0.000000e+00> : vector<2x32xf32>
    %387 = tpu.matmul %384, %386, %cst_247 {dimension_numbers = #tpu.dot_dimension_numbers<[1], [0], [0], [1], [0, 0, 1, 1], [], []>} : vector<2x32xf32>, vector<32x32xf32>, vector<2x32xf32> -> vector<2x32xf32>
    %c0_248 = arith.constant 0 : index
    %c0_249 = arith.constant 0 : index
    %c0_250 = arith.constant 0 : index
    %388 = vector.load %arg9[%c0_248, %c0_249, %c0_250] : memref<3x1x32xf32, #tpu.memory_space<vmem>>, vector<1x1x32xf32>
    %389 = vector.shape_cast %388 : vector<1x1x32xf32> to vector<1x32xf32>
    %390 = vector.broadcast %389 : vector<1x32xf32> to vector<2x32xf32>
    %391 = arith.addf %387, %390 : vector<2x32xf32>
    %c1_251 = arith.constant 1 : index
    %c0_252 = arith.constant 0 : index
    %c0_253 = arith.constant 0 : index
    %392 = vector.load %arg7[%c1_251, %c0_252, %c0_253] : memref<3x32x32xf32, #tpu.memory_space<vmem>>, vector<1x32x32xf32>
    %393 = vector.shape_cast %392 : vector<1x32x32xf32> to vector<32x32xf32>
    %cst_254 = arith.constant dense<0.000000e+00> : vector<2x32xf32>
    %394 = tpu.matmul %384, %393, %cst_254 {dimension_numbers = #tpu.dot_dimension_numbers<[1], [0], [0], [1], [0, 0, 1, 1], [], []>} : vector<2x32xf32>, vector<32x32xf32>, vector<2x32xf32> -> vector<2x32xf32>
    %c1_255 = arith.constant 1 : index
    %c0_256 = arith.constant 0 : index
    %c0_257 = arith.constant 0 : index
    %395 = vector.load %arg9[%c1_255, %c0_256, %c0_257] : memref<3x1x32xf32, #tpu.memory_space<vmem>>, vector<1x1x32xf32>
    %396 = vector.shape_cast %395 : vector<1x1x32xf32> to vector<1x32xf32>
    %397 = vector.broadcast %396 : vector<1x32xf32> to vector<2x32xf32>
    %398 = arith.addf %394, %397 : vector<2x32xf32>
    %c2_258 = arith.constant 2 : index
    %c0_259 = arith.constant 0 : index
    %c0_260 = arith.constant 0 : index
    %399 = vector.load %arg7[%c2_258, %c0_259, %c0_260] : memref<3x32x32xf32, #tpu.memory_space<vmem>>, vector<1x32x32xf32>
    %400 = vector.shape_cast %399 : vector<1x32x32xf32> to vector<32x32xf32>
    %cst_261 = arith.constant dense<0.000000e+00> : vector<2x32xf32>
    %401 = tpu.matmul %384, %400, %cst_261 {dimension_numbers = #tpu.dot_dimension_numbers<[1], [0], [0], [1], [0, 0, 1, 1], [], []>} : vector<2x32xf32>, vector<32x32xf32>, vector<2x32xf32> -> vector<2x32xf32>
    %c2_262 = arith.constant 2 : index
    %c0_263 = arith.constant 0 : index
    %c0_264 = arith.constant 0 : index
    %402 = vector.load %arg9[%c2_262, %c0_263, %c0_264] : memref<3x1x32xf32, #tpu.memory_space<vmem>>, vector<1x1x32xf32>
    %403 = vector.shape_cast %402 : vector<1x1x32xf32> to vector<1x32xf32>
    %404 = vector.broadcast %403 : vector<1x32xf32> to vector<2x32xf32>
    %405 = arith.addf %401, %404 : vector<2x32xf32>
    %406 = vector.extract_strided_slice %61 {offsets = [14, 0], sizes = [2, 32], strides = [1, 1]} : vector<32x32xf32> to vector<2x32xf32>
    %407 = arith.addf %406, %391 : vector<2x32xf32>
    %408 = arith.negf %407 : vector<2x32xf32>
    %409 = math.exp %408 : vector<2x32xf32>
    %cst_265 = arith.constant 1.000000e+00 : f32
    %410 = vector.broadcast %cst_265 : f32 to vector<2x32xf32>
    %411 = arith.addf %410, %409 : vector<2x32xf32>
    %412 = arith.divf %410, %411 : vector<2x32xf32>
    %413 = vector.extract_strided_slice %68 {offsets = [14, 0], sizes = [2, 32], strides = [1, 1]} : vector<32x32xf32> to vector<2x32xf32>
    %414 = arith.addf %413, %398 : vector<2x32xf32>
    %415 = arith.negf %414 : vector<2x32xf32>
    %416 = math.exp %415 : vector<2x32xf32>
    %cst_266 = arith.constant 1.000000e+00 : f32
    %417 = vector.broadcast %cst_266 : f32 to vector<2x32xf32>
    %418 = arith.addf %417, %416 : vector<2x32xf32>
    %419 = arith.divf %417, %418 : vector<2x32xf32>
    %420 = vector.extract_strided_slice %75 {offsets = [14, 0], sizes = [2, 32], strides = [1, 1]} : vector<32x32xf32> to vector<2x32xf32>
    %421 = arith.mulf %412, %405 : vector<2x32xf32>
    %422 = arith.addf %420, %421 : vector<2x32xf32>
    %423 = math.tanh %422 : vector<2x32xf32>
    %cst_267 = arith.constant 1.000000e+00 : f32
    %424 = vector.broadcast %cst_267 : f32 to vector<2x32xf32>
    %425 = arith.subf %424, %419 : vector<2x32xf32>
    %426 = arith.mulf %425, %423 : vector<2x32xf32>
    %427 = arith.mulf %419, %384 : vector<2x32xf32>
    %428 = arith.addf %426, %427 : vector<2x32xf32>
    %c0_268 = arith.constant 0 : index
    %c0_269 = arith.constant 0 : index
    %c0_270 = arith.constant 0 : index
    %429 = vector.load %arg7[%c0_268, %c0_269, %c0_270] : memref<3x32x32xf32, #tpu.memory_space<vmem>>, vector<1x32x32xf32>
    %430 = vector.shape_cast %429 : vector<1x32x32xf32> to vector<32x32xf32>
    %cst_271 = arith.constant dense<0.000000e+00> : vector<2x32xf32>
    %431 = tpu.matmul %428, %430, %cst_271 {dimension_numbers = #tpu.dot_dimension_numbers<[1], [0], [0], [1], [0, 0, 1, 1], [], []>} : vector<2x32xf32>, vector<32x32xf32>, vector<2x32xf32> -> vector<2x32xf32>
    %c0_272 = arith.constant 0 : index
    %c0_273 = arith.constant 0 : index
    %c0_274 = arith.constant 0 : index
    %432 = vector.load %arg9[%c0_272, %c0_273, %c0_274] : memref<3x1x32xf32, #tpu.memory_space<vmem>>, vector<1x1x32xf32>
    %433 = vector.shape_cast %432 : vector<1x1x32xf32> to vector<1x32xf32>
    %434 = vector.broadcast %433 : vector<1x32xf32> to vector<2x32xf32>
    %435 = arith.addf %431, %434 : vector<2x32xf32>
    %c1_275 = arith.constant 1 : index
    %c0_276 = arith.constant 0 : index
    %c0_277 = arith.constant 0 : index
    %436 = vector.load %arg7[%c1_275, %c0_276, %c0_277] : memref<3x32x32xf32, #tpu.memory_space<vmem>>, vector<1x32x32xf32>
    %437 = vector.shape_cast %436 : vector<1x32x32xf32> to vector<32x32xf32>
    %cst_278 = arith.constant dense<0.000000e+00> : vector<2x32xf32>
    %438 = tpu.matmul %428, %437, %cst_278 {dimension_numbers = #tpu.dot_dimension_numbers<[1], [0], [0], [1], [0, 0, 1, 1], [], []>} : vector<2x32xf32>, vector<32x32xf32>, vector<2x32xf32> -> vector<2x32xf32>
    %c1_279 = arith.constant 1 : index
    %c0_280 = arith.constant 0 : index
    %c0_281 = arith.constant 0 : index
    %439 = vector.load %arg9[%c1_279, %c0_280, %c0_281] : memref<3x1x32xf32, #tpu.memory_space<vmem>>, vector<1x1x32xf32>
    %440 = vector.shape_cast %439 : vector<1x1x32xf32> to vector<1x32xf32>
    %441 = vector.broadcast %440 : vector<1x32xf32> to vector<2x32xf32>
    %442 = arith.addf %438, %441 : vector<2x32xf32>
    %c2_282 = arith.constant 2 : index
    %c0_283 = arith.constant 0 : index
    %c0_284 = arith.constant 0 : index
    %443 = vector.load %arg7[%c2_282, %c0_283, %c0_284] : memref<3x32x32xf32, #tpu.memory_space<vmem>>, vector<1x32x32xf32>
    %444 = vector.shape_cast %443 : vector<1x32x32xf32> to vector<32x32xf32>
    %cst_285 = arith.constant dense<0.000000e+00> : vector<2x32xf32>
    %445 = tpu.matmul %428, %444, %cst_285 {dimension_numbers = #tpu.dot_dimension_numbers<[1], [0], [0], [1], [0, 0, 1, 1], [], []>} : vector<2x32xf32>, vector<32x32xf32>, vector<2x32xf32> -> vector<2x32xf32>
    %c2_286 = arith.constant 2 : index
    %c0_287 = arith.constant 0 : index
    %c0_288 = arith.constant 0 : index
    %446 = vector.load %arg9[%c2_286, %c0_287, %c0_288] : memref<3x1x32xf32, #tpu.memory_space<vmem>>, vector<1x1x32xf32>
    %447 = vector.shape_cast %446 : vector<1x1x32xf32> to vector<1x32xf32>
    %448 = vector.broadcast %447 : vector<1x32xf32> to vector<2x32xf32>
    %449 = arith.addf %445, %448 : vector<2x32xf32>
    %450 = vector.extract_strided_slice %61 {offsets = [16, 0], sizes = [2, 32], strides = [1, 1]} : vector<32x32xf32> to vector<2x32xf32>
    %451 = arith.addf %450, %435 : vector<2x32xf32>
    %452 = arith.negf %451 : vector<2x32xf32>
    %453 = math.exp %452 : vector<2x32xf32>
    %cst_289 = arith.constant 1.000000e+00 : f32
    %454 = vector.broadcast %cst_289 : f32 to vector<2x32xf32>
    %455 = arith.addf %454, %453 : vector<2x32xf32>
    %456 = arith.divf %454, %455 : vector<2x32xf32>
    %457 = vector.extract_strided_slice %68 {offsets = [16, 0], sizes = [2, 32], strides = [1, 1]} : vector<32x32xf32> to vector<2x32xf32>
    %458 = arith.addf %457, %442 : vector<2x32xf32>
    %459 = arith.negf %458 : vector<2x32xf32>
    %460 = math.exp %459 : vector<2x32xf32>
    %cst_290 = arith.constant 1.000000e+00 : f32
    %461 = vector.broadcast %cst_290 : f32 to vector<2x32xf32>
    %462 = arith.addf %461, %460 : vector<2x32xf32>
    %463 = arith.divf %461, %462 : vector<2x32xf32>
    %464 = vector.extract_strided_slice %75 {offsets = [16, 0], sizes = [2, 32], strides = [1, 1]} : vector<32x32xf32> to vector<2x32xf32>
    %465 = arith.mulf %456, %449 : vector<2x32xf32>
    %466 = arith.addf %464, %465 : vector<2x32xf32>
    %467 = math.tanh %466 : vector<2x32xf32>
    %cst_291 = arith.constant 1.000000e+00 : f32
    %468 = vector.broadcast %cst_291 : f32 to vector<2x32xf32>
    %469 = arith.subf %468, %463 : vector<2x32xf32>
    %470 = arith.mulf %469, %467 : vector<2x32xf32>
    %471 = arith.mulf %463, %428 : vector<2x32xf32>
    %472 = arith.addf %470, %471 : vector<2x32xf32>
    %c0_292 = arith.constant 0 : index
    %c0_293 = arith.constant 0 : index
    %c0_294 = arith.constant 0 : index
    %473 = vector.load %arg7[%c0_292, %c0_293, %c0_294] : memref<3x32x32xf32, #tpu.memory_space<vmem>>, vector<1x32x32xf32>
    %474 = vector.shape_cast %473 : vector<1x32x32xf32> to vector<32x32xf32>
    %cst_295 = arith.constant dense<0.000000e+00> : vector<2x32xf32>
    %475 = tpu.matmul %472, %474, %cst_295 {dimension_numbers = #tpu.dot_dimension_numbers<[1], [0], [0], [1], [0, 0, 1, 1], [], []>} : vector<2x32xf32>, vector<32x32xf32>, vector<2x32xf32> -> vector<2x32xf32>
    %c0_296 = arith.constant 0 : index
    %c0_297 = arith.constant 0 : index
    %c0_298 = arith.constant 0 : index
    %476 = vector.load %arg9[%c0_296, %c0_297, %c0_298] : memref<3x1x32xf32, #tpu.memory_space<vmem>>, vector<1x1x32xf32>
    %477 = vector.shape_cast %476 : vector<1x1x32xf32> to vector<1x32xf32>
    %478 = vector.broadcast %477 : vector<1x32xf32> to vector<2x32xf32>
    %479 = arith.addf %475, %478 : vector<2x32xf32>
    %c1_299 = arith.constant 1 : index
    %c0_300 = arith.constant 0 : index
    %c0_301 = arith.constant 0 : index
    %480 = vector.load %arg7[%c1_299, %c0_300, %c0_301] : memref<3x32x32xf32, #tpu.memory_space<vmem>>, vector<1x32x32xf32>
    %481 = vector.shape_cast %480 : vector<1x32x32xf32> to vector<32x32xf32>
    %cst_302 = arith.constant dense<0.000000e+00> : vector<2x32xf32>
    %482 = tpu.matmul %472, %481, %cst_302 {dimension_numbers = #tpu.dot_dimension_numbers<[1], [0], [0], [1], [0, 0, 1, 1], [], []>} : vector<2x32xf32>, vector<32x32xf32>, vector<2x32xf32> -> vector<2x32xf32>
    %c1_303 = arith.constant 1 : index
    %c0_304 = arith.constant 0 : index
    %c0_305 = arith.constant 0 : index
    %483 = vector.load %arg9[%c1_303, %c0_304, %c0_305] : memref<3x1x32xf32, #tpu.memory_space<vmem>>, vector<1x1x32xf32>
    %484 = vector.shape_cast %483 : vector<1x1x32xf32> to vector<1x32xf32>
    %485 = vector.broadcast %484 : vector<1x32xf32> to vector<2x32xf32>
    %486 = arith.addf %482, %485 : vector<2x32xf32>
    %c2_306 = arith.constant 2 : index
    %c0_307 = arith.constant 0 : index
    %c0_308 = arith.constant 0 : index
    %487 = vector.load %arg7[%c2_306, %c0_307, %c0_308] : memref<3x32x32xf32, #tpu.memory_space<vmem>>, vector<1x32x32xf32>
    %488 = vector.shape_cast %487 : vector<1x32x32xf32> to vector<32x32xf32>
    %cst_309 = arith.constant dense<0.000000e+00> : vector<2x32xf32>
    %489 = tpu.matmul %472, %488, %cst_309 {dimension_numbers = #tpu.dot_dimension_numbers<[1], [0], [0], [1], [0, 0, 1, 1], [], []>} : vector<2x32xf32>, vector<32x32xf32>, vector<2x32xf32> -> vector<2x32xf32>
    %c2_310 = arith.constant 2 : index
    %c0_311 = arith.constant 0 : index
    %c0_312 = arith.constant 0 : index
    %490 = vector.load %arg9[%c2_310, %c0_311, %c0_312] : memref<3x1x32xf32, #tpu.memory_space<vmem>>, vector<1x1x32xf32>
    %491 = vector.shape_cast %490 : vector<1x1x32xf32> to vector<1x32xf32>
    %492 = vector.broadcast %491 : vector<1x32xf32> to vector<2x32xf32>
    %493 = arith.addf %489, %492 : vector<2x32xf32>
    %494 = vector.extract_strided_slice %61 {offsets = [18, 0], sizes = [2, 32], strides = [1, 1]} : vector<32x32xf32> to vector<2x32xf32>
    %495 = arith.addf %494, %479 : vector<2x32xf32>
    %496 = arith.negf %495 : vector<2x32xf32>
    %497 = math.exp %496 : vector<2x32xf32>
    %cst_313 = arith.constant 1.000000e+00 : f32
    %498 = vector.broadcast %cst_313 : f32 to vector<2x32xf32>
    %499 = arith.addf %498, %497 : vector<2x32xf32>
    %500 = arith.divf %498, %499 : vector<2x32xf32>
    %501 = vector.extract_strided_slice %68 {offsets = [18, 0], sizes = [2, 32], strides = [1, 1]} : vector<32x32xf32> to vector<2x32xf32>
    %502 = arith.addf %501, %486 : vector<2x32xf32>
    %503 = arith.negf %502 : vector<2x32xf32>
    %504 = math.exp %503 : vector<2x32xf32>
    %cst_314 = arith.constant 1.000000e+00 : f32
    %505 = vector.broadcast %cst_314 : f32 to vector<2x32xf32>
    %506 = arith.addf %505, %504 : vector<2x32xf32>
    %507 = arith.divf %505, %506 : vector<2x32xf32>
    %508 = vector.extract_strided_slice %75 {offsets = [18, 0], sizes = [2, 32], strides = [1, 1]} : vector<32x32xf32> to vector<2x32xf32>
    %509 = arith.mulf %500, %493 : vector<2x32xf32>
    %510 = arith.addf %508, %509 : vector<2x32xf32>
    %511 = math.tanh %510 : vector<2x32xf32>
    %cst_315 = arith.constant 1.000000e+00 : f32
    %512 = vector.broadcast %cst_315 : f32 to vector<2x32xf32>
    %513 = arith.subf %512, %507 : vector<2x32xf32>
    %514 = arith.mulf %513, %511 : vector<2x32xf32>
    %515 = arith.mulf %507, %472 : vector<2x32xf32>
    %516 = arith.addf %514, %515 : vector<2x32xf32>
    %c0_316 = arith.constant 0 : index
    %c0_317 = arith.constant 0 : index
    %c0_318 = arith.constant 0 : index
    %517 = vector.load %arg7[%c0_316, %c0_317, %c0_318] : memref<3x32x32xf32, #tpu.memory_space<vmem>>, vector<1x32x32xf32>
    %518 = vector.shape_cast %517 : vector<1x32x32xf32> to vector<32x32xf32>
    %cst_319 = arith.constant dense<0.000000e+00> : vector<2x32xf32>
    %519 = tpu.matmul %516, %518, %cst_319 {dimension_numbers = #tpu.dot_dimension_numbers<[1], [0], [0], [1], [0, 0, 1, 1], [], []>} : vector<2x32xf32>, vector<32x32xf32>, vector<2x32xf32> -> vector<2x32xf32>
    %c0_320 = arith.constant 0 : index
    %c0_321 = arith.constant 0 : index
    %c0_322 = arith.constant 0 : index
    %520 = vector.load %arg9[%c0_320, %c0_321, %c0_322] : memref<3x1x32xf32, #tpu.memory_space<vmem>>, vector<1x1x32xf32>
    %521 = vector.shape_cast %520 : vector<1x1x32xf32> to vector<1x32xf32>
    %522 = vector.broadcast %521 : vector<1x32xf32> to vector<2x32xf32>
    %523 = arith.addf %519, %522 : vector<2x32xf32>
    %c1_323 = arith.constant 1 : index
    %c0_324 = arith.constant 0 : index
    %c0_325 = arith.constant 0 : index
    %524 = vector.load %arg7[%c1_323, %c0_324, %c0_325] : memref<3x32x32xf32, #tpu.memory_space<vmem>>, vector<1x32x32xf32>
    %525 = vector.shape_cast %524 : vector<1x32x32xf32> to vector<32x32xf32>
    %cst_326 = arith.constant dense<0.000000e+00> : vector<2x32xf32>
    %526 = tpu.matmul %516, %525, %cst_326 {dimension_numbers = #tpu.dot_dimension_numbers<[1], [0], [0], [1], [0, 0, 1, 1], [], []>} : vector<2x32xf32>, vector<32x32xf32>, vector<2x32xf32> -> vector<2x32xf32>
    %c1_327 = arith.constant 1 : index
    %c0_328 = arith.constant 0 : index
    %c0_329 = arith.constant 0 : index
    %527 = vector.load %arg9[%c1_327, %c0_328, %c0_329] : memref<3x1x32xf32, #tpu.memory_space<vmem>>, vector<1x1x32xf32>
    %528 = vector.shape_cast %527 : vector<1x1x32xf32> to vector<1x32xf32>
    %529 = vector.broadcast %528 : vector<1x32xf32> to vector<2x32xf32>
    %530 = arith.addf %526, %529 : vector<2x32xf32>
    %c2_330 = arith.constant 2 : index
    %c0_331 = arith.constant 0 : index
    %c0_332 = arith.constant 0 : index
    %531 = vector.load %arg7[%c2_330, %c0_331, %c0_332] : memref<3x32x32xf32, #tpu.memory_space<vmem>>, vector<1x32x32xf32>
    %532 = vector.shape_cast %531 : vector<1x32x32xf32> to vector<32x32xf32>
    %cst_333 = arith.constant dense<0.000000e+00> : vector<2x32xf32>
    %533 = tpu.matmul %516, %532, %cst_333 {dimension_numbers = #tpu.dot_dimension_numbers<[1], [0], [0], [1], [0, 0, 1, 1], [], []>} : vector<2x32xf32>, vector<32x32xf32>, vector<2x32xf32> -> vector<2x32xf32>
    %c2_334 = arith.constant 2 : index
    %c0_335 = arith.constant 0 : index
    %c0_336 = arith.constant 0 : index
    %534 = vector.load %arg9[%c2_334, %c0_335, %c0_336] : memref<3x1x32xf32, #tpu.memory_space<vmem>>, vector<1x1x32xf32>
    %535 = vector.shape_cast %534 : vector<1x1x32xf32> to vector<1x32xf32>
    %536 = vector.broadcast %535 : vector<1x32xf32> to vector<2x32xf32>
    %537 = arith.addf %533, %536 : vector<2x32xf32>
    %538 = vector.extract_strided_slice %61 {offsets = [20, 0], sizes = [2, 32], strides = [1, 1]} : vector<32x32xf32> to vector<2x32xf32>
    %539 = arith.addf %538, %523 : vector<2x32xf32>
    %540 = arith.negf %539 : vector<2x32xf32>
    %541 = math.exp %540 : vector<2x32xf32>
    %cst_337 = arith.constant 1.000000e+00 : f32
    %542 = vector.broadcast %cst_337 : f32 to vector<2x32xf32>
    %543 = arith.addf %542, %541 : vector<2x32xf32>
    %544 = arith.divf %542, %543 : vector<2x32xf32>
    %545 = vector.extract_strided_slice %68 {offsets = [20, 0], sizes = [2, 32], strides = [1, 1]} : vector<32x32xf32> to vector<2x32xf32>
    %546 = arith.addf %545, %530 : vector<2x32xf32>
    %547 = arith.negf %546 : vector<2x32xf32>
    %548 = math.exp %547 : vector<2x32xf32>
    %cst_338 = arith.constant 1.000000e+00 : f32
    %549 = vector.broadcast %cst_338 : f32 to vector<2x32xf32>
    %550 = arith.addf %549, %548 : vector<2x32xf32>
    %551 = arith.divf %549, %550 : vector<2x32xf32>
    %552 = vector.extract_strided_slice %75 {offsets = [20, 0], sizes = [2, 32], strides = [1, 1]} : vector<32x32xf32> to vector<2x32xf32>
    %553 = arith.mulf %544, %537 : vector<2x32xf32>
    %554 = arith.addf %552, %553 : vector<2x32xf32>
    %555 = math.tanh %554 : vector<2x32xf32>
    %cst_339 = arith.constant 1.000000e+00 : f32
    %556 = vector.broadcast %cst_339 : f32 to vector<2x32xf32>
    %557 = arith.subf %556, %551 : vector<2x32xf32>
    %558 = arith.mulf %557, %555 : vector<2x32xf32>
    %559 = arith.mulf %551, %516 : vector<2x32xf32>
    %560 = arith.addf %558, %559 : vector<2x32xf32>
    %c0_340 = arith.constant 0 : index
    %c0_341 = arith.constant 0 : index
    %c0_342 = arith.constant 0 : index
    %561 = vector.load %arg7[%c0_340, %c0_341, %c0_342] : memref<3x32x32xf32, #tpu.memory_space<vmem>>, vector<1x32x32xf32>
    %562 = vector.shape_cast %561 : vector<1x32x32xf32> to vector<32x32xf32>
    %cst_343 = arith.constant dense<0.000000e+00> : vector<2x32xf32>
    %563 = tpu.matmul %560, %562, %cst_343 {dimension_numbers = #tpu.dot_dimension_numbers<[1], [0], [0], [1], [0, 0, 1, 1], [], []>} : vector<2x32xf32>, vector<32x32xf32>, vector<2x32xf32> -> vector<2x32xf32>
    %c0_344 = arith.constant 0 : index
    %c0_345 = arith.constant 0 : index
    %c0_346 = arith.constant 0 : index
    %564 = vector.load %arg9[%c0_344, %c0_345, %c0_346] : memref<3x1x32xf32, #tpu.memory_space<vmem>>, vector<1x1x32xf32>
    %565 = vector.shape_cast %564 : vector<1x1x32xf32> to vector<1x32xf32>
    %566 = vector.broadcast %565 : vector<1x32xf32> to vector<2x32xf32>
    %567 = arith.addf %563, %566 : vector<2x32xf32>
    %c1_347 = arith.constant 1 : index
    %c0_348 = arith.constant 0 : index
    %c0_349 = arith.constant 0 : index
    %568 = vector.load %arg7[%c1_347, %c0_348, %c0_349] : memref<3x32x32xf32, #tpu.memory_space<vmem>>, vector<1x32x32xf32>
    %569 = vector.shape_cast %568 : vector<1x32x32xf32> to vector<32x32xf32>
    %cst_350 = arith.constant dense<0.000000e+00> : vector<2x32xf32>
    %570 = tpu.matmul %560, %569, %cst_350 {dimension_numbers = #tpu.dot_dimension_numbers<[1], [0], [0], [1], [0, 0, 1, 1], [], []>} : vector<2x32xf32>, vector<32x32xf32>, vector<2x32xf32> -> vector<2x32xf32>
    %c1_351 = arith.constant 1 : index
    %c0_352 = arith.constant 0 : index
    %c0_353 = arith.constant 0 : index
    %571 = vector.load %arg9[%c1_351, %c0_352, %c0_353] : memref<3x1x32xf32, #tpu.memory_space<vmem>>, vector<1x1x32xf32>
    %572 = vector.shape_cast %571 : vector<1x1x32xf32> to vector<1x32xf32>
    %573 = vector.broadcast %572 : vector<1x32xf32> to vector<2x32xf32>
    %574 = arith.addf %570, %573 : vector<2x32xf32>
    %c2_354 = arith.constant 2 : index
    %c0_355 = arith.constant 0 : index
    %c0_356 = arith.constant 0 : index
    %575 = vector.load %arg7[%c2_354, %c0_355, %c0_356] : memref<3x32x32xf32, #tpu.memory_space<vmem>>, vector<1x32x32xf32>
    %576 = vector.shape_cast %575 : vector<1x32x32xf32> to vector<32x32xf32>
    %cst_357 = arith.constant dense<0.000000e+00> : vector<2x32xf32>
    %577 = tpu.matmul %560, %576, %cst_357 {dimension_numbers = #tpu.dot_dimension_numbers<[1], [0], [0], [1], [0, 0, 1, 1], [], []>} : vector<2x32xf32>, vector<32x32xf32>, vector<2x32xf32> -> vector<2x32xf32>
    %c2_358 = arith.constant 2 : index
    %c0_359 = arith.constant 0 : index
    %c0_360 = arith.constant 0 : index
    %578 = vector.load %arg9[%c2_358, %c0_359, %c0_360] : memref<3x1x32xf32, #tpu.memory_space<vmem>>, vector<1x1x32xf32>
    %579 = vector.shape_cast %578 : vector<1x1x32xf32> to vector<1x32xf32>
    %580 = vector.broadcast %579 : vector<1x32xf32> to vector<2x32xf32>
    %581 = arith.addf %577, %580 : vector<2x32xf32>
    %582 = vector.extract_strided_slice %61 {offsets = [22, 0], sizes = [2, 32], strides = [1, 1]} : vector<32x32xf32> to vector<2x32xf32>
    %583 = arith.addf %582, %567 : vector<2x32xf32>
    %584 = arith.negf %583 : vector<2x32xf32>
    %585 = math.exp %584 : vector<2x32xf32>
    %cst_361 = arith.constant 1.000000e+00 : f32
    %586 = vector.broadcast %cst_361 : f32 to vector<2x32xf32>
    %587 = arith.addf %586, %585 : vector<2x32xf32>
    %588 = arith.divf %586, %587 : vector<2x32xf32>
    %589 = vector.extract_strided_slice %68 {offsets = [22, 0], sizes = [2, 32], strides = [1, 1]} : vector<32x32xf32> to vector<2x32xf32>
    %590 = arith.addf %589, %574 : vector<2x32xf32>
    %591 = arith.negf %590 : vector<2x32xf32>
    %592 = math.exp %591 : vector<2x32xf32>
    %cst_362 = arith.constant 1.000000e+00 : f32
    %593 = vector.broadcast %cst_362 : f32 to vector<2x32xf32>
    %594 = arith.addf %593, %592 : vector<2x32xf32>
    %595 = arith.divf %593, %594 : vector<2x32xf32>
    %596 = vector.extract_strided_slice %75 {offsets = [22, 0], sizes = [2, 32], strides = [1, 1]} : vector<32x32xf32> to vector<2x32xf32>
    %597 = arith.mulf %588, %581 : vector<2x32xf32>
    %598 = arith.addf %596, %597 : vector<2x32xf32>
    %599 = math.tanh %598 : vector<2x32xf32>
    %cst_363 = arith.constant 1.000000e+00 : f32
    %600 = vector.broadcast %cst_363 : f32 to vector<2x32xf32>
    %601 = arith.subf %600, %595 : vector<2x32xf32>
    %602 = arith.mulf %601, %599 : vector<2x32xf32>
    %603 = arith.mulf %595, %560 : vector<2x32xf32>
    %604 = arith.addf %602, %603 : vector<2x32xf32>
    %c0_364 = arith.constant 0 : index
    %c0_365 = arith.constant 0 : index
    %c0_366 = arith.constant 0 : index
    %605 = vector.load %arg7[%c0_364, %c0_365, %c0_366] : memref<3x32x32xf32, #tpu.memory_space<vmem>>, vector<1x32x32xf32>
    %606 = vector.shape_cast %605 : vector<1x32x32xf32> to vector<32x32xf32>
    %cst_367 = arith.constant dense<0.000000e+00> : vector<2x32xf32>
    %607 = tpu.matmul %604, %606, %cst_367 {dimension_numbers = #tpu.dot_dimension_numbers<[1], [0], [0], [1], [0, 0, 1, 1], [], []>} : vector<2x32xf32>, vector<32x32xf32>, vector<2x32xf32> -> vector<2x32xf32>
    %c0_368 = arith.constant 0 : index
    %c0_369 = arith.constant 0 : index
    %c0_370 = arith.constant 0 : index
    %608 = vector.load %arg9[%c0_368, %c0_369, %c0_370] : memref<3x1x32xf32, #tpu.memory_space<vmem>>, vector<1x1x32xf32>
    %609 = vector.shape_cast %608 : vector<1x1x32xf32> to vector<1x32xf32>
    %610 = vector.broadcast %609 : vector<1x32xf32> to vector<2x32xf32>
    %611 = arith.addf %607, %610 : vector<2x32xf32>
    %c1_371 = arith.constant 1 : index
    %c0_372 = arith.constant 0 : index
    %c0_373 = arith.constant 0 : index
    %612 = vector.load %arg7[%c1_371, %c0_372, %c0_373] : memref<3x32x32xf32, #tpu.memory_space<vmem>>, vector<1x32x32xf32>
    %613 = vector.shape_cast %612 : vector<1x32x32xf32> to vector<32x32xf32>
    %cst_374 = arith.constant dense<0.000000e+00> : vector<2x32xf32>
    %614 = tpu.matmul %604, %613, %cst_374 {dimension_numbers = #tpu.dot_dimension_numbers<[1], [0], [0], [1], [0, 0, 1, 1], [], []>} : vector<2x32xf32>, vector<32x32xf32>, vector<2x32xf32> -> vector<2x32xf32>
    %c1_375 = arith.constant 1 : index
    %c0_376 = arith.constant 0 : index
    %c0_377 = arith.constant 0 : index
    %615 = vector.load %arg9[%c1_375, %c0_376, %c0_377] : memref<3x1x32xf32, #tpu.memory_space<vmem>>, vector<1x1x32xf32>
    %616 = vector.shape_cast %615 : vector<1x1x32xf32> to vector<1x32xf32>
    %617 = vector.broadcast %616 : vector<1x32xf32> to vector<2x32xf32>
    %618 = arith.addf %614, %617 : vector<2x32xf32>
    %c2_378 = arith.constant 2 : index
    %c0_379 = arith.constant 0 : index
    %c0_380 = arith.constant 0 : index
    %619 = vector.load %arg7[%c2_378, %c0_379, %c0_380] : memref<3x32x32xf32, #tpu.memory_space<vmem>>, vector<1x32x32xf32>
    %620 = vector.shape_cast %619 : vector<1x32x32xf32> to vector<32x32xf32>
    %cst_381 = arith.constant dense<0.000000e+00> : vector<2x32xf32>
    %621 = tpu.matmul %604, %620, %cst_381 {dimension_numbers = #tpu.dot_dimension_numbers<[1], [0], [0], [1], [0, 0, 1, 1], [], []>} : vector<2x32xf32>, vector<32x32xf32>, vector<2x32xf32> -> vector<2x32xf32>
    %c2_382 = arith.constant 2 : index
    %c0_383 = arith.constant 0 : index
    %c0_384 = arith.constant 0 : index
    %622 = vector.load %arg9[%c2_382, %c0_383, %c0_384] : memref<3x1x32xf32, #tpu.memory_space<vmem>>, vector<1x1x32xf32>
    %623 = vector.shape_cast %622 : vector<1x1x32xf32> to vector<1x32xf32>
    %624 = vector.broadcast %623 : vector<1x32xf32> to vector<2x32xf32>
    %625 = arith.addf %621, %624 : vector<2x32xf32>
    %626 = vector.extract_strided_slice %61 {offsets = [24, 0], sizes = [2, 32], strides = [1, 1]} : vector<32x32xf32> to vector<2x32xf32>
    %627 = arith.addf %626, %611 : vector<2x32xf32>
    %628 = arith.negf %627 : vector<2x32xf32>
    %629 = math.exp %628 : vector<2x32xf32>
    %cst_385 = arith.constant 1.000000e+00 : f32
    %630 = vector.broadcast %cst_385 : f32 to vector<2x32xf32>
    %631 = arith.addf %630, %629 : vector<2x32xf32>
    %632 = arith.divf %630, %631 : vector<2x32xf32>
    %633 = vector.extract_strided_slice %68 {offsets = [24, 0], sizes = [2, 32], strides = [1, 1]} : vector<32x32xf32> to vector<2x32xf32>
    %634 = arith.addf %633, %618 : vector<2x32xf32>
    %635 = arith.negf %634 : vector<2x32xf32>
    %636 = math.exp %635 : vector<2x32xf32>
    %cst_386 = arith.constant 1.000000e+00 : f32
    %637 = vector.broadcast %cst_386 : f32 to vector<2x32xf32>
    %638 = arith.addf %637, %636 : vector<2x32xf32>
    %639 = arith.divf %637, %638 : vector<2x32xf32>
    %640 = vector.extract_strided_slice %75 {offsets = [24, 0], sizes = [2, 32], strides = [1, 1]} : vector<32x32xf32> to vector<2x32xf32>
    %641 = arith.mulf %632, %625 : vector<2x32xf32>
    %642 = arith.addf %640, %641 : vector<2x32xf32>
    %643 = math.tanh %642 : vector<2x32xf32>
    %cst_387 = arith.constant 1.000000e+00 : f32
    %644 = vector.broadcast %cst_387 : f32 to vector<2x32xf32>
    %645 = arith.subf %644, %639 : vector<2x32xf32>
    %646 = arith.mulf %645, %643 : vector<2x32xf32>
    %647 = arith.mulf %639, %604 : vector<2x32xf32>
    %648 = arith.addf %646, %647 : vector<2x32xf32>
    %c0_388 = arith.constant 0 : index
    %c0_389 = arith.constant 0 : index
    %c0_390 = arith.constant 0 : index
    %649 = vector.load %arg7[%c0_388, %c0_389, %c0_390] : memref<3x32x32xf32, #tpu.memory_space<vmem>>, vector<1x32x32xf32>
    %650 = vector.shape_cast %649 : vector<1x32x32xf32> to vector<32x32xf32>
    %cst_391 = arith.constant dense<0.000000e+00> : vector<2x32xf32>
    %651 = tpu.matmul %648, %650, %cst_391 {dimension_numbers = #tpu.dot_dimension_numbers<[1], [0], [0], [1], [0, 0, 1, 1], [], []>} : vector<2x32xf32>, vector<32x32xf32>, vector<2x32xf32> -> vector<2x32xf32>
    %c0_392 = arith.constant 0 : index
    %c0_393 = arith.constant 0 : index
    %c0_394 = arith.constant 0 : index
    %652 = vector.load %arg9[%c0_392, %c0_393, %c0_394] : memref<3x1x32xf32, #tpu.memory_space<vmem>>, vector<1x1x32xf32>
    %653 = vector.shape_cast %652 : vector<1x1x32xf32> to vector<1x32xf32>
    %654 = vector.broadcast %653 : vector<1x32xf32> to vector<2x32xf32>
    %655 = arith.addf %651, %654 : vector<2x32xf32>
    %c1_395 = arith.constant 1 : index
    %c0_396 = arith.constant 0 : index
    %c0_397 = arith.constant 0 : index
    %656 = vector.load %arg7[%c1_395, %c0_396, %c0_397] : memref<3x32x32xf32, #tpu.memory_space<vmem>>, vector<1x32x32xf32>
    %657 = vector.shape_cast %656 : vector<1x32x32xf32> to vector<32x32xf32>
    %cst_398 = arith.constant dense<0.000000e+00> : vector<2x32xf32>
    %658 = tpu.matmul %648, %657, %cst_398 {dimension_numbers = #tpu.dot_dimension_numbers<[1], [0], [0], [1], [0, 0, 1, 1], [], []>} : vector<2x32xf32>, vector<32x32xf32>, vector<2x32xf32> -> vector<2x32xf32>
    %c1_399 = arith.constant 1 : index
    %c0_400 = arith.constant 0 : index
    %c0_401 = arith.constant 0 : index
    %659 = vector.load %arg9[%c1_399, %c0_400, %c0_401] : memref<3x1x32xf32, #tpu.memory_space<vmem>>, vector<1x1x32xf32>
    %660 = vector.shape_cast %659 : vector<1x1x32xf32> to vector<1x32xf32>
    %661 = vector.broadcast %660 : vector<1x32xf32> to vector<2x32xf32>
    %662 = arith.addf %658, %661 : vector<2x32xf32>
    %c2_402 = arith.constant 2 : index
    %c0_403 = arith.constant 0 : index
    %c0_404 = arith.constant 0 : index
    %663 = vector.load %arg7[%c2_402, %c0_403, %c0_404] : memref<3x32x32xf32, #tpu.memory_space<vmem>>, vector<1x32x32xf32>
    %664 = vector.shape_cast %663 : vector<1x32x32xf32> to vector<32x32xf32>
    %cst_405 = arith.constant dense<0.000000e+00> : vector<2x32xf32>
    %665 = tpu.matmul %648, %664, %cst_405 {dimension_numbers = #tpu.dot_dimension_numbers<[1], [0], [0], [1], [0, 0, 1, 1], [], []>} : vector<2x32xf32>, vector<32x32xf32>, vector<2x32xf32> -> vector<2x32xf32>
    %c2_406 = arith.constant 2 : index
    %c0_407 = arith.constant 0 : index
    %c0_408 = arith.constant 0 : index
    %666 = vector.load %arg9[%c2_406, %c0_407, %c0_408] : memref<3x1x32xf32, #tpu.memory_space<vmem>>, vector<1x1x32xf32>
    %667 = vector.shape_cast %666 : vector<1x1x32xf32> to vector<1x32xf32>
    %668 = vector.broadcast %667 : vector<1x32xf32> to vector<2x32xf32>
    %669 = arith.addf %665, %668 : vector<2x32xf32>
    %670 = vector.extract_strided_slice %61 {offsets = [26, 0], sizes = [2, 32], strides = [1, 1]} : vector<32x32xf32> to vector<2x32xf32>
    %671 = arith.addf %670, %655 : vector<2x32xf32>
    %672 = arith.negf %671 : vector<2x32xf32>
    %673 = math.exp %672 : vector<2x32xf32>
    %cst_409 = arith.constant 1.000000e+00 : f32
    %674 = vector.broadcast %cst_409 : f32 to vector<2x32xf32>
    %675 = arith.addf %674, %673 : vector<2x32xf32>
    %676 = arith.divf %674, %675 : vector<2x32xf32>
    %677 = vector.extract_strided_slice %68 {offsets = [26, 0], sizes = [2, 32], strides = [1, 1]} : vector<32x32xf32> to vector<2x32xf32>
    %678 = arith.addf %677, %662 : vector<2x32xf32>
    %679 = arith.negf %678 : vector<2x32xf32>
    %680 = math.exp %679 : vector<2x32xf32>
    %cst_410 = arith.constant 1.000000e+00 : f32
    %681 = vector.broadcast %cst_410 : f32 to vector<2x32xf32>
    %682 = arith.addf %681, %680 : vector<2x32xf32>
    %683 = arith.divf %681, %682 : vector<2x32xf32>
    %684 = vector.extract_strided_slice %75 {offsets = [26, 0], sizes = [2, 32], strides = [1, 1]} : vector<32x32xf32> to vector<2x32xf32>
    %685 = arith.mulf %676, %669 : vector<2x32xf32>
    %686 = arith.addf %684, %685 : vector<2x32xf32>
    %687 = math.tanh %686 : vector<2x32xf32>
    %cst_411 = arith.constant 1.000000e+00 : f32
    %688 = vector.broadcast %cst_411 : f32 to vector<2x32xf32>
    %689 = arith.subf %688, %683 : vector<2x32xf32>
    %690 = arith.mulf %689, %687 : vector<2x32xf32>
    %691 = arith.mulf %683, %648 : vector<2x32xf32>
    %692 = arith.addf %690, %691 : vector<2x32xf32>
    %c0_412 = arith.constant 0 : index
    %c0_413 = arith.constant 0 : index
    %c0_414 = arith.constant 0 : index
    %693 = vector.load %arg7[%c0_412, %c0_413, %c0_414] : memref<3x32x32xf32, #tpu.memory_space<vmem>>, vector<1x32x32xf32>
    %694 = vector.shape_cast %693 : vector<1x32x32xf32> to vector<32x32xf32>
    %cst_415 = arith.constant dense<0.000000e+00> : vector<2x32xf32>
    %695 = tpu.matmul %692, %694, %cst_415 {dimension_numbers = #tpu.dot_dimension_numbers<[1], [0], [0], [1], [0, 0, 1, 1], [], []>} : vector<2x32xf32>, vector<32x32xf32>, vector<2x32xf32> -> vector<2x32xf32>
    %c0_416 = arith.constant 0 : index
    %c0_417 = arith.constant 0 : index
    %c0_418 = arith.constant 0 : index
    %696 = vector.load %arg9[%c0_416, %c0_417, %c0_418] : memref<3x1x32xf32, #tpu.memory_space<vmem>>, vector<1x1x32xf32>
    %697 = vector.shape_cast %696 : vector<1x1x32xf32> to vector<1x32xf32>
    %698 = vector.broadcast %697 : vector<1x32xf32> to vector<2x32xf32>
    %699 = arith.addf %695, %698 : vector<2x32xf32>
    %c1_419 = arith.constant 1 : index
    %c0_420 = arith.constant 0 : index
    %c0_421 = arith.constant 0 : index
    %700 = vector.load %arg7[%c1_419, %c0_420, %c0_421] : memref<3x32x32xf32, #tpu.memory_space<vmem>>, vector<1x32x32xf32>
    %701 = vector.shape_cast %700 : vector<1x32x32xf32> to vector<32x32xf32>
    %cst_422 = arith.constant dense<0.000000e+00> : vector<2x32xf32>
    %702 = tpu.matmul %692, %701, %cst_422 {dimension_numbers = #tpu.dot_dimension_numbers<[1], [0], [0], [1], [0, 0, 1, 1], [], []>} : vector<2x32xf32>, vector<32x32xf32>, vector<2x32xf32> -> vector<2x32xf32>
    %c1_423 = arith.constant 1 : index
    %c0_424 = arith.constant 0 : index
    %c0_425 = arith.constant 0 : index
    %703 = vector.load %arg9[%c1_423, %c0_424, %c0_425] : memref<3x1x32xf32, #tpu.memory_space<vmem>>, vector<1x1x32xf32>
    %704 = vector.shape_cast %703 : vector<1x1x32xf32> to vector<1x32xf32>
    %705 = vector.broadcast %704 : vector<1x32xf32> to vector<2x32xf32>
    %706 = arith.addf %702, %705 : vector<2x32xf32>
    %c2_426 = arith.constant 2 : index
    %c0_427 = arith.constant 0 : index
    %c0_428 = arith.constant 0 : index
    %707 = vector.load %arg7[%c2_426, %c0_427, %c0_428] : memref<3x32x32xf32, #tpu.memory_space<vmem>>, vector<1x32x32xf32>
    %708 = vector.shape_cast %707 : vector<1x32x32xf32> to vector<32x32xf32>
    %cst_429 = arith.constant dense<0.000000e+00> : vector<2x32xf32>
    %709 = tpu.matmul %692, %708, %cst_429 {dimension_numbers = #tpu.dot_dimension_numbers<[1], [0], [0], [1], [0, 0, 1, 1], [], []>} : vector<2x32xf32>, vector<32x32xf32>, vector<2x32xf32> -> vector<2x32xf32>
    %c2_430 = arith.constant 2 : index
    %c0_431 = arith.constant 0 : index
    %c0_432 = arith.constant 0 : index
    %710 = vector.load %arg9[%c2_430, %c0_431, %c0_432] : memref<3x1x32xf32, #tpu.memory_space<vmem>>, vector<1x1x32xf32>
    %711 = vector.shape_cast %710 : vector<1x1x32xf32> to vector<1x32xf32>
    %712 = vector.broadcast %711 : vector<1x32xf32> to vector<2x32xf32>
    %713 = arith.addf %709, %712 : vector<2x32xf32>
    %714 = vector.extract_strided_slice %61 {offsets = [28, 0], sizes = [2, 32], strides = [1, 1]} : vector<32x32xf32> to vector<2x32xf32>
    %715 = arith.addf %714, %699 : vector<2x32xf32>
    %716 = arith.negf %715 : vector<2x32xf32>
    %717 = math.exp %716 : vector<2x32xf32>
    %cst_433 = arith.constant 1.000000e+00 : f32
    %718 = vector.broadcast %cst_433 : f32 to vector<2x32xf32>
    %719 = arith.addf %718, %717 : vector<2x32xf32>
    %720 = arith.divf %718, %719 : vector<2x32xf32>
    %721 = vector.extract_strided_slice %68 {offsets = [28, 0], sizes = [2, 32], strides = [1, 1]} : vector<32x32xf32> to vector<2x32xf32>
    %722 = arith.addf %721, %706 : vector<2x32xf32>
    %723 = arith.negf %722 : vector<2x32xf32>
    %724 = math.exp %723 : vector<2x32xf32>
    %cst_434 = arith.constant 1.000000e+00 : f32
    %725 = vector.broadcast %cst_434 : f32 to vector<2x32xf32>
    %726 = arith.addf %725, %724 : vector<2x32xf32>
    %727 = arith.divf %725, %726 : vector<2x32xf32>
    %728 = vector.extract_strided_slice %75 {offsets = [28, 0], sizes = [2, 32], strides = [1, 1]} : vector<32x32xf32> to vector<2x32xf32>
    %729 = arith.mulf %720, %713 : vector<2x32xf32>
    %730 = arith.addf %728, %729 : vector<2x32xf32>
    %731 = math.tanh %730 : vector<2x32xf32>
    %cst_435 = arith.constant 1.000000e+00 : f32
    %732 = vector.broadcast %cst_435 : f32 to vector<2x32xf32>
    %733 = arith.subf %732, %727 : vector<2x32xf32>
    %734 = arith.mulf %733, %731 : vector<2x32xf32>
    %735 = arith.mulf %727, %692 : vector<2x32xf32>
    %736 = arith.addf %734, %735 : vector<2x32xf32>
    %c0_436 = arith.constant 0 : index
    %c0_437 = arith.constant 0 : index
    %c0_438 = arith.constant 0 : index
    %737 = vector.load %arg7[%c0_436, %c0_437, %c0_438] : memref<3x32x32xf32, #tpu.memory_space<vmem>>, vector<1x32x32xf32>
    %738 = vector.shape_cast %737 : vector<1x32x32xf32> to vector<32x32xf32>
    %cst_439 = arith.constant dense<0.000000e+00> : vector<2x32xf32>
    %739 = tpu.matmul %736, %738, %cst_439 {dimension_numbers = #tpu.dot_dimension_numbers<[1], [0], [0], [1], [0, 0, 1, 1], [], []>} : vector<2x32xf32>, vector<32x32xf32>, vector<2x32xf32> -> vector<2x32xf32>
    %c0_440 = arith.constant 0 : index
    %c0_441 = arith.constant 0 : index
    %c0_442 = arith.constant 0 : index
    %740 = vector.load %arg9[%c0_440, %c0_441, %c0_442] : memref<3x1x32xf32, #tpu.memory_space<vmem>>, vector<1x1x32xf32>
    %741 = vector.shape_cast %740 : vector<1x1x32xf32> to vector<1x32xf32>
    %742 = vector.broadcast %741 : vector<1x32xf32> to vector<2x32xf32>
    %743 = arith.addf %739, %742 : vector<2x32xf32>
    %c1_443 = arith.constant 1 : index
    %c0_444 = arith.constant 0 : index
    %c0_445 = arith.constant 0 : index
    %744 = vector.load %arg7[%c1_443, %c0_444, %c0_445] : memref<3x32x32xf32, #tpu.memory_space<vmem>>, vector<1x32x32xf32>
    %745 = vector.shape_cast %744 : vector<1x32x32xf32> to vector<32x32xf32>
    %cst_446 = arith.constant dense<0.000000e+00> : vector<2x32xf32>
    %746 = tpu.matmul %736, %745, %cst_446 {dimension_numbers = #tpu.dot_dimension_numbers<[1], [0], [0], [1], [0, 0, 1, 1], [], []>} : vector<2x32xf32>, vector<32x32xf32>, vector<2x32xf32> -> vector<2x32xf32>
    %c1_447 = arith.constant 1 : index
    %c0_448 = arith.constant 0 : index
    %c0_449 = arith.constant 0 : index
    %747 = vector.load %arg9[%c1_447, %c0_448, %c0_449] : memref<3x1x32xf32, #tpu.memory_space<vmem>>, vector<1x1x32xf32>
    %748 = vector.shape_cast %747 : vector<1x1x32xf32> to vector<1x32xf32>
    %749 = vector.broadcast %748 : vector<1x32xf32> to vector<2x32xf32>
    %750 = arith.addf %746, %749 : vector<2x32xf32>
    %c2_450 = arith.constant 2 : index
    %c0_451 = arith.constant 0 : index
    %c0_452 = arith.constant 0 : index
    %751 = vector.load %arg7[%c2_450, %c0_451, %c0_452] : memref<3x32x32xf32, #tpu.memory_space<vmem>>, vector<1x32x32xf32>
    %752 = vector.shape_cast %751 : vector<1x32x32xf32> to vector<32x32xf32>
    %cst_453 = arith.constant dense<0.000000e+00> : vector<2x32xf32>
    %753 = tpu.matmul %736, %752, %cst_453 {dimension_numbers = #tpu.dot_dimension_numbers<[1], [0], [0], [1], [0, 0, 1, 1], [], []>} : vector<2x32xf32>, vector<32x32xf32>, vector<2x32xf32> -> vector<2x32xf32>
    %c2_454 = arith.constant 2 : index
    %c0_455 = arith.constant 0 : index
    %c0_456 = arith.constant 0 : index
    %754 = vector.load %arg9[%c2_454, %c0_455, %c0_456] : memref<3x1x32xf32, #tpu.memory_space<vmem>>, vector<1x1x32xf32>
    %755 = vector.shape_cast %754 : vector<1x1x32xf32> to vector<1x32xf32>
    %756 = vector.broadcast %755 : vector<1x32xf32> to vector<2x32xf32>
    %757 = arith.addf %753, %756 : vector<2x32xf32>
    %758 = vector.extract_strided_slice %61 {offsets = [30, 0], sizes = [2, 32], strides = [1, 1]} : vector<32x32xf32> to vector<2x32xf32>
    %759 = arith.addf %758, %743 : vector<2x32xf32>
    %760 = arith.negf %759 : vector<2x32xf32>
    %761 = math.exp %760 : vector<2x32xf32>
    %cst_457 = arith.constant 1.000000e+00 : f32
    %762 = vector.broadcast %cst_457 : f32 to vector<2x32xf32>
    %763 = arith.addf %762, %761 : vector<2x32xf32>
    %764 = arith.divf %762, %763 : vector<2x32xf32>
    %765 = vector.extract_strided_slice %68 {offsets = [30, 0], sizes = [2, 32], strides = [1, 1]} : vector<32x32xf32> to vector<2x32xf32>
    %766 = arith.addf %765, %750 : vector<2x32xf32>
    %767 = arith.negf %766 : vector<2x32xf32>
    %768 = math.exp %767 : vector<2x32xf32>
    %cst_458 = arith.constant 1.000000e+00 : f32
    %769 = vector.broadcast %cst_458 : f32 to vector<2x32xf32>
    %770 = arith.addf %769, %768 : vector<2x32xf32>
    %771 = arith.divf %769, %770 : vector<2x32xf32>
    %772 = vector.extract_strided_slice %75 {offsets = [30, 0], sizes = [2, 32], strides = [1, 1]} : vector<32x32xf32> to vector<2x32xf32>
    %773 = arith.mulf %764, %757 : vector<2x32xf32>
    %774 = arith.addf %772, %773 : vector<2x32xf32>
    %775 = math.tanh %774 : vector<2x32xf32>
    %cst_459 = arith.constant 1.000000e+00 : f32
    %776 = vector.broadcast %cst_459 : f32 to vector<2x32xf32>
    %777 = arith.subf %776, %771 : vector<2x32xf32>
    %778 = arith.mulf %777, %775 : vector<2x32xf32>
    %779 = arith.mulf %771, %736 : vector<2x32xf32>
    %780 = arith.addf %778, %779 : vector<2x32xf32>
    %c0_460 = arith.constant 0 : index
    %c0_461 = arith.constant 0 : index
    %781 = vector.load %arg10[%c0_460, %c0_461] : memref<32x32xf32, #tpu.memory_space<vmem>>, vector<32x32xf32>
    %cst_462 = arith.constant dense<0.000000e+00> : vector<2x32xf32>
    %782 = tpu.matmul %780, %781, %cst_462 {dimension_numbers = #tpu.dot_dimension_numbers<[1], [0], [0], [1], [0, 0, 1, 1], [], []>} : vector<2x32xf32>, vector<32x32xf32>, vector<2x32xf32> -> vector<2x32xf32>
    %c0_463 = arith.constant 0 : index
    %c0_464 = arith.constant 0 : index
    %783 = vector.load %arg11[%c0_463, %c0_464] : memref<1x32xf32, #tpu.memory_space<vmem>>, vector<1x32xf32>
    %784 = vector.broadcast %783 : vector<1x32xf32> to vector<2x32xf32>
    %785 = arith.addf %782, %784 : vector<2x32xf32>
    %cst_465 = arith.constant 0.000000e+00 : f32
    %786 = vector.broadcast %cst_465 : f32 to vector<2x32xf32>
    %787 = arith.maximumf %785, %786 : vector<2x32xf32>
    %c0_466 = arith.constant 0 : index
    %c0_467 = arith.constant 0 : index
    %788 = vector.load %arg12[%c0_466, %c0_467] : memref<32x32xf32, #tpu.memory_space<vmem>>, vector<32x32xf32>
    %cst_468 = arith.constant dense<0.000000e+00> : vector<2x32xf32>
    %789 = tpu.matmul %787, %788, %cst_468 {dimension_numbers = #tpu.dot_dimension_numbers<[1], [0], [0], [1], [0, 0, 1, 1], [], []>} : vector<2x32xf32>, vector<32x32xf32>, vector<2x32xf32> -> vector<2x32xf32>
    %c0_469 = arith.constant 0 : index
    %c0_470 = arith.constant 0 : index
    %790 = vector.load %arg13[%c0_469, %c0_470] : memref<1x32xf32, #tpu.memory_space<vmem>>, vector<1x32xf32>
    %791 = vector.broadcast %790 : vector<1x32xf32> to vector<2x32xf32>
    %792 = arith.addf %789, %791 : vector<2x32xf32>
    %cst_471 = arith.constant 0.000000e+00 : f32
    %793 = vector.broadcast %cst_471 : f32 to vector<2x32xf32>
    %794 = arith.maximumf %792, %793 : vector<2x32xf32>
    %c0_472 = arith.constant 0 : index
    %c0_473 = arith.constant 0 : index
    %795 = vector.load %arg14[%c0_472, %c0_473] : memref<32x128xf32, #tpu.memory_space<vmem>>, vector<32x128xf32>
    %cst_474 = arith.constant dense<0.000000e+00> : vector<2x128xf32>
    %796 = tpu.matmul %794, %795, %cst_474 {dimension_numbers = #tpu.dot_dimension_numbers<[1], [0], [0], [1], [0, 0, 1, 1], [], []>} : vector<2x32xf32>, vector<32x128xf32>, vector<2x128xf32> -> vector<2x128xf32>
    %c0_475 = arith.constant 0 : index
    %c0_476 = arith.constant 0 : index
    %797 = vector.load %arg15[%c0_475, %c0_476] : memref<1x128xf32, #tpu.memory_space<vmem>>, vector<1x128xf32>
    %798 = vector.broadcast %797 : vector<1x128xf32> to vector<2x128xf32>
    %799 = arith.addf %796, %798 : vector<2x128xf32>
    %800 = tpu.iota {dimensions = array<i32: 1>} : vector<2x128xi32>
    %c3_i32 = arith.constant 3 : i32
    %801 = vector.broadcast %c3_i32 : i32 to vector<2x128xi32>
    %802 = arith.cmpi slt, %800, %801 : vector<2x128xi32>
    %c9_i32 = arith.constant 9 : i32
    %803 = vector.broadcast %c9_i32 : i32 to vector<2x128xi32>
    %804 = arith.cmpi sge, %800, %803 : vector<2x128xi32>
    %c15_i32 = arith.constant 15 : i32
    %805 = vector.broadcast %c15_i32 : i32 to vector<2x128xi32>
    %806 = arith.cmpi slt, %800, %805 : vector<2x128xi32>
    %807 = arith.andi %804, %806 : vector<2x128xi1>
    %cst_477 = arith.constant -1.000000e+30 : f32
    %808 = vector.broadcast %cst_477 : f32 to vector<2x128xf32>
    %809 = arith.select %802, %799, %808 : vector<2x128xi1>, vector<2x128xf32>
    %cst_478 = arith.constant dense<0xFF800000> : vector<2xf32>
    %810 = vector.multi_reduction <maximumf>, %809, %cst_478 [1] : vector<2x128xf32> to vector<2xf32>
    %811 = vector.shape_cast %810 : vector<2xf32> to vector<2x1xf32>
    %812 = vector.broadcast %811 : vector<2x1xf32> to vector<2x128xf32>
    %813 = arith.subf %799, %812 : vector<2x128xf32>
    %814 = math.exp %813 : vector<2x128xf32>
    %cst_479 = arith.constant 0.000000e+00 : f32
    %815 = vector.broadcast %cst_479 : f32 to vector<2x128xf32>
    %816 = arith.select %802, %814, %815 : vector<2x128xi1>, vector<2x128xf32>
    %cst_480 = arith.constant dense<0.000000e+00> : vector<2xf32>
    %817 = vector.multi_reduction <add>, %816, %cst_480 [1] : vector<2x128xf32> to vector<2xf32>
    %818 = vector.shape_cast %817 : vector<2xf32> to vector<2x1xf32>
    %819 = vector.broadcast %818 : vector<2x1xf32> to vector<2x128xf32>
    %820 = arith.divf %816, %819 : vector<2x128xf32>
    %cst_481 = arith.constant 0.000000e+00 : f32
    %821 = vector.broadcast %cst_481 : f32 to vector<2x128xf32>
    %822 = arith.select %807, %799, %821 : vector<2x128xi1>, vector<2x128xf32>
    %823 = math.exp %822 : vector<2x128xf32>
    %824 = arith.select %807, %823, %799 : vector<2x128xi1>, vector<2x128xf32>
    %825 = arith.select %802, %820, %824 : vector<2x128xi1>, vector<2x128xf32>
    %c0_482 = arith.constant 0 : index
    %c0_483 = arith.constant 0 : index
    %826 = vector.load %arg16[%c0_482, %c0_483] : memref<2x128xf32, #tpu.memory_space<vmem>>, vector<2x128xf32>
    tpu.vector_store %arg16[%c0_482, %c0_483], %825 {strides = array<i32>} : memref<2x128xf32, #tpu.memory_space<vmem>>, vector<2x128xf32>,
    return
  }
}

</mosaic_0001>

<llo_original>
// kernel: dmdnn_forward.1
$region0: #{dmdnn_forward.1}
  #allocation0 [shape = 'u32[]', space=smem, size = 0x4, offset = 0x4, fixed_abs, tag = 'smem constant byte address 0x4 - core index']
  #allocation1 [shape = 'u32[144,128]{1,0:T(1,128)}', space=vmem, size = 0x12000, scoped, tag = 'internal scratch']
  %s0 = inlined_call_operand.vmem [shape: f32[32,4], index: 0, kind: input, shape index: {}]
  %s1 = inlined_call_operand.vmem [shape: f32[3,32,32], index: 1, kind: input, shape index: {}]
  %s2 = inlined_call_operand.hbm [shape: f32[3,4,8], index: 2, kind: input, shape index: {}]
  %s3 = inlined_call_operand.vmem [shape: f32[1,8], index: 3, kind: input, shape index: {}]
  %s4 = inlined_call_operand.hbm [shape: f32[3,8,16], index: 4, kind: input, shape index: {}]
  %s5 = inlined_call_operand.vmem [shape: f32[1,16], index: 5, kind: input, shape index: {}]
  %s6 = inlined_call_operand.hbm [shape: f32[3,16,32], index: 6, kind: input, shape index: {}]
  %s7 = inlined_call_operand.hbm [shape: f32[3,32,32], index: 7, kind: input, shape index: {}]
  %s8 = inlined_call_operand.vmem [shape: f32[3,1,32], index: 8, kind: input, shape index: {}]
  %s9 = inlined_call_operand.vmem [shape: f32[3,1,32], index: 9, kind: input, shape index: {}]
  %s10 = inlined_call_operand.hbm [shape: f32[32,32], index: 10, kind: input, shape index: {}]
  %s11 = inlined_call_operand.hbm [shape: f32[1,32], index: 11, kind: input, shape index: {}]
  %s12 = inlined_call_operand.hbm [shape: f32[32,32], index: 12, kind: input, shape index: {}]
  %s13 = inlined_call_operand.hbm [shape: f32[1,32], index: 13, kind: input, shape index: {}]
  %s14 = inlined_call_operand.hbm [shape: f32[32,128], index: 14, kind: input, shape index: {}]
  %s15 = inlined_call_operand.hbm [shape: f32[1,128], index: 15, kind: input, shape index: {}]
  %s16 = inlined_call_operand.vmem [shape: f32[2,128], index: 16, kind: output, shape index: {}]
  %s17 = sld [smem:[#allocation0]]
  $region114: #{dmdnn_forward.1} parent=0
    _
  %s19 = ssub.s32 1, %s17
  %s20 = scalar_select 0, %s19, %s17
  $region1: #{dmdnn_forward.1} parent=0
    #allocation2 [shape = 'u8[6144]{0}', space=vmem, size = 0x1800, scoped, tag = 'input window, operand 2, single buffered']
    #allocation3 [shape = 's32[1]{0}', space=sflag, size = 0x4, scoped, tag = 'scoped memory for dmdnn_forward.1']
    #allocation4 [shape = 'u8[12288]{0}', space=vmem, size = 0x3000, scoped, tag = 'input window, operand 4, single buffered']
    #allocation5 [shape = 's32[1]{0}', space=sflag, size = 0x4, scoped, tag = 'scoped memory for dmdnn_forward.1']
    #allocation6 [shape = 'u8[24576]{0}', space=vmem, size = 0x6000, scoped, tag = 'input window, operand 6, single buffered']
    #allocation7 [shape = 'u8[49152]{0}', space=vmem, size = 0xc000, scoped, tag = 'input window, operand 7, single buffered']
    #allocation8 [shape = 's32[1]{0}', space=sflag, size = 0x4, scoped, tag = 'scoped memory for dmdnn_forward.1']
    #allocation9 [shape = 'u8[16384]{0}', space=vmem, size = 0x4000, scoped, tag = 'input window, operand 10, single buffered']
    #allocation10 [shape = 'u8[512]{0}', space=vmem, size = 0x400, scoped, tag = 'input window, operand 11, single buffered']
    #allocation11 [shape = 's32[1]{0}', space=sflag, size = 0x4, scoped, tag = 'scoped memory for dmdnn_forward.1']
    #allocation12 [shape = 'u8[16384]{0}', space=vmem, size = 0x4000, scoped, tag = 'input window, operand 12, single buffered']
    #allocation13 [shape = 'u8[512]{0}', space=vmem, size = 0x400, scoped, tag = 'input window, operand 13, single buffered']
    #allocation14 [shape = 's32[1]{0}', space=sflag, size = 0x4, scoped, tag = 'scoped memory for dmdnn_forward.1']
    #allocation15 [shape = 'u8[16384]{0}', space=vmem, size = 0x4000, scoped, tag = 'input window, operand 14, single buffered']
    #allocation16 [shape = 'u8[512]{0}', space=vmem, size = 0x400, scoped, tag = 'input window, operand 15, single buffered']
    #allocation17 [shape = 's32[1]{0}', space=sflag, size = 0x4, scoped, tag = 'scoped memory for dmdnn_forward.1']
    %21 = vsyncpa [#allocation3], 0
    %22 = vsyncpa [#allocation5], 0
    %23 = vsyncpa [#allocation8], 0
    %24 = vsyncpa [#allocation11], 0
    %25 = vsyncpa [#allocation14], 0
    %26 = vsyncpa [#allocation17], 0
    // Predicated region
    $region2: #{dmdnn_forward.1} parent=1 // pred_check
      _
    $region3: #{dmdnn_forward.1} parent=1 // pred_check_branch
      %28 = sbr.rel (0) target = $region5
    $region4: #{dmdnn_forward.1} parent=1 // pred_region
      _
    $region5: #{dmdnn_forward.1} parent=1 // pred_fallthru
      _
    // Predicated region
    $region6: #{dmdnn_forward.1} parent=1 // pred_check
      _
    $region7: #{dmdnn_forward.1} parent=1 // pred_check_branch
      %30 = sbr.rel (0) target = $region9
    $region8: #{dmdnn_forward.1} parent=1 // pred_region
      _
    $region9: #{dmdnn_forward.1} parent=1 // pred_fallthru
      _
    // Predicated region
    $region10: #{dmdnn_forward.1} parent=1 // pred_check
      _
    $region11: #{dmdnn_forward.1} parent=1 // pred_check_branch
      %32 = sbr.rel (0) target = $region13
    $region12: #{dmdnn_forward.1} parent=1 // pred_region
      %s34 = ssub.s32 192, 192
      %35 = vsyncadd [#allocation3], %s34
      %s36 = sshll.u32 [#allocation2], 4
      %s37 = int_to_ptr.vmem [resolvable:$true] %s36
      %42 = dma.hbm_to_vmem [thread:$0]  %s2, 192, %s37, [#allocation3], 64, 64, 4
    $region13: #{dmdnn_forward.1} parent=1 // pred_fallthru
      _
    // Predicated region
    $region14: #{dmdnn_forward.1} parent=1 // pred_check
      _
    $region15: #{dmdnn_forward.1} parent=1 // pred_check_branch
      %44 = sbr.rel (0) target = $region17
    $region16: #{dmdnn_forward.1} parent=1 // pred_region
      _
    $region17: #{dmdnn_forward.1} parent=1 // pred_fallthru
      _
    // Predicated region
    $region18: #{dmdnn_forward.1} parent=1 // pred_check
      _
    $region19: #{dmdnn_forward.1} parent=1 // pred_check_branch
      %46 = sbr.rel (0) target = $region21
    $region20: #{dmdnn_forward.1} parent=1 // pred_region
      %s48 = ssub.s32 384, 384
      %49 = vsyncadd [#allocation5], %s48
      %s50 = sshll.u32 [#allocation4], 4
      %s51 = int_to_ptr.vmem [resolvable:$true] %s50
      %56 = dma.hbm_to_vmem [thread:$0]  %s4, 384, %s51, [#allocation5], 128, 128, 8
    $region21: #{dmdnn_forward.1} parent=1 // pred_fallthru
      _
    // Predicated region
    $region22: #{dmdnn_forward.1} parent=1 // pred_check
      _
    $region23: #{dmdnn_forward.1} parent=1 // pred_check_branch
      %58 = sbr.rel (0) target = $region25
    $region24: #{dmdnn_forward.1} parent=1 // pred_region
      _
    $region25: #{dmdnn_forward.1} parent=1 // pred_fallthru
      _
    // Predicated region
    $region26: #{dmdnn_forward.1} parent=1 // pred_check
      _
    $region27: #{dmdnn_forward.1} parent=1 // pred_check_branch
      %60 = sbr.rel (0) target = $region29
    $region28: #{dmdnn_forward.1} parent=1 // pred_region
      %s62 = ssub.s32 768, 768
      %63 = vsyncadd [#allocation5], %s62
      %s64 = sshll.u32 [#allocation6], 4
      %s65 = int_to_ptr.vmem [resolvable:$true] %s64
      %70 = dma.hbm_to_vmem [thread:$0]  %s6, 768, %s65, [#allocation5], 128, 128, 8
    $region29: #{dmdnn_forward.1} parent=1 // pred_fallthru
      _
    // Predicated region
    $region30: #{dmdnn_forward.1} parent=1 // pred_check
      _
    $region31: #{dmdnn_forward.1} parent=1 // pred_check_branch
      %72 = sbr.rel (0) target = $region33
    $region32: #{dmdnn_forward.1} parent=1 // pred_region
      %s74 = ssub.s32 1536, 1536
      %75 = vsyncadd [#allocation8], %s74
      %s76 = sshll.u32 [#allocation7], 4
      %s77 = int_to_ptr.vmem [resolvable:$true] %s76
      %82 = dma.hbm_to_vmem [thread:$0]  %s7, 1536, %s77, [#allocation8], 128, 128, 8
    $region33: #{dmdnn_forward.1} parent=1 // pred_fallthru
      _
    // Predicated region
    $region34: #{dmdnn_forward.1} parent=1 // pred_check
      _
    $region35: #{dmdnn_forward.1} parent=1 // pred_check_branch
      %84 = sbr.rel (0) target = $region37
    $region36: #{dmdnn_forward.1} parent=1 // pred_region
      _
    $region37: #{dmdnn_forward.1} parent=1 // pred_fallthru
      _
    // Predicated region
    $region38: #{dmdnn_forward.1} parent=1 // pred_check
      _
    $region39: #{dmdnn_forward.1} parent=1 // pred_check_branch
      %86 = sbr.rel (0) target = $region41
    $region40: #{dmdnn_forward.1} parent=1 // pred_region
      _
    $region41: #{dmdnn_forward.1} parent=1 // pred_fallthru
      _
    // Predicated region
    $region42: #{dmdnn_forward.1} parent=1 // pred_check
      _
    $region43: #{dmdnn_forward.1} parent=1 // pred_check_branch
      %88 = sbr.rel (0) target = $region45
    $region44: #{dmdnn_forward.1} parent=1 // pred_region
      %s90 = ssub.s32 512, 512
      %91 = vsyncadd [#allocation8], %s90
      %s92 = sshll.u32 [#allocation9], 4
      %s93 = int_to_ptr.vmem [resolvable:$true] %s92
      %98 = dma.hbm_to_vmem [thread:$0]  %s10, 512, %s93, [#allocation8], 128, 128, 8
    $region45: #{dmdnn_forward.1} parent=1 // pred_fallthru
      _
    // Predicated region
    $region46: #{dmdnn_forward.1} parent=1 // pred_check
      _
    $region47: #{dmdnn_forward.1} parent=1 // pred_check_branch
      %100 = sbr.rel (0) target = $region49
    $region48: #{dmdnn_forward.1} parent=1 // pred_region
      %s102 = ssub.s32 16, 16
      %103 = vsyncadd [#allocation11], %s102
      %s105 = sshll.u32 [#allocation10], 4
      %s106 = int_to_ptr.vmem [resolvable:$true] %s105
      %108 = dma.hbm_to_vmem [thread:$0]  %s11, 16, %s106, [#allocation11]
    $region49: #{dmdnn_forward.1} parent=1 // pred_fallthru
      _
    // Predicated region
    $region50: #{dmdnn_forward.1} parent=1 // pred_check
      _
    $region51: #{dmdnn_forward.1} parent=1 // pred_check_branch
      %110 = sbr.rel (0) target = $region53
    $region52: #{dmdnn_forward.1} parent=1 // pred_region
      %s112 = ssub.s32 512, 512
      %113 = vsyncadd [#allocation11], %s112
      %s114 = sshll.u32 [#allocation12], 4
      %s115 = int_to_ptr.vmem [resolvable:$true] %s114
      %120 = dma.hbm_to_vmem [thread:$0]  %s12, 512, %s115, [#allocation11], 128, 128, 8
    $region53: #{dmdnn_forward.1} parent=1 // pred_fallthru
      _
    // Predicated region
    $region54: #{dmdnn_forward.1} parent=1 // pred_check
      _
    $region55: #{dmdnn_forward.1} parent=1 // pred_check_branch
      %122 = sbr.rel (0) target = $region57
    $region56: #{dmdnn_forward.1} parent=1 // pred_region
      %s124 = ssub.s32 16, 16
      %125 = vsyncadd [#allocation14], %s124
      %s127 = sshll.u32 [#allocation13], 4
      %s128 = int_to_ptr.vmem [resolvable:$true] %s127
      %130 = dma.hbm_to_vmem [thread:$0]  %s13, 16, %s128, [#allocation14]
    $region57: #{dmdnn_forward.1} parent=1 // pred_fallthru
      _
    // Predicated region
    $region58: #{dmdnn_forward.1} parent=1 // pred_check
      _
    $region59: #{dmdnn_forward.1} parent=1 // pred_check_branch
      %132 = sbr.rel (0) target = $region61
    $region60: #{dmdnn_forward.1} parent=1 // pred_region
      %s134 = ssub.s32 512, 512
      %135 = vsyncadd [#allocation14], %s134
      %s136 = sshll.u32 [#allocation15], 4
      %s137 = int_to_ptr.vmem [resolvable:$true] %s136
      %142 = dma.hbm_to_vmem [thread:$0]  %s14, 512, %s137, [#allocation14], 128, 128, 8
    $region61: #{dmdnn_forward.1} parent=1 // pred_fallthru
      _
    // Predicated region
    $region62: #{dmdnn_forward.1} parent=1 // pred_check
      _
    $region63: #{dmdnn_forward.1} parent=1 // pred_check_branch
      %144 = sbr.rel (0) target = $region65
    $region64: #{dmdnn_forward.1} parent=1 // pred_region
      %s146 = ssub.s32 16, 16
      %147 = vsyncadd [#allocation17], %s146
      %s149 = sshll.u32 [#allocation16], 4
      %s150 = int_to_ptr.vmem [resolvable:$true] %s149
      %152 = dma.hbm_to_vmem [thread:$0]  %s15, 16, %s150, [#allocation17]
    $region65: #{dmdnn_forward.1} parent=1 // pred_fallthru
      _
    // Predicated region
    $region66: #{dmdnn_forward.1} parent=1 // pred_check
      _
    $region67: #{dmdnn_forward.1} parent=1 // pred_check_branch
      %154 = sbr.rel (0) target = $region69
    $region68: #{dmdnn_forward.1} parent=1 // pred_region
      %155 = dma.done [#allocation3], 192
    $region69: #{dmdnn_forward.1} parent=1 // pred_fallthru
      _
    // Predicated region
    $region70: #{dmdnn_forward.1} parent=1 // pred_check
      _
    $region71: #{dmdnn_forward.1} parent=1 // pred_check_branch
      %157 = sbr.rel (0) target = $region73
    $region72: #{dmdnn_forward.1} parent=1 // pred_region
      %158 = dma.done [#allocation5], 384
    $region73: #{dmdnn_forward.1} parent=1 // pred_fallthru
      _
    // Predicated region
    $region74: #{dmdnn_forward.1} parent=1 // pred_check
      _
    $region75: #{dmdnn_forward.1} parent=1 // pred_check_branch
      %160 = sbr.rel (0) target = $region77
    $region76: #{dmdnn_forward.1} parent=1 // pred_region
      %161 = dma.done [#allocation5], 768
    $region77: #{dmdnn_forward.1} parent=1 // pred_fallthru
      _
    // Predicated region
    $region78: #{dmdnn_forward.1} parent=1 // pred_check
      _
    $region79: #{dmdnn_forward.1} parent=1 // pred_check_branch
      %163 = sbr.rel (0) target = $region81
    $region80: #{dmdnn_forward.1} parent=1 // pred_region
      %164 = dma.done [#allocation8], 1536
    $region81: #{dmdnn_forward.1} parent=1 // pred_fallthru
      _
    // Predicated region
    $region82: #{dmdnn_forward.1} parent=1 // pred_check
      _
    $region83: #{dmdnn_forward.1} parent=1 // pred_check_branch
      %166 = sbr.rel (0) target = $region85
    $region84: #{dmdnn_forward.1} parent=1 // pred_region
      %167 = dma.done [#allocation8], 512
    $region85: #{dmdnn_forward.1} parent=1 // pred_fallthru
      _
    // Predicated region
    $region86: #{dmdnn_forward.1} parent=1 // pred_check
      _
    $region87: #{dmdnn_forward.1} parent=1 // pred_check_branch
      %169 = sbr.rel (0) target = $region89
    $region88: #{dmdnn_forward.1} parent=1 // pred_region
      %170 = dma.done [#allocation11], 16
    $region89: #{dmdnn_forward.1} parent=1 // pred_fallthru
      _
    // Predicated region
    $region90: #{dmdnn_forward.1} parent=1 // pred_check
      _
    $region91: #{dmdnn_forward.1} parent=1 // pred_check_branch
      %172 = sbr.rel (0) target = $region93
    $region92: #{dmdnn_forward.1} parent=1 // pred_region
      %173 = dma.done [#allocation11], 512
    $region93: #{dmdnn_forward.1} parent=1 // pred_fallthru
      _
    // Predicated region
    $region94: #{dmdnn_forward.1} parent=1 // pred_check
      _
    $region95: #{dmdnn_forward.1} parent=1 // pred_check_branch
      %175 = sbr.rel (0) target = $region97
    $region96: #{dmdnn_forward.1} parent=1 // pred_region
      %176 = dma.done [#allocation14], 16
    $region97: #{dmdnn_forward.1} parent=1 // pred_fallthru
      _
    // Predicated region
    $region98: #{dmdnn_forward.1} parent=1 // pred_check
      _
    $region99: #{dmdnn_forward.1} parent=1 // pred_check_branch
      %178 = sbr.rel (0) target = $region101
    $region100: #{dmdnn_forward.1} parent=1 // pred_region
      %179 = dma.done [#allocation14], 512
    $region101: #{dmdnn_forward.1} parent=1 // pred_fallthru
      _
    // Predicated region
    $region102: #{dmdnn_forward.1} parent=1 // pred_check
      _
    $region103: #{dmdnn_forward.1} parent=1 // pred_check_branch
      %181 = sbr.rel (0) target = $region105
    $region104: #{dmdnn_forward.1} parent=1 // pred_region
      %182 = dma.done [#allocation17], 16
    $region105: #{dmdnn_forward.1} parent=1 // pred_fallthru
      _
    %v183 = vld [vmem:[%s0] sm:$0xff]
    %v184 = vld [vmem:[%s0 + $0x8] sm:$0xff]
    %v185 = vld [vmem:[%s0 + $0x10] sm:$0xff]
    %v186 = vld [vmem:[%s0 + $0x18] sm:$0xff]
    %v187 = vld [vmem:[%s1] sm:$0xff]
    %v188 = vld [vmem:[%s1 + $0x8] sm:$0xff]
    %v189 = vld [vmem:[%s1 + $0x10] sm:$0xff]
    %v190 = vld [vmem:[%s1 + $0x18] sm:$0xff]
    %vm191 = vcmask 261120
    %v193 = vsel %vm191, %v187, 0
    %v196 = vsel %vm191, %v188, 0
    %v199 = vsel %vm191, %v189, 0
    %v202 = vsel %vm191, %v190, 0
    %204 = vmatprep.subr.mxu0 0.0
    %205 = vmatpush1.msra.mxu0 %v183
    %206 = vmatprep.subr.mxu0 0.0
    %207 = vmatpush1.msra.mxu0 %v184
    %208 = vmatprep.subr.mxu0 0.0
    %209 = vmatpush1.msra.mxu0 %v185
    %210 = vmatprep.subr.mxu0 0.0
    %211 = vmatpush1.msra.mxu0 %v186
    %212 = vmatprep.subr.mxu0 0.0
    %213 = vmatpush1.msra.mxu0 0.0
    %214 = vmatprep.subr.mxu0 0.0
    %215 = vmatpush1.msra.mxu0 0.0
    %216 = vmatprep.subr.mxu0 0.0
    %217 = vmatpush1.msra.mxu0 0.0
    %218 = vmatprep.subr.mxu0 0.0
    %219 = vmatpush1.msra.mxu0 0.0
    %220 = vmatprep.subr.mxu0 0.0
    %221 = vmatpush1.msra.mxu0 0.0
    %222 = vmatprep.subr.mxu0 0.0
    %223 = vmatpush1.msra.mxu0 0.0
    %224 = vmatprep.subr.mxu0 0.0
    %225 = vmatpush1.msra.mxu0 0.0
    %226 = vmatprep.subr.mxu0 0.0
    %227 = vmatpush1.msra.mxu0 0.0
    %228 = vmatprep.subr.mxu0 0.0
    %229 = vmatpush1.msra.mxu0 0.0
    %230 = vmatprep.subr.mxu0 0.0
    %231 = vmatpush1.msra.mxu0 0.0
    %232 = vmatprep.subr.mxu0 0.0
    %233 = vmatpush1.msra.mxu0 0.0
    %234 = vmatprep.subr.mxu0 0.0
    %235 = vmatpush1.msra.mxu0 0.0
    %236 = vmatprep.subr.mxu0 0.0
    %237 = vmatpush1.msra.mxu0 0.0
    %238 = vmatprep.subr.mxu0 0.0
    %239 = vmatpush1.msra.mxu0 0.0
    %240 = vmatprep.subr.mxu0 0.0
    %241 = vmatpush1.msra.mxu0 0.0
    %242 = vmatprep.subr.mxu0 0.0
    %243 = vmatpush1.msra.mxu0 0.0
    %244 = vmatprep.subr.mxu0 0.0
    %245 = vmatpush1.msra.mxu0 0.0
    %246 = vmatprep.subr.mxu0 0.0
    %247 = vmatpush1.msra.mxu0 0.0
    %248 = vmatprep.subr.mxu0 0.0
    %249 = vmatpush1.msra.mxu0 0.0
    %250 = vmatprep.subr.mxu0 0.0
    %251 = vmatpush1.msra.mxu0 0.0
    %252 = vmatprep.subr.mxu0 0.0
    %253 = vmatpush1.msra.mxu0 0.0
    %254 = vmatprep.subr.mxu0 0.0
    %255 = vmatpush1.msra.mxu0 0.0
    %256 = vmatprep.subr.mxu0 0.0
    %257 = vmatpush1.msra.mxu0 0.0
    %258 = vmatprep.subr.mxu0 0.0
    %259 = vmatpush1.msra.mxu0 0.0
    %260 = vmatprep.subr.mxu0 0.0
    %261 = vmatpush1.msra.mxu0 0.0
    %262 = vmatprep.subr.mxu0 0.0
    %263 = vmatpush1.msra.mxu0 0.0
    %264 = vmatprep.subr.mxu0 0.0
    %265 = vmatpush1.msra.mxu0 0.0
    %266 = vmatprep.subr.mxu0 0.0
    %267 = vmatpush1.msra.mxu0 0.0
    %268 = vmatprep.mubr.f32.mxu0 0.0
    %269 = vmatmul.mubr.f32.gmra.mrb[0].mxu0 %v193
    %v270 = vpop.f32.mrb[0].mxu0
    %v271 = vadd.f32 0.0, %v270
    %v272 = vpop.f32.mrb[0].mxu0
    %273 = vmatprep.mubr.f32.mxu0 0.0
    %274 = vmatmul.mubr.f32.gmra.mrb[0].mxu0 %v196
    %v275 = vpop.f32.mrb[0].mxu0
    %v276 = vadd.f32 0.0, %v275
    %v277 = vpop.f32.mrb[0].mxu0
    %278 = vmatprep.mubr.f32.mxu0 0.0
    %279 = vmatmul.mubr.f32.gmra.mrb[0].mxu0 %v199
    %v280 = vpop.f32.mrb[0].mxu0
    %v281 = vadd.f32 0.0, %v280
    %v282 = vpop.f32.mrb[0].mxu0
    %283 = vmatprep.mubr.f32.mxu0 0.0
    %284 = vmatmul.mubr.f32.gmra.mrb[0].mxu0 %v202
    %v285 = vpop.f32.mrb[0].mxu0
    %v286 = vadd.f32 0.0, %v285
    %v287 = vpop.f32.mrb[0].mxu0
    %288 = vdwg.mxu0
    %v289 = vld [vmem:[#allocation2] sm:$0xf]
    %s290 = scalar_lea.vmem %s1, 32
    %v291 = vld [vmem:[%s290] sm:$0xff]
    %v292 = vld [vmem:[%s290 + $0x8] sm:$0xff]
    %v293 = vld [vmem:[%s290 + $0x10] sm:$0xff]
    %v294 = vld [vmem:[%s290 + $0x18] sm:$0xff]
    %v296 = vsel %vm191, %v291, 0
    %v299 = vsel %vm191, %v292, 0
    %v302 = vsel %vm191, %v293, 0
    %v305 = vsel %vm191, %v294, 0
    %307 = vmatprep.subr.mxu0 0.0
    %308 = vmatpush1.msra.mxu0 %v183
    %309 = vmatprep.subr.mxu0 0.0
    %310 = vmatpush1.msra.mxu0 %v184
    %311 = vmatprep.subr.mxu0 0.0
    %312 = vmatpush1.msra.mxu0 %v185
    %313 = vmatprep.subr.mxu0 0.0
    %314 = vmatpush1.msra.mxu0 %v186
    %315 = vmatprep.subr.mxu0 0.0
    %316 = vmatpush1.msra.mxu0 0.0
    %317 = vmatprep.subr.mxu0 0.0
    %318 = vmatpush1.msra.mxu0 0.0
    %319 = vmatprep.subr.mxu0 0.0
    %320 = vmatpush1.msra.mxu0 0.0
    %321 = vmatprep.subr.mxu0 0.0
    %322 = vmatpush1.msra.mxu0 0.0
    %323 = vmatprep.subr.mxu0 0.0
    %324 = vmatpush1.msra.mxu0 0.0
    %325 = vmatprep.subr.mxu0 0.0
    %326 = vmatpush1.msra.mxu0 0.0
    %327 = vmatprep.subr.mxu0 0.0
    %328 = vmatpush1.msra.mxu0 0.0
    %329 = vmatprep.subr.mxu0 0.0
    %330 = vmatpush1.msra.mxu0 0.0
    %331 = vmatprep.subr.mxu0 0.0
    %332 = vmatpush1.msra.mxu0 0.0
    %333 = vmatprep.subr.mxu0 0.0
    %334 = vmatpush1.msra.mxu0 0.0
    %335 = vmatprep.subr.mxu0 0.0
    %336 = vmatpush1.msra.mxu0 0.0
    %337 = vmatprep.subr.mxu0 0.0
    %338 = vmatpush1.msra.mxu0 0.0
    %339 = vmatprep.subr.mxu0 0.0
    %340 = vmatpush1.msra.mxu0 0.0
    %341 = vmatprep.subr.mxu0 0.0
    %342 = vmatpush1.msra.mxu0 0.0
    %343 = vmatprep.subr.mxu0 0.0
    %344 = vmatpush1.msra.mxu0 0.0
    %345 = vmatprep.subr.mxu0 0.0
    %346 = vmatpush1.msra.mxu0 0.0
    %347 = vmatprep.subr.mxu0 0.0
    %348 = vmatpush1.msra.mxu0 0.0
    %349 = vmatprep.subr.mxu0 0.0
    %350 = vmatpush1.msra.mxu0 0.0
    %351 = vmatprep.subr.mxu0 0.0
    %352 = vmatpush1.msra.mxu0 0.0
    %353 = vmatprep.subr.mxu0 0.0
    %354 = vmatpush1.msra.mxu0 0.0
    %355 = vmatprep.subr.mxu0 0.0
    %356 = vmatpush1.msra.mxu0 0.0
    %357 = vmatprep.subr.mxu0 0.0
    %358 = vmatpush1.msra.mxu0 0.0
    %359 = vmatprep.subr.mxu0 0.0
    %360 = vmatpush1.msra.mxu0 0.0
    %361 = vmatprep.subr.mxu0 0.0
    %362 = vmatpush1.msra.mxu0 0.0
    %363 = vmatprep.subr.mxu0 0.0
    %364 = vmatpush1.msra.mxu0 0.0
    %365 = vmatprep.subr.mxu0 0.0
    %366 = vmatpush1.msra.mxu0 0.0
    %367 = vmatprep.subr.mxu0 0.0
    %368 = vmatpush1.msra.mxu0 0.0
    %369 = vmatprep.subr.mxu0 0.0
    %370 = vmatpush1.msra.mxu0 0.0
    %371 = vmatprep.mubr.f32.mxu0 0.0
    %372 = vmatmul.mubr.f32.gmra.mrb[0].mxu0 %v296
    %v373 = vpop.f32.mrb[0].mxu0
    %v374 = vadd.f32 0.0, %v373
    %v375 = vpop.f32.mrb[0].mxu0
    %376 = vmatprep.mubr.f32.mxu0 0.0
    %377 = vmatmul.mubr.f32.gmra.mrb[0].mxu0 %v299
    %v378 = vpop.f32.mrb[0].mxu0
    %v379 = vadd.f32 0.0, %v378
    %v380 = vpop.f32.mrb[0].mxu0
    %381 = vmatprep.mubr.f32.mxu0 0.0
    %382 = vmatmul.mubr.f32.gmra.mrb[0].mxu0 %v302
    %v383 = vpop.f32.mrb[0].mxu0
    %v384 = vadd.f32 0.0, %v383
    %v385 = vpop.f32.mrb[0].mxu0
    %386 = vmatprep.mubr.f32.mxu0 0.0
    %387 = vmatmul.mubr.f32.gmra.mrb[0].mxu0 %v305
    %v388 = vpop.f32.mrb[0].mxu0
    %v389 = vadd.f32 0.0, %v388
    %v390 = vpop.f32.mrb[0].mxu0
    %391 = vdwg.mxu0
    %s392 = scalar_lea.vmem [#allocation2], 4
    %v393 = vld [vmem:[%s392] sm:$0xf]
    %vm394 = vcmask 31744
    %v396 = vsel %vm394, %v374, 0
    %v399 = vsel %vm394, %v379, 0
    %v402 = vsel %vm394, %v384, 0
    %v405 = vsel %vm394, %v389, 0
    %vm407 = vcmask 1043456
    %v409 = vsel %vm407, %v393, 0
    %411 = vmatprep.subr.mxu0 0.0
    %412 = vmatpush1.msra.mxu0 %v409
    %413 = vmatprep.subr.mxu0 0.0
    %414 = vmatpush1.msra.mxu0 0.0
    %415 = vmatprep.subr.mxu0 0.0
    %416 = vmatpush1.msra.mxu0 0.0
    %417 = vmatprep.subr.mxu0 0.0
    %418 = vmatpush1.msra.mxu0 0.0
    %419 = vmatprep.subr.mxu0 0.0
    %420 = vmatpush1.msra.mxu0 0.0
    %421 = vmatprep.subr.mxu0 0.0
    %422 = vmatpush1.msra.mxu0 0.0
    %423 = vmatprep.subr.mxu0 0.0
    %424 = vmatpush1.msra.mxu0 0.0
    %425 = vmatprep.subr.mxu0 0.0
    %426 = vmatpush1.msra.mxu0 0.0
    %427 = vmatprep.subr.mxu0 0.0
    %428 = vmatpush1.msra.mxu0 0.0
    %429 = vmatprep.subr.mxu0 0.0
    %430 = vmatpush1.msra.mxu0 0.0
    %431 = vmatprep.subr.mxu0 0.0
    %432 = vmatpush1.msra.mxu0 0.0
    %433 = vmatprep.subr.mxu0 0.0
    %434 = vmatpush1.msra.mxu0 0.0
    %435 = vmatprep.subr.mxu0 0.0
    %436 = vmatpush1.msra.mxu0 0.0
    %437 = vmatprep.subr.mxu0 0.0
    %438 = vmatpush1.msra.mxu0 0.0
    %439 = vmatprep.subr.mxu0 0.0
    %440 = vmatpush1.msra.mxu0 0.0
    %441 = vmatprep.subr.mxu0 0.0
    %442 = vmatpush1.msra.mxu0 0.0
    %443 = vmatprep.subr.mxu0 0.0
    %444 = vmatpush1.msra.mxu0 0.0
    %445 = vmatprep.subr.mxu0 0.0
    %446 = vmatpush1.msra.mxu0 0.0
    %447 = vmatprep.subr.mxu0 0.0
    %448 = vmatpush1.msra.mxu0 0.0
    %449 = vmatprep.subr.mxu0 0.0
    %450 = vmatpush1.msra.mxu0 0.0
    %451 = vmatprep.subr.mxu0 0.0
    %452 = vmatpush1.msra.mxu0 0.0
    %453 = vmatprep.subr.mxu0 0.0
    %454 = vmatpush1.msra.mxu0 0.0
    %455 = vmatprep.subr.mxu0 0.0
    %456 = vmatpush1.msra.mxu0 0.0
    %457 = vmatprep.subr.mxu0 0.0
    %458 = vmatpush1.msra.mxu0 0.0
    %459 = vmatprep.subr.mxu0 0.0
    %460 = vmatpush1.msra.mxu0 0.0
    %461 = vmatprep.subr.mxu0 0.0
    %462 = vmatpush1.msra.mxu0 0.0
    %463 = vmatprep.subr.mxu0 0.0
    %464 = vmatpush1.msra.mxu0 0.0
    %465 = vmatprep.subr.mxu0 0.0
    %466 = vmatpush1.msra.mxu0 0.0
    %467 = vmatprep.subr.mxu0 0.0
    %468 = vmatpush1.msra.mxu0 0.0
    %469 = vmatprep.subr.mxu0 0.0
    %470 = vmatpush1.msra.mxu0 0.0
    %471 = vmatprep.subr.mxu0 0.0
    %472 = vmatpush1.msra.mxu0 0.0
    %473 = vmatprep.subr.mxu0 0.0
    %474 = vmatpush1.msra.mxu0 0.0
    %475 = vmatprep.mubr.f32.mxu0 0.0
    %476 = vmatmul.mubr.f32.gmra.mrb[0].mxu0 %v396
    %v477 = vpop.f32.mrb[0].mxu0
    %v478 = vadd.f32 0.0, %v477
    %v479 = vpop.f32.mrb[0].mxu0
    %480 = vmatprep.mubr.f32.mxu0 0.0
    %481 = vmatmul.mubr.f32.gmra.mrb[0].mxu0 %v399
    %v482 = vpop.f32.mrb[0].mxu0
    %v483 = vadd.f32 0.0, %v482
    %v484 = vpop.f32.mrb[0].mxu0
    %485 = vmatprep.mubr.f32.mxu0 0.0
    %486 = vmatmul.mubr.f32.gmra.mrb[0].mxu0 %v402
    %v487 = vpop.f32.mrb[0].mxu0
    %v488 = vadd.f32 0.0, %v487
    %v489 = vpop.f32.mrb[0].mxu0
    %490 = vmatprep.mubr.f32.mxu0 0.0
    %491 = vmatmul.mubr.f32.gmra.mrb[0].mxu0 %v405
    %v492 = vpop.f32.mrb[0].mxu0
    %v493 = vadd.f32 0.0, %v492
    %v494 = vpop.f32.mrb[0].mxu0
    %495 = vdwg.mxu0
    %v497 = vsel %vm394, %v271, 0
    %v500 = vsel %vm394, %v276, 0
    %v503 = vsel %vm394, %v281, 0
    %v506 = vsel %vm394, %v286, 0
    %v509 = vsel %vm407, %v289, 0
    %511 = vmatprep.subr.mxu0 0.0
    %512 = vmatpush1.msra.mxu0 %v509
    %513 = vmatprep.subr.mxu0 0.0
    %514 = vmatpush1.msra.mxu0 0.0
    %515 = vmatprep.subr.mxu0 0.0
    %516 = vmatpush1.msra.mxu0 0.0
    %517 = vmatprep.subr.mxu0 0.0
    %518 = vmatpush1.msra.mxu0 0.0
    %519 = vmatprep.subr.mxu0 0.0
    %520 = vmatpush1.msra.mxu0 0.0
    %521 = vmatprep.subr.mxu0 0.0
    %522 = vmatpush1.msra.mxu0 0.0
    %523 = vmatprep.subr.mxu0 0.0
    %524 = vmatpush1.msra.mxu0 0.0
    %525 = vmatprep.subr.mxu0 0.0
    %526 = vmatpush1.msra.mxu0 0.0
    %527 = vmatprep.subr.mxu0 0.0
    %528 = vmatpush1.msra.mxu0 0.0
    %529 = vmatprep.subr.mxu0 0.0
    %530 = vmatpush1.msra.mxu0 0.0
    %531 = vmatprep.subr.mxu0 0.0
    %532 = vmatpush1.msra.mxu0 0.0
    %533 = vmatprep.subr.mxu0 0.0
    %534 = vmatpush1.msra.mxu0 0.0
    %535 = vmatprep.subr.mxu0 0.0
    %536 = vmatpush1.msra.mxu0 0.0
    %537 = vmatprep.subr.mxu0 0.0
    %538 = vmatpush1.msra.mxu0 0.0
    %539 = vmatprep.subr.mxu0 0.0
    %540 = vmatpush1.msra.mxu0 0.0
    %541 = vmatprep.subr.mxu0 0.0
    %542 = vmatpush1.msra.mxu0 0.0
    %543 = vmatprep.subr.mxu0 0.0
    %544 = vmatpush1.msra.mxu0 0.0
    %545 = vmatprep.subr.mxu0 0.0
    %546 = vmatpush1.msra.mxu0 0.0
    %547 = vmatprep.subr.mxu0 0.0
    %548 = vmatpush1.msra.mxu0 0.0
    %549 = vmatprep.subr.mxu0 0.0
    %550 = vmatpush1.msra.mxu0 0.0
    %551 = vmatprep.subr.mxu0 0.0
    %552 = vmatpush1.msra.mxu0 0.0
    %553 = vmatprep.subr.mxu0 0.0
    %554 = vmatpush1.msra.mxu0 0.0
    %555 = vmatprep.subr.mxu0 0.0
    %556 = vmatpush1.msra.mxu0 0.0
    %557 = vmatprep.subr.mxu0 0.0
    %558 = vmatpush1.msra.mxu0 0.0
    %559 = vmatprep.subr.mxu0 0.0
    %560 = vmatpush1.msra.mxu0 0.0
    %561 = vmatprep.subr.mxu0 0.0
    %562 = vmatpush1.msra.mxu0 0.0
    %563 = vmatprep.subr.mxu0 0.0
    %564 = vmatpush1.msra.mxu0 0.0
    %565 = vmatprep.subr.mxu0 0.0
    %566 = vmatpush1.msra.mxu0 0.0
    %567 = vmatprep.subr.mxu0 0.0
    %568 = vmatpush1.msra.mxu0 0.0
    %569 = vmatprep.subr.mxu0 0.0
    %570 = vmatpush1.msra.mxu0 0.0
    %571 = vmatprep.subr.mxu0 0.0
    %572 = vmatpush1.msra.mxu0 0.0
    %573 = vmatprep.subr.mxu0 0.0
    %574 = vmatpush1.msra.mxu0 0.0
    %575 = vmatprep.mubr.f32.mxu0 0.0
    %576 = vmatmul.mubr.f32.gmra.mrb[0].mxu0 %v497
    %v577 = vpop.f32.mrb[0].mxu0
    %v578 = vadd.f32 %v478, %v577
    %v579 = vpop.f32.mrb[0].mxu0
    %580 = vmatprep.mubr.f32.mxu0 0.0
    %581 = vmatmul.mubr.f32.gmra.mrb[0].mxu0 %v500
    %v582 = vpop.f32.mrb[0].mxu0
    %v583 = vadd.f32 %v483, %v582
    %v584 = vpop.f32.mrb[0].mxu0
    %585 = vmatprep.mubr.f32.mxu0 0.0
    %586 = vmatmul.mubr.f32.gmra.mrb[0].mxu0 %v503
    %v587 = vpop.f32.mrb[0].mxu0
    %v588 = vadd.f32 %v488, %v587
    %v589 = vpop.f32.mrb[0].mxu0
    %590 = vmatprep.mubr.f32.mxu0 0.0
    %591 = vmatmul.mubr.f32.gmra.mrb[0].mxu0 %v506
    %v592 = vpop.f32.mrb[0].mxu0
    %v593 = vadd.f32 %v493, %v592
    %v594 = vpop.f32.mrb[0].mxu0
    %595 = vdwg.mxu0
    %s596 = scalar_lea.vmem %s1, 64
    %v597 = vld [vmem:[%s596] sm:$0xff]
    %v598 = vld [vmem:[%s596 + $0x8] sm:$0xff]
    %v599 = vld [vmem:[%s596 + $0x10] sm:$0xff]
    %v600 = vld [vmem:[%s596 + $0x18] sm:$0xff]
    %v602 = vsel %vm191, %v597, 0
    %v605 = vsel %vm191, %v598, 0
    %v608 = vsel %vm191, %v599, 0
    %v611 = vsel %vm191, %v600, 0
    %613 = vmatprep.subr.mxu0 0.0
    %614 = vmatpush1.msra.mxu0 %v183
    %615 = vmatprep.subr.mxu0 0.0
    %616 = vmatpush1.msra.mxu0 %v184
    %617 = vmatprep.subr.mxu0 0.0
    %618 = vmatpush1.msra.mxu0 %v185
    %619 = vmatprep.subr.mxu0 0.0
    %620 = vmatpush1.msra.mxu0 %v186
    %621 = vmatprep.subr.mxu0 0.0
    %622 = vmatpush1.msra.mxu0 0.0
    %623 = vmatprep.subr.mxu0 0.0
    %624 = vmatpush1.msra.mxu0 0.0
    %625 = vmatprep.subr.mxu0 0.0
    %626 = vmatpush1.msra.mxu0 0.0
    %627 = vmatprep.subr.mxu0 0.0
    %628 = vmatpush1.msra.mxu0 0.0
    %629 = vmatprep.subr.mxu0 0.0
    %630 = vmatpush1.msra.mxu0 0.0
    %631 = vmatprep.subr.mxu0 0.0
    %632 = vmatpush1.msra.mxu0 0.0
    %633 = vmatprep.subr.mxu0 0.0
    %634 = vmatpush1.msra.mxu0 0.0
    %635 = vmatprep.subr.mxu0 0.0
    %636 = vmatpush1.msra.mxu0 0.0
    %637 = vmatprep.subr.mxu0 0.0
    %638 = vmatpush1.msra.mxu0 0.0
    %639 = vmatprep.subr.mxu0 0.0
    %640 = vmatpush1.msra.mxu0 0.0
    %641 = vmatprep.subr.mxu0 0.0
    %642 = vmatpush1.msra.mxu0 0.0
    %643 = vmatprep.subr.mxu0 0.0
    %644 = vmatpush1.msra.mxu0 0.0
    %645 = vmatprep.subr.mxu0 0.0
    %646 = vmatpush1.msra.mxu0 0.0
    %647 = vmatprep.subr.mxu0 0.0
    %648 = vmatpush1.msra.mxu0 0.0
    %649 = vmatprep.subr.mxu0 0.0
    %650 = vmatpush1.msra.mxu0 0.0
    %651 = vmatprep.subr.mxu0 0.0
    %652 = vmatpush1.msra.mxu0 0.0
    %653 = vmatprep.subr.mxu0 0.0
    %654 = vmatpush1.msra.mxu0 0.0
    %655 = vmatprep.subr.mxu0 0.0
    %656 = vmatpush1.msra.mxu0 0.0
    %657 = vmatprep.subr.mxu0 0.0
    %658 = vmatpush1.msra.mxu0 0.0
    %659 = vmatprep.subr.mxu0 0.0
    %660 = vmatpush1.msra.mxu0 0.0
    %661 = vmatprep.subr.mxu0 0.0
    %662 = vmatpush1.msra.mxu0 0.0
    %663 = vmatprep.subr.mxu0 0.0
    %664 = vmatpush1.msra.mxu0 0.0
    %665 = vmatprep.subr.mxu0 0.0
    %666 = vmatpush1.msra.mxu0 0.0
    %667 = vmatprep.subr.mxu0 0.0
    %668 = vmatpush1.msra.mxu0 0.0
    %669 = vmatprep.subr.mxu0 0.0
    %670 = vmatpush1.msra.mxu0 0.0
    %671 = vmatprep.subr.mxu0 0.0
    %672 = vmatpush1.msra.mxu0 0.0
    %673 = vmatprep.subr.mxu0 0.0
    %674 = vmatpush1.msra.mxu0 0.0
    %675 = vmatprep.subr.mxu0 0.0
    %676 = vmatpush1.msra.mxu0 0.0
    %677 = vmatprep.mubr.f32.mxu0 0.0
    %678 = vmatmul.mubr.f32.gmra.mrb[0].mxu0 %v602
    %v679 = vpop.f32.mrb[0].mxu0
    %v680 = vadd.f32 0.0, %v679
    %v681 = vpop.f32.mrb[0].mxu0
    %682 = vmatprep.mubr.f32.mxu0 0.0
    %683 = vmatmul.mubr.f32.gmra.mrb[0].mxu0 %v605
    %v684 = vpop.f32.mrb[0].mxu0
    %v685 = vadd.f32 0.0, %v684
    %v686 = vpop.f32.mrb[0].mxu0
    %687 = vmatprep.mubr.f32.mxu0 0.0
    %688 = vmatmul.mubr.f32.gmra.mrb[0].mxu0 %v608
    %v689 = vpop.f32.mrb[0].mxu0
    %v690 = vadd.f32 0.0, %v689
    %v691 = vpop.f32.mrb[0].mxu0
    %692 = vmatprep.mubr.f32.mxu0 0.0
    %693 = vmatmul.mubr.f32.gmra.mrb[0].mxu0 %v611
    %v694 = vpop.f32.mrb[0].mxu0
    %v695 = vadd.f32 0.0, %v694
    %v696 = vpop.f32.mrb[0].mxu0
    %697 = vdwg.mxu0
    %s698 = scalar_lea.vmem [#allocation2], 8
    %v699 = vld [vmem:[%s698] sm:$0xf]
    %v701 = vsel %vm394, %v680, 0
    %v704 = vsel %vm394, %v685, 0
    %v707 = vsel %vm394, %v690, 0
    %v710 = vsel %vm394, %v695, 0
    %v713 = vsel %vm407, %v699, 0
    %715 = vmatprep.subr.mxu0 0.0
    %716 = vmatpush1.msra.mxu0 %v713
    %717 = vmatprep.subr.mxu0 0.0
    %718 = vmatpush1.msra.mxu0 0.0
    %719 = vmatprep.subr.mxu0 0.0
    %720 = vmatpush1.msra.mxu0 0.0
    %721 = vmatprep.subr.mxu0 0.0
    %722 = vmatpush1.msra.mxu0 0.0
    %723 = vmatprep.subr.mxu0 0.0
    %724 = vmatpush1.msra.mxu0 0.0
    %725 = vmatprep.subr.mxu0 0.0
    %726 = vmatpush1.msra.mxu0 0.0
    %727 = vmatprep.subr.mxu0 0.0
    %728 = vmatpush1.msra.mxu0 0.0
    %729 = vmatprep.subr.mxu0 0.0
    %730 = vmatpush1.msra.mxu0 0.0
    %731 = vmatprep.subr.mxu0 0.0
    %732 = vmatpush1.msra.mxu0 0.0
    %733 = vmatprep.subr.mxu0 0.0
    %734 = vmatpush1.msra.mxu0 0.0
    %735 = vmatprep.subr.mxu0 0.0
    %736 = vmatpush1.msra.mxu0 0.0
    %737 = vmatprep.subr.mxu0 0.0
    %738 = vmatpush1.msra.mxu0 0.0
    %739 = vmatprep.subr.mxu0 0.0
    %740 = vmatpush1.msra.mxu0 0.0
    %741 = vmatprep.subr.mxu0 0.0
    %742 = vmatpush1.msra.mxu0 0.0
    %743 = vmatprep.subr.mxu0 0.0
    %744 = vmatpush1.msra.mxu0 0.0
    %745 = vmatprep.subr.mxu0 0.0
    %746 = vmatpush1.msra.mxu0 0.0
    %747 = vmatprep.subr.mxu0 0.0
    %748 = vmatpush1.msra.mxu0 0.0
    %749 = vmatprep.subr.mxu0 0.0
    %750 = vmatpush1.msra.mxu0 0.0
    %751 = vmatprep.subr.mxu0 0.0
    %752 = vmatpush1.msra.mxu0 0.0
    %753 = vmatprep.subr.mxu0 0.0
    %754 = vmatpush1.msra.mxu0 0.0
    %755 = vmatprep.subr.mxu0 0.0
    %756 = vmatpush1.msra.mxu0 0.0
    %757 = vmatprep.subr.mxu0 0.0
    %758 = vmatpush1.msra.mxu0 0.0
    %759 = vmatprep.subr.mxu0 0.0
    %760 = vmatpush1.msra.mxu0 0.0
    %761 = vmatprep.subr.mxu0 0.0
    %762 = vmatpush1.msra.mxu0 0.0
    %763 = vmatprep.subr.mxu0 0.0
    %764 = vmatpush1.msra.mxu0 0.0
    %765 = vmatprep.subr.mxu0 0.0
    %766 = vmatpush1.msra.mxu0 0.0
    %767 = vmatprep.subr.mxu0 0.0
    %768 = vmatpush1.msra.mxu0 0.0
    %769 = vmatprep.subr.mxu0 0.0
    %770 = vmatpush1.msra.mxu0 0.0
    %771 = vmatprep.subr.mxu0 0.0
    %772 = vmatpush1.msra.mxu0 0.0
    %773 = vmatprep.subr.mxu0 0.0
    %774 = vmatpush1.msra.mxu0 0.0
    %775 = vmatprep.subr.mxu0 0.0
    %776 = vmatpush1.msra.mxu0 0.0
    %777 = vmatprep.subr.mxu0 0.0
    %778 = vmatpush1.msra.mxu0 0.0
    %779 = vmatprep.mubr.f32.mxu0 0.0
    %780 = vmatmul.mubr.f32.gmra.mrb[0].mxu0 %v701
    %v781 = vpop.f32.mrb[0].mxu0
    %v782 = vadd.f32 0.0, %v781
    %v783 = vpop.f32.mrb[0].mxu0
    %784 = vmatprep.mubr.f32.mxu0 0.0
    %785 = vmatmul.mubr.f32.gmra.mrb[0].mxu0 %v704
    %v786 = vpop.f32.mrb[0].mxu0
    %v787 = vadd.f32 0.0, %v786
    %v788 = vpop.f32.mrb[0].mxu0
    %789 = vmatprep.mubr.f32.mxu0 0.0
    %790 = vmatmul.mubr.f32.gmra.mrb[0].mxu0 %v707
    %v791 = vpop.f32.mrb[0].mxu0
    %v792 = vadd.f32 0.0, %v791
    %v793 = vpop.f32.mrb[0].mxu0
    %794 = vmatprep.mubr.f32.mxu0 0.0
    %795 = vmatmul.mubr.f32.gmra.mrb[0].mxu0 %v710
    %v796 = vpop.f32.mrb[0].mxu0
    %v797 = vadd.f32 0.0, %v796
    %v798 = vpop.f32.mrb[0].mxu0
    %799 = vdwg.mxu0
    %v800 = vadd.f32 %v578, %v782
    %v801 = vadd.f32 %v583, %v787
    %v802 = vadd.f32 %v588, %v792
    %v803 = vadd.f32 %v593, %v797
    %v804 = vld [vmem:[%s3] sm:$0x1]
    %v806 = vlaneseq
    %v807 = vshrl.u32 %v806, 7
    %v808 = vsub.s32 0, %v807
    %v809 = vrot.slane %v804, %v808
    %v811 = vadd.f32 %v800, %v809
    %v812 = vadd.f32 %v801, %v809
    %v813 = vadd.f32 %v802, %v809
    %v814 = vadd.f32 %v803, %v809
    %v815 = vmax.f32 %v811, 0.0
    %v816 = vmax.f32 %v812, 0.0
    %v817 = vmax.f32 %v813, 0.0
    %v818 = vmax.f32 %v814, 0.0
    %819 = vmatprep.subr.mxu0 0.0
    %820 = vmatpush1.msra.mxu0 %v815
    %821 = vmatprep.subr.mxu0 0.0
    %822 = vmatpush1.msra.mxu0 %v816
    %823 = vmatprep.subr.mxu0 0.0
    %824 = vmatpush1.msra.mxu0 %v817
    %825 = vmatprep.subr.mxu0 0.0
    %826 = vmatpush1.msra.mxu0 %v818
    %827 = vmatprep.subr.mxu0 0.0
    %828 = vmatpush1.msra.mxu0 0.0
    %829 = vmatprep.subr.mxu0 0.0
    %830 = vmatpush1.msra.mxu0 0.0
    %831 = vmatprep.subr.mxu0 0.0
    %832 = vmatpush1.msra.mxu0 0.0
    %833 = vmatprep.subr.mxu0 0.0
    %834 = vmatpush1.msra.mxu0 0.0
    %835 = vmatprep.subr.mxu0 0.0
    %836 = vmatpush1.msra.mxu0 0.0
    %837 = vmatprep.subr.mxu0 0.0
    %838 = vmatpush1.msra.mxu0 0.0
    %839 = vmatprep.subr.mxu0 0.0
    %840 = vmatpush1.msra.mxu0 0.0
    %841 = vmatprep.subr.mxu0 0.0
    %842 = vmatpush1.msra.mxu0 0.0
    %843 = vmatprep.subr.mxu0 0.0
    %844 = vmatpush1.msra.mxu0 0.0
    %845 = vmatprep.subr.mxu0 0.0
    %846 = vmatpush1.msra.mxu0 0.0
    %847 = vmatprep.subr.mxu0 0.0
    %848 = vmatpush1.msra.mxu0 0.0
    %849 = vmatprep.subr.mxu0 0.0
    %850 = vmatpush1.msra.mxu0 0.0
    %851 = vmatprep.subr.mxu0 0.0
    %852 = vmatpush1.msra.mxu0 0.0
    %853 = vmatprep.subr.mxu0 0.0
    %854 = vmatpush1.msra.mxu0 0.0
    %855 = vmatprep.subr.mxu0 0.0
    %856 = vmatpush1.msra.mxu0 0.0
    %857 = vmatprep.subr.mxu0 0.0
    %858 = vmatpush1.msra.mxu0 0.0
    %859 = vmatprep.subr.mxu0 0.0
    %860 = vmatpush1.msra.mxu0 0.0
    %861 = vmatprep.subr.mxu0 0.0
    %862 = vmatpush1.msra.mxu0 0.0
    %863 = vmatprep.subr.mxu0 0.0
    %864 = vmatpush1.msra.mxu0 0.0
    %865 = vmatprep.subr.mxu0 0.0
    %866 = vmatpush1.msra.mxu0 0.0
    %867 = vmatprep.subr.mxu0 0.0
    %868 = vmatpush1.msra.mxu0 0.0
    %869 = vmatprep.subr.mxu0 0.0
    %870 = vmatpush1.msra.mxu0 0.0
    %871 = vmatprep.subr.mxu0 0.0
    %872 = vmatpush1.msra.mxu0 0.0
    %873 = vmatprep.subr.mxu0 0.0
    %874 = vmatpush1.msra.mxu0 0.0
    %875 = vmatprep.subr.mxu0 0.0
    %876 = vmatpush1.msra.mxu0 0.0
    %877 = vmatprep.subr.mxu0 0.0
    %878 = vmatpush1.msra.mxu0 0.0
    %879 = vmatprep.subr.mxu0 0.0
    %880 = vmatpush1.msra.mxu0 0.0
    %881 = vmatprep.subr.mxu0 0.0
    %882 = vmatpush1.msra.mxu0 0.0
    %883 = vmatprep.mubr.f32.mxu0 0.0
    %884 = vmatmul.mubr.f32.gmra.mrb[0].mxu0 %v193
    %v885 = vpop.f32.mrb[0].mxu0
    %v886 = vadd.f32 0.0, %v885
    %v887 = vpop.f32.mrb[0].mxu0
    %888 = vmatprep.mubr.f32.mxu0 0.0
    %889 = vmatmul.mubr.f32.gmra.mrb[0].mxu0 %v196
    %v890 = vpop.f32.mrb[0].mxu0
    %v891 = vadd.f32 0.0, %v890
    %v892 = vpop.f32.mrb[0].mxu0
    %893 = vmatprep.mubr.f32.mxu0 0.0
    %894 = vmatmul.mubr.f32.gmra.mrb[0].mxu0 %v199
    %v895 = vpop.f32.mrb[0].mxu0
    %v896 = vadd.f32 0.0, %v895
    %v897 = vpop.f32.mrb[0].mxu0
    %898 = vmatprep.mubr.f32.mxu0 0.0
    %899 = vmatmul.mubr.f32.gmra.mrb[0].mxu0 %v202
    %v900 = vpop.f32.mrb[0].mxu0
    %v901 = vadd.f32 0.0, %v900
    %v902 = vpop.f32.mrb[0].mxu0
    %903 = vdwg.mxu0
    %v904 = vld [vmem:[#allocation4] sm:$0xff]
    %905 = vmatprep.subr.mxu0 0.0
    %906 = vmatpush1.msra.mxu0 %v815
    %907 = vmatprep.subr.mxu0 0.0
    %908 = vmatpush1.msra.mxu0 %v816
    %909 = vmatprep.subr.mxu0 0.0
    %910 = vmatpush1.msra.mxu0 %v817
    %911 = vmatprep.subr.mxu0 0.0
    %912 = vmatpush1.msra.mxu0 %v818
    %913 = vmatprep.subr.mxu0 0.0
    %914 = vmatpush1.msra.mxu0 0.0
    %915 = vmatprep.subr.mxu0 0.0
    %916 = vmatpush1.msra.mxu0 0.0
    %917 = vmatprep.subr.mxu0 0.0
    %918 = vmatpush1.msra.mxu0 0.0
    %919 = vmatprep.subr.mxu0 0.0
    %920 = vmatpush1.msra.mxu0 0.0
    %921 = vmatprep.subr.mxu0 0.0
    %922 = vmatpush1.msra.mxu0 0.0
    %923 = vmatprep.subr.mxu0 0.0
    %924 = vmatpush1.msra.mxu0 0.0
    %925 = vmatprep.subr.mxu0 0.0
    %926 = vmatpush1.msra.mxu0 0.0
    %927 = vmatprep.subr.mxu0 0.0
    %928 = vmatpush1.msra.mxu0 0.0
    %929 = vmatprep.subr.mxu0 0.0
    %930 = vmatpush1.msra.mxu0 0.0
    %931 = vmatprep.subr.mxu0 0.0
    %932 = vmatpush1.msra.mxu0 0.0
    %933 = vmatprep.subr.mxu0 0.0
    %934 = vmatpush1.msra.mxu0 0.0
    %935 = vmatprep.subr.mxu0 0.0
    %936 = vmatpush1.msra.mxu0 0.0
    %937 = vmatprep.subr.mxu0 0.0
    %938 = vmatpush1.msra.mxu0 0.0
    %939 = vmatprep.subr.mxu0 0.0
    %940 = vmatpush1.msra.mxu0 0.0
    %941 = vmatprep.subr.mxu0 0.0
    %942 = vmatpush1.msra.mxu0 0.0
    %943 = vmatprep.subr.mxu0 0.0
    %944 = vmatpush1.msra.mxu0 0.0
    %945 = vmatprep.subr.mxu0 0.0
    %946 = vmatpush1.msra.mxu0 0.0
    %947 = vmatprep.subr.mxu0 0.0
    %948 = vmatpush1.msra.mxu0 0.0
    %949 = vmatprep.subr.mxu0 0.0
    %950 = vmatpush1.msra.mxu0 0.0
    %951 = vmatprep.subr.mxu0 0.0
    %952 = vmatpush1.msra.mxu0 0.0
    %953 = vmatprep.subr.mxu0 0.0
    %954 = vmatpush1.msra.mxu0 0.0
    %955 = vmatprep.subr.mxu0 0.0
    %956 = vmatpush1.msra.mxu0 0.0
    %957 = vmatprep.subr.mxu0 0.0
    %958 = vmatpush1.msra.mxu0 0.0
    %959 = vmatprep.subr.mxu0 0.0
    %960 = vmatpush1.msra.mxu0 0.0
    %961 = vmatprep.subr.mxu0 0.0
    %962 = vmatpush1.msra.mxu0 0.0
    %963 = vmatprep.subr.mxu0 0.0
    %964 = vmatpush1.msra.mxu0 0.0
    %965 = vmatprep.subr.mxu0 0.0
    %966 = vmatpush1.msra.mxu0 0.0
    %967 = vmatprep.subr.mxu0 0.0
    %968 = vmatpush1.msra.mxu0 0.0
    %969 = vmatprep.mubr.f32.mxu0 0.0
    %970 = vmatmul.mubr.f32.gmra.mrb[0].mxu0 %v296
    %v971 = vpop.f32.mrb[0].mxu0
    %v972 = vadd.f32 0.0, %v971
    %v973 = vpop.f32.mrb[0].mxu0
    %974 = vmatprep.mubr.f32.mxu0 0.0
    %975 = vmatmul.mubr.f32.gmra.mrb[0].mxu0 %v299
    %v976 = vpop.f32.mrb[0].mxu0
    %v977 = vadd.f32 0.0, %v976
    %v978 = vpop.f32.mrb[0].mxu0
    %979 = vmatprep.mubr.f32.mxu0 0.0
    %980 = vmatmul.mubr.f32.gmra.mrb[0].mxu0 %v302
    %v981 = vpop.f32.mrb[0].mxu0
    %v982 = vadd.f32 0.0, %v981
    %v983 = vpop.f32.mrb[0].mxu0
    %984 = vmatprep.mubr.f32.mxu0 0.0
    %985 = vmatmul.mubr.f32.gmra.mrb[0].mxu0 %v305
    %v986 = vpop.f32.mrb[0].mxu0
    %v987 = vadd.f32 0.0, %v986
    %v988 = vpop.f32.mrb[0].mxu0
    %989 = vdwg.mxu0
    %s990 = scalar_lea.vmem [#allocation4], 8
    %v991 = vld [vmem:[%s990] sm:$0xff]
    %vm992 = vcmask 64512
    %v994 = vsel %vm992, %v972, 0
    %v997 = vsel %vm992, %v977, 0
    %v1000 = vsel %vm992, %v982, 0
    %v1003 = vsel %vm992, %v987, 0
    %1005 = vmatprep.subr.mxu0 0.0
    %1006 = vmatpush1.msra.mxu0 %v991
    %1007 = vmatprep.subr.mxu0 0.0
    %1008 = vmatpush1.msra.mxu0 0.0
    %1009 = vmatprep.subr.mxu0 0.0
    %1010 = vmatpush1.msra.mxu0 0.0
    %1011 = vmatprep.subr.mxu0 0.0
    %1012 = vmatpush1.msra.mxu0 0.0
    %1013 = vmatprep.subr.mxu0 0.0
    %1014 = vmatpush1.msra.mxu0 0.0
    %1015 = vmatprep.subr.mxu0 0.0
    %1016 = vmatpush1.msra.mxu0 0.0
    %1017 = vmatprep.subr.mxu0 0.0
    %1018 = vmatpush1.msra.mxu0 0.0
    %1019 = vmatprep.subr.mxu0 0.0
    %1020 = vmatpush1.msra.mxu0 0.0
    %1021 = vmatprep.subr.mxu0 0.0
    %1022 = vmatpush1.msra.mxu0 0.0
    %1023 = vmatprep.subr.mxu0 0.0
    %1024 = vmatpush1.msra.mxu0 0.0
    %1025 = vmatprep.subr.mxu0 0.0
    %1026 = vmatpush1.msra.mxu0 0.0
    %1027 = vmatprep.subr.mxu0 0.0
    %1028 = vmatpush1.msra.mxu0 0.0
    %1029 = vmatprep.subr.mxu0 0.0
    %1030 = vmatpush1.msra.mxu0 0.0
    %1031 = vmatprep.subr.mxu0 0.0
    %1032 = vmatpush1.msra.mxu0 0.0
    %1033 = vmatprep.subr.mxu0 0.0
    %1034 = vmatpush1.msra.mxu0 0.0
    %1035 = vmatprep.subr.mxu0 0.0
    %1036 = vmatpush1.msra.mxu0 0.0
    %1037 = vmatprep.subr.mxu0 0.0
    %1038 = vmatpush1.msra.mxu0 0.0
    %1039 = vmatprep.subr.mxu0 0.0
    %1040 = vmatpush1.msra.mxu0 0.0
    %1041 = vmatprep.subr.mxu0 0.0
    %1042 = vmatpush1.msra.mxu0 0.0
    %1043 = vmatprep.subr.mxu0 0.0
    %1044 = vmatpush1.msra.mxu0 0.0
    %1045 = vmatprep.subr.mxu0 0.0
    %1046 = vmatpush1.msra.mxu0 0.0
    %1047 = vmatprep.subr.mxu0 0.0
    %1048 = vmatpush1.msra.mxu0 0.0
    %1049 = vmatprep.subr.mxu0 0.0
    %1050 = vmatpush1.msra.mxu0 0.0
    %1051 = vmatprep.subr.mxu0 0.0
    %1052 = vmatpush1.msra.mxu0 0.0
    %1053 = vmatprep.subr.mxu0 0.0
    %1054 = vmatpush1.msra.mxu0 0.0
    %1055 = vmatprep.subr.mxu0 0.0
    %1056 = vmatpush1.msra.mxu0 0.0
    %1057 = vmatprep.subr.mxu0 0.0
    %1058 = vmatpush1.msra.mxu0 0.0
    %1059 = vmatprep.subr.mxu0 0.0
    %1060 = vmatpush1.msra.mxu0 0.0
    %1061 = vmatprep.subr.mxu0 0.0
    %1062 = vmatpush1.msra.mxu0 0.0
    %1063 = vmatprep.subr.mxu0 0.0
    %1064 = vmatpush1.msra.mxu0 0.0
    %1065 = vmatprep.subr.mxu0 0.0
    %1066 = vmatpush1.msra.mxu0 0.0
    %1067 = vmatprep.subr.mxu0 0.0
    %1068 = vmatpush1.msra.mxu0 0.0
    %1069 = vmatprep.mubr.f32.mxu0 0.0
    %1070 = vmatmul.mubr.f32.gmra.mrb[0].mxu0 %v994
    %v1071 = vpop.f32.mrb[0].mxu0
    %v1072 = vadd.f32 0.0, %v1071
    %v1073 = vpop.f32.mrb[0].mxu0
    %1074 = vmatprep.mubr.f32.mxu0 0.0
    %1075 = vmatmul.mubr.f32.gmra.mrb[0].mxu0 %v997
    %v1076 = vpop.f32.mrb[0].mxu0
    %v1077 = vadd.f32 0.0, %v1076
    %v1078 = vpop.f32.mrb[0].mxu0
    %1079 = vmatprep.mubr.f32.mxu0 0.0
    %1080 = vmatmul.mubr.f32.gmra.mrb[0].mxu0 %v1000
    %v1081 = vpop.f32.mrb[0].mxu0
    %v1082 = vadd.f32 0.0, %v1081
    %v1083 = vpop.f32.mrb[0].mxu0
    %1084 = vmatprep.mubr.f32.mxu0 0.0
    %1085 = vmatmul.mubr.f32.gmra.mrb[0].mxu0 %v1003
    %v1086 = vpop.f32.mrb[0].mxu0
    %v1087 = vadd.f32 0.0, %v1086
    %v1088 = vpop.f32.mrb[0].mxu0
    %1089 = vdwg.mxu0
    %v1091 = vsel %vm992, %v886, 0
    %v1094 = vsel %vm992, %v891, 0
    %v1097 = vsel %vm992, %v896, 0
    %v1100 = vsel %vm992, %v901, 0
    %1102 = vmatprep.subr.mxu0 0.0
    %1103 = vmatpush1.msra.mxu0 %v904
    %1104 = vmatprep.subr.mxu0 0.0
    %1105 = vmatpush1.msra.mxu0 0.0
    %1106 = vmatprep.subr.mxu0 0.0
    %1107 = vmatpush1.msra.mxu0 0.0
    %1108 = vmatprep.subr.mxu0 0.0
    %1109 = vmatpush1.msra.mxu0 0.0
    %1110 = vmatprep.subr.mxu0 0.0
    %1111 = vmatpush1.msra.mxu0 0.0
    %1112 = vmatprep.subr.mxu0 0.0
    %1113 = vmatpush1.msra.mxu0 0.0
    %1114 = vmatprep.subr.mxu0 0.0
    %1115 = vmatpush1.msra.mxu0 0.0
    %1116 = vmatprep.subr.mxu0 0.0
    %1117 = vmatpush1.msra.mxu0 0.0
    %1118 = vmatprep.subr.mxu0 0.0
    %1119 = vmatpush1.msra.mxu0 0.0
    %1120 = vmatprep.subr.mxu0 0.0
    %1121 = vmatpush1.msra.mxu0 0.0
    %1122 = vmatprep.subr.mxu0 0.0
    %1123 = vmatpush1.msra.mxu0 0.0
    %1124 = vmatprep.subr.mxu0 0.0
    %1125 = vmatpush1.msra.mxu0 0.0
    %1126 = vmatprep.subr.mxu0 0.0
    %1127 = vmatpush1.msra.mxu0 0.0
    %1128 = vmatprep.subr.mxu0 0.0
    %1129 = vmatpush1.msra.mxu0 0.0
    %1130 = vmatprep.subr.mxu0 0.0
    %1131 = vmatpush1.msra.mxu0 0.0
    %1132 = vmatprep.subr.mxu0 0.0
    %1133 = vmatpush1.msra.mxu0 0.0
    %1134 = vmatprep.subr.mxu0 0.0
    %1135 = vmatpush1.msra.mxu0 0.0
    %1136 = vmatprep.subr.mxu0 0.0
    %1137 = vmatpush1.msra.mxu0 0.0
    %1138 = vmatprep.subr.mxu0 0.0
    %1139 = vmatpush1.msra.mxu0 0.0
    %1140 = vmatprep.subr.mxu0 0.0
    %1141 = vmatpush1.msra.mxu0 0.0
    %1142 = vmatprep.subr.mxu0 0.0
    %1143 = vmatpush1.msra.mxu0 0.0
    %1144 = vmatprep.subr.mxu0 0.0
    %1145 = vmatpush1.msra.mxu0 0.0
    %1146 = vmatprep.subr.mxu0 0.0
    %1147 = vmatpush1.msra.mxu0 0.0
    %1148 = vmatprep.subr.mxu0 0.0
    %1149 = vmatpush1.msra.mxu0 0.0
    %1150 = vmatprep.subr.mxu0 0.0
    %1151 = vmatpush1.msra.mxu0 0.0
    %1152 = vmatprep.subr.mxu0 0.0
    %1153 = vmatpush1.msra.mxu0 0.0
    %1154 = vmatprep.subr.mxu0 0.0
    %1155 = vmatpush1.msra.mxu0 0.0
    %1156 = vmatprep.subr.mxu0 0.0
    %1157 = vmatpush1.msra.mxu0 0.0
    %1158 = vmatprep.subr.mxu0 0.0
    %1159 = vmatpush1.msra.mxu0 0.0
    %1160 = vmatprep.subr.mxu0 0.0
    %1161 = vmatpush1.msra.mxu0 0.0
    %1162 = vmatprep.subr.mxu0 0.0
    %1163 = vmatpush1.msra.mxu0 0.0
    %1164 = vmatprep.subr.mxu0 0.0
    %1165 = vmatpush1.msra.mxu0 0.0
    %1166 = vmatprep.mubr.f32.mxu0 0.0
    %1167 = vmatmul.mubr.f32.gmra.mrb[0].mxu0 %v1091
    %v1168 = vpop.f32.mrb[0].mxu0
    %v1169 = vadd.f32 %v1072, %v1168
    %v1170 = vpop.f32.mrb[0].mxu0
    %1171 = vmatprep.mubr.f32.mxu0 0.0
    %1172 = vmatmul.mubr.f32.gmra.mrb[0].mxu0 %v1094
    %v1173 = vpop.f32.mrb[0].mxu0
    %v1174 = vadd.f32 %v1077, %v1173
    %v1175 = vpop.f32.mrb[0].mxu0
    %1176 = vmatprep.mubr.f32.mxu0 0.0
    %1177 = vmatmul.mubr.f32.gmra.mrb[0].mxu0 %v1097
    %v1178 = vpop.f32.mrb[0].mxu0
    %v1179 = vadd.f32 %v1082, %v1178
    %v1180 = vpop.f32.mrb[0].mxu0
    %1181 = vmatprep.mubr.f32.mxu0 0.0
    %1182 = vmatmul.mubr.f32.gmra.mrb[0].mxu0 %v1100
    %v1183 = vpop.f32.mrb[0].mxu0
    %v1184 = vadd.f32 %v1087, %v1183
    %v1185 = vpop.f32.mrb[0].mxu0
    %1186 = vdwg.mxu0
    %1187 = vmatprep.subr.mxu0 0.0
    %1188 = vmatpush1.msra.mxu0 %v815
    %1189 = vmatprep.subr.mxu0 0.0
    %1190 = vmatpush1.msra.mxu0 %v816
    %1191 = vmatprep.subr.mxu0 0.0
    %1192 = vmatpush1.msra.mxu0 %v817
    %1193 = vmatprep.subr.mxu0 0.0
    %1194 = vmatpush1.msra.mxu0 %v818
    %1195 = vmatprep.subr.mxu0 0.0
    %1196 = vmatpush1.msra.mxu0 0.0
    %1197 = vmatprep.subr.mxu0 0.0
    %1198 = vmatpush1.msra.mxu0 0.0
    %1199 = vmatprep.subr.mxu0 0.0
    %1200 = vmatpush1.msra.mxu0 0.0
    %1201 = vmatprep.subr.mxu0 0.0
    %1202 = vmatpush1.msra.mxu0 0.0
    %1203 = vmatprep.subr.mxu0 0.0
    %1204 = vmatpush1.msra.mxu0 0.0
    %1205 = vmatprep.subr.mxu0 0.0
    %1206 = vmatpush1.msra.mxu0 0.0
    %1207 = vmatprep.subr.mxu0 0.0
    %1208 = vmatpush1.msra.mxu0 0.0
    %1209 = vmatprep.subr.mxu0 0.0
    %1210 = vmatpush1.msra.mxu0 0.0
    %1211 = vmatprep.subr.mxu0 0.0
    %1212 = vmatpush1.msra.mxu0 0.0
    %1213 = vmatprep.subr.mxu0 0.0
    %1214 = vmatpush1.msra.mxu0 0.0
    %1215 = vmatprep.subr.mxu0 0.0
    %1216 = vmatpush1.msra.mxu0 0.0
    %1217 = vmatprep.subr.mxu0 0.0
    %1218 = vmatpush1.msra.mxu0 0.0
    %1219 = vmatprep.subr.mxu0 0.0
    %1220 = vmatpush1.msra.mxu0 0.0
    %1221 = vmatprep.subr.mxu0 0.0
    %1222 = vmatpush1.msra.mxu0 0.0
    %1223 = vmatprep.subr.mxu0 0.0
    %1224 = vmatpush1.msra.mxu0 0.0
    %1225 = vmatprep.subr.mxu0 0.0
    %1226 = vmatpush1.msra.mxu0 0.0
    %1227 = vmatprep.subr.mxu0 0.0
    %1228 = vmatpush1.msra.mxu0 0.0
    %1229 = vmatprep.subr.mxu0 0.0
    %1230 = vmatpush1.msra.mxu0 0.0
    %1231 = vmatprep.subr.mxu0 0.0
    %1232 = vmatpush1.msra.mxu0 0.0
    %1233 = vmatprep.subr.mxu0 0.0
    %1234 = vmatpush1.msra.mxu0 0.0
    %1235 = vmatprep.subr.mxu0 0.0
    %1236 = vmatpush1.msra.mxu0 0.0
    %1237 = vmatprep.subr.mxu0 0.0
    %1238 = vmatpush1.msra.mxu0 0.0
    %1239 = vmatprep.subr.mxu0 0.0
    %1240 = vmatpush1.msra.mxu0 0.0
    %1241 = vmatprep.subr.mxu0 0.0
    %1242 = vmatpush1.msra.mxu0 0.0
    %1243 = vmatprep.subr.mxu0 0.0
    %1244 = vmatpush1.msra.mxu0 0.0
    %1245 = vmatprep.subr.mxu0 0.0
    %1246 = vmatpush1.msra.mxu0 0.0
    %1247 = vmatprep.subr.mxu0 0.0
    %1248 = vmatpush1.msra.mxu0 0.0
    %1249 = vmatprep.subr.mxu0 0.0
    %1250 = vmatpush1.msra.mxu0 0.0
    %1251 = vmatprep.mubr.f32.mxu0 0.0
    %1252 = vmatmul.mubr.f32.gmra.mrb[0].mxu0 %v602
    %v1253 = vpop.f32.mrb[0].mxu0
    %v1254 = vadd.f32 0.0, %v1253
    %v1255 = vpop.f32.mrb[0].mxu0
    %1256 = vmatprep.mubr.f32.mxu0 0.0
    %1257 = vmatmul.mubr.f32.gmra.mrb[0].mxu0 %v605
    %v1258 = vpop.f32.mrb[0].mxu0
    %v1259 = vadd.f32 0.0, %v1258
    %v1260 = vpop.f32.mrb[0].mxu0
    %1261 = vmatprep.mubr.f32.mxu0 0.0
    %1262 = vmatmul.mubr.f32.gmra.mrb[0].mxu0 %v608
    %v1263 = vpop.f32.mrb[0].mxu0
    %v1264 = vadd.f32 0.0, %v1263
    %v1265 = vpop.f32.mrb[0].mxu0
    %1266 = vmatprep.mubr.f32.mxu0 0.0
    %1267 = vmatmul.mubr.f32.gmra.mrb[0].mxu0 %v611
    %v1268 = vpop.f32.mrb[0].mxu0
    %v1269 = vadd.f32 0.0, %v1268
    %v1270 = vpop.f32.mrb[0].mxu0
    %1271 = vdwg.mxu0
    %s1272 = scalar_lea.vmem [#allocation4], 16
    %v1273 = vld [vmem:[%s1272] sm:$0xff]
    %v1275 = vsel %vm992, %v1254, 0
    %v1278 = vsel %vm992, %v1259, 0
    %v1281 = vsel %vm992, %v1264, 0
    %v1284 = vsel %vm992, %v1269, 0
    %1286 = vmatprep.subr.mxu0 0.0
    %1287 = vmatpush1.msra.mxu0 %v1273
    %1288 = vmatprep.subr.mxu0 0.0
    %1289 = vmatpush1.msra.mxu0 0.0
    %1290 = vmatprep.subr.mxu0 0.0
    %1291 = vmatpush1.msra.mxu0 0.0
    %1292 = vmatprep.subr.mxu0 0.0
    %1293 = vmatpush1.msra.mxu0 0.0
    %1294 = vmatprep.subr.mxu0 0.0
    %1295 = vmatpush1.msra.mxu0 0.0
    %1296 = vmatprep.subr.mxu0 0.0
    %1297 = vmatpush1.msra.mxu0 0.0
    %1298 = vmatprep.subr.mxu0 0.0
    %1299 = vmatpush1.msra.mxu0 0.0
    %1300 = vmatprep.subr.mxu0 0.0
    %1301 = vmatpush1.msra.mxu0 0.0
    %1302 = vmatprep.subr.mxu0 0.0
    %1303 = vmatpush1.msra.mxu0 0.0
    %1304 = vmatprep.subr.mxu0 0.0
    %1305 = vmatpush1.msra.mxu0 0.0
    %1306 = vmatprep.subr.mxu0 0.0
    %1307 = vmatpush1.msra.mxu0 0.0
    %1308 = vmatprep.subr.mxu0 0.0
    %1309 = vmatpush1.msra.mxu0 0.0
    %1310 = vmatprep.subr.mxu0 0.0
    %1311 = vmatpush1.msra.mxu0 0.0
    %1312 = vmatprep.subr.mxu0 0.0
    %1313 = vmatpush1.msra.mxu0 0.0
    %1314 = vmatprep.subr.mxu0 0.0
    %1315 = vmatpush1.msra.mxu0 0.0
    %1316 = vmatprep.subr.mxu0 0.0
    %1317 = vmatpush1.msra.mxu0 0.0
    %1318 = vmatprep.subr.mxu0 0.0
    %1319 = vmatpush1.msra.mxu0 0.0
    %1320 = vmatprep.subr.mxu0 0.0
    %1321 = vmatpush1.msra.mxu0 0.0
    %1322 = vmatprep.subr.mxu0 0.0
    %1323 = vmatpush1.msra.mxu0 0.0
    %1324 = vmatprep.subr.mxu0 0.0
    %1325 = vmatpush1.msra.mxu0 0.0
    %1326 = vmatprep.subr.mxu0 0.0
    %1327 = vmatpush1.msra.mxu0 0.0
    %1328 = vmatprep.subr.mxu0 0.0
    %1329 = vmatpush1.msra.mxu0 0.0
    %1330 = vmatprep.subr.mxu0 0.0
    %1331 = vmatpush1.msra.mxu0 0.0
    %1332 = vmatprep.subr.mxu0 0.0
    %1333 = vmatpush1.msra.mxu0 0.0
    %1334 = vmatprep.subr.mxu0 0.0
    %1335 = vmatpush1.msra.mxu0 0.0
    %1336 = vmatprep.subr.mxu0 0.0
    %1337 = vmatpush1.msra.mxu0 0.0
    %1338 = vmatprep.subr.mxu0 0.0
    %1339 = vmatpush1.msra.mxu0 0.0
    %1340 = vmatprep.subr.mxu0 0.0
    %1341 = vmatpush1.msra.mxu0 0.0
    %1342 = vmatprep.subr.mxu0 0.0
    %1343 = vmatpush1.msra.mxu0 0.0
    %1344 = vmatprep.subr.mxu0 0.0
    %1345 = vmatpush1.msra.mxu0 0.0
    %1346 = vmatprep.subr.mxu0 0.0
    %1347 = vmatpush1.msra.mxu0 0.0
    %1348 = vmatprep.subr.mxu0 0.0
    %1349 = vmatpush1.msra.mxu0 0.0
    %1350 = vmatprep.mubr.f32.mxu0 0.0
    %1351 = vmatmul.mubr.f32.gmra.mrb[0].mxu0 %v1275
    %v1352 = vpop.f32.mrb[0].mxu0
    %v1353 = vadd.f32 0.0, %v1352
    %v1354 = vpop.f32.mrb[0].mxu0
    %1355 = vmatprep.mubr.f32.mxu0 0.0
    %1356 = vmatmul.mubr.f32.gmra.mrb[0].mxu0 %v1278
    %v1357 = vpop.f32.mrb[0].mxu0
    %v1358 = vadd.f32 0.0, %v1357
    %v1359 = vpop.f32.mrb[0].mxu0
    %1360 = vmatprep.mubr.f32.mxu0 0.0
    %1361 = vmatmul.mubr.f32.gmra.mrb[0].mxu0 %v1281
    %v1362 = vpop.f32.mrb[0].mxu0
    %v1363 = vadd.f32 0.0, %v1362
    %v1364 = vpop.f32.mrb[0].mxu0
    %1365 = vmatprep.mubr.f32.mxu0 0.0
    %1366 = vmatmul.mubr.f32.gmra.mrb[0].mxu0 %v1284
    %v1367 = vpop.f32.mrb[0].mxu0
    %v1368 = vadd.f32 0.0, %v1367
    %v1369 = vpop.f32.mrb[0].mxu0
    %1370 = vdwg.mxu0
    %v1371 = vadd.f32 %v1169, %v1353
    %v1372 = vadd.f32 %v1174, %v1358
    %v1373 = vadd.f32 %v1179, %v1363
    %v1374 = vadd.f32 %v1184, %v1368
    %v1375 = vld [vmem:[%s5] sm:$0x1]
    %v1377 = vlaneseq
    %v1378 = vshrl.u32 %v1377, 7
    %v1379 = vsub.s32 0, %v1378
    %v1380 = vrot.slane %v1375, %v1379
    %v1382 = vadd.f32 %v1371, %v1380
    %v1383 = vadd.f32 %v1372, %v1380
    %v1384 = vadd.f32 %v1373, %v1380
    %v1385 = vadd.f32 %v1374, %v1380
    %v1386 = vmax.f32 %v1382, 0.0
    %v1387 = vmax.f32 %v1383, 0.0
    %v1388 = vmax.f32 %v1384, 0.0
    %v1389 = vmax.f32 %v1385, 0.0
    %v1390 = vld [vmem:[#allocation6] sm:$0xff]
    %v1391 = vld [vmem:[#allocation6 + $0x8] sm:$0xff]
    %v1392 = vld [vmem:[%s8] sm:$0x1]
    %v1394 = vlaneseq
    %v1395 = vshrl.u32 %v1394, 7
    %v1396 = vsub.s32 0, %v1395
    %v1397 = vrot.slane %v1392, %v1396
    %vm1399 = vcmask 130048
    %v1401 = vsel %vm1399, %v1386, 0
    %v1404 = vsel %vm1399, %v1387, 0
    %v1407 = vsel %vm1399, %v1388, 0
    %v1410 = vsel %vm1399, %v1389, 0
    %1412 = vmatprep.subr.mxu0 0.0
    %1413 = vmatpush1.msra.mxu0 %v1390
    %1414 = vmatprep.subr.mxu0 0.0
    %1415 = vmatpush1.msra.mxu0 %v1391
    %1416 = vmatprep.subr.mxu0 0.0
    %1417 = vmatpush1.msra.mxu0 0.0
    %1418 = vmatprep.subr.mxu0 0.0
    %1419 = vmatpush1.msra.mxu0 0.0
    %1420 = vmatprep.subr.mxu0 0.0
    %1421 = vmatpush1.msra.mxu0 0.0
    %1422 = vmatprep.subr.mxu0 0.0
    %1423 = vmatpush1.msra.mxu0 0.0
    %1424 = vmatprep.subr.mxu0 0.0
    %1425 = vmatpush1.msra.mxu0 0.0
    %1426 = vmatprep.subr.mxu0 0.0
    %1427 = vmatpush1.msra.mxu0 0.0
    %1428 = vmatprep.subr.mxu0 0.0
    %1429 = vmatpush1.msra.mxu0 0.0
    %1430 = vmatprep.subr.mxu0 0.0
    %1431 = vmatpush1.msra.mxu0 0.0
    %1432 = vmatprep.subr.mxu0 0.0
    %1433 = vmatpush1.msra.mxu0 0.0
    %1434 = vmatprep.subr.mxu0 0.0
    %1435 = vmatpush1.msra.mxu0 0.0
    %1436 = vmatprep.subr.mxu0 0.0
    %1437 = vmatpush1.msra.mxu0 0.0
    %1438 = vmatprep.subr.mxu0 0.0
    %1439 = vmatpush1.msra.mxu0 0.0
    %1440 = vmatprep.subr.mxu0 0.0
    %1441 = vmatpush1.msra.mxu0 0.0
    %1442 = vmatprep.subr.mxu0 0.0
    %1443 = vmatpush1.msra.mxu0 0.0
    %1444 = vmatprep.subr.mxu0 0.0
    %1445 = vmatpush1.msra.mxu0 0.0
    %1446 = vmatprep.subr.mxu0 0.0
    %1447 = vmatpush1.msra.mxu0 0.0
    %1448 = vmatprep.subr.mxu0 0.0
    %1449 = vmatpush1.msra.mxu0 0.0
    %1450 = vmatprep.subr.mxu0 0.0
    %1451 = vmatpush1.msra.mxu0 0.0
    %1452 = vmatprep.subr.mxu0 0.0
    %1453 = vmatpush1.msra.mxu0 0.0
    %1454 = vmatprep.subr.mxu0 0.0
    %1455 = vmatpush1.msra.mxu0 0.0
    %1456 = vmatprep.subr.mxu0 0.0
    %1457 = vmatpush1.msra.mxu0 0.0
    %1458 = vmatprep.subr.mxu0 0.0
    %1459 = vmatpush1.msra.mxu0 0.0
    %1460 = vmatprep.subr.mxu0 0.0
    %1461 = vmatpush1.msra.mxu0 0.0
    %1462 = vmatprep.subr.mxu0 0.0
    %1463 = vmatpush1.msra.mxu0 0.0
    %1464 = vmatprep.subr.mxu0 0.0
    %1465 = vmatpush1.msra.mxu0 0.0
    %1466 = vmatprep.subr.mxu0 0.0
    %1467 = vmatpush1.msra.mxu0 0.0
    %1468 = vmatprep.subr.mxu0 0.0
    %1469 = vmatpush1.msra.mxu0 0.0
    %1470 = vmatprep.subr.mxu0 0.0
    %1471 = vmatpush1.msra.mxu0 0.0
    %1472 = vmatprep.subr.mxu0 0.0
    %1473 = vmatpush1.msra.mxu0 0.0
    %1474 = vmatprep.subr.mxu0 0.0
    %1475 = vmatpush1.msra.mxu0 0.0
    %1476 = vmatprep.mubr.f32.mxu0 0.0
    %1477 = vmatmul.mubr.f32.gmra.mrb[0].mxu0 %v1401
    %v1478 = vpop.f32.mrb[0].mxu0
    %v1479 = vadd.f32 %v1397, %v1478
    %v1480 = vpop.f32.mrb[0].mxu0
    %1481 = vmatprep.mubr.f32.mxu0 0.0
    %1482 = vmatmul.mubr.f32.gmra.mrb[0].mxu0 %v1404
    %v1483 = vpop.f32.mrb[0].mxu0
    %v1484 = vadd.f32 %v1397, %v1483
    %v1485 = vpop.f32.mrb[0].mxu0
    %1486 = vmatprep.mubr.f32.mxu0 0.0
    %1487 = vmatmul.mubr.f32.gmra.mrb[0].mxu0 %v1407
    %v1488 = vpop.f32.mrb[0].mxu0
    %v1489 = vadd.f32 %v1397, %v1488
    %v1490 = vpop.f32.mrb[0].mxu0
    %1491 = vmatprep.mubr.f32.mxu0 0.0
    %1492 = vmatmul.mubr.f32.gmra.mrb[0].mxu0 %v1410
    %v1493 = vpop.f32.mrb[0].mxu0
    %v1494 = vadd.f32 %v1397, %v1493
    %v1495 = vpop.f32.mrb[0].mxu0
    %1496 = vdwg.mxu0
    %s1497 = scalar_lea.vmem [#allocation6], 16
    %v1498 = vld [vmem:[%s1497] sm:$0xff]
    %v1499 = vld [vmem:[%s1497 + $0x8] sm:$0xff]
    %s1500 = scalar_lea.vmem %s8, 1
    %v1501 = vld [vmem:[%s1500] sm:$0x1]
    %v1503 = vlaneseq
    %v1504 = vshrl.u32 %v1503, 7
    %v1505 = vsub.s32 0, %v1504
    %v1506 = vrot.slane %v1501, %v1505
    %1508 = vmatprep.subr.mxu0 0.0
    %1509 = vmatpush1.msra.mxu0 %v1498
    %1510 = vmatprep.subr.mxu0 0.0
    %1511 = vmatpush1.msra.mxu0 %v1499
    %1512 = vmatprep.subr.mxu0 0.0
    %1513 = vmatpush1.msra.mxu0 0.0
    %1514 = vmatprep.subr.mxu0 0.0
    %1515 = vmatpush1.msra.mxu0 0.0
    %1516 = vmatprep.subr.mxu0 0.0
    %1517 = vmatpush1.msra.mxu0 0.0
    %1518 = vmatprep.subr.mxu0 0.0
    %1519 = vmatpush1.msra.mxu0 0.0
    %1520 = vmatprep.subr.mxu0 0.0
    %1521 = vmatpush1.msra.mxu0 0.0
    %1522 = vmatprep.subr.mxu0 0.0
    %1523 = vmatpush1.msra.mxu0 0.0
    %1524 = vmatprep.subr.mxu0 0.0
    %1525 = vmatpush1.msra.mxu0 0.0
    %1526 = vmatprep.subr.mxu0 0.0
    %1527 = vmatpush1.msra.mxu0 0.0
    %1528 = vmatprep.subr.mxu0 0.0
    %1529 = vmatpush1.msra.mxu0 0.0
    %1530 = vmatprep.subr.mxu0 0.0
    %1531 = vmatpush1.msra.mxu0 0.0
    %1532 = vmatprep.subr.mxu0 0.0
    %1533 = vmatpush1.msra.mxu0 0.0
    %1534 = vmatprep.subr.mxu0 0.0
    %1535 = vmatpush1.msra.mxu0 0.0
    %1536 = vmatprep.subr.mxu0 0.0
    %1537 = vmatpush1.msra.mxu0 0.0
    %1538 = vmatprep.subr.mxu0 0.0
    %1539 = vmatpush1.msra.mxu0 0.0
    %1540 = vmatprep.subr.mxu0 0.0
    %1541 = vmatpush1.msra.mxu0 0.0
    %1542 = vmatprep.subr.mxu0 0.0
    %1543 = vmatpush1.msra.mxu0 0.0
    %1544 = vmatprep.subr.mxu0 0.0
    %1545 = vmatpush1.msra.mxu0 0.0
    %1546 = vmatprep.subr.mxu0 0.0
    %1547 = vmatpush1.msra.mxu0 0.0
    %1548 = vmatprep.subr.mxu0 0.0
    %1549 = vmatpush1.msra.mxu0 0.0
    %1550 = vmatprep.subr.mxu0 0.0
    %1551 = vmatpush1.msra.mxu0 0.0
    %1552 = vmatprep.subr.mxu0 0.0
    %1553 = vmatpush1.msra.mxu0 0.0
    %1554 = vmatprep.subr.mxu0 0.0
    %1555 = vmatpush1.msra.mxu0 0.0
    %1556 = vmatprep.subr.mxu0 0.0
    %1557 = vmatpush1.msra.mxu0 0.0
    %1558 = vmatprep.subr.mxu0 0.0
    %1559 = vmatpush1.msra.mxu0 0.0
    %1560 = vmatprep.subr.mxu0 0.0
    %1561 = vmatpush1.msra.mxu0 0.0
    %1562 = vmatprep.subr.mxu0 0.0
    %1563 = vmatpush1.msra.mxu0 0.0
    %1564 = vmatprep.subr.mxu0 0.0
    %1565 = vmatpush1.msra.mxu0 0.0
    %1566 = vmatprep.subr.mxu0 0.0
    %1567 = vmatpush1.msra.mxu0 0.0
    %1568 = vmatprep.subr.mxu0 0.0
    %1569 = vmatpush1.msra.mxu0 0.0
    %1570 = vmatprep.subr.mxu0 0.0
    %1571 = vmatpush1.msra.mxu0 0.0
    %1572 = vmatprep.mubr.f32.mxu0 0.0
    %1573 = vmatmul.mubr.f32.gmra.mrb[0].mxu0 %v1401
    %v1574 = vpop.f32.mrb[0].mxu0
    %v1575 = vadd.f32 %v1506, %v1574
    %v1576 = vpop.f32.mrb[0].mxu0
    %1577 = vmatprep.mubr.f32.mxu0 0.0
    %1578 = vmatmul.mubr.f32.gmra.mrb[0].mxu0 %v1404
    %v1579 = vpop.f32.mrb[0].mxu0
    %v1580 = vadd.f32 %v1506, %v1579
    %v1581 = vpop.f32.mrb[0].mxu0
    %1582 = vmatprep.mubr.f32.mxu0 0.0
    %1583 = vmatmul.mubr.f32.gmra.mrb[0].mxu0 %v1407
    %v1584 = vpop.f32.mrb[0].mxu0
    %v1585 = vadd.f32 %v1506, %v1584
    %v1586 = vpop.f32.mrb[0].mxu0
    %1587 = vmatprep.mubr.f32.mxu0 0.0
    %1588 = vmatmul.mubr.f32.gmra.mrb[0].mxu0 %v1410
    %v1589 = vpop.f32.mrb[0].mxu0
    %v1590 = vadd.f32 %v1506, %v1589
    %v1591 = vpop.f32.mrb[0].mxu0
    %1592 = vdwg.mxu0
    %s1593 = scalar_lea.vmem [#allocation6], 32
    %v1594 = vld [vmem:[%s1593] sm:$0xff]
    %v1595 = vld [vmem:[%s1593 + $0x8] sm:$0xff]
    %s1596 = scalar_lea.vmem %s8, 2
    %v1597 = vld [vmem:[%s1596] sm:$0x1]
    %v1599 = vlaneseq
    %v1600 = vshrl.u32 %v1599, 7
    %v1601 = vsub.s32 0, %v1600
    %v1602 = vrot.slane %v1597, %v1601
    %1604 = vmatprep.subr.mxu0 0.0
    %1605 = vmatpush1.msra.mxu0 %v1594
    %1606 = vmatprep.subr.mxu0 0.0
    %1607 = vmatpush1.msra.mxu0 %v1595
    %1608 = vmatprep.subr.mxu0 0.0
    %1609 = vmatpush1.msra.mxu0 0.0
    %1610 = vmatprep.subr.mxu0 0.0
    %1611 = vmatpush1.msra.mxu0 0.0
    %1612 = vmatprep.subr.mxu0 0.0
    %1613 = vmatpush1.msra.mxu0 0.0
    %1614 = vmatprep.subr.mxu0 0.0
    %1615 = vmatpush1.msra.mxu0 0.0
    %1616 = vmatprep.subr.mxu0 0.0
    %1617 = vmatpush1.msra.mxu0 0.0
    %1618 = vmatprep.subr.mxu0 0.0
    %1619 = vmatpush1.msra.mxu0 0.0
    %1620 = vmatprep.subr.mxu0 0.0
    %1621 = vmatpush1.msra.mxu0 0.0
    %1622 = vmatprep.subr.mxu0 0.0
    %1623 = vmatpush1.msra.mxu0 0.0
    %1624 = vmatprep.subr.mxu0 0.0
    %1625 = vmatpush1.msra.mxu0 0.0
    %1626 = vmatprep.subr.mxu0 0.0
    %1627 = vmatpush1.msra.mxu0 0.0
    %1628 = vmatprep.subr.mxu0 0.0
    %1629 = vmatpush1.msra.mxu0 0.0
    %1630 = vmatprep.subr.mxu0 0.0
    %1631 = vmatpush1.msra.mxu0 0.0
    %1632 = vmatprep.subr.mxu0 0.0
    %1633 = vmatpush1.msra.mxu0 0.0
    %1634 = vmatprep.subr.mxu0 0.0
    %1635 = vmatpush1.msra.mxu0 0.0
    %1636 = vmatprep.subr.mxu0 0.0
    %1637 = vmatpush1.msra.mxu0 0.0
    %1638 = vmatprep.subr.mxu0 0.0
    %1639 = vmatpush1.msra.mxu0 0.0
    %1640 = vmatprep.subr.mxu0 0.0
    %1641 = vmatpush1.msra.mxu0 0.0
    %1642 = vmatprep.subr.mxu0 0.0
    %1643 = vmatpush1.msra.mxu0 0.0
    %1644 = vmatprep.subr.mxu0 0.0
    %1645 = vmatpush1.msra.mxu0 0.0
    %1646 = vmatprep.subr.mxu0 0.0
    %1647 = vmatpush1.msra.mxu0 0.0
    %1648 = vmatprep.subr.mxu0 0.0
    %1649 = vmatpush1.msra.mxu0 0.0
    %1650 = vmatprep.subr.mxu0 0.0
    %1651 = vmatpush1.msra.mxu0 0.0
    %1652 = vmatprep.subr.mxu0 0.0
    %1653 = vmatpush1.msra.mxu0 0.0
    %1654 = vmatprep.subr.mxu0 0.0
    %1655 = vmatpush1.msra.mxu0 0.0
    %1656 = vmatprep.subr.mxu0 0.0
    %1657 = vmatpush1.msra.mxu0 0.0
    %1658 = vmatprep.subr.mxu0 0.0
    %1659 = vmatpush1.msra.mxu0 0.0
    %1660 = vmatprep.subr.mxu0 0.0
    %1661 = vmatpush1.msra.mxu0 0.0
    %1662 = vmatprep.subr.mxu0 0.0
    %1663 = vmatpush1.msra.mxu0 0.0
    %1664 = vmatprep.subr.mxu0 0.0
    %1665 = vmatpush1.msra.mxu0 0.0
    %1666 = vmatprep.subr.mxu0 0.0
    %1667 = vmatpush1.msra.mxu0 0.0
    %1668 = vmatprep.mubr.f32.mxu0 0.0
    %1669 = vmatmul.mubr.f32.gmra.mrb[0].mxu0 %v1401
    %v1670 = vpop.f32.mrb[0].mxu0
    %v1671 = vadd.f32 %v1602, %v1670
    %v1672 = vpop.f32.mrb[0].mxu0
    %1673 = vmatprep.mubr.f32.mxu0 0.0
    %1674 = vmatmul.mubr.f32.gmra.mrb[0].mxu0 %v1404
    %v1675 = vpop.f32.mrb[0].mxu0
    %v1676 = vadd.f32 %v1602, %v1675
    %v1677 = vpop.f32.mrb[0].mxu0
    %1678 = vmatprep.mubr.f32.mxu0 0.0
    %1679 = vmatmul.mubr.f32.gmra.mrb[0].mxu0 %v1407
    %v1680 = vpop.f32.mrb[0].mxu0
    %v1681 = vadd.f32 %v1602, %v1680
    %v1682 = vpop.f32.mrb[0].mxu0
    %1683 = vmatprep.mubr.f32.mxu0 0.0
    %1684 = vmatmul.mubr.f32.gmra.mrb[0].mxu0 %v1410
    %v1685 = vpop.f32.mrb[0].mxu0
    %v1686 = vadd.f32 %v1602, %v1685
    %v1687 = vpop.f32.mrb[0].mxu0
    %1688 = vdwg.mxu0
    %v1689 = vld [vmem:[#allocation7] sm:$0xff]
    %v1690 = vld [vmem:[#allocation7 + $0x8] sm:$0xff]
    %v1691 = vld [vmem:[#allocation7 + $0x10] sm:$0xff]
    %v1692 = vld [vmem:[#allocation7 + $0x18] sm:$0xff]
    %v1693 = vld [vmem:[%s9] sm:$0x1]
    %v1695 = vlaneseq
    %v1696 = vshrl.u32 %v1695, 7
    %v1697 = vsub.s32 0, %v1696
    %v1698 = vrot.slane %v1693, %v1697
    %v1701 = vsel %vm191, 0.0, 0
    %1703 = vmatprep.subr.mxu0 0.0
    %1704 = vmatpush1.msra.mxu0 %v1689
    %1705 = vmatprep.subr.mxu0 0.0
    %1706 = vmatpush1.msra.mxu0 %v1690
    %1707 = vmatprep.subr.mxu0 0.0
    %1708 = vmatpush1.msra.mxu0 %v1691
    %1709 = vmatprep.subr.mxu0 0.0
    %1710 = vmatpush1.msra.mxu0 %v1692
    %1711 = vmatprep.subr.mxu0 0.0
    %1712 = vmatpush1.msra.mxu0 0.0
    %1713 = vmatprep.subr.mxu0 0.0
    %1714 = vmatpush1.msra.mxu0 0.0
    %1715 = vmatprep.subr.mxu0 0.0
    %1716 = vmatpush1.msra.mxu0 0.0
    %1717 = vmatprep.subr.mxu0 0.0
    %1718 = vmatpush1.msra.mxu0 0.0
    %1719 = vmatprep.subr.mxu0 0.0
    %1720 = vmatpush1.msra.mxu0 0.0
    %1721 = vmatprep.subr.mxu0 0.0
    %1722 = vmatpush1.msra.mxu0 0.0
    %1723 = vmatprep.subr.mxu0 0.0
    %1724 = vmatpush1.msra.mxu0 0.0
    %1725 = vmatprep.subr.mxu0 0.0
    %1726 = vmatpush1.msra.mxu0 0.0
    %1727 = vmatprep.subr.mxu0 0.0
    %1728 = vmatpush1.msra.mxu0 0.0
    %1729 = vmatprep.subr.mxu0 0.0
    %1730 = vmatpush1.msra.mxu0 0.0
    %1731 = vmatprep.subr.mxu0 0.0
    %1732 = vmatpush1.msra.mxu0 0.0
    %1733 = vmatprep.subr.mxu0 0.0
    %1734 = vmatpush1.msra.mxu0 0.0
    %1735 = vmatprep.subr.mxu0 0.0
    %1736 = vmatpush1.msra.mxu0 0.0
    %1737 = vmatprep.subr.mxu0 0.0
    %1738 = vmatpush1.msra.mxu0 0.0
    %1739 = vmatprep.subr.mxu0 0.0
    %1740 = vmatpush1.msra.mxu0 0.0
    %1741 = vmatprep.subr.mxu0 0.0
    %1742 = vmatpush1.msra.mxu0 0.0
    %1743 = vmatprep.subr.mxu0 0.0
    %1744 = vmatpush1.msra.mxu0 0.0
    %1745 = vmatprep.subr.mxu0 0.0
    %1746 = vmatpush1.msra.mxu0 0.0
    %1747 = vmatprep.subr.mxu0 0.0
    %1748 = vmatpush1.msra.mxu0 0.0
    %1749 = vmatprep.subr.mxu0 0.0
    %1750 = vmatpush1.msra.mxu0 0.0
    %1751 = vmatprep.subr.mxu0 0.0
    %1752 = vmatpush1.msra.mxu0 0.0
    %1753 = vmatprep.subr.mxu0 0.0
    %1754 = vmatpush1.msra.mxu0 0.0
    %1755 = vmatprep.subr.mxu0 0.0
    %1756 = vmatpush1.msra.mxu0 0.0
    %1757 = vmatprep.subr.mxu0 0.0
    %1758 = vmatpush1.msra.mxu0 0.0
    %1759 = vmatprep.subr.mxu0 0.0
    %1760 = vmatpush1.msra.mxu0 0.0
    %1761 = vmatprep.subr.mxu0 0.0
    %1762 = vmatpush1.msra.mxu0 0.0
    %1763 = vmatprep.subr.mxu0 0.0
    %1764 = vmatpush1.msra.mxu0 0.0
    %1765 = vmatprep.subr.mxu0 0.0
    %1766 = vmatpush1.msra.mxu0 0.0
    %1767 = vmatprep.mubr.f32.mxu0 0.0
    %1768 = vmatmul.mubr.f32.gmra.mrb[0].mxu0 %v1701
    %v1769 = vpop.f32.mrb[0].mxu0
    %v1770 = vadd.f32 %v1698, %v1769
    %v1771 = vpop.f32.mrb[0].mxu0
    %1772 = vdwg.mxu0
    %s1773 = scalar_lea.vmem [#allocation7], 32
    %v1774 = vld [vmem:[%s1773] sm:$0xff]
    %v1775 = vld [vmem:[%s1773 + $0x8] sm:$0xff]
    %v1776 = vld [vmem:[%s1773 + $0x10] sm:$0xff]
    %v1777 = vld [vmem:[%s1773 + $0x18] sm:$0xff]
    %s1778 = scalar_lea.vmem %s9, 1
    %v1779 = vld [vmem:[%s1778] sm:$0x1]
    %v1781 = vlaneseq
    %v1782 = vshrl.u32 %v1781, 7
    %v1783 = vsub.s32 0, %v1782
    %v1784 = vrot.slane %v1779, %v1783
    %1786 = vmatprep.subr.mxu0 0.0
    %1787 = vmatpush1.msra.mxu0 %v1774
    %1788 = vmatprep.subr.mxu0 0.0
    %1789 = vmatpush1.msra.mxu0 %v1775
    %1790 = vmatprep.subr.mxu0 0.0
    %1791 = vmatpush1.msra.mxu0 %v1776
    %1792 = vmatprep.subr.mxu0 0.0
    %1793 = vmatpush1.msra.mxu0 %v1777
    %1794 = vmatprep.subr.mxu0 0.0
    %1795 = vmatpush1.msra.mxu0 0.0
    %1796 = vmatprep.subr.mxu0 0.0
    %1797 = vmatpush1.msra.mxu0 0.0
    %1798 = vmatprep.subr.mxu0 0.0
    %1799 = vmatpush1.msra.mxu0 0.0
    %1800 = vmatprep.subr.mxu0 0.0
    %1801 = vmatpush1.msra.mxu0 0.0
    %1802 = vmatprep.subr.mxu0 0.0
    %1803 = vmatpush1.msra.mxu0 0.0
    %1804 = vmatprep.subr.mxu0 0.0
    %1805 = vmatpush1.msra.mxu0 0.0
    %1806 = vmatprep.subr.mxu0 0.0
    %1807 = vmatpush1.msra.mxu0 0.0
    %1808 = vmatprep.subr.mxu0 0.0
    %1809 = vmatpush1.msra.mxu0 0.0
    %1810 = vmatprep.subr.mxu0 0.0
    %1811 = vmatpush1.msra.mxu0 0.0
    %1812 = vmatprep.subr.mxu0 0.0
    %1813 = vmatpush1.msra.mxu0 0.0
    %1814 = vmatprep.subr.mxu0 0.0
    %1815 = vmatpush1.msra.mxu0 0.0
    %1816 = vmatprep.subr.mxu0 0.0
    %1817 = vmatpush1.msra.mxu0 0.0
    %1818 = vmatprep.subr.mxu0 0.0
    %1819 = vmatpush1.msra.mxu0 0.0
    %1820 = vmatprep.subr.mxu0 0.0
    %1821 = vmatpush1.msra.mxu0 0.0
    %1822 = vmatprep.subr.mxu0 0.0
    %1823 = vmatpush1.msra.mxu0 0.0
    %1824 = vmatprep.subr.mxu0 0.0
    %1825 = vmatpush1.msra.mxu0 0.0
    %1826 = vmatprep.subr.mxu0 0.0
    %1827 = vmatpush1.msra.mxu0 0.0
    %1828 = vmatprep.subr.mxu0 0.0
    %1829 = vmatpush1.msra.mxu0 0.0
    %1830 = vmatprep.subr.mxu0 0.0
    %1831 = vmatpush1.msra.mxu0 0.0
    %1832 = vmatprep.subr.mxu0 0.0
    %1833 = vmatpush1.msra.mxu0 0.0
    %1834 = vmatprep.subr.mxu0 0.0
    %1835 = vmatpush1.msra.mxu0 0.0
    %1836 = vmatprep.subr.mxu0 0.0
    %1837 = vmatpush1.msra.mxu0 0.0
    %1838 = vmatprep.subr.mxu0 0.0
    %1839 = vmatpush1.msra.mxu0 0.0
    %1840 = vmatprep.subr.mxu0 0.0
    %1841 = vmatpush1.msra.mxu0 0.0
    %1842 = vmatprep.subr.mxu0 0.0
    %1843 = vmatpush1.msra.mxu0 0.0
    %1844 = vmatprep.subr.mxu0 0.0
    %1845 = vmatpush1.msra.mxu0 0.0
    %1846 = vmatprep.subr.mxu0 0.0
    %1847 = vmatpush1.msra.mxu0 0.0
    %1848 = vmatprep.subr.mxu0 0.0
    %1849 = vmatpush1.msra.mxu0 0.0
    %1850 = vmatprep.mubr.f32.mxu0 0.0
    %1851 = vmatmul.mubr.f32.gmra.mrb[0].mxu0 %v1701
    %v1852 = vpop.f32.mrb[0].mxu0
    %v1853 = vadd.f32 %v1784, %v1852
    %v1854 = vpop.f32.mrb[0].mxu0
    %1855 = vdwg.mxu0
    %s1856 = scalar_lea.vmem [#allocation7], 64
    %v1857 = vld [vmem:[%s1856] sm:$0xff]
    %v1858 = vld [vmem:[%s1856 + $0x8] sm:$0xff]
    %v1859 = vld [vmem:[%s1856 + $0x10] sm:$0xff]
    %v1860 = vld [vmem:[%s1856 + $0x18] sm:$0xff]
    %s1861 = scalar_lea.vmem %s9, 2
    %v1862 = vld [vmem:[%s1861] sm:$0x1]
    %v1864 = vlaneseq
    %v1865 = vshrl.u32 %v1864, 7
    %v1866 = vsub.s32 0, %v1865
    %v1867 = vrot.slane %v1862, %v1866
    %1869 = vmatprep.subr.mxu0 0.0
    %1870 = vmatpush1.msra.mxu0 %v1857
    %1871 = vmatprep.subr.mxu0 0.0
    %1872 = vmatpush1.msra.mxu0 %v1858
    %1873 = vmatprep.subr.mxu0 0.0
    %1874 = vmatpush1.msra.mxu0 %v1859
    %1875 = vmatprep.subr.mxu0 0.0
    %1876 = vmatpush1.msra.mxu0 %v1860
    %1877 = vmatprep.subr.mxu0 0.0
    %1878 = vmatpush1.msra.mxu0 0.0
    %1879 = vmatprep.subr.mxu0 0.0
    %1880 = vmatpush1.msra.mxu0 0.0
    %1881 = vmatprep.subr.mxu0 0.0
    %1882 = vmatpush1.msra.mxu0 0.0
    %1883 = vmatprep.subr.mxu0 0.0
    %1884 = vmatpush1.msra.mxu0 0.0
    %1885 = vmatprep.subr.mxu0 0.0
    %1886 = vmatpush1.msra.mxu0 0.0
    %1887 = vmatprep.subr.mxu0 0.0
    %1888 = vmatpush1.msra.mxu0 0.0
    %1889 = vmatprep.subr.mxu0 0.0
    %1890 = vmatpush1.msra.mxu0 0.0
    %1891 = vmatprep.subr.mxu0 0.0
    %1892 = vmatpush1.msra.mxu0 0.0
    %1893 = vmatprep.subr.mxu0 0.0
    %1894 = vmatpush1.msra.mxu0 0.0
    %1895 = vmatprep.subr.mxu0 0.0
    %1896 = vmatpush1.msra.mxu0 0.0
    %1897 = vmatprep.subr.mxu0 0.0
    %1898 = vmatpush1.msra.mxu0 0.0
    %1899 = vmatprep.subr.mxu0 0.0
    %1900 = vmatpush1.msra.mxu0 0.0
    %1901 = vmatprep.subr.mxu0 0.0
    %1902 = vmatpush1.msra.mxu0 0.0
    %1903 = vmatprep.subr.mxu0 0.0
    %1904 = vmatpush1.msra.mxu0 0.0
    %1905 = vmatprep.subr.mxu0 0.0
    %1906 = vmatpush1.msra.mxu0 0.0
    %1907 = vmatprep.subr.mxu0 0.0
    %1908 = vmatpush1.msra.mxu0 0.0
    %1909 = vmatprep.subr.mxu0 0.0
    %1910 = vmatpush1.msra.mxu0 0.0
    %1911 = vmatprep.subr.mxu0 0.0
    %1912 = vmatpush1.msra.mxu0 0.0
    %1913 = vmatprep.subr.mxu0 0.0
    %1914 = vmatpush1.msra.mxu0 0.0
    %1915 = vmatprep.subr.mxu0 0.0
    %1916 = vmatpush1.msra.mxu0 0.0
    %1917 = vmatprep.subr.mxu0 0.0
    %1918 = vmatpush1.msra.mxu0 0.0
    %1919 = vmatprep.subr.mxu0 0.0
    %1920 = vmatpush1.msra.mxu0 0.0
    %1921 = vmatprep.subr.mxu0 0.0
    %1922 = vmatpush1.msra.mxu0 0.0
    %1923 = vmatprep.subr.mxu0 0.0
    %1924 = vmatpush1.msra.mxu0 0.0
    %1925 = vmatprep.subr.mxu0 0.0
    %1926 = vmatpush1.msra.mxu0 0.0
    %1927 = vmatprep.subr.mxu0 0.0
    %1928 = vmatpush1.msra.mxu0 0.0
    %1929 = vmatprep.subr.mxu0 0.0
    %1930 = vmatpush1.msra.mxu0 0.0
    %1931 = vmatprep.subr.mxu0 0.0
    %1932 = vmatpush1.msra.mxu0 0.0
    %1933 = vmatprep.mubr.f32.mxu0 0.0
    %1934 = vmatmul.mubr.f32.gmra.mrb[0].mxu0 %v1701
    %v1935 = vpop.f32.mrb[0].mxu0
    %v1936 = vadd.f32 %v1867, %v1935
    %v1937 = vpop.f32.mrb[0].mxu0
    %1938 = vdwg.mxu0
    %v1939 = vadd.f32 %v1479, %v1770
    %v1940 = vxor.u32 %v1939, 2147483648
    %v1941 = vmul.f32 %v1940, 1.442695
    %v1942 = vpow.pop %v1941
    %v1943 = vadd.f32 %v1942, 1.0
    %v1944 = vrcp.pop %v1943
    %v1945 = vmul.f32 1.0, %v1944
    %v1946 = vadd.f32 %v1575, %v1853
    %v1947 = vxor.u32 %v1946, 2147483648
    %v1948 = vmul.f32 %v1947, 1.442695
    %v1949 = vpow.pop %v1948
    %v1950 = vadd.f32 %v1949, 1.0
    %v1951 = vrcp.pop %v1950
    %v1952 = vmul.f32 1.0, %v1951
    %v1953 = vmul.f32 %v1945, %v1936
    %v1954 = vadd.f32 %v1671, %v1953
    %v1955 = vtanh.pop %v1954
    %v1956 = vsub.f32 1.0, %v1952
    %v1957 = vmul.f32 %v1956, %v1955
    %v1958 = vmul.f32 %v1952, 0.0
    %v1959 = vadd.f32 %v1957, %v1958
    %v1961 = vsel %vm191, %v1959, 0
    %1963 = vmatprep.subr.mxu0 0.0
    %1964 = vmatpush1.msra.mxu0 %v1689
    %1965 = vmatprep.subr.mxu0 0.0
    %1966 = vmatpush1.msra.mxu0 %v1690
    %1967 = vmatprep.subr.mxu0 0.0
    %1968 = vmatpush1.msra.mxu0 %v1691
    %1969 = vmatprep.subr.mxu0 0.0
    %1970 = vmatpush1.msra.mxu0 %v1692
    %1971 = vmatprep.subr.mxu0 0.0
    %1972 = vmatpush1.msra.mxu0 0.0
    %1973 = vmatprep.subr.mxu0 0.0
    %1974 = vmatpush1.msra.mxu0 0.0
    %1975 = vmatprep.subr.mxu0 0.0
    %1976 = vmatpush1.msra.mxu0 0.0
    %1977 = vmatprep.subr.mxu0 0.0
    %1978 = vmatpush1.msra.mxu0 0.0
    %1979 = vmatprep.subr.mxu0 0.0
    %1980 = vmatpush1.msra.mxu0 0.0
    %1981 = vmatprep.subr.mxu0 0.0
    %1982 = vmatpush1.msra.mxu0 0.0
    %1983 = vmatprep.subr.mxu0 0.0
    %1984 = vmatpush1.msra.mxu0 0.0
    %1985 = vmatprep.subr.mxu0 0.0
    %1986 = vmatpush1.msra.mxu0 0.0
    %1987 = vmatprep.subr.mxu0 0.0
    %1988 = vmatpush1.msra.mxu0 0.0
    %1989 = vmatprep.subr.mxu0 0.0
    %1990 = vmatpush1.msra.mxu0 0.0
    %1991 = vmatprep.subr.mxu0 0.0
    %1992 = vmatpush1.msra.mxu0 0.0
    %1993 = vmatprep.subr.mxu0 0.0
    %1994 = vmatpush1.msra.mxu0 0.0
    %1995 = vmatprep.subr.mxu0 0.0
    %1996 = vmatpush1.msra.mxu0 0.0
    %1997 = vmatprep.subr.mxu0 0.0
    %1998 = vmatpush1.msra.mxu0 0.0
    %1999 = vmatprep.subr.mxu0 0.0
    %2000 = vmatpush1.msra.mxu0 0.0
    %2001 = vmatprep.subr.mxu0 0.0
    %2002 = vmatpush1.msra.mxu0 0.0
    %2003 = vmatprep.subr.mxu0 0.0
    %2004 = vmatpush1.msra.mxu0 0.0
    %2005 = vmatprep.subr.mxu0 0.0
    %2006 = vmatpush1.msra.mxu0 0.0
    %2007 = vmatprep.subr.mxu0 0.0
    %2008 = vmatpush1.msra.mxu0 0.0
    %2009 = vmatprep.subr.mxu0 0.0
    %2010 = vmatpush1.msra.mxu0 0.0
    %2011 = vmatprep.subr.mxu0 0.0
    %2012 = vmatpush1.msra.mxu0 0.0
    %2013 = vmatprep.subr.mxu0 0.0
    %2014 = vmatpush1.msra.mxu0 0.0
    %2015 = vmatprep.subr.mxu0 0.0
    %2016 = vmatpush1.msra.mxu0 0.0
    %2017 = vmatprep.subr.mxu0 0.0
    %2018 = vmatpush1.msra.mxu0 0.0
    %2019 = vmatprep.subr.mxu0 0.0
    %2020 = vmatpush1.msra.mxu0 0.0
    %2021 = vmatprep.subr.mxu0 0.0
    %2022 = vmatpush1.msra.mxu0 0.0
    %2023 = vmatprep.subr.mxu0 0.0
    %2024 = vmatpush1.msra.mxu0 0.0
    %2025 = vmatprep.subr.mxu0 0.0
    %2026 = vmatpush1.msra.mxu0 0.0
    %2027 = vmatprep.mubr.f32.mxu0 0.0
    %2028 = vmatmul.mubr.f32.gmra.mrb[0].mxu0 %v1961
    %v2029 = vpop.f32.mrb[0].mxu0
    %v2030 = vadd.f32 %v1698, %v2029
    %v2031 = vpop.f32.mrb[0].mxu0
    %2032 = vdwg.mxu0
    %2033 = vmatprep.subr.mxu0 0.0
    %2034 = vmatpush1.msra.mxu0 %v1774
    %2035 = vmatprep.subr.mxu0 0.0
    %2036 = vmatpush1.msra.mxu0 %v1775
    %2037 = vmatprep.subr.mxu0 0.0
    %2038 = vmatpush1.msra.mxu0 %v1776
    %2039 = vmatprep.subr.mxu0 0.0
    %2040 = vmatpush1.msra.mxu0 %v1777
    %2041 = vmatprep.subr.mxu0 0.0
    %2042 = vmatpush1.msra.mxu0 0.0
    %2043 = vmatprep.subr.mxu0 0.0
    %2044 = vmatpush1.msra.mxu0 0.0
    %2045 = vmatprep.subr.mxu0 0.0
    %2046 = vmatpush1.msra.mxu0 0.0
    %2047 = vmatprep.subr.mxu0 0.0
    %2048 = vmatpush1.msra.mxu0 0.0
    %2049 = vmatprep.subr.mxu0 0.0
    %2050 = vmatpush1.msra.mxu0 0.0
    %2051 = vmatprep.subr.mxu0 0.0
    %2052 = vmatpush1.msra.mxu0 0.0
    %2053 = vmatprep.subr.mxu0 0.0
    %2054 = vmatpush1.msra.mxu0 0.0
    %2055 = vmatprep.subr.mxu0 0.0
    %2056 = vmatpush1.msra.mxu0 0.0
    %2057 = vmatprep.subr.mxu0 0.0
    %2058 = vmatpush1.msra.mxu0 0.0
    %2059 = vmatprep.subr.mxu0 0.0
    %2060 = vmatpush1.msra.mxu0 0.0
    %2061 = vmatprep.subr.mxu0 0.0
    %2062 = vmatpush1.msra.mxu0 0.0
    %2063 = vmatprep.subr.mxu0 0.0
    %2064 = vmatpush1.msra.mxu0 0.0
    %2065 = vmatprep.subr.mxu0 0.0
    %2066 = vmatpush1.msra.mxu0 0.0
    %2067 = vmatprep.subr.mxu0 0.0
    %2068 = vmatpush1.msra.mxu0 0.0
    %2069 = vmatprep.subr.mxu0 0.0
    %2070 = vmatpush1.msra.mxu0 0.0
    %2071 = vmatprep.subr.mxu0 0.0
    %2072 = vmatpush1.msra.mxu0 0.0
    %2073 = vmatprep.subr.mxu0 0.0
    %2074 = vmatpush1.msra.mxu0 0.0
    %2075 = vmatprep.subr.mxu0 0.0
    %2076 = vmatpush1.msra.mxu0 0.0
    %2077 = vmatprep.subr.mxu0 0.0
    %2078 = vmatpush1.msra.mxu0 0.0
    %2079 = vmatprep.subr.mxu0 0.0
    %2080 = vmatpush1.msra.mxu0 0.0
    %2081 = vmatprep.subr.mxu0 0.0
    %2082 = vmatpush1.msra.mxu0 0.0
    %2083 = vmatprep.subr.mxu0 0.0
    %2084 = vmatpush1.msra.mxu0 0.0
    %2085 = vmatprep.subr.mxu0 0.0
    %2086 = vmatpush1.msra.mxu0 0.0
    %2087 = vmatprep.subr.mxu0 0.0
    %2088 = vmatpush1.msra.mxu0 0.0
    %2089 = vmatprep.subr.mxu0 0.0
    %2090 = vmatpush1.msra.mxu0 0.0
    %2091 = vmatprep.subr.mxu0 0.0
    %2092 = vmatpush1.msra.mxu0 0.0
    %2093 = vmatprep.subr.mxu0 0.0
    %2094 = vmatpush1.msra.mxu0 0.0
    %2095 = vmatprep.subr.mxu0 0.0
    %2096 = vmatpush1.msra.mxu0 0.0
    %2097 = vmatprep.mubr.f32.mxu0 0.0
    %2098 = vmatmul.mubr.f32.gmra.mrb[0].mxu0 %v1961
    %v2099 = vpop.f32.mrb[0].mxu0
    %v2100 = vadd.f32 %v1784, %v2099
    %v2101 = vpop.f32.mrb[0].mxu0
    %2102 = vdwg.mxu0
    %2103 = vmatprep.subr.mxu0 0.0
    %2104 = vmatpush1.msra.mxu0 %v1857
    %2105 = vmatprep.subr.mxu0 0.0
    %2106 = vmatpush1.msra.mxu0 %v1858
    %2107 = vmatprep.subr.mxu0 0.0
    %2108 = vmatpush1.msra.mxu0 %v1859
    %2109 = vmatprep.subr.mxu0 0.0
    %2110 = vmatpush1.msra.mxu0 %v1860
    %2111 = vmatprep.subr.mxu0 0.0
    %2112 = vmatpush1.msra.mxu0 0.0
    %2113 = vmatprep.subr.mxu0 0.0
    %2114 = vmatpush1.msra.mxu0 0.0
    %2115 = vmatprep.subr.mxu0 0.0
    %2116 = vmatpush1.msra.mxu0 0.0
    %2117 = vmatprep.subr.mxu0 0.0
    %2118 = vmatpush1.msra.mxu0 0.0
    %2119 = vmatprep.subr.mxu0 0.0
    %2120 = vmatpush1.msra.mxu0 0.0
    %2121 = vmatprep.subr.mxu0 0.0
    %2122 = vmatpush1.msra.mxu0 0.0
    %2123 = vmatprep.subr.mxu0 0.0
    %2124 = vmatpush1.msra.mxu0 0.0
    %2125 = vmatprep.subr.mxu0 0.0
    %2126 = vmatpush1.msra.mxu0 0.0
    %2127 = vmatprep.subr.mxu0 0.0
    %2128 = vmatpush1.msra.mxu0 0.0
    %2129 = vmatprep.subr.mxu0 0.0
    %2130 = vmatpush1.msra.mxu0 0.0
    %2131 = vmatprep.subr.mxu0 0.0
    %2132 = vmatpush1.msra.mxu0 0.0
    %2133 = vmatprep.subr.mxu0 0.0
    %2134 = vmatpush1.msra.mxu0 0.0
    %2135 = vmatprep.subr.mxu0 0.0
    %2136 = vmatpush1.msra.mxu0 0.0
    %2137 = vmatprep.subr.mxu0 0.0
    %2138 = vmatpush1.msra.mxu0 0.0
    %2139 = vmatprep.subr.mxu0 0.0
    %2140 = vmatpush1.msra.mxu0 0.0
    %2141 = vmatprep.subr.mxu0 0.0
    %2142 = vmatpush1.msra.mxu0 0.0
    %2143 = vmatprep.subr.mxu0 0.0
    %2144 = vmatpush1.msra.mxu0 0.0
    %2145 = vmatprep.subr.mxu0 0.0
    %2146 = vmatpush1.msra.mxu0 0.0
    %2147 = vmatprep.subr.mxu0 0.0
    %2148 = vmatpush1.msra.mxu0 0.0
    %2149 = vmatprep.subr.mxu0 0.0
    %2150 = vmatpush1.msra.mxu0 0.0
    %2151 = vmatprep.subr.mxu0 0.0
    %2152 = vmatpush1.msra.mxu0 0.0
    %2153 = vmatprep.subr.mxu0 0.0
    %2154 = vmatpush1.msra.mxu0 0.0
    %2155 = vmatprep.subr.mxu0 0.0
    %2156 = vmatpush1.msra.mxu0 0.0
    %2157 = vmatprep.subr.mxu0 0.0
    %2158 = vmatpush1.msra.mxu0 0.0
    %2159 = vmatprep.subr.mxu0 0.0
    %2160 = vmatpush1.msra.mxu0 0.0
    %2161 = vmatprep.subr.mxu0 0.0
    %2162 = vmatpush1.msra.mxu0 0.0
    %2163 = vmatprep.subr.mxu0 0.0
    %2164 = vmatpush1.msra.mxu0 0.0
    %2165 = vmatprep.subr.mxu0 0.0
    %2166 = vmatpush1.msra.mxu0 0.0
    %2167 = vmatprep.mubr.f32.mxu0 0.0
    %2168 = vmatmul.mubr.f32.gmra.mrb[0].mxu0 %v1961
    %v2169 = vpop.f32.mrb[0].mxu0
    %v2170 = vadd.f32 %v1867, %v2169
    %v2171 = vpop.f32.mrb[0].mxu0
    %2172 = vdwg.mxu0
    %v2174 = vrot.slane %v2030, 6
    %v2176 = vadd.f32 %v1479, %v2174
    %v2177 = vxor.u32 %v2176, 2147483648
    %v2178 = vmul.f32 %v2177, 1.442695
    %v2179 = vpow.pop %v2178
    %v2180 = vadd.f32 %v2179, 1.0
    %v2181 = vrcp.pop %v2180
    %v2182 = vmul.f32 1.0, %v2181
    %v2184 = vrot.slane %v2100, 6
    %v2186 = vadd.f32 %v1575, %v2184
    %v2187 = vxor.u32 %v2186, 2147483648
    %v2188 = vmul.f32 %v2187, 1.442695
    %v2189 = vpow.pop %v2188
    %v2190 = vadd.f32 %v2189, 1.0
    %v2191 = vrcp.pop %v2190
    %v2192 = vmul.f32 1.0, %v2191
    %v2194 = vrot.slane %v2170, 6
    %v2196 = vmul.f32 %v2182, %v2194
    %v2197 = vadd.f32 %v1671, %v2196
    %v2198 = vtanh.pop %v2197
    %v2199 = vsub.f32 1.0, %v2192
    %v2200 = vmul.f32 %v2199, %v2198
    %v2201 = vrot.slane %v1959, 6
    %v2203 = vmul.f32 %v2192, %v2201
    %v2204 = vadd.f32 %v2200, %v2203
    %v2206 = vrot.slane %v2204, 2
    %v2207 = vsel %vm191, %v2206, 0
    %2209 = vmatprep.subr.mxu0 0.0
    %2210 = vmatpush1.msra.mxu0 %v1689
    %2211 = vmatprep.subr.mxu0 0.0
    %2212 = vmatpush1.msra.mxu0 %v1690
    %2213 = vmatprep.subr.mxu0 0.0
    %2214 = vmatpush1.msra.mxu0 %v1691
    %2215 = vmatprep.subr.mxu0 0.0
    %2216 = vmatpush1.msra.mxu0 %v1692
    %2217 = vmatprep.subr.mxu0 0.0
    %2218 = vmatpush1.msra.mxu0 0.0
    %2219 = vmatprep.subr.mxu0 0.0
    %2220 = vmatpush1.msra.mxu0 0.0
    %2221 = vmatprep.subr.mxu0 0.0
    %2222 = vmatpush1.msra.mxu0 0.0
    %2223 = vmatprep.subr.mxu0 0.0
    %2224 = vmatpush1.msra.mxu0 0.0
    %2225 = vmatprep.subr.mxu0 0.0
    %2226 = vmatpush1.msra.mxu0 0.0
    %2227 = vmatprep.subr.mxu0 0.0
    %2228 = vmatpush1.msra.mxu0 0.0
    %2229 = vmatprep.subr.mxu0 0.0
    %2230 = vmatpush1.msra.mxu0 0.0
    %2231 = vmatprep.subr.mxu0 0.0
    %2232 = vmatpush1.msra.mxu0 0.0
    %2233 = vmatprep.subr.mxu0 0.0
    %2234 = vmatpush1.msra.mxu0 0.0
    %2235 = vmatprep.subr.mxu0 0.0
    %2236 = vmatpush1.msra.mxu0 0.0
    %2237 = vmatprep.subr.mxu0 0.0
    %2238 = vmatpush1.msra.mxu0 0.0
    %2239 = vmatprep.subr.mxu0 0.0
    %2240 = vmatpush1.msra.mxu0 0.0
    %2241 = vmatprep.subr.mxu0 0.0
    %2242 = vmatpush1.msra.mxu0 0.0
    %2243 = vmatprep.subr.mxu0 0.0
    %2244 = vmatpush1.msra.mxu0 0.0
    %2245 = vmatprep.subr.mxu0 0.0
    %2246 = vmatpush1.msra.mxu0 0.0
    %2247 = vmatprep.subr.mxu0 0.0
    %2248 = vmatpush1.msra.mxu0 0.0
    %2249 = vmatprep.subr.mxu0 0.0
    %2250 = vmatpush1.msra.mxu0 0.0
    %2251 = vmatprep.subr.mxu0 0.0
    %2252 = vmatpush1.msra.mxu0 0.0
    %2253 = vmatprep.subr.mxu0 0.0
    %2254 = vmatpush1.msra.mxu0 0.0
    %2255 = vmatprep.subr.mxu0 0.0
    %2256 = vmatpush1.msra.mxu0 0.0
    %2257 = vmatprep.subr.mxu0 0.0
    %2258 = vmatpush1.msra.mxu0 0.0
    %2259 = vmatprep.subr.mxu0 0.0
    %2260 = vmatpush1.msra.mxu0 0.0
    %2261 = vmatprep.subr.mxu0 0.0
    %2262 = vmatpush1.msra.mxu0 0.0
    %2263 = vmatprep.subr.mxu0 0.0
    %2264 = vmatpush1.msra.mxu0 0.0
    %2265 = vmatprep.subr.mxu0 0.0
    %2266 = vmatpush1.msra.mxu0 0.0
    %2267 = vmatprep.subr.mxu0 0.0
    %2268 = vmatpush1.msra.mxu0 0.0
    %2269 = vmatprep.subr.mxu0 0.0
    %2270 = vmatpush1.msra.mxu0 0.0
    %2271 = vmatprep.subr.mxu0 0.0
    %2272 = vmatpush1.msra.mxu0 0.0
    %2273 = vmatprep.mubr.f32.mxu0 0.0
    %2274 = vmatmul.mubr.f32.gmra.mrb[0].mxu0 %v2207
    %v2275 = vpop.f32.mrb[0].mxu0
    %v2276 = vadd.f32 %v1698, %v2275
    %v2277 = vpop.f32.mrb[0].mxu0
    %2278 = vdwg.mxu0
    %2279 = vmatprep.subr.mxu0 0.0
    %2280 = vmatpush1.msra.mxu0 %v1774
    %2281 = vmatprep.subr.mxu0 0.0
    %2282 = vmatpush1.msra.mxu0 %v1775
    %2283 = vmatprep.subr.mxu0 0.0
    %2284 = vmatpush1.msra.mxu0 %v1776
    %2285 = vmatprep.subr.mxu0 0.0
    %2286 = vmatpush1.msra.mxu0 %v1777
    %2287 = vmatprep.subr.mxu0 0.0
    %2288 = vmatpush1.msra.mxu0 0.0
    %2289 = vmatprep.subr.mxu0 0.0
    %2290 = vmatpush1.msra.mxu0 0.0
    %2291 = vmatprep.subr.mxu0 0.0
    %2292 = vmatpush1.msra.mxu0 0.0
    %2293 = vmatprep.subr.mxu0 0.0
    %2294 = vmatpush1.msra.mxu0 0.0
    %2295 = vmatprep.subr.mxu0 0.0
    %2296 = vmatpush1.msra.mxu0 0.0
    %2297 = vmatprep.subr.mxu0 0.0
    %2298 = vmatpush1.msra.mxu0 0.0
    %2299 = vmatprep.subr.mxu0 0.0
    %2300 = vmatpush1.msra.mxu0 0.0
    %2301 = vmatprep.subr.mxu0 0.0
    %2302 = vmatpush1.msra.mxu0 0.0
    %2303 = vmatprep.subr.mxu0 0.0
    %2304 = vmatpush1.msra.mxu0 0.0
    %2305 = vmatprep.subr.mxu0 0.0
    %2306 = vmatpush1.msra.mxu0 0.0
    %2307 = vmatprep.subr.mxu0 0.0
    %2308 = vmatpush1.msra.mxu0 0.0
    %2309 = vmatprep.subr.mxu0 0.0
    %2310 = vmatpush1.msra.mxu0 0.0
    %2311 = vmatprep.subr.mxu0 0.0
    %2312 = vmatpush1.msra.mxu0 0.0
    %2313 = vmatprep.subr.mxu0 0.0
    %2314 = vmatpush1.msra.mxu0 0.0
    %2315 = vmatprep.subr.mxu0 0.0
    %2316 = vmatpush1.msra.mxu0 0.0
    %2317 = vmatprep.subr.mxu0 0.0
    %2318 = vmatpush1.msra.mxu0 0.0
    %2319 = vmatprep.subr.mxu0 0.0
    %2320 = vmatpush1.msra.mxu0 0.0
    %2321 = vmatprep.subr.mxu0 0.0
    %2322 = vmatpush1.msra.mxu0 0.0
    %2323 = vmatprep.subr.mxu0 0.0
    %2324 = vmatpush1.msra.mxu0 0.0
    %2325 = vmatprep.subr.mxu0 0.0
    %2326 = vmatpush1.msra.mxu0 0.0
    %2327 = vmatprep.subr.mxu0 0.0
    %2328 = vmatpush1.msra.mxu0 0.0
    %2329 = vmatprep.subr.mxu0 0.0
    %2330 = vmatpush1.msra.mxu0 0.0
    %2331 = vmatprep.subr.mxu0 0.0
    %2332 = vmatpush1.msra.mxu0 0.0
    %2333 = vmatprep.subr.mxu0 0.0
    %2334 = vmatpush1.msra.mxu0 0.0
    %2335 = vmatprep.subr.mxu0 0.0
    %2336 = vmatpush1.msra.mxu0 0.0
    %2337 = vmatprep.subr.mxu0 0.0
    %2338 = vmatpush1.msra.mxu0 0.0
    %2339 = vmatprep.subr.mxu0 0.0
    %2340 = vmatpush1.msra.mxu0 0.0
    %2341 = vmatprep.subr.mxu0 0.0
    %2342 = vmatpush1.msra.mxu0 0.0
    %2343 = vmatprep.mubr.f32.mxu0 0.0
    %2344 = vmatmul.mubr.f32.gmra.mrb[0].mxu0 %v2207
    %v2345 = vpop.f32.mrb[0].mxu0
    %v2346 = vadd.f32 %v1784, %v2345
    %v2347 = vpop.f32.mrb[0].mxu0
    %2348 = vdwg.mxu0
    %2349 = vmatprep.subr.mxu0 0.0
    %2350 = vmatpush1.msra.mxu0 %v1857
    %2351 = vmatprep.subr.mxu0 0.0
    %2352 = vmatpush1.msra.mxu0 %v1858
    %2353 = vmatprep.subr.mxu0 0.0
    %2354 = vmatpush1.msra.mxu0 %v1859
    %2355 = vmatprep.subr.mxu0 0.0
    %2356 = vmatpush1.msra.mxu0 %v1860
    %2357 = vmatprep.subr.mxu0 0.0
    %2358 = vmatpush1.msra.mxu0 0.0
    %2359 = vmatprep.subr.mxu0 0.0
    %2360 = vmatpush1.msra.mxu0 0.0
    %2361 = vmatprep.subr.mxu0 0.0
    %2362 = vmatpush1.msra.mxu0 0.0
    %2363 = vmatprep.subr.mxu0 0.0
    %2364 = vmatpush1.msra.mxu0 0.0
    %2365 = vmatprep.subr.mxu0 0.0
    %2366 = vmatpush1.msra.mxu0 0.0
    %2367 = vmatprep.subr.mxu0 0.0
    %2368 = vmatpush1.msra.mxu0 0.0
    %2369 = vmatprep.subr.mxu0 0.0
    %2370 = vmatpush1.msra.mxu0 0.0
    %2371 = vmatprep.subr.mxu0 0.0
    %2372 = vmatpush1.msra.mxu0 0.0
    %2373 = vmatprep.subr.mxu0 0.0
    %2374 = vmatpush1.msra.mxu0 0.0
    %2375 = vmatprep.subr.mxu0 0.0
    %2376 = vmatpush1.msra.mxu0 0.0
    %2377 = vmatprep.subr.mxu0 0.0
    %2378 = vmatpush1.msra.mxu0 0.0
    %2379 = vmatprep.subr.mxu0 0.0
    %2380 = vmatpush1.msra.mxu0 0.0
    %2381 = vmatprep.subr.mxu0 0.0
    %2382 = vmatpush1.msra.mxu0 0.0
    %2383 = vmatprep.subr.mxu0 0.0
    %2384 = vmatpush1.msra.mxu0 0.0
    %2385 = vmatprep.subr.mxu0 0.0
    %2386 = vmatpush1.msra.mxu0 0.0
    %2387 = vmatprep.subr.mxu0 0.0
    %2388 = vmatpush1.msra.mxu0 0.0
    %2389 = vmatprep.subr.mxu0 0.0
    %2390 = vmatpush1.msra.mxu0 0.0
    %2391 = vmatprep.subr.mxu0 0.0
    %2392 = vmatpush1.msra.mxu0 0.0
    %2393 = vmatprep.subr.mxu0 0.0
    %2394 = vmatpush1.msra.mxu0 0.0
    %2395 = vmatprep.subr.mxu0 0.0
    %2396 = vmatpush1.msra.mxu0 0.0
    %2397 = vmatprep.subr.mxu0 0.0
    %2398 = vmatpush1.msra.mxu0 0.0
    %2399 = vmatprep.subr.mxu0 0.0
    %2400 = vmatpush1.msra.mxu0 0.0
    %2401 = vmatprep.subr.mxu0 0.0
    %2402 = vmatpush1.msra.mxu0 0.0
    %2403 = vmatprep.subr.mxu0 0.0
    %2404 = vmatpush1.msra.mxu0 0.0
    %2405 = vmatprep.subr.mxu0 0.0
    %2406 = vmatpush1.msra.mxu0 0.0
    %2407 = vmatprep.subr.mxu0 0.0
    %2408 = vmatpush1.msra.mxu0 0.0
    %2409 = vmatprep.subr.mxu0 0.0
    %2410 = vmatpush1.msra.mxu0 0.0
    %2411 = vmatprep.subr.mxu0 0.0
    %2412 = vmatpush1.msra.mxu0 0.0
    %2413 = vmatprep.mubr.f32.mxu0 0.0
    %2414 = vmatmul.mubr.f32.gmra.mrb[0].mxu0 %v2207
    %v2415 = vpop.f32.mrb[0].mxu0
    %v2416 = vadd.f32 %v1867, %v2415
    %v2417 = vpop.f32.mrb[0].mxu0
    %2418 = vdwg.mxu0
    %v2420 = vrot.slane %v2276, 4
    %v2422 = vadd.f32 %v1479, %v2420
    %v2423 = vxor.u32 %v2422, 2147483648
    %v2424 = vmul.f32 %v2423, 1.442695
    %v2425 = vpow.pop %v2424
    %v2426 = vadd.f32 %v2425, 1.0
    %v2427 = vrcp.pop %v2426
    %v2428 = vmul.f32 1.0, %v2427
    %v2430 = vrot.slane %v2346, 4
    %v2432 = vadd.f32 %v1575, %v2430
    %v2433 = vxor.u32 %v2432, 2147483648
    %v2434 = vmul.f32 %v2433, 1.442695
    %v2435 = vpow.pop %v2434
    %v2436 = vadd.f32 %v2435, 1.0
    %v2437 = vrcp.pop %v2436
    %v2438 = vmul.f32 1.0, %v2437
    %v2440 = vrot.slane %v2416, 4
    %v2442 = vmul.f32 %v2428, %v2440
    %v2443 = vadd.f32 %v1671, %v2442
    %v2444 = vtanh.pop %v2443
    %v2445 = vsub.f32 1.0, %v2438
    %v2446 = vmul.f32 %v2445, %v2444
    %v2447 = vrot.slane %v2204, 6
    %v2449 = vmul.f32 %v2438, %v2447
    %v2450 = vadd.f32 %v2446, %v2449
    %v2452 = vrot.slane %v2450, 4
    %v2453 = vsel %vm191, %v2452, 0
    %2455 = vmatprep.subr.mxu0 0.0
    %2456 = vmatpush1.msra.mxu0 %v1689
    %2457 = vmatprep.subr.mxu0 0.0
    %2458 = vmatpush1.msra.mxu0 %v1690
    %2459 = vmatprep.subr.mxu0 0.0
    %2460 = vmatpush1.msra.mxu0 %v1691
    %2461 = vmatprep.subr.mxu0 0.0
    %2462 = vmatpush1.msra.mxu0 %v1692
    %2463 = vmatprep.subr.mxu0 0.0
    %2464 = vmatpush1.msra.mxu0 0.0
    %2465 = vmatprep.subr.mxu0 0.0
    %2466 = vmatpush1.msra.mxu0 0.0
    %2467 = vmatprep.subr.mxu0 0.0
    %2468 = vmatpush1.msra.mxu0 0.0
    %2469 = vmatprep.subr.mxu0 0.0
    %2470 = vmatpush1.msra.mxu0 0.0
    %2471 = vmatprep.subr.mxu0 0.0
    %2472 = vmatpush1.msra.mxu0 0.0
    %2473 = vmatprep.subr.mxu0 0.0
    %2474 = vmatpush1.msra.mxu0 0.0
    %2475 = vmatprep.subr.mxu0 0.0
    %2476 = vmatpush1.msra.mxu0 0.0
    %2477 = vmatprep.subr.mxu0 0.0
    %2478 = vmatpush1.msra.mxu0 0.0
    %2479 = vmatprep.subr.mxu0 0.0
    %2480 = vmatpush1.msra.mxu0 0.0
    %2481 = vmatprep.subr.mxu0 0.0
    %2482 = vmatpush1.msra.mxu0 0.0
    %2483 = vmatprep.subr.mxu0 0.0
    %2484 = vmatpush1.msra.mxu0 0.0
    %2485 = vmatprep.subr.mxu0 0.0
    %2486 = vmatpush1.msra.mxu0 0.0
    %2487 = vmatprep.subr.mxu0 0.0
    %2488 = vmatpush1.msra.mxu0 0.0
    %2489 = vmatprep.subr.mxu0 0.0
    %2490 = vmatpush1.msra.mxu0 0.0
    %2491 = vmatprep.subr.mxu0 0.0
    %2492 = vmatpush1.msra.mxu0 0.0
    %2493 = vmatprep.subr.mxu0 0.0
    %2494 = vmatpush1.msra.mxu0 0.0
    %2495 = vmatprep.subr.mxu0 0.0
    %2496 = vmatpush1.msra.mxu0 0.0
    %2497 = vmatprep.subr.mxu0 0.0
    %2498 = vmatpush1.msra.mxu0 0.0
    %2499 = vmatprep.subr.mxu0 0.0
    %2500 = vmatpush1.msra.mxu0 0.0
    %2501 = vmatprep.subr.mxu0 0.0
    %2502 = vmatpush1.msra.mxu0 0.0
    %2503 = vmatprep.subr.mxu0 0.0
    %2504 = vmatpush1.msra.mxu0 0.0
    %2505 = vmatprep.subr.mxu0 0.0
    %2506 = vmatpush1.msra.mxu0 0.0
    %2507 = vmatprep.subr.mxu0 0.0
    %2508 = vmatpush1.msra.mxu0 0.0
    %2509 = vmatprep.subr.mxu0 0.0
    %2510 = vmatpush1.msra.mxu0 0.0
    %2511 = vmatprep.subr.mxu0 0.0
    %2512 = vmatpush1.msra.mxu0 0.0
    %2513 = vmatprep.subr.mxu0 0.0
    %2514 = vmatpush1.msra.mxu0 0.0
    %2515 = vmatprep.subr.mxu0 0.0
    %2516 = vmatpush1.msra.mxu0 0.0
    %2517 = vmatprep.subr.mxu0 0.0
    %2518 = vmatpush1.msra.mxu0 0.0
    %2519 = vmatprep.mubr.f32.mxu0 0.0
    %2520 = vmatmul.mubr.f32.gmra.mrb[0].mxu0 %v2453
    %v2521 = vpop.f32.mrb[0].mxu0
    %v2522 = vadd.f32 %v1698, %v2521
    %v2523 = vpop.f32.mrb[0].mxu0
    %2524 = vdwg.mxu0
    %2525 = vmatprep.subr.mxu0 0.0
    %2526 = vmatpush1.msra.mxu0 %v1774
    %2527 = vmatprep.subr.mxu0 0.0
    %2528 = vmatpush1.msra.mxu0 %v1775
    %2529 = vmatprep.subr.mxu0 0.0
    %2530 = vmatpush1.msra.mxu0 %v1776
    %2531 = vmatprep.subr.mxu0 0.0
    %2532 = vmatpush1.msra.mxu0 %v1777
    %2533 = vmatprep.subr.mxu0 0.0
    %2534 = vmatpush1.msra.mxu0 0.0
    %2535 = vmatprep.subr.mxu0 0.0
    %2536 = vmatpush1.msra.mxu0 0.0
    %2537 = vmatprep.subr.mxu0 0.0
    %2538 = vmatpush1.msra.mxu0 0.0
    %2539 = vmatprep.subr.mxu0 0.0
    %2540 = vmatpush1.msra.mxu0 0.0
    %2541 = vmatprep.subr.mxu0 0.0
    %2542 = vmatpush1.msra.mxu0 0.0
    %2543 = vmatprep.subr.mxu0 0.0
    %2544 = vmatpush1.msra.mxu0 0.0
    %2545 = vmatprep.subr.mxu0 0.0
    %2546 = vmatpush1.msra.mxu0 0.0
    %2547 = vmatprep.subr.mxu0 0.0
    %2548 = vmatpush1.msra.mxu0 0.0
    %2549 = vmatprep.subr.mxu0 0.0
    %2550 = vmatpush1.msra.mxu0 0.0
    %2551 = vmatprep.subr.mxu0 0.0
    %2552 = vmatpush1.msra.mxu0 0.0
    %2553 = vmatprep.subr.mxu0 0.0
    %2554 = vmatpush1.msra.mxu0 0.0
    %2555 = vmatprep.subr.mxu0 0.0
    %2556 = vmatpush1.msra.mxu0 0.0
    %2557 = vmatprep.subr.mxu0 0.0
    %2558 = vmatpush1.msra.mxu0 0.0
    %2559 = vmatprep.subr.mxu0 0.0
    %2560 = vmatpush1.msra.mxu0 0.0
    %2561 = vmatprep.subr.mxu0 0.0
    %2562 = vmatpush1.msra.mxu0 0.0
    %2563 = vmatprep.subr.mxu0 0.0
    %2564 = vmatpush1.msra.mxu0 0.0
    %2565 = vmatprep.subr.mxu0 0.0
    %2566 = vmatpush1.msra.mxu0 0.0
    %2567 = vmatprep.subr.mxu0 0.0
    %2568 = vmatpush1.msra.mxu0 0.0
    %2569 = vmatprep.subr.mxu0 0.0
    %2570 = vmatpush1.msra.mxu0 0.0
    %2571 = vmatprep.subr.mxu0 0.0
    %2572 = vmatpush1.msra.mxu0 0.0
    %2573 = vmatprep.subr.mxu0 0.0
    %2574 = vmatpush1.msra.mxu0 0.0
    %2575 = vmatprep.subr.mxu0 0.0
    %2576 = vmatpush1.msra.mxu0 0.0
    %2577 = vmatprep.subr.mxu0 0.0
    %2578 = vmatpush1.msra.mxu0 0.0
    %2579 = vmatprep.subr.mxu0 0.0
    %2580 = vmatpush1.msra.mxu0 0.0
    %2581 = vmatprep.subr.mxu0 0.0
    %2582 = vmatpush1.msra.mxu0 0.0
    %2583 = vmatprep.subr.mxu0 0.0
    %2584 = vmatpush1.msra.mxu0 0.0
    %2585 = vmatprep.subr.mxu0 0.0
    %2586 = vmatpush1.msra.mxu0 0.0
    %2587 = vmatprep.subr.mxu0 0.0
    %2588 = vmatpush1.msra.mxu0 0.0
    %2589 = vmatprep.mubr.f32.mxu0 0.0
    %2590 = vmatmul.mubr.f32.gmra.mrb[0].mxu0 %v2453
    %v2591 = vpop.f32.mrb[0].mxu0
    %v2592 = vadd.f32 %v1784, %v2591
    %v2593 = vpop.f32.mrb[0].mxu0
    %2594 = vdwg.mxu0
    %2595 = vmatprep.subr.mxu0 0.0
    %2596 = vmatpush1.msra.mxu0 %v1857
    %2597 = vmatprep.subr.mxu0 0.0
    %2598 = vmatpush1.msra.mxu0 %v1858
    %2599 = vmatprep.subr.mxu0 0.0
    %2600 = vmatpush1.msra.mxu0 %v1859
    %2601 = vmatprep.subr.mxu0 0.0
    %2602 = vmatpush1.msra.mxu0 %v1860
    %2603 = vmatprep.subr.mxu0 0.0
    %2604 = vmatpush1.msra.mxu0 0.0
    %2605 = vmatprep.subr.mxu0 0.0
    %2606 = vmatpush1.msra.mxu0 0.0
    %2607 = vmatprep.subr.mxu0 0.0
    %2608 = vmatpush1.msra.mxu0 0.0
    %2609 = vmatprep.subr.mxu0 0.0
    %2610 = vmatpush1.msra.mxu0 0.0
    %2611 = vmatprep.subr.mxu0 0.0
    %2612 = vmatpush1.msra.mxu0 0.0
    %2613 = vmatprep.subr.mxu0 0.0
    %2614 = vmatpush1.msra.mxu0 0.0
    %2615 = vmatprep.subr.mxu0 0.0
    %2616 = vmatpush1.msra.mxu0 0.0
    %2617 = vmatprep.subr.mxu0 0.0
    %2618 = vmatpush1.msra.mxu0 0.0
    %2619 = vmatprep.subr.mxu0 0.0
    %2620 = vmatpush1.msra.mxu0 0.0
    %2621 = vmatprep.subr.mxu0 0.0
    %2622 = vmatpush1.msra.mxu0 0.0
    %2623 = vmatprep.subr.mxu0 0.0
    %2624 = vmatpush1.msra.mxu0 0.0
    %2625 = vmatprep.subr.mxu0 0.0
    %2626 = vmatpush1.msra.mxu0 0.0
    %2627 = vmatprep.subr.mxu0 0.0
    %2628 = vmatpush1.msra.mxu0 0.0
    %2629 = vmatprep.subr.mxu0 0.0
    %2630 = vmatpush1.msra.mxu0 0.0
    %2631 = vmatprep.subr.mxu0 0.0
    %2632 = vmatpush1.msra.mxu0 0.0
    %2633 = vmatprep.subr.mxu0 0.0
    %2634 = vmatpush1.msra.mxu0 0.0
    %2635 = vmatprep.subr.mxu0 0.0
    %2636 = vmatpush1.msra.mxu0 0.0
    %2637 = vmatprep.subr.mxu0 0.0
    %2638 = vmatpush1.msra.mxu0 0.0
    %2639 = vmatprep.subr.mxu0 0.0
    %2640 = vmatpush1.msra.mxu0 0.0
    %2641 = vmatprep.subr.mxu0 0.0
    %2642 = vmatpush1.msra.mxu0 0.0
    %2643 = vmatprep.subr.mxu0 0.0
    %2644 = vmatpush1.msra.mxu0 0.0
    %2645 = vmatprep.subr.mxu0 0.0
    %2646 = vmatpush1.msra.mxu0 0.0
    %2647 = vmatprep.subr.mxu0 0.0
    %2648 = vmatpush1.msra.mxu0 0.0
    %2649 = vmatprep.subr.mxu0 0.0
    %2650 = vmatpush1.msra.mxu0 0.0
    %2651 = vmatprep.subr.mxu0 0.0
    %2652 = vmatpush1.msra.mxu0 0.0
    %2653 = vmatprep.subr.mxu0 0.0
    %2654 = vmatpush1.msra.mxu0 0.0
    %2655 = vmatprep.subr.mxu0 0.0
    %2656 = vmatpush1.msra.mxu0 0.0
    %2657 = vmatprep.subr.mxu0 0.0
    %2658 = vmatpush1.msra.mxu0 0.0
    %2659 = vmatprep.mubr.f32.mxu0 0.0
    %2660 = vmatmul.mubr.f32.gmra.mrb[0].mxu0 %v2453
    %v2661 = vpop.f32.mrb[0].mxu0
    %v2662 = vadd.f32 %v1867, %v2661
    %v2663 = vpop.f32.mrb[0].mxu0
    %2664 = vdwg.mxu0
    %v2666 = vrot.slane %v2522, 2
    %v2668 = vadd.f32 %v1479, %v2666
    %v2669 = vxor.u32 %v2668, 2147483648
    %v2670 = vmul.f32 %v2669, 1.442695
    %v2671 = vpow.pop %v2670
    %v2672 = vadd.f32 %v2671, 1.0
    %v2673 = vrcp.pop %v2672
    %v2674 = vmul.f32 1.0, %v2673
    %v2676 = vrot.slane %v2592, 2
    %v2678 = vadd.f32 %v1575, %v2676
    %v2679 = vxor.u32 %v2678, 2147483648
    %v2680 = vmul.f32 %v2679, 1.442695
    %v2681 = vpow.pop %v2680
    %v2682 = vadd.f32 %v2681, 1.0
    %v2683 = vrcp.pop %v2682
    %v2684 = vmul.f32 1.0, %v2683
    %v2686 = vrot.slane %v2662, 2
    %v2688 = vmul.f32 %v2674, %v2686
    %v2689 = vadd.f32 %v1671, %v2688
    %v2690 = vtanh.pop %v2689
    %v2691 = vsub.f32 1.0, %v2684
    %v2692 = vmul.f32 %v2691, %v2690
    %v2693 = vrot.slane %v2450, 6
    %v2695 = vmul.f32 %v2684, %v2693
    %v2696 = vadd.f32 %v2692, %v2695
    %v2698 = vrot.slane %v2696, 6
    %v2699 = vsel %vm191, %v2698, 0
    %2701 = vmatprep.subr.mxu0 0.0
    %2702 = vmatpush1.msra.mxu0 %v1689
    %2703 = vmatprep.subr.mxu0 0.0
    %2704 = vmatpush1.msra.mxu0 %v1690
    %2705 = vmatprep.subr.mxu0 0.0
    %2706 = vmatpush1.msra.mxu0 %v1691
    %2707 = vmatprep.subr.mxu0 0.0
    %2708 = vmatpush1.msra.mxu0 %v1692
    %2709 = vmatprep.subr.mxu0 0.0
    %2710 = vmatpush1.msra.mxu0 0.0
    %2711 = vmatprep.subr.mxu0 0.0
    %2712 = vmatpush1.msra.mxu0 0.0
    %2713 = vmatprep.subr.mxu0 0.0
    %2714 = vmatpush1.msra.mxu0 0.0
    %2715 = vmatprep.subr.mxu0 0.0
    %2716 = vmatpush1.msra.mxu0 0.0
    %2717 = vmatprep.subr.mxu0 0.0
    %2718 = vmatpush1.msra.mxu0 0.0
    %2719 = vmatprep.subr.mxu0 0.0
    %2720 = vmatpush1.msra.mxu0 0.0
    %2721 = vmatprep.subr.mxu0 0.0
    %2722 = vmatpush1.msra.mxu0 0.0
    %2723 = vmatprep.subr.mxu0 0.0
    %2724 = vmatpush1.msra.mxu0 0.0
    %2725 = vmatprep.subr.mxu0 0.0
    %2726 = vmatpush1.msra.mxu0 0.0
    %2727 = vmatprep.subr.mxu0 0.0
    %2728 = vmatpush1.msra.mxu0 0.0
    %2729 = vmatprep.subr.mxu0 0.0
    %2730 = vmatpush1.msra.mxu0 0.0
    %2731 = vmatprep.subr.mxu0 0.0
    %2732 = vmatpush1.msra.mxu0 0.0
    %2733 = vmatprep.subr.mxu0 0.0
    %2734 = vmatpush1.msra.mxu0 0.0
    %2735 = vmatprep.subr.mxu0 0.0
    %2736 = vmatpush1.msra.mxu0 0.0
    %2737 = vmatprep.subr.mxu0 0.0
    %2738 = vmatpush1.msra.mxu0 0.0
    %2739 = vmatprep.subr.mxu0 0.0
    %2740 = vmatpush1.msra.mxu0 0.0
    %2741 = vmatprep.subr.mxu0 0.0
    %2742 = vmatpush1.msra.mxu0 0.0
    %2743 = vmatprep.subr.mxu0 0.0
    %2744 = vmatpush1.msra.mxu0 0.0
    %2745 = vmatprep.subr.mxu0 0.0
    %2746 = vmatpush1.msra.mxu0 0.0
    %2747 = vmatprep.subr.mxu0 0.0
    %2748 = vmatpush1.msra.mxu0 0.0
    %2749 = vmatprep.subr.mxu0 0.0
    %2750 = vmatpush1.msra.mxu0 0.0
    %2751 = vmatprep.subr.mxu0 0.0
    %2752 = vmatpush1.msra.mxu0 0.0
    %2753 = vmatprep.subr.mxu0 0.0
    %2754 = vmatpush1.msra.mxu0 0.0
    %2755 = vmatprep.subr.mxu0 0.0
    %2756 = vmatpush1.msra.mxu0 0.0
    %2757 = vmatprep.subr.mxu0 0.0
    %2758 = vmatpush1.msra.mxu0 0.0
    %2759 = vmatprep.subr.mxu0 0.0
    %2760 = vmatpush1.msra.mxu0 0.0
    %2761 = vmatprep.subr.mxu0 0.0
    %2762 = vmatpush1.msra.mxu0 0.0
    %2763 = vmatprep.subr.mxu0 0.0
    %2764 = vmatpush1.msra.mxu0 0.0
    %2765 = vmatprep.mubr.f32.mxu0 0.0
    %2766 = vmatmul.mubr.f32.gmra.mrb[0].mxu0 %v2699
    %v2767 = vpop.f32.mrb[0].mxu0
    %v2768 = vadd.f32 %v1698, %v2767
    %v2769 = vpop.f32.mrb[0].mxu0
    %2770 = vdwg.mxu0
    %2771 = vmatprep.subr.mxu0 0.0
    %2772 = vmatpush1.msra.mxu0 %v1774
    %2773 = vmatprep.subr.mxu0 0.0
    %2774 = vmatpush1.msra.mxu0 %v1775
    %2775 = vmatprep.subr.mxu0 0.0
    %2776 = vmatpush1.msra.mxu0 %v1776
    %2777 = vmatprep.subr.mxu0 0.0
    %2778 = vmatpush1.msra.mxu0 %v1777
    %2779 = vmatprep.subr.mxu0 0.0
    %2780 = vmatpush1.msra.mxu0 0.0
    %2781 = vmatprep.subr.mxu0 0.0
    %2782 = vmatpush1.msra.mxu0 0.0
    %2783 = vmatprep.subr.mxu0 0.0
    %2784 = vmatpush1.msra.mxu0 0.0
    %2785 = vmatprep.subr.mxu0 0.0
    %2786 = vmatpush1.msra.mxu0 0.0
    %2787 = vmatprep.subr.mxu0 0.0
    %2788 = vmatpush1.msra.mxu0 0.0
    %2789 = vmatprep.subr.mxu0 0.0
    %2790 = vmatpush1.msra.mxu0 0.0
    %2791 = vmatprep.subr.mxu0 0.0
    %2792 = vmatpush1.msra.mxu0 0.0
    %2793 = vmatprep.subr.mxu0 0.0
    %2794 = vmatpush1.msra.mxu0 0.0
    %2795 = vmatprep.subr.mxu0 0.0
    %2796 = vmatpush1.msra.mxu0 0.0
    %2797 = vmatprep.subr.mxu0 0.0
    %2798 = vmatpush1.msra.mxu0 0.0
    %2799 = vmatprep.subr.mxu0 0.0
    %2800 = vmatpush1.msra.mxu0 0.0
    %2801 = vmatprep.subr.mxu0 0.0
    %2802 = vmatpush1.msra.mxu0 0.0
    %2803 = vmatprep.subr.mxu0 0.0
    %2804 = vmatpush1.msra.mxu0 0.0
    %2805 = vmatprep.subr.mxu0 0.0
    %2806 = vmatpush1.msra.mxu0 0.0
    %2807 = vmatprep.subr.mxu0 0.0
    %2808 = vmatpush1.msra.mxu0 0.0
    %2809 = vmatprep.subr.mxu0 0.0
    %2810 = vmatpush1.msra.mxu0 0.0
    %2811 = vmatprep.subr.mxu0 0.0
    %2812 = vmatpush1.msra.mxu0 0.0
    %2813 = vmatprep.subr.mxu0 0.0
    %2814 = vmatpush1.msra.mxu0 0.0
    %2815 = vmatprep.subr.mxu0 0.0
    %2816 = vmatpush1.msra.mxu0 0.0
    %2817 = vmatprep.subr.mxu0 0.0
    %2818 = vmatpush1.msra.mxu0 0.0
    %2819 = vmatprep.subr.mxu0 0.0
    %2820 = vmatpush1.msra.mxu0 0.0
    %2821 = vmatprep.subr.mxu0 0.0
    %2822 = vmatpush1.msra.mxu0 0.0
    %2823 = vmatprep.subr.mxu0 0.0
    %2824 = vmatpush1.msra.mxu0 0.0
    %2825 = vmatprep.subr.mxu0 0.0
    %2826 = vmatpush1.msra.mxu0 0.0
    %2827 = vmatprep.subr.mxu0 0.0
    %2828 = vmatpush1.msra.mxu0 0.0
    %2829 = vmatprep.subr.mxu0 0.0
    %2830 = vmatpush1.msra.mxu0 0.0
    %2831 = vmatprep.subr.mxu0 0.0
    %2832 = vmatpush1.msra.mxu0 0.0
    %2833 = vmatprep.subr.mxu0 0.0
    %2834 = vmatpush1.msra.mxu0 0.0
    %2835 = vmatprep.mubr.f32.mxu0 0.0
    %2836 = vmatmul.mubr.f32.gmra.mrb[0].mxu0 %v2699
    %v2837 = vpop.f32.mrb[0].mxu0
    %v2838 = vadd.f32 %v1784, %v2837
    %v2839 = vpop.f32.mrb[0].mxu0
    %2840 = vdwg.mxu0
    %2841 = vmatprep.subr.mxu0 0.0
    %2842 = vmatpush1.msra.mxu0 %v1857
    %2843 = vmatprep.subr.mxu0 0.0
    %2844 = vmatpush1.msra.mxu0 %v1858
    %2845 = vmatprep.subr.mxu0 0.0
    %2846 = vmatpush1.msra.mxu0 %v1859
    %2847 = vmatprep.subr.mxu0 0.0
    %2848 = vmatpush1.msra.mxu0 %v1860
    %2849 = vmatprep.subr.mxu0 0.0
    %2850 = vmatpush1.msra.mxu0 0.0
    %2851 = vmatprep.subr.mxu0 0.0
    %2852 = vmatpush1.msra.mxu0 0.0
    %2853 = vmatprep.subr.mxu0 0.0
    %2854 = vmatpush1.msra.mxu0 0.0
    %2855 = vmatprep.subr.mxu0 0.0
    %2856 = vmatpush1.msra.mxu0 0.0
    %2857 = vmatprep.subr.mxu0 0.0
    %2858 = vmatpush1.msra.mxu0 0.0
    %2859 = vmatprep.subr.mxu0 0.0
    %2860 = vmatpush1.msra.mxu0 0.0
    %2861 = vmatprep.subr.mxu0 0.0
    %2862 = vmatpush1.msra.mxu0 0.0
    %2863 = vmatprep.subr.mxu0 0.0
    %2864 = vmatpush1.msra.mxu0 0.0
    %2865 = vmatprep.subr.mxu0 0.0
    %2866 = vmatpush1.msra.mxu0 0.0
    %2867 = vmatprep.subr.mxu0 0.0
    %2868 = vmatpush1.msra.mxu0 0.0
    %2869 = vmatprep.subr.mxu0 0.0
    %2870 = vmatpush1.msra.mxu0 0.0
    %2871 = vmatprep.subr.mxu0 0.0
    %2872 = vmatpush1.msra.mxu0 0.0
    %2873 = vmatprep.subr.mxu0 0.0
    %2874 = vmatpush1.msra.mxu0 0.0
    %2875 = vmatprep.subr.mxu0 0.0
    %2876 = vmatpush1.msra.mxu0 0.0
    %2877 = vmatprep.subr.mxu0 0.0
    %2878 = vmatpush1.msra.mxu0 0.0
    %2879 = vmatprep.subr.mxu0 0.0
    %2880 = vmatpush1.msra.mxu0 0.0
    %2881 = vmatprep.subr.mxu0 0.0
    %2882 = vmatpush1.msra.mxu0 0.0
    %2883 = vmatprep.subr.mxu0 0.0
    %2884 = vmatpush1.msra.mxu0 0.0
    %2885 = vmatprep.subr.mxu0 0.0
    %2886 = vmatpush1.msra.mxu0 0.0
    %2887 = vmatprep.subr.mxu0 0.0
    %2888 = vmatpush1.msra.mxu0 0.0
    %2889 = vmatprep.subr.mxu0 0.0
    %2890 = vmatpush1.msra.mxu0 0.0
    %2891 = vmatprep.subr.mxu0 0.0
    %2892 = vmatpush1.msra.mxu0 0.0
    %2893 = vmatprep.subr.mxu0 0.0
    %2894 = vmatpush1.msra.mxu0 0.0
    %2895 = vmatprep.subr.mxu0 0.0
    %2896 = vmatpush1.msra.mxu0 0.0
    %2897 = vmatprep.subr.mxu0 0.0
    %2898 = vmatpush1.msra.mxu0 0.0
    %2899 = vmatprep.subr.mxu0 0.0
    %2900 = vmatpush1.msra.mxu0 0.0
    %2901 = vmatprep.subr.mxu0 0.0
    %2902 = vmatpush1.msra.mxu0 0.0
    %2903 = vmatprep.subr.mxu0 0.0
    %2904 = vmatpush1.msra.mxu0 0.0
    %2905 = vmatprep.mubr.f32.mxu0 0.0
    %2906 = vmatmul.mubr.f32.gmra.mrb[0].mxu0 %v2699
    %v2907 = vpop.f32.mrb[0].mxu0
    %v2908 = vadd.f32 %v1867, %v2907
    %v2909 = vpop.f32.mrb[0].mxu0
    %2910 = vdwg.mxu0
    %v2911 = vadd.f32 %v1484, %v2768
    %v2912 = vxor.u32 %v2911, 2147483648
    %v2913 = vmul.f32 %v2912, 1.442695
    %v2914 = vpow.pop %v2913
    %v2915 = vadd.f32 %v2914, 1.0
    %v2916 = vrcp.pop %v2915
    %v2917 = vmul.f32 1.0, %v2916
    %v2918 = vadd.f32 %v1580, %v2838
    %v2919 = vxor.u32 %v2918, 2147483648
    %v2920 = vmul.f32 %v2919, 1.442695
    %v2921 = vpow.pop %v2920
    %v2922 = vadd.f32 %v2921, 1.0
    %v2923 = vrcp.pop %v2922
    %v2924 = vmul.f32 1.0, %v2923
    %v2925 = vmul.f32 %v2917, %v2908
    %v2926 = vadd.f32 %v1676, %v2925
    %v2927 = vtanh.pop %v2926
    %v2928 = vsub.f32 1.0, %v2924
    %v2929 = vmul.f32 %v2928, %v2927
    %v2931 = vmul.f32 %v2924, %v2698
    %v2932 = vadd.f32 %v2929, %v2931
    %v2934 = vsel %vm191, %v2932, 0
    %2936 = vmatprep.subr.mxu0 0.0
    %2937 = vmatpush1.msra.mxu0 %v1689
    %2938 = vmatprep.subr.mxu0 0.0
    %2939 = vmatpush1.msra.mxu0 %v1690
    %2940 = vmatprep.subr.mxu0 0.0
    %2941 = vmatpush1.msra.mxu0 %v1691
    %2942 = vmatprep.subr.mxu0 0.0
    %2943 = vmatpush1.msra.mxu0 %v1692
    %2944 = vmatprep.subr.mxu0 0.0
    %2945 = vmatpush1.msra.mxu0 0.0
    %2946 = vmatprep.subr.mxu0 0.0
    %2947 = vmatpush1.msra.mxu0 0.0
    %2948 = vmatprep.subr.mxu0 0.0
    %2949 = vmatpush1.msra.mxu0 0.0
    %2950 = vmatprep.subr.mxu0 0.0
    %2951 = vmatpush1.msra.mxu0 0.0
    %2952 = vmatprep.subr.mxu0 0.0
    %2953 = vmatpush1.msra.mxu0 0.0
    %2954 = vmatprep.subr.mxu0 0.0
    %2955 = vmatpush1.msra.mxu0 0.0
    %2956 = vmatprep.subr.mxu0 0.0
    %2957 = vmatpush1.msra.mxu0 0.0
    %2958 = vmatprep.subr.mxu0 0.0
    %2959 = vmatpush1.msra.mxu0 0.0
    %2960 = vmatprep.subr.mxu0 0.0
    %2961 = vmatpush1.msra.mxu0 0.0
    %2962 = vmatprep.subr.mxu0 0.0
    %2963 = vmatpush1.msra.mxu0 0.0
    %2964 = vmatprep.subr.mxu0 0.0
    %2965 = vmatpush1.msra.mxu0 0.0
    %2966 = vmatprep.subr.mxu0 0.0
    %2967 = vmatpush1.msra.mxu0 0.0
    %2968 = vmatprep.subr.mxu0 0.0
    %2969 = vmatpush1.msra.mxu0 0.0
    %2970 = vmatprep.subr.mxu0 0.0
    %2971 = vmatpush1.msra.mxu0 0.0
    %2972 = vmatprep.subr.mxu0 0.0
    %2973 = vmatpush1.msra.mxu0 0.0
    %2974 = vmatprep.subr.mxu0 0.0
    %2975 = vmatpush1.msra.mxu0 0.0
    %2976 = vmatprep.subr.mxu0 0.0
    %2977 = vmatpush1.msra.mxu0 0.0
    %2978 = vmatprep.subr.mxu0 0.0
    %2979 = vmatpush1.msra.mxu0 0.0
    %2980 = vmatprep.subr.mxu0 0.0
    %2981 = vmatpush1.msra.mxu0 0.0
    %2982 = vmatprep.subr.mxu0 0.0
    %2983 = vmatpush1.msra.mxu0 0.0
    %2984 = vmatprep.subr.mxu0 0.0
    %2985 = vmatpush1.msra.mxu0 0.0
    %2986 = vmatprep.subr.mxu0 0.0
    %2987 = vmatpush1.msra.mxu0 0.0
    %2988 = vmatprep.subr.mxu0 0.0
    %2989 = vmatpush1.msra.mxu0 0.0
    %2990 = vmatprep.subr.mxu0 0.0
    %2991 = vmatpush1.msra.mxu0 0.0
    %2992 = vmatprep.subr.mxu0 0.0
    %2993 = vmatpush1.msra.mxu0 0.0
    %2994 = vmatprep.subr.mxu0 0.0
    %2995 = vmatpush1.msra.mxu0 0.0
    %2996 = vmatprep.subr.mxu0 0.0
    %2997 = vmatpush1.msra.mxu0 0.0
    %2998 = vmatprep.subr.mxu0 0.0
    %2999 = vmatpush1.msra.mxu0 0.0
    %3000 = vmatprep.mubr.f32.mxu0 0.0
    %3001 = vmatmul.mubr.f32.gmra.mrb[0].mxu0 %v2934
    %v3002 = vpop.f32.mrb[0].mxu0
    %v3003 = vadd.f32 %v1698, %v3002
    %v3004 = vpop.f32.mrb[0].mxu0
    %3005 = vdwg.mxu0
    %3006 = vmatprep.subr.mxu0 0.0
    %3007 = vmatpush1.msra.mxu0 %v1774
    %3008 = vmatprep.subr.mxu0 0.0
    %3009 = vmatpush1.msra.mxu0 %v1775
    %3010 = vmatprep.subr.mxu0 0.0
    %3011 = vmatpush1.msra.mxu0 %v1776
    %3012 = vmatprep.subr.mxu0 0.0
    %3013 = vmatpush1.msra.mxu0 %v1777
    %3014 = vmatprep.subr.mxu0 0.0
    %3015 = vmatpush1.msra.mxu0 0.0
    %3016 = vmatprep.subr.mxu0 0.0
    %3017 = vmatpush1.msra.mxu0 0.0
    %3018 = vmatprep.subr.mxu0 0.0
    %3019 = vmatpush1.msra.mxu0 0.0
    %3020 = vmatprep.subr.mxu0 0.0
    %3021 = vmatpush1.msra.mxu0 0.0
    %3022 = vmatprep.subr.mxu0 0.0
    %3023 = vmatpush1.msra.mxu0 0.0
    %3024 = vmatprep.subr.mxu0 0.0
    %3025 = vmatpush1.msra.mxu0 0.0
    %3026 = vmatprep.subr.mxu0 0.0
    %3027 = vmatpush1.msra.mxu0 0.0
    %3028 = vmatprep.subr.mxu0 0.0
    %3029 = vmatpush1.msra.mxu0 0.0
    %3030 = vmatprep.subr.mxu0 0.0
    %3031 = vmatpush1.msra.mxu0 0.0
    %3032 = vmatprep.subr.mxu0 0.0
    %3033 = vmatpush1.msra.mxu0 0.0
    %3034 = vmatprep.subr.mxu0 0.0
    %3035 = vmatpush1.msra.mxu0 0.0
    %3036 = vmatprep.subr.mxu0 0.0
    %3037 = vmatpush1.msra.mxu0 0.0
    %3038 = vmatprep.subr.mxu0 0.0
    %3039 = vmatpush1.msra.mxu0 0.0
    %3040 = vmatprep.subr.mxu0 0.0
    %3041 = vmatpush1.msra.mxu0 0.0
    %3042 = vmatprep.subr.mxu0 0.0
    %3043 = vmatpush1.msra.mxu0 0.0
    %3044 = vmatprep.subr.mxu0 0.0
    %3045 = vmatpush1.msra.mxu0 0.0
    %3046 = vmatprep.subr.mxu0 0.0
    %3047 = vmatpush1.msra.mxu0 0.0
    %3048 = vmatprep.subr.mxu0 0.0
    %3049 = vmatpush1.msra.mxu0 0.0
    %3050 = vmatprep.subr.mxu0 0.0
    %3051 = vmatpush1.msra.mxu0 0.0
    %3052 = vmatprep.subr.mxu0 0.0
    %3053 = vmatpush1.msra.mxu0 0.0
    %3054 = vmatprep.subr.mxu0 0.0
    %3055 = vmatpush1.msra.mxu0 0.0
    %3056 = vmatprep.subr.mxu0 0.0
    %3057 = vmatpush1.msra.mxu0 0.0
    %3058 = vmatprep.subr.mxu0 0.0
    %3059 = vmatpush1.msra.mxu0 0.0
    %3060 = vmatprep.subr.mxu0 0.0
    %3061 = vmatpush1.msra.mxu0 0.0
    %3062 = vmatprep.subr.mxu0 0.0
    %3063 = vmatpush1.msra.mxu0 0.0
    %3064 = vmatprep.subr.mxu0 0.0
    %3065 = vmatpush1.msra.mxu0 0.0
    %3066 = vmatprep.subr.mxu0 0.0
    %3067 = vmatpush1.msra.mxu0 0.0
    %3068 = vmatprep.subr.mxu0 0.0
    %3069 = vmatpush1.msra.mxu0 0.0
    %3070 = vmatprep.mubr.f32.mxu0 0.0
    %3071 = vmatmul.mubr.f32.gmra.mrb[0].mxu0 %v2934
    %v3072 = vpop.f32.mrb[0].mxu0
    %v3073 = vadd.f32 %v1784, %v3072
    %v3074 = vpop.f32.mrb[0].mxu0
    %3075 = vdwg.mxu0
    %3076 = vmatprep.subr.mxu0 0.0
    %3077 = vmatpush1.msra.mxu0 %v1857
    %3078 = vmatprep.subr.mxu0 0.0
    %3079 = vmatpush1.msra.mxu0 %v1858
    %3080 = vmatprep.subr.mxu0 0.0
    %3081 = vmatpush1.msra.mxu0 %v1859
    %3082 = vmatprep.subr.mxu0 0.0
    %3083 = vmatpush1.msra.mxu0 %v1860
    %3084 = vmatprep.subr.mxu0 0.0
    %3085 = vmatpush1.msra.mxu0 0.0
    %3086 = vmatprep.subr.mxu0 0.0
    %3087 = vmatpush1.msra.mxu0 0.0
    %3088 = vmatprep.subr.mxu0 0.0
    %3089 = vmatpush1.msra.mxu0 0.0
    %3090 = vmatprep.subr.mxu0 0.0
    %3091 = vmatpush1.msra.mxu0 0.0
    %3092 = vmatprep.subr.mxu0 0.0
    %3093 = vmatpush1.msra.mxu0 0.0
    %3094 = vmatprep.subr.mxu0 0.0
    %3095 = vmatpush1.msra.mxu0 0.0
    %3096 = vmatprep.subr.mxu0 0.0
    %3097 = vmatpush1.msra.mxu0 0.0
    %3098 = vmatprep.subr.mxu0 0.0
    %3099 = vmatpush1.msra.mxu0 0.0
    %3100 = vmatprep.subr.mxu0 0.0
    %3101 = vmatpush1.msra.mxu0 0.0
    %3102 = vmatprep.subr.mxu0 0.0
    %3103 = vmatpush1.msra.mxu0 0.0
    %3104 = vmatprep.subr.mxu0 0.0
    %3105 = vmatpush1.msra.mxu0 0.0
    %3106 = vmatprep.subr.mxu0 0.0
    %3107 = vmatpush1.msra.mxu0 0.0
    %3108 = vmatprep.subr.mxu0 0.0
    %3109 = vmatpush1.msra.mxu0 0.0
    %3110 = vmatprep.subr.mxu0 0.0
    %3111 = vmatpush1.msra.mxu0 0.0
    %3112 = vmatprep.subr.mxu0 0.0
    %3113 = vmatpush1.msra.mxu0 0.0
    %3114 = vmatprep.subr.mxu0 0.0
    %3115 = vmatpush1.msra.mxu0 0.0
    %3116 = vmatprep.subr.mxu0 0.0
    %3117 = vmatpush1.msra.mxu0 0.0
    %3118 = vmatprep.subr.mxu0 0.0
    %3119 = vmatpush1.msra.mxu0 0.0
    %3120 = vmatprep.subr.mxu0 0.0
    %3121 = vmatpush1.msra.mxu0 0.0
    %3122 = vmatprep.subr.mxu0 0.0
    %3123 = vmatpush1.msra.mxu0 0.0
    %3124 = vmatprep.subr.mxu0 0.0
    %3125 = vmatpush1.msra.mxu0 0.0
    %3126 = vmatprep.subr.mxu0 0.0
    %3127 = vmatpush1.msra.mxu0 0.0
    %3128 = vmatprep.subr.mxu0 0.0
    %3129 = vmatpush1.msra.mxu0 0.0
    %3130 = vmatprep.subr.mxu0 0.0
    %3131 = vmatpush1.msra.mxu0 0.0
    %3132 = vmatprep.subr.mxu0 0.0
    %3133 = vmatpush1.msra.mxu0 0.0
    %3134 = vmatprep.subr.mxu0 0.0
    %3135 = vmatpush1.msra.mxu0 0.0
    %3136 = vmatprep.subr.mxu0 0.0
    %3137 = vmatpush1.msra.mxu0 0.0
    %3138 = vmatprep.subr.mxu0 0.0
    %3139 = vmatpush1.msra.mxu0 0.0
    %3140 = vmatprep.mubr.f32.mxu0 0.0
    %3141 = vmatmul.mubr.f32.gmra.mrb[0].mxu0 %v2934
    %v3142 = vpop.f32.mrb[0].mxu0
    %v3143 = vadd.f32 %v1867, %v3142
    %v3144 = vpop.f32.mrb[0].mxu0
    %3145 = vdwg.mxu0
    %v3147 = vrot.slane %v3003, 6
    %v3149 = vadd.f32 %v1484, %v3147
    %v3150 = vxor.u32 %v3149, 2147483648
    %v3151 = vmul.f32 %v3150, 1.442695
    %v3152 = vpow.pop %v3151
    %v3153 = vadd.f32 %v3152, 1.0
    %v3154 = vrcp.pop %v3153
    %v3155 = vmul.f32 1.0, %v3154
    %v3157 = vrot.slane %v3073, 6
    %v3159 = vadd.f32 %v1580, %v3157
    %v3160 = vxor.u32 %v3159, 2147483648
    %v3161 = vmul.f32 %v3160, 1.442695
    %v3162 = vpow.pop %v3161
    %v3163 = vadd.f32 %v3162, 1.0
    %v3164 = vrcp.pop %v3163
    %v3165 = vmul.f32 1.0, %v3164
    %v3167 = vrot.slane %v3143, 6
    %v3169 = vmul.f32 %v3155, %v3167
    %v3170 = vadd.f32 %v1676, %v3169
    %v3171 = vtanh.pop %v3170
    %v3172 = vsub.f32 1.0, %v3165
    %v3173 = vmul.f32 %v3172, %v3171
    %v3174 = vrot.slane %v2932, 6
    %v3176 = vmul.f32 %v3165, %v3174
    %v3177 = vadd.f32 %v3173, %v3176
    %v3179 = vrot.slane %v3177, 2
    %v3180 = vsel %vm191, %v3179, 0
    %3182 = vmatprep.subr.mxu0 0.0
    %3183 = vmatpush1.msra.mxu0 %v1689
    %3184 = vmatprep.subr.mxu0 0.0
    %3185 = vmatpush1.msra.mxu0 %v1690
    %3186 = vmatprep.subr.mxu0 0.0
    %3187 = vmatpush1.msra.mxu0 %v1691
    %3188 = vmatprep.subr.mxu0 0.0
    %3189 = vmatpush1.msra.mxu0 %v1692
    %3190 = vmatprep.subr.mxu0 0.0
    %3191 = vmatpush1.msra.mxu0 0.0
    %3192 = vmatprep.subr.mxu0 0.0
    %3193 = vmatpush1.msra.mxu0 0.0
    %3194 = vmatprep.subr.mxu0 0.0
    %3195 = vmatpush1.msra.mxu0 0.0
    %3196 = vmatprep.subr.mxu0 0.0
    %3197 = vmatpush1.msra.mxu0 0.0
    %3198 = vmatprep.subr.mxu0 0.0
    %3199 = vmatpush1.msra.mxu0 0.0
    %3200 = vmatprep.subr.mxu0 0.0
    %3201 = vmatpush1.msra.mxu0 0.0
    %3202 = vmatprep.subr.mxu0 0.0
    %3203 = vmatpush1.msra.mxu0 0.0
    %3204 = vmatprep.subr.mxu0 0.0
    %3205 = vmatpush1.msra.mxu0 0.0
    %3206 = vmatprep.subr.mxu0 0.0
    %3207 = vmatpush1.msra.mxu0 0.0
    %3208 = vmatprep.subr.mxu0 0.0
    %3209 = vmatpush1.msra.mxu0 0.0
    %3210 = vmatprep.subr.mxu0 0.0
    %3211 = vmatpush1.msra.mxu0 0.0
    %3212 = vmatprep.subr.mxu0 0.0
    %3213 = vmatpush1.msra.mxu0 0.0
    %3214 = vmatprep.subr.mxu0 0.0
    %3215 = vmatpush1.msra.mxu0 0.0
    %3216 = vmatprep.subr.mxu0 0.0
    %3217 = vmatpush1.msra.mxu0 0.0
    %3218 = vmatprep.subr.mxu0 0.0
    %3219 = vmatpush1.msra.mxu0 0.0
    %3220 = vmatprep.subr.mxu0 0.0
    %3221 = vmatpush1.msra.mxu0 0.0
    %3222 = vmatprep.subr.mxu0 0.0
    %3223 = vmatpush1.msra.mxu0 0.0
    %3224 = vmatprep.subr.mxu0 0.0
    %3225 = vmatpush1.msra.mxu0 0.0
    %3226 = vmatprep.subr.mxu0 0.0
    %3227 = vmatpush1.msra.mxu0 0.0
    %3228 = vmatprep.subr.mxu0 0.0
    %3229 = vmatpush1.msra.mxu0 0.0
    %3230 = vmatprep.subr.mxu0 0.0
    %3231 = vmatpush1.msra.mxu0 0.0
    %3232 = vmatprep.subr.mxu0 0.0
    %3233 = vmatpush1.msra.mxu0 0.0
    %3234 = vmatprep.subr.mxu0 0.0
    %3235 = vmatpush1.msra.mxu0 0.0
    %3236 = vmatprep.subr.mxu0 0.0
    %3237 = vmatpush1.msra.mxu0 0.0
    %3238 = vmatprep.subr.mxu0 0.0
    %3239 = vmatpush1.msra.mxu0 0.0
    %3240 = vmatprep.subr.mxu0 0.0
    %3241 = vmatpush1.msra.mxu0 0.0
    %3242 = vmatprep.subr.mxu0 0.0
    %3243 = vmatpush1.msra.mxu0 0.0
    %3244 = vmatprep.subr.mxu0 0.0
    %3245 = vmatpush1.msra.mxu0 0.0
    %3246 = vmatprep.mubr.f32.mxu0 0.0
    %3247 = vmatmul.mubr.f32.gmra.mrb[0].mxu0 %v3180
    %v3248 = vpop.f32.mrb[0].mxu0
    %v3249 = vadd.f32 %v1698, %v3248
    %v3250 = vpop.f32.mrb[0].mxu0
    %3251 = vdwg.mxu0
    %3252 = vmatprep.subr.mxu0 0.0
    %3253 = vmatpush1.msra.mxu0 %v1774
    %3254 = vmatprep.subr.mxu0 0.0
    %3255 = vmatpush1.msra.mxu0 %v1775
    %3256 = vmatprep.subr.mxu0 0.0
    %3257 = vmatpush1.msra.mxu0 %v1776
    %3258 = vmatprep.subr.mxu0 0.0
    %3259 = vmatpush1.msra.mxu0 %v1777
    %3260 = vmatprep.subr.mxu0 0.0
    %3261 = vmatpush1.msra.mxu0 0.0
    %3262 = vmatprep.subr.mxu0 0.0
    %3263 = vmatpush1.msra.mxu0 0.0
    %3264 = vmatprep.subr.mxu0 0.0
    %3265 = vmatpush1.msra.mxu0 0.0
    %3266 = vmatprep.subr.mxu0 0.0
    %3267 = vmatpush1.msra.mxu0 0.0
    %3268 = vmatprep.subr.mxu0 0.0
    %3269 = vmatpush1.msra.mxu0 0.0
    %3270 = vmatprep.subr.mxu0 0.0
    %3271 = vmatpush1.msra.mxu0 0.0
    %3272 = vmatprep.subr.mxu0 0.0
    %3273 = vmatpush1.msra.mxu0 0.0
    %3274 = vmatprep.subr.mxu0 0.0
    %3275 = vmatpush1.msra.mxu0 0.0
    %3276 = vmatprep.subr.mxu0 0.0
    %3277 = vmatpush1.msra.mxu0 0.0
    %3278 = vmatprep.subr.mxu0 0.0
    %3279 = vmatpush1.msra.mxu0 0.0
    %3280 = vmatprep.subr.mxu0 0.0
    %3281 = vmatpush1.msra.mxu0 0.0
    %3282 = vmatprep.subr.mxu0 0.0
    %3283 = vmatpush1.msra.mxu0 0.0
    %3284 = vmatprep.subr.mxu0 0.0
    %3285 = vmatpush1.msra.mxu0 0.0
    %3286 = vmatprep.subr.mxu0 0.0
    %3287 = vmatpush1.msra.mxu0 0.0
    %3288 = vmatprep.subr.mxu0 0.0
    %3289 = vmatpush1.msra.mxu0 0.0
    %3290 = vmatprep.subr.mxu0 0.0
    %3291 = vmatpush1.msra.mxu0 0.0
    %3292 = vmatprep.subr.mxu0 0.0
    %3293 = vmatpush1.msra.mxu0 0.0
    %3294 = vmatprep.subr.mxu0 0.0
    %3295 = vmatpush1.msra.mxu0 0.0
    %3296 = vmatprep.subr.mxu0 0.0
    %3297 = vmatpush1.msra.mxu0 0.0
    %3298 = vmatprep.subr.mxu0 0.0
    %3299 = vmatpush1.msra.mxu0 0.0
    %3300 = vmatprep.subr.mxu0 0.0
    %3301 = vmatpush1.msra.mxu0 0.0
    %3302 = vmatprep.subr.mxu0 0.0
    %3303 = vmatpush1.msra.mxu0 0.0
    %3304 = vmatprep.subr.mxu0 0.0
    %3305 = vmatpush1.msra.mxu0 0.0
    %3306 = vmatprep.subr.mxu0 0.0
    %3307 = vmatpush1.msra.mxu0 0.0
    %3308 = vmatprep.subr.mxu0 0.0
    %3309 = vmatpush1.msra.mxu0 0.0
    %3310 = vmatprep.subr.mxu0 0.0
    %3311 = vmatpush1.msra.mxu0 0.0
    %3312 = vmatprep.subr.mxu0 0.0
    %3313 = vmatpush1.msra.mxu0 0.0
    %3314 = vmatprep.subr.mxu0 0.0
    %3315 = vmatpush1.msra.mxu0 0.0
    %3316 = vmatprep.mubr.f32.mxu0 0.0
    %3317 = vmatmul.mubr.f32.gmra.mrb[0].mxu0 %v3180
    %v3318 = vpop.f32.mrb[0].mxu0
    %v3319 = vadd.f32 %v1784, %v3318
    %v3320 = vpop.f32.mrb[0].mxu0
    %3321 = vdwg.mxu0
    %3322 = vmatprep.subr.mxu0 0.0
    %3323 = vmatpush1.msra.mxu0 %v1857
    %3324 = vmatprep.subr.mxu0 0.0
    %3325 = vmatpush1.msra.mxu0 %v1858
    %3326 = vmatprep.subr.mxu0 0.0
    %3327 = vmatpush1.msra.mxu0 %v1859
    %3328 = vmatprep.subr.mxu0 0.0
    %3329 = vmatpush1.msra.mxu0 %v1860
    %3330 = vmatprep.subr.mxu0 0.0
    %3331 = vmatpush1.msra.mxu0 0.0
    %3332 = vmatprep.subr.mxu0 0.0
    %3333 = vmatpush1.msra.mxu0 0.0
    %3334 = vmatprep.subr.mxu0 0.0
    %3335 = vmatpush1.msra.mxu0 0.0
    %3336 = vmatprep.subr.mxu0 0.0
    %3337 = vmatpush1.msra.mxu0 0.0
    %3338 = vmatprep.subr.mxu0 0.0
    %3339 = vmatpush1.msra.mxu0 0.0
    %3340 = vmatprep.subr.mxu0 0.0
    %3341 = vmatpush1.msra.mxu0 0.0
    %3342 = vmatprep.subr.mxu0 0.0
    %3343 = vmatpush1.msra.mxu0 0.0
    %3344 = vmatprep.subr.mxu0 0.0
    %3345 = vmatpush1.msra.mxu0 0.0
    %3346 = vmatprep.subr.mxu0 0.0
    %3347 = vmatpush1.msra.mxu0 0.0
    %3348 = vmatprep.subr.mxu0 0.0
    %3349 = vmatpush1.msra.mxu0 0.0
    %3350 = vmatprep.subr.mxu0 0.0
    %3351 = vmatpush1.msra.mxu0 0.0
    %3352 = vmatprep.subr.mxu0 0.0
    %3353 = vmatpush1.msra.mxu0 0.0
    %3354 = vmatprep.subr.mxu0 0.0
    %3355 = vmatpush1.msra.mxu0 0.0
    %3356 = vmatprep.subr.mxu0 0.0
    %3357 = vmatpush1.msra.mxu0 0.0
    %3358 = vmatprep.subr.mxu0 0.0
    %3359 = vmatpush1.msra.mxu0 0.0
    %3360 = vmatprep.subr.mxu0 0.0
    %3361 = vmatpush1.msra.mxu0 0.0
    %3362 = vmatprep.subr.mxu0 0.0
    %3363 = vmatpush1.msra.mxu0 0.0
    %3364 = vmatprep.subr.mxu0 0.0
    %3365 = vmatpush1.msra.mxu0 0.0
    %3366 = vmatprep.subr.mxu0 0.0
    %3367 = vmatpush1.msra.mxu0 0.0
    %3368 = vmatprep.subr.mxu0 0.0
    %3369 = vmatpush1.msra.mxu0 0.0
    %3370 = vmatprep.subr.mxu0 0.0
    %3371 = vmatpush1.msra.mxu0 0.0
    %3372 = vmatprep.subr.mxu0 0.0
    %3373 = vmatpush1.msra.mxu0 0.0
    %3374 = vmatprep.subr.mxu0 0.0
    %3375 = vmatpush1.msra.mxu0 0.0
    %3376 = vmatprep.subr.mxu0 0.0
    %3377 = vmatpush1.msra.mxu0 0.0
    %3378 = vmatprep.subr.mxu0 0.0
    %3379 = vmatpush1.msra.mxu0 0.0
    %3380 = vmatprep.subr.mxu0 0.0
    %3381 = vmatpush1.msra.mxu0 0.0
    %3382 = vmatprep.subr.mxu0 0.0
    %3383 = vmatpush1.msra.mxu0 0.0
    %3384 = vmatprep.subr.mxu0 0.0
    %3385 = vmatpush1.msra.mxu0 0.0
    %3386 = vmatprep.mubr.f32.mxu0 0.0
    %3387 = vmatmul.mubr.f32.gmra.mrb[0].mxu0 %v3180
    %v3388 = vpop.f32.mrb[0].mxu0
    %v3389 = vadd.f32 %v1867, %v3388
    %v3390 = vpop.f32.mrb[0].mxu0
    %3391 = vdwg.mxu0
    %v3393 = vrot.slane %v3249, 4
    %v3395 = vadd.f32 %v1484, %v3393
    %v3396 = vxor.u32 %v3395, 2147483648
    %v3397 = vmul.f32 %v3396, 1.442695
    %v3398 = vpow.pop %v3397
    %v3399 = vadd.f32 %v3398, 1.0
    %v3400 = vrcp.pop %v3399
    %v3401 = vmul.f32 1.0, %v3400
    %v3403 = vrot.slane %v3319, 4
    %v3405 = vadd.f32 %v1580, %v3403
    %v3406 = vxor.u32 %v3405, 2147483648
    %v3407 = vmul.f32 %v3406, 1.442695
    %v3408 = vpow.pop %v3407
    %v3409 = vadd.f32 %v3408, 1.0
    %v3410 = vrcp.pop %v3409
    %v3411 = vmul.f32 1.0, %v3410
    %v3413 = vrot.slane %v3389, 4
    %v3415 = vmul.f32 %v3401, %v3413
    %v3416 = vadd.f32 %v1676, %v3415
    %v3417 = vtanh.pop %v3416
    %v3418 = vsub.f32 1.0, %v3411
    %v3419 = vmul.f32 %v3418, %v3417
    %v3420 = vrot.slane %v3177, 6
    %v3422 = vmul.f32 %v3411, %v3420
    %v3423 = vadd.f32 %v3419, %v3422
    %v3425 = vrot.slane %v3423, 4
    %v3426 = vsel %vm191, %v3425, 0
    %3428 = vmatprep.subr.mxu0 0.0
    %3429 = vmatpush1.msra.mxu0 %v1689
    %3430 = vmatprep.subr.mxu0 0.0
    %3431 = vmatpush1.msra.mxu0 %v1690
    %3432 = vmatprep.subr.mxu0 0.0
    %3433 = vmatpush1.msra.mxu0 %v1691
    %3434 = vmatprep.subr.mxu0 0.0
    %3435 = vmatpush1.msra.mxu0 %v1692
    %3436 = vmatprep.subr.mxu0 0.0
    %3437 = vmatpush1.msra.mxu0 0.0
    %3438 = vmatprep.subr.mxu0 0.0
    %3439 = vmatpush1.msra.mxu0 0.0
    %3440 = vmatprep.subr.mxu0 0.0
    %3441 = vmatpush1.msra.mxu0 0.0
    %3442 = vmatprep.subr.mxu0 0.0
    %3443 = vmatpush1.msra.mxu0 0.0
    %3444 = vmatprep.subr.mxu0 0.0
    %3445 = vmatpush1.msra.mxu0 0.0
    %3446 = vmatprep.subr.mxu0 0.0
    %3447 = vmatpush1.msra.mxu0 0.0
    %3448 = vmatprep.subr.mxu0 0.0
    %3449 = vmatpush1.msra.mxu0 0.0
    %3450 = vmatprep.subr.mxu0 0.0
    %3451 = vmatpush1.msra.mxu0 0.0
    %3452 = vmatprep.subr.mxu0 0.0
    %3453 = vmatpush1.msra.mxu0 0.0
    %3454 = vmatprep.subr.mxu0 0.0
    %3455 = vmatpush1.msra.mxu0 0.0
    %3456 = vmatprep.subr.mxu0 0.0
    %3457 = vmatpush1.msra.mxu0 0.0
    %3458 = vmatprep.subr.mxu0 0.0
    %3459 = vmatpush1.msra.mxu0 0.0
    %3460 = vmatprep.subr.mxu0 0.0
    %3461 = vmatpush1.msra.mxu0 0.0
    %3462 = vmatprep.subr.mxu0 0.0
    %3463 = vmatpush1.msra.mxu0 0.0
    %3464 = vmatprep.subr.mxu0 0.0
    %3465 = vmatpush1.msra.mxu0 0.0
    %3466 = vmatprep.subr.mxu0 0.0
    %3467 = vmatpush1.msra.mxu0 0.0
    %3468 = vmatprep.subr.mxu0 0.0
    %3469 = vmatpush1.msra.mxu0 0.0
    %3470 = vmatprep.subr.mxu0 0.0
    %3471 = vmatpush1.msra.mxu0 0.0
    %3472 = vmatprep.subr.mxu0 0.0
    %3473 = vmatpush1.msra.mxu0 0.0
    %3474 = vmatprep.subr.mxu0 0.0
    %3475 = vmatpush1.msra.mxu0 0.0
    %3476 = vmatprep.subr.mxu0 0.0
    %3477 = vmatpush1.msra.mxu0 0.0
    %3478 = vmatprep.subr.mxu0 0.0
    %3479 = vmatpush1.msra.mxu0 0.0
    %3480 = vmatprep.subr.mxu0 0.0
    %3481 = vmatpush1.msra.mxu0 0.0
    %3482 = vmatprep.subr.mxu0 0.0
    %3483 = vmatpush1.msra.mxu0 0.0
    %3484 = vmatprep.subr.mxu0 0.0
    %3485 = vmatpush1.msra.mxu0 0.0
    %3486 = vmatprep.subr.mxu0 0.0
    %3487 = vmatpush1.msra.mxu0 0.0
    %3488 = vmatprep.subr.mxu0 0.0
    %3489 = vmatpush1.msra.mxu0 0.0
    %3490 = vmatprep.subr.mxu0 0.0
    %3491 = vmatpush1.msra.mxu0 0.0
    %3492 = vmatprep.mubr.f32.mxu0 0.0
    %3493 = vmatmul.mubr.f32.gmra.mrb[0].mxu0 %v3426
    %v3494 = vpop.f32.mrb[0].mxu0
    %v3495 = vadd.f32 %v1698, %v3494
    %v3496 = vpop.f32.mrb[0].mxu0
    %3497 = vdwg.mxu0
    %3498 = vmatprep.subr.mxu0 0.0
    %3499 = vmatpush1.msra.mxu0 %v1774
    %3500 = vmatprep.subr.mxu0 0.0
    %3501 = vmatpush1.msra.mxu0 %v1775
    %3502 = vmatprep.subr.mxu0 0.0
    %3503 = vmatpush1.msra.mxu0 %v1776
    %3504 = vmatprep.subr.mxu0 0.0
    %3505 = vmatpush1.msra.mxu0 %v1777
    %3506 = vmatprep.subr.mxu0 0.0
    %3507 = vmatpush1.msra.mxu0 0.0
    %3508 = vmatprep.subr.mxu0 0.0
    %3509 = vmatpush1.msra.mxu0 0.0
    %3510 = vmatprep.subr.mxu0 0.0
    %3511 = vmatpush1.msra.mxu0 0.0
    %3512 = vmatprep.subr.mxu0 0.0
    %3513 = vmatpush1.msra.mxu0 0.0
    %3514 = vmatprep.subr.mxu0 0.0
    %3515 = vmatpush1.msra.mxu0 0.0
    %3516 = vmatprep.subr.mxu0 0.0
    %3517 = vmatpush1.msra.mxu0 0.0
    %3518 = vmatprep.subr.mxu0 0.0
    %3519 = vmatpush1.msra.mxu0 0.0
    %3520 = vmatprep.subr.mxu0 0.0
    %3521 = vmatpush1.msra.mxu0 0.0
    %3522 = vmatprep.subr.mxu0 0.0
    %3523 = vmatpush1.msra.mxu0 0.0
    %3524 = vmatprep.subr.mxu0 0.0
    %3525 = vmatpush1.msra.mxu0 0.0
    %3526 = vmatprep.subr.mxu0 0.0
    %3527 = vmatpush1.msra.mxu0 0.0
    %3528 = vmatprep.subr.mxu0 0.0
    %3529 = vmatpush1.msra.mxu0 0.0
    %3530 = vmatprep.subr.mxu0 0.0
    %3531 = vmatpush1.msra.mxu0 0.0
    %3532 = vmatprep.subr.mxu0 0.0
    %3533 = vmatpush1.msra.mxu0 0.0
    %3534 = vmatprep.subr.mxu0 0.0
    %3535 = vmatpush1.msra.mxu0 0.0
    %3536 = vmatprep.subr.mxu0 0.0
    %3537 = vmatpush1.msra.mxu0 0.0
    %3538 = vmatprep.subr.mxu0 0.0
    %3539 = vmatpush1.msra.mxu0 0.0
    %3540 = vmatprep.subr.mxu0 0.0
    %3541 = vmatpush1.msra.mxu0 0.0
    %3542 = vmatprep.subr.mxu0 0.0
    %3543 = vmatpush1.msra.mxu0 0.0
    %3544 = vmatprep.subr.mxu0 0.0
    %3545 = vmatpush1.msra.mxu0 0.0
    %3546 = vmatprep.subr.mxu0 0.0
    %3547 = vmatpush1.msra.mxu0 0.0
    %3548 = vmatprep.subr.mxu0 0.0
    %3549 = vmatpush1.msra.mxu0 0.0
    %3550 = vmatprep.subr.mxu0 0.0
    %3551 = vmatpush1.msra.mxu0 0.0
    %3552 = vmatprep.subr.mxu0 0.0
    %3553 = vmatpush1.msra.mxu0 0.0
    %3554 = vmatprep.subr.mxu0 0.0
    %3555 = vmatpush1.msra.mxu0 0.0
    %3556 = vmatprep.subr.mxu0 0.0
    %3557 = vmatpush1.msra.mxu0 0.0
    %3558 = vmatprep.subr.mxu0 0.0
    %3559 = vmatpush1.msra.mxu0 0.0
    %3560 = vmatprep.subr.mxu0 0.0
    %3561 = vmatpush1.msra.mxu0 0.0
    %3562 = vmatprep.mubr.f32.mxu0 0.0
    %3563 = vmatmul.mubr.f32.gmra.mrb[0].mxu0 %v3426
    %v3564 = vpop.f32.mrb[0].mxu0
    %v3565 = vadd.f32 %v1784, %v3564
    %v3566 = vpop.f32.mrb[0].mxu0
    %3567 = vdwg.mxu0
    %3568 = vmatprep.subr.mxu0 0.0
    %3569 = vmatpush1.msra.mxu0 %v1857
    %3570 = vmatprep.subr.mxu0 0.0
    %3571 = vmatpush1.msra.mxu0 %v1858
    %3572 = vmatprep.subr.mxu0 0.0
    %3573 = vmatpush1.msra.mxu0 %v1859
    %3574 = vmatprep.subr.mxu0 0.0
    %3575 = vmatpush1.msra.mxu0 %v1860
    %3576 = vmatprep.subr.mxu0 0.0
    %3577 = vmatpush1.msra.mxu0 0.0
    %3578 = vmatprep.subr.mxu0 0.0
    %3579 = vmatpush1.msra.mxu0 0.0
    %3580 = vmatprep.subr.mxu0 0.0
    %3581 = vmatpush1.msra.mxu0 0.0
    %3582 = vmatprep.subr.mxu0 0.0
    %3583 = vmatpush1.msra.mxu0 0.0
    %3584 = vmatprep.subr.mxu0 0.0
    %3585 = vmatpush1.msra.mxu0 0.0
    %3586 = vmatprep.subr.mxu0 0.0
    %3587 = vmatpush1.msra.mxu0 0.0
    %3588 = vmatprep.subr.mxu0 0.0
    %3589 = vmatpush1.msra.mxu0 0.0
    %3590 = vmatprep.subr.mxu0 0.0
    %3591 = vmatpush1.msra.mxu0 0.0
    %3592 = vmatprep.subr.mxu0 0.0
    %3593 = vmatpush1.msra.mxu0 0.0
    %3594 = vmatprep.subr.mxu0 0.0
    %3595 = vmatpush1.msra.mxu0 0.0
    %3596 = vmatprep.subr.mxu0 0.0
    %3597 = vmatpush1.msra.mxu0 0.0
    %3598 = vmatprep.subr.mxu0 0.0
    %3599 = vmatpush1.msra.mxu0 0.0
    %3600 = vmatprep.subr.mxu0 0.0
    %3601 = vmatpush1.msra.mxu0 0.0
    %3602 = vmatprep.subr.mxu0 0.0
    %3603 = vmatpush1.msra.mxu0 0.0
    %3604 = vmatprep.subr.mxu0 0.0
    %3605 = vmatpush1.msra.mxu0 0.0
    %3606 = vmatprep.subr.mxu0 0.0
    %3607 = vmatpush1.msra.mxu0 0.0
    %3608 = vmatprep.subr.mxu0 0.0
    %3609 = vmatpush1.msra.mxu0 0.0
    %3610 = vmatprep.subr.mxu0 0.0
    %3611 = vmatpush1.msra.mxu0 0.0
    %3612 = vmatprep.subr.mxu0 0.0
    %3613 = vmatpush1.msra.mxu0 0.0
    %3614 = vmatprep.subr.mxu0 0.0
    %3615 = vmatpush1.msra.mxu0 0.0
    %3616 = vmatprep.subr.mxu0 0.0
    %3617 = vmatpush1.msra.mxu0 0.0
    %3618 = vmatprep.subr.mxu0 0.0
    %3619 = vmatpush1.msra.mxu0 0.0
    %3620 = vmatprep.subr.mxu0 0.0
    %3621 = vmatpush1.msra.mxu0 0.0
    %3622 = vmatprep.subr.mxu0 0.0
    %3623 = vmatpush1.msra.mxu0 0.0
    %3624 = vmatprep.subr.mxu0 0.0
    %3625 = vmatpush1.msra.mxu0 0.0
    %3626 = vmatprep.subr.mxu0 0.0
    %3627 = vmatpush1.msra.mxu0 0.0
    %3628 = vmatprep.subr.mxu0 0.0
    %3629 = vmatpush1.msra.mxu0 0.0
    %3630 = vmatprep.subr.mxu0 0.0
    %3631 = vmatpush1.msra.mxu0 0.0
    %3632 = vmatprep.mubr.f32.mxu0 0.0
    %3633 = vmatmul.mubr.f32.gmra.mrb[0].mxu0 %v3426
    %v3634 = vpop.f32.mrb[0].mxu0
    %v3635 = vadd.f32 %v1867, %v3634
    %v3636 = vpop.f32.mrb[0].mxu0
    %3637 = vdwg.mxu0
    %v3639 = vrot.slane %v3495, 2
    %v3641 = vadd.f32 %v1484, %v3639
    %v3642 = vxor.u32 %v3641, 2147483648
    %v3643 = vmul.f32 %v3642, 1.442695
    %v3644 = vpow.pop %v3643
    %v3645 = vadd.f32 %v3644, 1.0
    %v3646 = vrcp.pop %v3645
    %v3647 = vmul.f32 1.0, %v3646
    %v3649 = vrot.slane %v3565, 2
    %v3651 = vadd.f32 %v1580, %v3649
    %v3652 = vxor.u32 %v3651, 2147483648
    %v3653 = vmul.f32 %v3652, 1.442695
    %v3654 = vpow.pop %v3653
    %v3655 = vadd.f32 %v3654, 1.0
    %v3656 = vrcp.pop %v3655
    %v3657 = vmul.f32 1.0, %v3656
    %v3659 = vrot.slane %v3635, 2
    %v3661 = vmul.f32 %v3647, %v3659
    %v3662 = vadd.f32 %v1676, %v3661
    %v3663 = vtanh.pop %v3662
    %v3664 = vsub.f32 1.0, %v3657
    %v3665 = vmul.f32 %v3664, %v3663
    %v3666 = vrot.slane %v3423, 6
    %v3668 = vmul.f32 %v3657, %v3666
    %v3669 = vadd.f32 %v3665, %v3668
    %v3671 = vrot.slane %v3669, 6
    %v3672 = vsel %vm191, %v3671, 0
    %3674 = vmatprep.subr.mxu0 0.0
    %3675 = vmatpush1.msra.mxu0 %v1689
    %3676 = vmatprep.subr.mxu0 0.0
    %3677 = vmatpush1.msra.mxu0 %v1690
    %3678 = vmatprep.subr.mxu0 0.0
    %3679 = vmatpush1.msra.mxu0 %v1691
    %3680 = vmatprep.subr.mxu0 0.0
    %3681 = vmatpush1.msra.mxu0 %v1692
    %3682 = vmatprep.subr.mxu0 0.0
    %3683 = vmatpush1.msra.mxu0 0.0
    %3684 = vmatprep.subr.mxu0 0.0
    %3685 = vmatpush1.msra.mxu0 0.0
    %3686 = vmatprep.subr.mxu0 0.0
    %3687 = vmatpush1.msra.mxu0 0.0
    %3688 = vmatprep.subr.mxu0 0.0
    %3689 = vmatpush1.msra.mxu0 0.0
    %3690 = vmatprep.subr.mxu0 0.0
    %3691 = vmatpush1.msra.mxu0 0.0
    %3692 = vmatprep.subr.mxu0 0.0
    %3693 = vmatpush1.msra.mxu0 0.0
    %3694 = vmatprep.subr.mxu0 0.0
    %3695 = vmatpush1.msra.mxu0 0.0
    %3696 = vmatprep.subr.mxu0 0.0
    %3697 = vmatpush1.msra.mxu0 0.0
    %3698 = vmatprep.subr.mxu0 0.0
    %3699 = vmatpush1.msra.mxu0 0.0
    %3700 = vmatprep.subr.mxu0 0.0
    %3701 = vmatpush1.msra.mxu0 0.0
    %3702 = vmatprep.subr.mxu0 0.0
    %3703 = vmatpush1.msra.mxu0 0.0
    %3704 = vmatprep.subr.mxu0 0.0
    %3705 = vmatpush1.msra.mxu0 0.0
    %3706 = vmatprep.subr.mxu0 0.0
    %3707 = vmatpush1.msra.mxu0 0.0
    %3708 = vmatprep.subr.mxu0 0.0
    %3709 = vmatpush1.msra.mxu0 0.0
    %3710 = vmatprep.subr.mxu0 0.0
    %3711 = vmatpush1.msra.mxu0 0.0
    %3712 = vmatprep.subr.mxu0 0.0
    %3713 = vmatpush1.msra.mxu0 0.0
    %3714 = vmatprep.subr.mxu0 0.0
    %3715 = vmatpush1.msra.mxu0 0.0
    %3716 = vmatprep.subr.mxu0 0.0
    %3717 = vmatpush1.msra.mxu0 0.0
    %3718 = vmatprep.subr.mxu0 0.0
    %3719 = vmatpush1.msra.mxu0 0.0
    %3720 = vmatprep.subr.mxu0 0.0
    %3721 = vmatpush1.msra.mxu0 0.0
    %3722 = vmatprep.subr.mxu0 0.0
    %3723 = vmatpush1.msra.mxu0 0.0
    %3724 = vmatprep.subr.mxu0 0.0
    %3725 = vmatpush1.msra.mxu0 0.0
    %3726 = vmatprep.subr.mxu0 0.0
    %3727 = vmatpush1.msra.mxu0 0.0
    %3728 = vmatprep.subr.mxu0 0.0
    %3729 = vmatpush1.msra.mxu0 0.0
    %3730 = vmatprep.subr.mxu0 0.0
    %3731 = vmatpush1.msra.mxu0 0.0
    %3732 = vmatprep.subr.mxu0 0.0
    %3733 = vmatpush1.msra.mxu0 0.0
    %3734 = vmatprep.subr.mxu0 0.0
    %3735 = vmatpush1.msra.mxu0 0.0
    %3736 = vmatprep.subr.mxu0 0.0
    %3737 = vmatpush1.msra.mxu0 0.0
    %3738 = vmatprep.mubr.f32.mxu0 0.0
    %3739 = vmatmul.mubr.f32.gmra.mrb[0].mxu0 %v3672
    %v3740 = vpop.f32.mrb[0].mxu0
    %v3741 = vadd.f32 %v1698, %v3740
    %v3742 = vpop.f32.mrb[0].mxu0
    %3743 = vdwg.mxu0
    %3744 = vmatprep.subr.mxu0 0.0
    %3745 = vmatpush1.msra.mxu0 %v1774
    %3746 = vmatprep.subr.mxu0 0.0
    %3747 = vmatpush1.msra.mxu0 %v1775
    %3748 = vmatprep.subr.mxu0 0.0
    %3749 = vmatpush1.msra.mxu0 %v1776
    %3750 = vmatprep.subr.mxu0 0.0
    %3751 = vmatpush1.msra.mxu0 %v1777
    %3752 = vmatprep.subr.mxu0 0.0
    %3753 = vmatpush1.msra.mxu0 0.0
    %3754 = vmatprep.subr.mxu0 0.0
    %3755 = vmatpush1.msra.mxu0 0.0
    %3756 = vmatprep.subr.mxu0 0.0
    %3757 = vmatpush1.msra.mxu0 0.0
    %3758 = vmatprep.subr.mxu0 0.0
    %3759 = vmatpush1.msra.mxu0 0.0
    %3760 = vmatprep.subr.mxu0 0.0
    %3761 = vmatpush1.msra.mxu0 0.0
    %3762 = vmatprep.subr.mxu0 0.0
    %3763 = vmatpush1.msra.mxu0 0.0
    %3764 = vmatprep.subr.mxu0 0.0
    %3765 = vmatpush1.msra.mxu0 0.0
    %3766 = vmatprep.subr.mxu0 0.0
    %3767 = vmatpush1.msra.mxu0 0.0
    %3768 = vmatprep.subr.mxu0 0.0
    %3769 = vmatpush1.msra.mxu0 0.0
    %3770 = vmatprep.subr.mxu0 0.0
    %3771 = vmatpush1.msra.mxu0 0.0
    %3772 = vmatprep.subr.mxu0 0.0
    %3773 = vmatpush1.msra.mxu0 0.0
    %3774 = vmatprep.subr.mxu0 0.0
    %3775 = vmatpush1.msra.mxu0 0.0
    %3776 = vmatprep.subr.mxu0 0.0
    %3777 = vmatpush1.msra.mxu0 0.0
    %3778 = vmatprep.subr.mxu0 0.0
    %3779 = vmatpush1.msra.mxu0 0.0
    %3780 = vmatprep.subr.mxu0 0.0
    %3781 = vmatpush1.msra.mxu0 0.0
    %3782 = vmatprep.subr.mxu0 0.0
    %3783 = vmatpush1.msra.mxu0 0.0
    %3784 = vmatprep.subr.mxu0 0.0
    %3785 = vmatpush1.msra.mxu0 0.0
    %3786 = vmatprep.subr.mxu0 0.0
    %3787 = vmatpush1.msra.mxu0 0.0
    %3788 = vmatprep.subr.mxu0 0.0
    %3789 = vmatpush1.msra.mxu0 0.0
    %3790 = vmatprep.subr.mxu0 0.0
    %3791 = vmatpush1.msra.mxu0 0.0
    %3792 = vmatprep.subr.mxu0 0.0
    %3793 = vmatpush1.msra.mxu0 0.0
    %3794 = vmatprep.subr.mxu0 0.0
    %3795 = vmatpush1.msra.mxu0 0.0
    %3796 = vmatprep.subr.mxu0 0.0
    %3797 = vmatpush1.msra.mxu0 0.0
    %3798 = vmatprep.subr.mxu0 0.0
    %3799 = vmatpush1.msra.mxu0 0.0
    %3800 = vmatprep.subr.mxu0 0.0
    %3801 = vmatpush1.msra.mxu0 0.0
    %3802 = vmatprep.subr.mxu0 0.0
    %3803 = vmatpush1.msra.mxu0 0.0
    %3804 = vmatprep.subr.mxu0 0.0
    %3805 = vmatpush1.msra.mxu0 0.0
    %3806 = vmatprep.subr.mxu0 0.0
    %3807 = vmatpush1.msra.mxu0 0.0
    %3808 = vmatprep.mubr.f32.mxu0 0.0
    %3809 = vmatmul.mubr.f32.gmra.mrb[0].mxu0 %v3672
    %v3810 = vpop.f32.mrb[0].mxu0
    %v3811 = vadd.f32 %v1784, %v3810
    %v3812 = vpop.f32.mrb[0].mxu0
    %3813 = vdwg.mxu0
    %3814 = vmatprep.subr.mxu0 0.0
    %3815 = vmatpush1.msra.mxu0 %v1857
    %3816 = vmatprep.subr.mxu0 0.0
    %3817 = vmatpush1.msra.mxu0 %v1858
    %3818 = vmatprep.subr.mxu0 0.0
    %3819 = vmatpush1.msra.mxu0 %v1859
    %3820 = vmatprep.subr.mxu0 0.0
    %3821 = vmatpush1.msra.mxu0 %v1860
    %3822 = vmatprep.subr.mxu0 0.0
    %3823 = vmatpush1.msra.mxu0 0.0
    %3824 = vmatprep.subr.mxu0 0.0
    %3825 = vmatpush1.msra.mxu0 0.0
    %3826 = vmatprep.subr.mxu0 0.0
    %3827 = vmatpush1.msra.mxu0 0.0
    %3828 = vmatprep.subr.mxu0 0.0
    %3829 = vmatpush1.msra.mxu0 0.0
    %3830 = vmatprep.subr.mxu0 0.0
    %3831 = vmatpush1.msra.mxu0 0.0
    %3832 = vmatprep.subr.mxu0 0.0
    %3833 = vmatpush1.msra.mxu0 0.0
    %3834 = vmatprep.subr.mxu0 0.0
    %3835 = vmatpush1.msra.mxu0 0.0
    %3836 = vmatprep.subr.mxu0 0.0
    %3837 = vmatpush1.msra.mxu0 0.0
    %3838 = vmatprep.subr.mxu0 0.0
    %3839 = vmatpush1.msra.mxu0 0.0
    %3840 = vmatprep.subr.mxu0 0.0
    %3841 = vmatpush1.msra.mxu0 0.0
    %3842 = vmatprep.subr.mxu0 0.0
    %3843 = vmatpush1.msra.mxu0 0.0
    %3844 = vmatprep.subr.mxu0 0.0
    %3845 = vmatpush1.msra.mxu0 0.0
    %3846 = vmatprep.subr.mxu0 0.0
    %3847 = vmatpush1.msra.mxu0 0.0
    %3848 = vmatprep.subr.mxu0 0.0
    %3849 = vmatpush1.msra.mxu0 0.0
    %3850 = vmatprep.subr.mxu0 0.0
    %3851 = vmatpush1.msra.mxu0 0.0
    %3852 = vmatprep.subr.mxu0 0.0
    %3853 = vmatpush1.msra.mxu0 0.0
    %3854 = vmatprep.subr.mxu0 0.0
    %3855 = vmatpush1.msra.mxu0 0.0
    %3856 = vmatprep.subr.mxu0 0.0
    %3857 = vmatpush1.msra.mxu0 0.0
    %3858 = vmatprep.subr.mxu0 0.0
    %3859 = vmatpush1.msra.mxu0 0.0
    %3860 = vmatprep.subr.mxu0 0.0
    %3861 = vmatpush1.msra.mxu0 0.0
    %3862 = vmatprep.subr.mxu0 0.0
    %3863 = vmatpush1.msra.mxu0 0.0
    %3864 = vmatprep.subr.mxu0 0.0
    %3865 = vmatpush1.msra.mxu0 0.0
    %3866 = vmatprep.subr.mxu0 0.0
    %3867 = vmatpush1.msra.mxu0 0.0
    %3868 = vmatprep.subr.mxu0 0.0
    %3869 = vmatpush1.msra.mxu0 0.0
    %3870 = vmatprep.subr.mxu0 0.0
    %3871 = vmatpush1.msra.mxu0 0.0
    %3872 = vmatprep.subr.mxu0 0.0
    %3873 = vmatpush1.msra.mxu0 0.0
    %3874 = vmatprep.subr.mxu0 0.0
    %3875 = vmatpush1.msra.mxu0 0.0
    %3876 = vmatprep.subr.mxu0 0.0
    %3877 = vmatpush1.msra.mxu0 0.0
    %3878 = vmatprep.mubr.f32.mxu0 0.0
    %3879 = vmatmul.mubr.f32.gmra.mrb[0].mxu0 %v3672
    %v3880 = vpop.f32.mrb[0].mxu0
    %v3881 = vadd.f32 %v1867, %v3880
    %v3882 = vpop.f32.mrb[0].mxu0
    %3883 = vdwg.mxu0
    %v3884 = vadd.f32 %v1489, %v3741
    %v3885 = vxor.u32 %v3884, 2147483648
    %v3886 = vmul.f32 %v3885, 1.442695
    %v3887 = vpow.pop %v3886
    %v3888 = vadd.f32 %v3887, 1.0
    %v3889 = vrcp.pop %v3888
    %v3890 = vmul.f32 1.0, %v3889
    %v3891 = vadd.f32 %v1585, %v3811
    %v3892 = vxor.u32 %v3891, 2147483648
    %v3893 = vmul.f32 %v3892, 1.442695
    %v3894 = vpow.pop %v3893
    %v3895 = vadd.f32 %v3894, 1.0
    %v3896 = vrcp.pop %v3895
    %v3897 = vmul.f32 1.0, %v3896
    %v3898 = vmul.f32 %v3890, %v3881
    %v3899 = vadd.f32 %v1681, %v3898
    %v3900 = vtanh.pop %v3899
    %v3901 = vsub.f32 1.0, %v3897
    %v3902 = vmul.f32 %v3901, %v3900
    %v3904 = vmul.f32 %v3897, %v3671
    %v3905 = vadd.f32 %v3902, %v3904
    %v3907 = vsel %vm191, %v3905, 0
    %3909 = vmatprep.subr.mxu0 0.0
    %3910 = vmatpush1.msra.mxu0 %v1689
    %3911 = vmatprep.subr.mxu0 0.0
    %3912 = vmatpush1.msra.mxu0 %v1690
    %3913 = vmatprep.subr.mxu0 0.0
    %3914 = vmatpush1.msra.mxu0 %v1691
    %3915 = vmatprep.subr.mxu0 0.0
    %3916 = vmatpush1.msra.mxu0 %v1692
    %3917 = vmatprep.subr.mxu0 0.0
    %3918 = vmatpush1.msra.mxu0 0.0
    %3919 = vmatprep.subr.mxu0 0.0
    %3920 = vmatpush1.msra.mxu0 0.0
    %3921 = vmatprep.subr.mxu0 0.0
    %3922 = vmatpush1.msra.mxu0 0.0
    %3923 = vmatprep.subr.mxu0 0.0
    %3924 = vmatpush1.msra.mxu0 0.0
    %3925 = vmatprep.subr.mxu0 0.0
    %3926 = vmatpush1.msra.mxu0 0.0
    %3927 = vmatprep.subr.mxu0 0.0
    %3928 = vmatpush1.msra.mxu0 0.0
    %3929 = vmatprep.subr.mxu0 0.0
    %3930 = vmatpush1.msra.mxu0 0.0
    %3931 = vmatprep.subr.mxu0 0.0
    %3932 = vmatpush1.msra.mxu0 0.0
    %3933 = vmatprep.subr.mxu0 0.0
    %3934 = vmatpush1.msra.mxu0 0.0
    %3935 = vmatprep.subr.mxu0 0.0
    %3936 = vmatpush1.msra.mxu0 0.0
    %3937 = vmatprep.subr.mxu0 0.0
    %3938 = vmatpush1.msra.mxu0 0.0
    %3939 = vmatprep.subr.mxu0 0.0
    %3940 = vmatpush1.msra.mxu0 0.0
    %3941 = vmatprep.subr.mxu0 0.0
    %3942 = vmatpush1.msra.mxu0 0.0
    %3943 = vmatprep.subr.mxu0 0.0
    %3944 = vmatpush1.msra.mxu0 0.0
    %3945 = vmatprep.subr.mxu0 0.0
    %3946 = vmatpush1.msra.mxu0 0.0
    %3947 = vmatprep.subr.mxu0 0.0
    %3948 = vmatpush1.msra.mxu0 0.0
    %3949 = vmatprep.subr.mxu0 0.0
    %3950 = vmatpush1.msra.mxu0 0.0
    %3951 = vmatprep.subr.mxu0 0.0
    %3952 = vmatpush1.msra.mxu0 0.0
    %3953 = vmatprep.subr.mxu0 0.0
    %3954 = vmatpush1.msra.mxu0 0.0
    %3955 = vmatprep.subr.mxu0 0.0
    %3956 = vmatpush1.msra.mxu0 0.0
    %3957 = vmatprep.subr.mxu0 0.0
    %3958 = vmatpush1.msra.mxu0 0.0
    %3959 = vmatprep.subr.mxu0 0.0
    %3960 = vmatpush1.msra.mxu0 0.0
    %3961 = vmatprep.subr.mxu0 0.0
    %3962 = vmatpush1.msra.mxu0 0.0
    %3963 = vmatprep.subr.mxu0 0.0
    %3964 = vmatpush1.msra.mxu0 0.0
    %3965 = vmatprep.subr.mxu0 0.0
    %3966 = vmatpush1.msra.mxu0 0.0
    %3967 = vmatprep.subr.mxu0 0.0
    %3968 = vmatpush1.msra.mxu0 0.0
    %3969 = vmatprep.subr.mxu0 0.0
    %3970 = vmatpush1.msra.mxu0 0.0
    %3971 = vmatprep.subr.mxu0 0.0
    %3972 = vmatpush1.msra.mxu0 0.0
    %3973 = vmatprep.mubr.f32.mxu0 0.0
    %3974 = vmatmul.mubr.f32.gmra.mrb[0].mxu0 %v3907
    %v3975 = vpop.f32.mrb[0].mxu0
    %v3976 = vadd.f32 %v1698, %v3975
    %v3977 = vpop.f32.mrb[0].mxu0
    %3978 = vdwg.mxu0
    %3979 = vmatprep.subr.mxu0 0.0
    %3980 = vmatpush1.msra.mxu0 %v1774
    %3981 = vmatprep.subr.mxu0 0.0
    %3982 = vmatpush1.msra.mxu0 %v1775
    %3983 = vmatprep.subr.mxu0 0.0
    %3984 = vmatpush1.msra.mxu0 %v1776
    %3985 = vmatprep.subr.mxu0 0.0
    %3986 = vmatpush1.msra.mxu0 %v1777
    %3987 = vmatprep.subr.mxu0 0.0
    %3988 = vmatpush1.msra.mxu0 0.0
    %3989 = vmatprep.subr.mxu0 0.0
    %3990 = vmatpush1.msra.mxu0 0.0
    %3991 = vmatprep.subr.mxu0 0.0
    %3992 = vmatpush1.msra.mxu0 0.0
    %3993 = vmatprep.subr.mxu0 0.0
    %3994 = vmatpush1.msra.mxu0 0.0
    %3995 = vmatprep.subr.mxu0 0.0
    %3996 = vmatpush1.msra.mxu0 0.0
    %3997 = vmatprep.subr.mxu0 0.0
    %3998 = vmatpush1.msra.mxu0 0.0
    %3999 = vmatprep.subr.mxu0 0.0
    %4000 = vmatpush1.msra.mxu0 0.0
    %4001 = vmatprep.subr.mxu0 0.0
    %4002 = vmatpush1.msra.mxu0 0.0
    %4003 = vmatprep.subr.mxu0 0.0
    %4004 = vmatpush1.msra.mxu0 0.0
    %4005 = vmatprep.subr.mxu0 0.0
    %4006 = vmatpush1.msra.mxu0 0.0
    %4007 = vmatprep.subr.mxu0 0.0
    %4008 = vmatpush1.msra.mxu0 0.0
    %4009 = vmatprep.subr.mxu0 0.0
    %4010 = vmatpush1.msra.mxu0 0.0
    %4011 = vmatprep.subr.mxu0 0.0
    %4012 = vmatpush1.msra.mxu0 0.0
    %4013 = vmatprep.subr.mxu0 0.0
    %4014 = vmatpush1.msra.mxu0 0.0
    %4015 = vmatprep.subr.mxu0 0.0
    %4016 = vmatpush1.msra.mxu0 0.0
    %4017 = vmatprep.subr.mxu0 0.0
    %4018 = vmatpush1.msra.mxu0 0.0
    %4019 = vmatprep.subr.mxu0 0.0
    %4020 = vmatpush1.msra.mxu0 0.0
    %4021 = vmatprep.subr.mxu0 0.0
    %4022 = vmatpush1.msra.mxu0 0.0
    %4023 = vmatprep.subr.mxu0 0.0
    %4024 = vmatpush1.msra.mxu0 0.0
    %4025 = vmatprep.subr.mxu0 0.0
    %4026 = vmatpush1.msra.mxu0 0.0
    %4027 = vmatprep.subr.mxu0 0.0
    %4028 = vmatpush1.msra.mxu0 0.0
    %4029 = vmatprep.subr.mxu0 0.0
    %4030 = vmatpush1.msra.mxu0 0.0
    %4031 = vmatprep.subr.mxu0 0.0
    %4032 = vmatpush1.msra.mxu0 0.0
    %4033 = vmatprep.subr.mxu0 0.0
    %4034 = vmatpush1.msra.mxu0 0.0
    %4035 = vmatprep.subr.mxu0 0.0
    %4036 = vmatpush1.msra.mxu0 0.0
    %4037 = vmatprep.subr.mxu0 0.0
    %4038 = vmatpush1.msra.mxu0 0.0
    %4039 = vmatprep.subr.mxu0 0.0
    %4040 = vmatpush1.msra.mxu0 0.0
    %4041 = vmatprep.subr.mxu0 0.0
    %4042 = vmatpush1.msra.mxu0 0.0
    %4043 = vmatprep.mubr.f32.mxu0 0.0
    %4044 = vmatmul.mubr.f32.gmra.mrb[0].mxu0 %v3907
    %v4045 = vpop.f32.mrb[0].mxu0
    %v4046 = vadd.f32 %v1784, %v4045
    %v4047 = vpop.f32.mrb[0].mxu0
    %4048 = vdwg.mxu0
    %4049 = vmatprep.subr.mxu0 0.0
    %4050 = vmatpush1.msra.mxu0 %v1857
    %4051 = vmatprep.subr.mxu0 0.0
    %4052 = vmatpush1.msra.mxu0 %v1858
    %4053 = vmatprep.subr.mxu0 0.0
    %4054 = vmatpush1.msra.mxu0 %v1859
    %4055 = vmatprep.subr.mxu0 0.0
    %4056 = vmatpush1.msra.mxu0 %v1860
    %4057 = vmatprep.subr.mxu0 0.0
    %4058 = vmatpush1.msra.mxu0 0.0
    %4059 = vmatprep.subr.mxu0 0.0
    %4060 = vmatpush1.msra.mxu0 0.0
    %4061 = vmatprep.subr.mxu0 0.0
    %4062 = vmatpush1.msra.mxu0 0.0
    %4063 = vmatprep.subr.mxu0 0.0
    %4064 = vmatpush1.msra.mxu0 0.0
    %4065 = vmatprep.subr.mxu0 0.0
    %4066 = vmatpush1.msra.mxu0 0.0
    %4067 = vmatprep.subr.mxu0 0.0
    %4068 = vmatpush1.msra.mxu0 0.0
    %4069 = vmatprep.subr.mxu0 0.0
    %4070 = vmatpush1.msra.mxu0 0.0
    %4071 = vmatprep.subr.mxu0 0.0
    %4072 = vmatpush1.msra.mxu0 0.0
    %4073 = vmatprep.subr.mxu0 0.0
    %4074 = vmatpush1.msra.mxu0 0.0
    %4075 = vmatprep.subr.mxu0 0.0
    %4076 = vmatpush1.msra.mxu0 0.0
    %4077 = vmatprep.subr.mxu0 0.0
    %4078 = vmatpush1.msra.mxu0 0.0
    %4079 = vmatprep.subr.mxu0 0.0
    %4080 = vmatpush1.msra.mxu0 0.0
    %4081 = vmatprep.subr.mxu0 0.0
    %4082 = vmatpush1.msra.mxu0 0.0
    %4083 = vmatprep.subr.mxu0 0.0
    %4084 = vmatpush1.msra.mxu0 0.0
    %4085 = vmatprep.subr.mxu0 0.0
    %4086 = vmatpush1.msra.mxu0 0.0
    %4087 = vmatprep.subr.mxu0 0.0
    %4088 = vmatpush1.msra.mxu0 0.0
    %4089 = vmatprep.subr.mxu0 0.0
    %4090 = vmatpush1.msra.mxu0 0.0
    %4091 = vmatprep.subr.mxu0 0.0
    %4092 = vmatpush1.msra.mxu0 0.0
    %4093 = vmatprep.subr.mxu0 0.0
    %4094 = vmatpush1.msra.mxu0 0.0
    %4095 = vmatprep.subr.mxu0 0.0
    %4096 = vmatpush1.msra.mxu0 0.0
    %4097 = vmatprep.subr.mxu0 0.0
    %4098 = vmatpush1.msra.mxu0 0.0
    %4099 = vmatprep.subr.mxu0 0.0
    %4100 = vmatpush1.msra.mxu0 0.0
    %4101 = vmatprep.subr.mxu0 0.0
    %4102 = vmatpush1.msra.mxu0 0.0
    %4103 = vmatprep.subr.mxu0 0.0
    %4104 = vmatpush1.msra.mxu0 0.0
    %4105 = vmatprep.subr.mxu0 0.0
    %4106 = vmatpush1.msra.mxu0 0.0
    %4107 = vmatprep.subr.mxu0 0.0
    %4108 = vmatpush1.msra.mxu0 0.0
    %4109 = vmatprep.subr.mxu0 0.0
    %4110 = vmatpush1.msra.mxu0 0.0
    %4111 = vmatprep.subr.mxu0 0.0
    %4112 = vmatpush1.msra.mxu0 0.0
    %4113 = vmatprep.mubr.f32.mxu0 0.0
    %4114 = vmatmul.mubr.f32.gmra.mrb[0].mxu0 %v3907
    %v4115 = vpop.f32.mrb[0].mxu0
    %v4116 = vadd.f32 %v1867, %v4115
    %v4117 = vpop.f32.mrb[0].mxu0
    %4118 = vdwg.mxu0
    %v4120 = vrot.slane %v3976, 6
    %v4122 = vadd.f32 %v1489, %v4120
    %v4123 = vxor.u32 %v4122, 2147483648
    %v4124 = vmul.f32 %v4123, 1.442695
    %v4125 = vpow.pop %v4124
    %v4126 = vadd.f32 %v4125, 1.0
    %v4127 = vrcp.pop %v4126
    %v4128 = vmul.f32 1.0, %v4127
    %v4130 = vrot.slane %v4046, 6
    %v4132 = vadd.f32 %v1585, %v4130
    %v4133 = vxor.u32 %v4132, 2147483648
    %v4134 = vmul.f32 %v4133, 1.442695
    %v4135 = vpow.pop %v4134
    %v4136 = vadd.f32 %v4135, 1.0
    %v4137 = vrcp.pop %v4136
    %v4138 = vmul.f32 1.0, %v4137
    %v4140 = vrot.slane %v4116, 6
    %v4142 = vmul.f32 %v4128, %v4140
    %v4143 = vadd.f32 %v1681, %v4142
    %v4144 = vtanh.pop %v4143
    %v4145 = vsub.f32 1.0, %v4138
    %v4146 = vmul.f32 %v4145, %v4144
    %v4147 = vrot.slane %v3905, 6
    %v4149 = vmul.f32 %v4138, %v4147
    %v4150 = vadd.f32 %v4146, %v4149
    %v4152 = vrot.slane %v4150, 2
    %v4153 = vsel %vm191, %v4152, 0
    %4155 = vmatprep.subr.mxu0 0.0
    %4156 = vmatpush1.msra.mxu0 %v1689
    %4157 = vmatprep.subr.mxu0 0.0
    %4158 = vmatpush1.msra.mxu0 %v1690
    %4159 = vmatprep.subr.mxu0 0.0
    %4160 = vmatpush1.msra.mxu0 %v1691
    %4161 = vmatprep.subr.mxu0 0.0
    %4162 = vmatpush1.msra.mxu0 %v1692
    %4163 = vmatprep.subr.mxu0 0.0
    %4164 = vmatpush1.msra.mxu0 0.0
    %4165 = vmatprep.subr.mxu0 0.0
    %4166 = vmatpush1.msra.mxu0 0.0
    %4167 = vmatprep.subr.mxu0 0.0
    %4168 = vmatpush1.msra.mxu0 0.0
    %4169 = vmatprep.subr.mxu0 0.0
    %4170 = vmatpush1.msra.mxu0 0.0
    %4171 = vmatprep.subr.mxu0 0.0
    %4172 = vmatpush1.msra.mxu0 0.0
    %4173 = vmatprep.subr.mxu0 0.0
    %4174 = vmatpush1.msra.mxu0 0.0
    %4175 = vmatprep.subr.mxu0 0.0
    %4176 = vmatpush1.msra.mxu0 0.0
    %4177 = vmatprep.subr.mxu0 0.0
    %4178 = vmatpush1.msra.mxu0 0.0
    %4179 = vmatprep.subr.mxu0 0.0
    %4180 = vmatpush1.msra.mxu0 0.0
    %4181 = vmatprep.subr.mxu0 0.0
    %4182 = vmatpush1.msra.mxu0 0.0
    %4183 = vmatprep.subr.mxu0 0.0
    %4184 = vmatpush1.msra.mxu0 0.0
    %4185 = vmatprep.subr.mxu0 0.0
    %4186 = vmatpush1.msra.mxu0 0.0
    %4187 = vmatprep.subr.mxu0 0.0
    %4188 = vmatpush1.msra.mxu0 0.0
    %4189 = vmatprep.subr.mxu0 0.0
    %4190 = vmatpush1.msra.mxu0 0.0
    %4191 = vmatprep.subr.mxu0 0.0
    %4192 = vmatpush1.msra.mxu0 0.0
    %4193 = vmatprep.subr.mxu0 0.0
    %4194 = vmatpush1.msra.mxu0 0.0
    %4195 = vmatprep.subr.mxu0 0.0
    %4196 = vmatpush1.msra.mxu0 0.0
    %4197 = vmatprep.subr.mxu0 0.0
    %4198 = vmatpush1.msra.mxu0 0.0
    %4199 = vmatprep.subr.mxu0 0.0
    %4200 = vmatpush1.msra.mxu0 0.0
    %4201 = vmatprep.subr.mxu0 0.0
    %4202 = vmatpush1.msra.mxu0 0.0
    %4203 = vmatprep.subr.mxu0 0.0
    %4204 = vmatpush1.msra.mxu0 0.0
    %4205 = vmatprep.subr.mxu0 0.0
    %4206 = vmatpush1.msra.mxu0 0.0
    %4207 = vmatprep.subr.mxu0 0.0
    %4208 = vmatpush1.msra.mxu0 0.0
    %4209 = vmatprep.subr.mxu0 0.0
    %4210 = vmatpush1.msra.mxu0 0.0
    %4211 = vmatprep.subr.mxu0 0.0
    %4212 = vmatpush1.msra.mxu0 0.0
    %4213 = vmatprep.subr.mxu0 0.0
    %4214 = vmatpush1.msra.mxu0 0.0
    %4215 = vmatprep.subr.mxu0 0.0
    %4216 = vmatpush1.msra.mxu0 0.0
    %4217 = vmatprep.subr.mxu0 0.0
    %4218 = vmatpush1.msra.mxu0 0.0
    %4219 = vmatprep.mubr.f32.mxu0 0.0
    %4220 = vmatmul.mubr.f32.gmra.mrb[0].mxu0 %v4153
    %v4221 = vpop.f32.mrb[0].mxu0
    %v4222 = vadd.f32 %v1698, %v4221
    %v4223 = vpop.f32.mrb[0].mxu0
    %4224 = vdwg.mxu0
    %4225 = vmatprep.subr.mxu0 0.0
    %4226 = vmatpush1.msra.mxu0 %v1774
    %4227 = vmatprep.subr.mxu0 0.0
    %4228 = vmatpush1.msra.mxu0 %v1775
    %4229 = vmatprep.subr.mxu0 0.0
    %4230 = vmatpush1.msra.mxu0 %v1776
    %4231 = vmatprep.subr.mxu0 0.0
    %4232 = vmatpush1.msra.mxu0 %v1777
    %4233 = vmatprep.subr.mxu0 0.0
    %4234 = vmatpush1.msra.mxu0 0.0
    %4235 = vmatprep.subr.mxu0 0.0
    %4236 = vmatpush1.msra.mxu0 0.0
    %4237 = vmatprep.subr.mxu0 0.0
    %4238 = vmatpush1.msra.mxu0 0.0
    %4239 = vmatprep.subr.mxu0 0.0
    %4240 = vmatpush1.msra.mxu0 0.0
    %4241 = vmatprep.subr.mxu0 0.0
    %4242 = vmatpush1.msra.mxu0 0.0
    %4243 = vmatprep.subr.mxu0 0.0
    %4244 = vmatpush1.msra.mxu0 0.0
    %4245 = vmatprep.subr.mxu0 0.0
    %4246 = vmatpush1.msra.mxu0 0.0
    %4247 = vmatprep.subr.mxu0 0.0
    %4248 = vmatpush1.msra.mxu0 0.0
    %4249 = vmatprep.subr.mxu0 0.0
    %4250 = vmatpush1.msra.mxu0 0.0
    %4251 = vmatprep.subr.mxu0 0.0
    %4252 = vmatpush1.msra.mxu0 0.0
    %4253 = vmatprep.subr.mxu0 0.0
    %4254 = vmatpush1.msra.mxu0 0.0
    %4255 = vmatprep.subr.mxu0 0.0
    %4256 = vmatpush1.msra.mxu0 0.0
    %4257 = vmatprep.subr.mxu0 0.0
    %4258 = vmatpush1.msra.mxu0 0.0
    %4259 = vmatprep.subr.mxu0 0.0
    %4260 = vmatpush1.msra.mxu0 0.0
    %4261 = vmatprep.subr.mxu0 0.0
    %4262 = vmatpush1.msra.mxu0 0.0
    %4263 = vmatprep.subr.mxu0 0.0
    %4264 = vmatpush1.msra.mxu0 0.0
    %4265 = vmatprep.subr.mxu0 0.0
    %4266 = vmatpush1.msra.mxu0 0.0
    %4267 = vmatprep.subr.mxu0 0.0
    %4268 = vmatpush1.msra.mxu0 0.0
    %4269 = vmatprep.subr.mxu0 0.0
    %4270 = vmatpush1.msra.mxu0 0.0
    %4271 = vmatprep.subr.mxu0 0.0
    %4272 = vmatpush1.msra.mxu0 0.0
    %4273 = vmatprep.subr.mxu0 0.0
    %4274 = vmatpush1.msra.mxu0 0.0
    %4275 = vmatprep.subr.mxu0 0.0
    %4276 = vmatpush1.msra.mxu0 0.0
    %4277 = vmatprep.subr.mxu0 0.0
    %4278 = vmatpush1.msra.mxu0 0.0
    %4279 = vmatprep.subr.mxu0 0.0
    %4280 = vmatpush1.msra.mxu0 0.0
    %4281 = vmatprep.subr.mxu0 0.0
    %4282 = vmatpush1.msra.mxu0 0.0
    %4283 = vmatprep.subr.mxu0 0.0
    %4284 = vmatpush1.msra.mxu0 0.0
    %4285 = vmatprep.subr.mxu0 0.0
    %4286 = vmatpush1.msra.mxu0 0.0
    %4287 = vmatprep.subr.mxu0 0.0
    %4288 = vmatpush1.msra.mxu0 0.0
    %4289 = vmatprep.mubr.f32.mxu0 0.0
    %4290 = vmatmul.mubr.f32.gmra.mrb[0].mxu0 %v4153
    %v4291 = vpop.f32.mrb[0].mxu0
    %v4292 = vadd.f32 %v1784, %v4291
    %v4293 = vpop.f32.mrb[0].mxu0
    %4294 = vdwg.mxu0
    %4295 = vmatprep.subr.mxu0 0.0
    %4296 = vmatpush1.msra.mxu0 %v1857
    %4297 = vmatprep.subr.mxu0 0.0
    %4298 = vmatpush1.msra.mxu0 %v1858
    %4299 = vmatprep.subr.mxu0 0.0
    %4300 = vmatpush1.msra.mxu0 %v1859
    %4301 = vmatprep.subr.mxu0 0.0
    %4302 = vmatpush1.msra.mxu0 %v1860
    %4303 = vmatprep.subr.mxu0 0.0
    %4304 = vmatpush1.msra.mxu0 0.0
    %4305 = vmatprep.subr.mxu0 0.0
    %4306 = vmatpush1.msra.mxu0 0.0
    %4307 = vmatprep.subr.mxu0 0.0
    %4308 = vmatpush1.msra.mxu0 0.0
    %4309 = vmatprep.subr.mxu0 0.0
    %4310 = vmatpush1.msra.mxu0 0.0
    %4311 = vmatprep.subr.mxu0 0.0
    %4312 = vmatpush1.msra.mxu0 0.0
    %4313 = vmatprep.subr.mxu0 0.0
    %4314 = vmatpush1.msra.mxu0 0.0
    %4315 = vmatprep.subr.mxu0 0.0
    %4316 = vmatpush1.msra.mxu0 0.0
    %4317 = vmatprep.subr.mxu0 0.0
    %4318 = vmatpush1.msra.mxu0 0.0
    %4319 = vmatprep.subr.mxu0 0.0
    %4320 = vmatpush1.msra.mxu0 0.0
    %4321 = vmatprep.subr.mxu0 0.0
    %4322 = vmatpush1.msra.mxu0 0.0
    %4323 = vmatprep.subr.mxu0 0.0
    %4324 = vmatpush1.msra.mxu0 0.0
    %4325 = vmatprep.subr.mxu0 0.0
    %4326 = vmatpush1.msra.mxu0 0.0
    %4327 = vmatprep.subr.mxu0 0.0
    %4328 = vmatpush1.msra.mxu0 0.0
    %4329 = vmatprep.subr.mxu0 0.0
    %4330 = vmatpush1.msra.mxu0 0.0
    %4331 = vmatprep.subr.mxu0 0.0
    %4332 = vmatpush1.msra.mxu0 0.0
    %4333 = vmatprep.subr.mxu0 0.0
    %4334 = vmatpush1.msra.mxu0 0.0
    %4335 = vmatprep.subr.mxu0 0.0
    %4336 = vmatpush1.msra.mxu0 0.0
    %4337 = vmatprep.subr.mxu0 0.0
    %4338 = vmatpush1.msra.mxu0 0.0
    %4339 = vmatprep.subr.mxu0 0.0
    %4340 = vmatpush1.msra.mxu0 0.0
    %4341 = vmatprep.subr.mxu0 0.0
    %4342 = vmatpush1.msra.mxu0 0.0
    %4343 = vmatprep.subr.mxu0 0.0
    %4344 = vmatpush1.msra.mxu0 0.0
    %4345 = vmatprep.subr.mxu0 0.0
    %4346 = vmatpush1.msra.mxu0 0.0
    %4347 = vmatprep.subr.mxu0 0.0
    %4348 = vmatpush1.msra.mxu0 0.0
    %4349 = vmatprep.subr.mxu0 0.0
    %4350 = vmatpush1.msra.mxu0 0.0
    %4351 = vmatprep.subr.mxu0 0.0
    %4352 = vmatpush1.msra.mxu0 0.0
    %4353 = vmatprep.subr.mxu0 0.0
    %4354 = vmatpush1.msra.mxu0 0.0
    %4355 = vmatprep.subr.mxu0 0.0
    %4356 = vmatpush1.msra.mxu0 0.0
    %4357 = vmatprep.subr.mxu0 0.0
    %4358 = vmatpush1.msra.mxu0 0.0
    %4359 = vmatprep.mubr.f32.mxu0 0.0
    %4360 = vmatmul.mubr.f32.gmra.mrb[0].mxu0 %v4153
    %v4361 = vpop.f32.mrb[0].mxu0
    %v4362 = vadd.f32 %v1867, %v4361
    %v4363 = vpop.f32.mrb[0].mxu0
    %4364 = vdwg.mxu0
    %v4366 = vrot.slane %v4222, 4
    %v4368 = vadd.f32 %v1489, %v4366
    %v4369 = vxor.u32 %v4368, 2147483648
    %v4370 = vmul.f32 %v4369, 1.442695
    %v4371 = vpow.pop %v4370
    %v4372 = vadd.f32 %v4371, 1.0
    %v4373 = vrcp.pop %v4372
    %v4374 = vmul.f32 1.0, %v4373
    %v4376 = vrot.slane %v4292, 4
    %v4378 = vadd.f32 %v1585, %v4376
    %v4379 = vxor.u32 %v4378, 2147483648
    %v4380 = vmul.f32 %v4379, 1.442695
    %v4381 = vpow.pop %v4380
    %v4382 = vadd.f32 %v4381, 1.0
    %v4383 = vrcp.pop %v4382
    %v4384 = vmul.f32 1.0, %v4383
    %v4386 = vrot.slane %v4362, 4
    %v4388 = vmul.f32 %v4374, %v4386
    %v4389 = vadd.f32 %v1681, %v4388
    %v4390 = vtanh.pop %v4389
    %v4391 = vsub.f32 1.0, %v4384
    %v4392 = vmul.f32 %v4391, %v4390
    %v4393 = vrot.slane %v4150, 6
    %v4395 = vmul.f32 %v4384, %v4393
    %v4396 = vadd.f32 %v4392, %v4395
    %v4398 = vrot.slane %v4396, 4
    %v4399 = vsel %vm191, %v4398, 0
    %4401 = vmatprep.subr.mxu0 0.0
    %4402 = vmatpush1.msra.mxu0 %v1689
    %4403 = vmatprep.subr.mxu0 0.0
    %4404 = vmatpush1.msra.mxu0 %v1690
    %4405 = vmatprep.subr.mxu0 0.0
    %4406 = vmatpush1.msra.mxu0 %v1691
    %4407 = vmatprep.subr.mxu0 0.0
    %4408 = vmatpush1.msra.mxu0 %v1692
    %4409 = vmatprep.subr.mxu0 0.0
    %4410 = vmatpush1.msra.mxu0 0.0
    %4411 = vmatprep.subr.mxu0 0.0
    %4412 = vmatpush1.msra.mxu0 0.0
    %4413 = vmatprep.subr.mxu0 0.0
    %4414 = vmatpush1.msra.mxu0 0.0
    %4415 = vmatprep.subr.mxu0 0.0
    %4416 = vmatpush1.msra.mxu0 0.0
    %4417 = vmatprep.subr.mxu0 0.0
    %4418 = vmatpush1.msra.mxu0 0.0
    %4419 = vmatprep.subr.mxu0 0.0
    %4420 = vmatpush1.msra.mxu0 0.0
    %4421 = vmatprep.subr.mxu0 0.0
    %4422 = vmatpush1.msra.mxu0 0.0
    %4423 = vmatprep.subr.mxu0 0.0
    %4424 = vmatpush1.msra.mxu0 0.0
    %4425 = vmatprep.subr.mxu0 0.0
    %4426 = vmatpush1.msra.mxu0 0.0
    %4427 = vmatprep.subr.mxu0 0.0
    %4428 = vmatpush1.msra.mxu0 0.0
    %4429 = vmatprep.subr.mxu0 0.0
    %4430 = vmatpush1.msra.mxu0 0.0
    %4431 = vmatprep.subr.mxu0 0.0
    %4432 = vmatpush1.msra.mxu0 0.0
    %4433 = vmatprep.subr.mxu0 0.0
    %4434 = vmatpush1.msra.mxu0 0.0
    %4435 = vmatprep.subr.mxu0 0.0
    %4436 = vmatpush1.msra.mxu0 0.0
    %4437 = vmatprep.subr.mxu0 0.0
    %4438 = vmatpush1.msra.mxu0 0.0
    %4439 = vmatprep.subr.mxu0 0.0
    %4440 = vmatpush1.msra.mxu0 0.0
    %4441 = vmatprep.subr.mxu0 0.0
    %4442 = vmatpush1.msra.mxu0 0.0
    %4443 = vmatprep.subr.mxu0 0.0
    %4444 = vmatpush1.msra.mxu0 0.0
    %4445 = vmatprep.subr.mxu0 0.0
    %4446 = vmatpush1.msra.mxu0 0.0
    %4447 = vmatprep.subr.mxu0 0.0
    %4448 = vmatpush1.msra.mxu0 0.0
    %4449 = vmatprep.subr.mxu0 0.0
    %4450 = vmatpush1.msra.mxu0 0.0
    %4451 = vmatprep.subr.mxu0 0.0
    %4452 = vmatpush1.msra.mxu0 0.0
    %4453 = vmatprep.subr.mxu0 0.0
    %4454 = vmatpush1.msra.mxu0 0.0
    %4455 = vmatprep.subr.mxu0 0.0
    %4456 = vmatpush1.msra.mxu0 0.0
    %4457 = vmatprep.subr.mxu0 0.0
    %4458 = vmatpush1.msra.mxu0 0.0
    %4459 = vmatprep.subr.mxu0 0.0
    %4460 = vmatpush1.msra.mxu0 0.0
    %4461 = vmatprep.subr.mxu0 0.0
    %4462 = vmatpush1.msra.mxu0 0.0
    %4463 = vmatprep.subr.mxu0 0.0
    %4464 = vmatpush1.msra.mxu0 0.0
    %4465 = vmatprep.mubr.f32.mxu0 0.0
    %4466 = vmatmul.mubr.f32.gmra.mrb[0].mxu0 %v4399
    %v4467 = vpop.f32.mrb[0].mxu0
    %v4468 = vadd.f32 %v1698, %v4467
    %v4469 = vpop.f32.mrb[0].mxu0
    %4470 = vdwg.mxu0
    %4471 = vmatprep.subr.mxu0 0.0
    %4472 = vmatpush1.msra.mxu0 %v1774
    %4473 = vmatprep.subr.mxu0 0.0
    %4474 = vmatpush1.msra.mxu0 %v1775
    %4475 = vmatprep.subr.mxu0 0.0
    %4476 = vmatpush1.msra.mxu0 %v1776
    %4477 = vmatprep.subr.mxu0 0.0
    %4478 = vmatpush1.msra.mxu0 %v1777
    %4479 = vmatprep.subr.mxu0 0.0
    %4480 = vmatpush1.msra.mxu0 0.0
    %4481 = vmatprep.subr.mxu0 0.0
    %4482 = vmatpush1.msra.mxu0 0.0
    %4483 = vmatprep.subr.mxu0 0.0
    %4484 = vmatpush1.msra.mxu0 0.0
    %4485 = vmatprep.subr.mxu0 0.0
    %4486 = vmatpush1.msra.mxu0 0.0
    %4487 = vmatprep.subr.mxu0 0.0
    %4488 = vmatpush1.msra.mxu0 0.0
    %4489 = vmatprep.subr.mxu0 0.0
    %4490 = vmatpush1.msra.mxu0 0.0
    %4491 = vmatprep.subr.mxu0 0.0
    %4492 = vmatpush1.msra.mxu0 0.0
    %4493 = vmatprep.subr.mxu0 0.0
    %4494 = vmatpush1.msra.mxu0 0.0
    %4495 = vmatprep.subr.mxu0 0.0
    %4496 = vmatpush1.msra.mxu0 0.0
    %4497 = vmatprep.subr.mxu0 0.0
    %4498 = vmatpush1.msra.mxu0 0.0
    %4499 = vmatprep.subr.mxu0 0.0
    %4500 = vmatpush1.msra.mxu0 0.0
    %4501 = vmatprep.subr.mxu0 0.0
    %4502 = vmatpush1.msra.mxu0 0.0
    %4503 = vmatprep.subr.mxu0 0.0
    %4504 = vmatpush1.msra.mxu0 0.0
    %4505 = vmatprep.subr.mxu0 0.0
    %4506 = vmatpush1.msra.mxu0 0.0
    %4507 = vmatprep.subr.mxu0 0.0
    %4508 = vmatpush1.msra.mxu0 0.0
    %4509 = vmatprep.subr.mxu0 0.0
    %4510 = vmatpush1.msra.mxu0 0.0
    %4511 = vmatprep.subr.mxu0 0.0
    %4512 = vmatpush1.msra.mxu0 0.0
    %4513 = vmatprep.subr.mxu0 0.0
    %4514 = vmatpush1.msra.mxu0 0.0
    %4515 = vmatprep.subr.mxu0 0.0
    %4516 = vmatpush1.msra.mxu0 0.0
    %4517 = vmatprep.subr.mxu0 0.0
    %4518 = vmatpush1.msra.mxu0 0.0
    %4519 = vmatprep.subr.mxu0 0.0
    %4520 = vmatpush1.msra.mxu0 0.0
    %4521 = vmatprep.subr.mxu0 0.0
    %4522 = vmatpush1.msra.mxu0 0.0
    %4523 = vmatprep.subr.mxu0 0.0
    %4524 = vmatpush1.msra.mxu0 0.0
    %4525 = vmatprep.subr.mxu0 0.0
    %4526 = vmatpush1.msra.mxu0 0.0
    %4527 = vmatprep.subr.mxu0 0.0
    %4528 = vmatpush1.msra.mxu0 0.0
    %4529 = vmatprep.subr.mxu0 0.0
    %4530 = vmatpush1.msra.mxu0 0.0
    %4531 = vmatprep.subr.mxu0 0.0
    %4532 = vmatpush1.msra.mxu0 0.0
    %4533 = vmatprep.subr.mxu0 0.0
    %4534 = vmatpush1.msra.mxu0 0.0
    %4535 = vmatprep.mubr.f32.mxu0 0.0
    %4536 = vmatmul.mubr.f32.gmra.mrb[0].mxu0 %v4399
    %v4537 = vpop.f32.mrb[0].mxu0
    %v4538 = vadd.f32 %v1784, %v4537
    %v4539 = vpop.f32.mrb[0].mxu0
    %4540 = vdwg.mxu0
    %4541 = vmatprep.subr.mxu0 0.0
    %4542 = vmatpush1.msra.mxu0 %v1857
    %4543 = vmatprep.subr.mxu0 0.0
    %4544 = vmatpush1.msra.mxu0 %v1858
    %4545 = vmatprep.subr.mxu0 0.0
    %4546 = vmatpush1.msra.mxu0 %v1859
    %4547 = vmatprep.subr.mxu0 0.0
    %4548 = vmatpush1.msra.mxu0 %v1860
    %4549 = vmatprep.subr.mxu0 0.0
    %4550 = vmatpush1.msra.mxu0 0.0
    %4551 = vmatprep.subr.mxu0 0.0
    %4552 = vmatpush1.msra.mxu0 0.0
    %4553 = vmatprep.subr.mxu0 0.0
    %4554 = vmatpush1.msra.mxu0 0.0
    %4555 = vmatprep.subr.mxu0 0.0
    %4556 = vmatpush1.msra.mxu0 0.0
    %4557 = vmatprep.subr.mxu0 0.0
    %4558 = vmatpush1.msra.mxu0 0.0
    %4559 = vmatprep.subr.mxu0 0.0
    %4560 = vmatpush1.msra.mxu0 0.0
    %4561 = vmatprep.subr.mxu0 0.0
    %4562 = vmatpush1.msra.mxu0 0.0
    %4563 = vmatprep.subr.mxu0 0.0
    %4564 = vmatpush1.msra.mxu0 0.0
    %4565 = vmatprep.subr.mxu0 0.0
    %4566 = vmatpush1.msra.mxu0 0.0
    %4567 = vmatprep.subr.mxu0 0.0
    %4568 = vmatpush1.msra.mxu0 0.0
    %4569 = vmatprep.subr.mxu0 0.0
    %4570 = vmatpush1.msra.mxu0 0.0
    %4571 = vmatprep.subr.mxu0 0.0
    %4572 = vmatpush1.msra.mxu0 0.0
    %4573 = vmatprep.subr.mxu0 0.0
    %4574 = vmatpush1.msra.mxu0 0.0
    %4575 = vmatprep.subr.mxu0 0.0
    %4576 = vmatpush1.msra.mxu0 0.0
    %4577 = vmatprep.subr.mxu0 0.0
    %4578 = vmatpush1.msra.mxu0 0.0
    %4579 = vmatprep.subr.mxu0 0.0
    %4580 = vmatpush1.msra.mxu0 0.0
    %4581 = vmatprep.subr.mxu0 0.0
    %4582 = vmatpush1.msra.mxu0 0.0
    %4583 = vmatprep.subr.mxu0 0.0
    %4584 = vmatpush1.msra.mxu0 0.0
    %4585 = vmatprep.subr.mxu0 0.0
    %4586 = vmatpush1.msra.mxu0 0.0
    %4587 = vmatprep.subr.mxu0 0.0
    %4588 = vmatpush1.msra.mxu0 0.0
    %4589 = vmatprep.subr.mxu0 0.0
    %4590 = vmatpush1.msra.mxu0 0.0
    %4591 = vmatprep.subr.mxu0 0.0
    %4592 = vmatpush1.msra.mxu0 0.0
    %4593 = vmatprep.subr.mxu0 0.0
    %4594 = vmatpush1.msra.mxu0 0.0
    %4595 = vmatprep.subr.mxu0 0.0
    %4596 = vmatpush1.msra.mxu0 0.0
    %4597 = vmatprep.subr.mxu0 0.0
    %4598 = vmatpush1.msra.mxu0 0.0
    %4599 = vmatprep.subr.mxu0 0.0
    %4600 = vmatpush1.msra.mxu0 0.0
    %4601 = vmatprep.subr.mxu0 0.0
    %4602 = vmatpush1.msra.mxu0 0.0
    %4603 = vmatprep.subr.mxu0 0.0
    %4604 = vmatpush1.msra.mxu0 0.0
    %4605 = vmatprep.mubr.f32.mxu0 0.0
    %4606 = vmatmul.mubr.f32.gmra.mrb[0].mxu0 %v4399
    %v4607 = vpop.f32.mrb[0].mxu0
    %v4608 = vadd.f32 %v1867, %v4607
    %v4609 = vpop.f32.mrb[0].mxu0
    %4610 = vdwg.mxu0
    %v4612 = vrot.slane %v4468, 2
    %v4614 = vadd.f32 %v1489, %v4612
    %v4615 = vxor.u32 %v4614, 2147483648
    %v4616 = vmul.f32 %v4615, 1.442695
    %v4617 = vpow.pop %v4616
    %v4618 = vadd.f32 %v4617, 1.0
    %v4619 = vrcp.pop %v4618
    %v4620 = vmul.f32 1.0, %v4619
    %v4622 = vrot.slane %v4538, 2
    %v4624 = vadd.f32 %v1585, %v4622
    %v4625 = vxor.u32 %v4624, 2147483648
    %v4626 = vmul.f32 %v4625, 1.442695
    %v4627 = vpow.pop %v4626
    %v4628 = vadd.f32 %v4627, 1.0
    %v4629 = vrcp.pop %v4628
    %v4630 = vmul.f32 1.0, %v4629
    %v4632 = vrot.slane %v4608, 2
    %v4634 = vmul.f32 %v4620, %v4632
    %v4635 = vadd.f32 %v1681, %v4634
    %v4636 = vtanh.pop %v4635
    %v4637 = vsub.f32 1.0, %v4630
    %v4638 = vmul.f32 %v4637, %v4636
    %v4639 = vrot.slane %v4396, 6
    %v4641 = vmul.f32 %v4630, %v4639
    %v4642 = vadd.f32 %v4638, %v4641
    %v4644 = vrot.slane %v4642, 6
    %v4645 = vsel %vm191, %v4644, 0
    %4647 = vmatprep.subr.mxu0 0.0
    %4648 = vmatpush1.msra.mxu0 %v1689
    %4649 = vmatprep.subr.mxu0 0.0
    %4650 = vmatpush1.msra.mxu0 %v1690
    %4651 = vmatprep.subr.mxu0 0.0
    %4652 = vmatpush1.msra.mxu0 %v1691
    %4653 = vmatprep.subr.mxu0 0.0
    %4654 = vmatpush1.msra.mxu0 %v1692
    %4655 = vmatprep.subr.mxu0 0.0
    %4656 = vmatpush1.msra.mxu0 0.0
    %4657 = vmatprep.subr.mxu0 0.0
    %4658 = vmatpush1.msra.mxu0 0.0
    %4659 = vmatprep.subr.mxu0 0.0
    %4660 = vmatpush1.msra.mxu0 0.0
    %4661 = vmatprep.subr.mxu0 0.0
    %4662 = vmatpush1.msra.mxu0 0.0
    %4663 = vmatprep.subr.mxu0 0.0
    %4664 = vmatpush1.msra.mxu0 0.0
    %4665 = vmatprep.subr.mxu0 0.0
    %4666 = vmatpush1.msra.mxu0 0.0
    %4667 = vmatprep.subr.mxu0 0.0
    %4668 = vmatpush1.msra.mxu0 0.0
    %4669 = vmatprep.subr.mxu0 0.0
    %4670 = vmatpush1.msra.mxu0 0.0
    %4671 = vmatprep.subr.mxu0 0.0
    %4672 = vmatpush1.msra.mxu0 0.0
    %4673 = vmatprep.subr.mxu0 0.0
    %4674 = vmatpush1.msra.mxu0 0.0
    %4675 = vmatprep.subr.mxu0 0.0
    %4676 = vmatpush1.msra.mxu0 0.0
    %4677 = vmatprep.subr.mxu0 0.0
    %4678 = vmatpush1.msra.mxu0 0.0
    %4679 = vmatprep.subr.mxu0 0.0
    %4680 = vmatpush1.msra.mxu0 0.0
    %4681 = vmatprep.subr.mxu0 0.0
    %4682 = vmatpush1.msra.mxu0 0.0
    %4683 = vmatprep.subr.mxu0 0.0
    %4684 = vmatpush1.msra.mxu0 0.0
    %4685 = vmatprep.subr.mxu0 0.0
    %4686 = vmatpush1.msra.mxu0 0.0
    %4687 = vmatprep.subr.mxu0 0.0
    %4688 = vmatpush1.msra.mxu0 0.0
    %4689 = vmatprep.subr.mxu0 0.0
    %4690 = vmatpush1.msra.mxu0 0.0
    %4691 = vmatprep.subr.mxu0 0.0
    %4692 = vmatpush1.msra.mxu0 0.0
    %4693 = vmatprep.subr.mxu0 0.0
    %4694 = vmatpush1.msra.mxu0 0.0
    %4695 = vmatprep.subr.mxu0 0.0
    %4696 = vmatpush1.msra.mxu0 0.0
    %4697 = vmatprep.subr.mxu0 0.0
    %4698 = vmatpush1.msra.mxu0 0.0
    %4699 = vmatprep.subr.mxu0 0.0
    %4700 = vmatpush1.msra.mxu0 0.0
    %4701 = vmatprep.subr.mxu0 0.0
    %4702 = vmatpush1.msra.mxu0 0.0
    %4703 = vmatprep.subr.mxu0 0.0
    %4704 = vmatpush1.msra.mxu0 0.0
    %4705 = vmatprep.subr.mxu0 0.0
    %4706 = vmatpush1.msra.mxu0 0.0
    %4707 = vmatprep.subr.mxu0 0.0
    %4708 = vmatpush1.msra.mxu0 0.0
    %4709 = vmatprep.subr.mxu0 0.0
    %4710 = vmatpush1.msra.mxu0 0.0
    %4711 = vmatprep.mubr.f32.mxu0 0.0
    %4712 = vmatmul.mubr.f32.gmra.mrb[0].mxu0 %v4645
    %v4713 = vpop.f32.mrb[0].mxu0
    %v4714 = vadd.f32 %v1698, %v4713
    %v4715 = vpop.f32.mrb[0].mxu0
    %4716 = vdwg.mxu0
    %4717 = vmatprep.subr.mxu0 0.0
    %4718 = vmatpush1.msra.mxu0 %v1774
    %4719 = vmatprep.subr.mxu0 0.0
    %4720 = vmatpush1.msra.mxu0 %v1775
    %4721 = vmatprep.subr.mxu0 0.0
    %4722 = vmatpush1.msra.mxu0 %v1776
    %4723 = vmatprep.subr.mxu0 0.0
    %4724 = vmatpush1.msra.mxu0 %v1777
    %4725 = vmatprep.subr.mxu0 0.0
    %4726 = vmatpush1.msra.mxu0 0.0
    %4727 = vmatprep.subr.mxu0 0.0
    %4728 = vmatpush1.msra.mxu0 0.0
    %4729 = vmatprep.subr.mxu0 0.0
    %4730 = vmatpush1.msra.mxu0 0.0
    %4731 = vmatprep.subr.mxu0 0.0
    %4732 = vmatpush1.msra.mxu0 0.0
    %4733 = vmatprep.subr.mxu0 0.0
    %4734 = vmatpush1.msra.mxu0 0.0
    %4735 = vmatprep.subr.mxu0 0.0
    %4736 = vmatpush1.msra.mxu0 0.0
    %4737 = vmatprep.subr.mxu0 0.0
    %4738 = vmatpush1.msra.mxu0 0.0
    %4739 = vmatprep.subr.mxu0 0.0
    %4740 = vmatpush1.msra.mxu0 0.0
    %4741 = vmatprep.subr.mxu0 0.0
    %4742 = vmatpush1.msra.mxu0 0.0
    %4743 = vmatprep.subr.mxu0 0.0
    %4744 = vmatpush1.msra.mxu0 0.0
    %4745 = vmatprep.subr.mxu0 0.0
    %4746 = vmatpush1.msra.mxu0 0.0
    %4747 = vmatprep.subr.mxu0 0.0
    %4748 = vmatpush1.msra.mxu0 0.0
    %4749 = vmatprep.subr.mxu0 0.0
    %4750 = vmatpush1.msra.mxu0 0.0
    %4751 = vmatprep.subr.mxu0 0.0
    %4752 = vmatpush1.msra.mxu0 0.0
    %4753 = vmatprep.subr.mxu0 0.0
    %4754 = vmatpush1.msra.mxu0 0.0
    %4755 = vmatprep.subr.mxu0 0.0
    %4756 = vmatpush1.msra.mxu0 0.0
    %4757 = vmatprep.subr.mxu0 0.0
    %4758 = vmatpush1.msra.mxu0 0.0
    %4759 = vmatprep.subr.mxu0 0.0
    %4760 = vmatpush1.msra.mxu0 0.0
    %4761 = vmatprep.subr.mxu0 0.0
    %4762 = vmatpush1.msra.mxu0 0.0
    %4763 = vmatprep.subr.mxu0 0.0
    %4764 = vmatpush1.msra.mxu0 0.0
    %4765 = vmatprep.subr.mxu0 0.0
    %4766 = vmatpush1.msra.mxu0 0.0
    %4767 = vmatprep.subr.mxu0 0.0
    %4768 = vmatpush1.msra.mxu0 0.0
    %4769 = vmatprep.subr.mxu0 0.0
    %4770 = vmatpush1.msra.mxu0 0.0
    %4771 = vmatprep.subr.mxu0 0.0
    %4772 = vmatpush1.msra.mxu0 0.0
    %4773 = vmatprep.subr.mxu0 0.0
    %4774 = vmatpush1.msra.mxu0 0.0
    %4775 = vmatprep.subr.mxu0 0.0
    %4776 = vmatpush1.msra.mxu0 0.0
    %4777 = vmatprep.subr.mxu0 0.0
    %4778 = vmatpush1.msra.mxu0 0.0
    %4779 = vmatprep.subr.mxu0 0.0
    %4780 = vmatpush1.msra.mxu0 0.0
    %4781 = vmatprep.mubr.f32.mxu0 0.0
    %4782 = vmatmul.mubr.f32.gmra.mrb[0].mxu0 %v4645
    %v4783 = vpop.f32.mrb[0].mxu0
    %v4784 = vadd.f32 %v1784, %v4783
    %v4785 = vpop.f32.mrb[0].mxu0
    %4786 = vdwg.mxu0
    %4787 = vmatprep.subr.mxu0 0.0
    %4788 = vmatpush1.msra.mxu0 %v1857
    %4789 = vmatprep.subr.mxu0 0.0
    %4790 = vmatpush1.msra.mxu0 %v1858
    %4791 = vmatprep.subr.mxu0 0.0
    %4792 = vmatpush1.msra.mxu0 %v1859
    %4793 = vmatprep.subr.mxu0 0.0
    %4794 = vmatpush1.msra.mxu0 %v1860
    %4795 = vmatprep.subr.mxu0 0.0
    %4796 = vmatpush1.msra.mxu0 0.0
    %4797 = vmatprep.subr.mxu0 0.0
    %4798 = vmatpush1.msra.mxu0 0.0
    %4799 = vmatprep.subr.mxu0 0.0
    %4800 = vmatpush1.msra.mxu0 0.0
    %4801 = vmatprep.subr.mxu0 0.0
    %4802 = vmatpush1.msra.mxu0 0.0
    %4803 = vmatprep.subr.mxu0 0.0
    %4804 = vmatpush1.msra.mxu0 0.0
    %4805 = vmatprep.subr.mxu0 0.0
    %4806 = vmatpush1.msra.mxu0 0.0
    %4807 = vmatprep.subr.mxu0 0.0
    %4808 = vmatpush1.msra.mxu0 0.0
    %4809 = vmatprep.subr.mxu0 0.0
    %4810 = vmatpush1.msra.mxu0 0.0
    %4811 = vmatprep.subr.mxu0 0.0
    %4812 = vmatpush1.msra.mxu0 0.0
    %4813 = vmatprep.subr.mxu0 0.0
    %4814 = vmatpush1.msra.mxu0 0.0
    %4815 = vmatprep.subr.mxu0 0.0
    %4816 = vmatpush1.msra.mxu0 0.0
    %4817 = vmatprep.subr.mxu0 0.0
    %4818 = vmatpush1.msra.mxu0 0.0
    %4819 = vmatprep.subr.mxu0 0.0
    %4820 = vmatpush1.msra.mxu0 0.0
    %4821 = vmatprep.subr.mxu0 0.0
    %4822 = vmatpush1.msra.mxu0 0.0
    %4823 = vmatprep.subr.mxu0 0.0
    %4824 = vmatpush1.msra.mxu0 0.0
    %4825 = vmatprep.subr.mxu0 0.0
    %4826 = vmatpush1.msra.mxu0 0.0
    %4827 = vmatprep.subr.mxu0 0.0
    %4828 = vmatpush1.msra.mxu0 0.0
    %4829 = vmatprep.subr.mxu0 0.0
    %4830 = vmatpush1.msra.mxu0 0.0
    %4831 = vmatprep.subr.mxu0 0.0
    %4832 = vmatpush1.msra.mxu0 0.0
    %4833 = vmatprep.subr.mxu0 0.0
    %4834 = vmatpush1.msra.mxu0 0.0
    %4835 = vmatprep.subr.mxu0 0.0
    %4836 = vmatpush1.msra.mxu0 0.0
    %4837 = vmatprep.subr.mxu0 0.0
    %4838 = vmatpush1.msra.mxu0 0.0
    %4839 = vmatprep.subr.mxu0 0.0
    %4840 = vmatpush1.msra.mxu0 0.0
    %4841 = vmatprep.subr.mxu0 0.0
    %4842 = vmatpush1.msra.mxu0 0.0
    %4843 = vmatprep.subr.mxu0 0.0
    %4844 = vmatpush1.msra.mxu0 0.0
    %4845 = vmatprep.subr.mxu0 0.0
    %4846 = vmatpush1.msra.mxu0 0.0
    %4847 = vmatprep.subr.mxu0 0.0
    %4848 = vmatpush1.msra.mxu0 0.0
    %4849 = vmatprep.subr.mxu0 0.0
    %4850 = vmatpush1.msra.mxu0 0.0
    %4851 = vmatprep.mubr.f32.mxu0 0.0
    %4852 = vmatmul.mubr.f32.gmra.mrb[0].mxu0 %v4645
    %v4853 = vpop.f32.mrb[0].mxu0
    %v4854 = vadd.f32 %v1867, %v4853
    %v4855 = vpop.f32.mrb[0].mxu0
    %4856 = vdwg.mxu0
    %v4857 = vadd.f32 %v1494, %v4714
    %v4858 = vxor.u32 %v4857, 2147483648
    %v4859 = vmul.f32 %v4858, 1.442695
    %v4860 = vpow.pop %v4859
    %v4861 = vadd.f32 %v4860, 1.0
    %v4862 = vrcp.pop %v4861
    %v4863 = vmul.f32 1.0, %v4862
    %v4864 = vadd.f32 %v1590, %v4784
    %v4865 = vxor.u32 %v4864, 2147483648
    %v4866 = vmul.f32 %v4865, 1.442695
    %v4867 = vpow.pop %v4866
    %v4868 = vadd.f32 %v4867, 1.0
    %v4869 = vrcp.pop %v4868
    %v4870 = vmul.f32 1.0, %v4869
    %v4871 = vmul.f32 %v4863, %v4854
    %v4872 = vadd.f32 %v1686, %v4871
    %v4873 = vtanh.pop %v4872
    %v4874 = vsub.f32 1.0, %v4870
    %v4875 = vmul.f32 %v4874, %v4873
    %v4877 = vmul.f32 %v4870, %v4644
    %v4878 = vadd.f32 %v4875, %v4877
    %v4880 = vsel %vm191, %v4878, 0
    %4882 = vmatprep.subr.mxu0 0.0
    %4883 = vmatpush1.msra.mxu0 %v1689
    %4884 = vmatprep.subr.mxu0 0.0
    %4885 = vmatpush1.msra.mxu0 %v1690
    %4886 = vmatprep.subr.mxu0 0.0
    %4887 = vmatpush1.msra.mxu0 %v1691
    %4888 = vmatprep.subr.mxu0 0.0
    %4889 = vmatpush1.msra.mxu0 %v1692
    %4890 = vmatprep.subr.mxu0 0.0
    %4891 = vmatpush1.msra.mxu0 0.0
    %4892 = vmatprep.subr.mxu0 0.0
    %4893 = vmatpush1.msra.mxu0 0.0
    %4894 = vmatprep.subr.mxu0 0.0
    %4895 = vmatpush1.msra.mxu0 0.0
    %4896 = vmatprep.subr.mxu0 0.0
    %4897 = vmatpush1.msra.mxu0 0.0
    %4898 = vmatprep.subr.mxu0 0.0
    %4899 = vmatpush1.msra.mxu0 0.0
    %4900 = vmatprep.subr.mxu0 0.0
    %4901 = vmatpush1.msra.mxu0 0.0
    %4902 = vmatprep.subr.mxu0 0.0
    %4903 = vmatpush1.msra.mxu0 0.0
    %4904 = vmatprep.subr.mxu0 0.0
    %4905 = vmatpush1.msra.mxu0 0.0
    %4906 = vmatprep.subr.mxu0 0.0
    %4907 = vmatpush1.msra.mxu0 0.0
    %4908 = vmatprep.subr.mxu0 0.0
    %4909 = vmatpush1.msra.mxu0 0.0
    %4910 = vmatprep.subr.mxu0 0.0
    %4911 = vmatpush1.msra.mxu0 0.0
    %4912 = vmatprep.subr.mxu0 0.0
    %4913 = vmatpush1.msra.mxu0 0.0
    %4914 = vmatprep.subr.mxu0 0.0
    %4915 = vmatpush1.msra.mxu0 0.0
    %4916 = vmatprep.subr.mxu0 0.0
    %4917 = vmatpush1.msra.mxu0 0.0
    %4918 = vmatprep.subr.mxu0 0.0
    %4919 = vmatpush1.msra.mxu0 0.0
    %4920 = vmatprep.subr.mxu0 0.0
    %4921 = vmatpush1.msra.mxu0 0.0
    %4922 = vmatprep.subr.mxu0 0.0
    %4923 = vmatpush1.msra.mxu0 0.0
    %4924 = vmatprep.subr.mxu0 0.0
    %4925 = vmatpush1.msra.mxu0 0.0
    %4926 = vmatprep.subr.mxu0 0.0
    %4927 = vmatpush1.msra.mxu0 0.0
    %4928 = vmatprep.subr.mxu0 0.0
    %4929 = vmatpush1.msra.mxu0 0.0
    %4930 = vmatprep.subr.mxu0 0.0
    %4931 = vmatpush1.msra.mxu0 0.0
    %4932 = vmatprep.subr.mxu0 0.0
    %4933 = vmatpush1.msra.mxu0 0.0
    %4934 = vmatprep.subr.mxu0 0.0
    %4935 = vmatpush1.msra.mxu0 0.0
    %4936 = vmatprep.subr.mxu0 0.0
    %4937 = vmatpush1.msra.mxu0 0.0
    %4938 = vmatprep.subr.mxu0 0.0
    %4939 = vmatpush1.msra.mxu0 0.0
    %4940 = vmatprep.subr.mxu0 0.0
    %4941 = vmatpush1.msra.mxu0 0.0
    %4942 = vmatprep.subr.mxu0 0.0
    %4943 = vmatpush1.msra.mxu0 0.0
    %4944 = vmatprep.subr.mxu0 0.0
    %4945 = vmatpush1.msra.mxu0 0.0
    %4946 = vmatprep.mubr.f32.mxu0 0.0
    %4947 = vmatmul.mubr.f32.gmra.mrb[0].mxu0 %v4880
    %v4948 = vpop.f32.mrb[0].mxu0
    %v4949 = vadd.f32 %v1698, %v4948
    %v4950 = vpop.f32.mrb[0].mxu0
    %4951 = vdwg.mxu0
    %4952 = vmatprep.subr.mxu0 0.0
    %4953 = vmatpush1.msra.mxu0 %v1774
    %4954 = vmatprep.subr.mxu0 0.0
    %4955 = vmatpush1.msra.mxu0 %v1775
    %4956 = vmatprep.subr.mxu0 0.0
    %4957 = vmatpush1.msra.mxu0 %v1776
    %4958 = vmatprep.subr.mxu0 0.0
    %4959 = vmatpush1.msra.mxu0 %v1777
    %4960 = vmatprep.subr.mxu0 0.0
    %4961 = vmatpush1.msra.mxu0 0.0
    %4962 = vmatprep.subr.mxu0 0.0
    %4963 = vmatpush1.msra.mxu0 0.0
    %4964 = vmatprep.subr.mxu0 0.0
    %4965 = vmatpush1.msra.mxu0 0.0
    %4966 = vmatprep.subr.mxu0 0.0
    %4967 = vmatpush1.msra.mxu0 0.0
    %4968 = vmatprep.subr.mxu0 0.0
    %4969 = vmatpush1.msra.mxu0 0.0
    %4970 = vmatprep.subr.mxu0 0.0
    %4971 = vmatpush1.msra.mxu0 0.0
    %4972 = vmatprep.subr.mxu0 0.0
    %4973 = vmatpush1.msra.mxu0 0.0
    %4974 = vmatprep.subr.mxu0 0.0
    %4975 = vmatpush1.msra.mxu0 0.0
    %4976 = vmatprep.subr.mxu0 0.0
    %4977 = vmatpush1.msra.mxu0 0.0
    %4978 = vmatprep.subr.mxu0 0.0
    %4979 = vmatpush1.msra.mxu0 0.0
    %4980 = vmatprep.subr.mxu0 0.0
    %4981 = vmatpush1.msra.mxu0 0.0
    %4982 = vmatprep.subr.mxu0 0.0
    %4983 = vmatpush1.msra.mxu0 0.0
    %4984 = vmatprep.subr.mxu0 0.0
    %4985 = vmatpush1.msra.mxu0 0.0
    %4986 = vmatprep.subr.mxu0 0.0
    %4987 = vmatpush1.msra.mxu0 0.0
    %4988 = vmatprep.subr.mxu0 0.0
    %4989 = vmatpush1.msra.mxu0 0.0
    %4990 = vmatprep.subr.mxu0 0.0
    %4991 = vmatpush1.msra.mxu0 0.0
    %4992 = vmatprep.subr.mxu0 0.0
    %4993 = vmatpush1.msra.mxu0 0.0
    %4994 = vmatprep.subr.mxu0 0.0
    %4995 = vmatpush1.msra.mxu0 0.0
    %4996 = vmatprep.subr.mxu0 0.0
    %4997 = vmatpush1.msra.mxu0 0.0
    %4998 = vmatprep.subr.mxu0 0.0
    %4999 = vmatpush1.msra.mxu0 0.0
    %5000 = vmatprep.subr.mxu0 0.0
    %5001 = vmatpush1.msra.mxu0 0.0
    %5002 = vmatprep.subr.mxu0 0.0
    %5003 = vmatpush1.msra.mxu0 0.0
    %5004 = vmatprep.subr.mxu0 0.0
    %5005 = vmatpush1.msra.mxu0 0.0
    %5006 = vmatprep.subr.mxu0 0.0
    %5007 = vmatpush1.msra.mxu0 0.0
    %5008 = vmatprep.subr.mxu0 0.0
    %5009 = vmatpush1.msra.mxu0 0.0
    %5010 = vmatprep.subr.mxu0 0.0
    %5011 = vmatpush1.msra.mxu0 0.0
    %5012 = vmatprep.subr.mxu0 0.0
    %5013 = vmatpush1.msra.mxu0 0.0
    %5014 = vmatprep.subr.mxu0 0.0
    %5015 = vmatpush1.msra.mxu0 0.0
    %5016 = vmatprep.mubr.f32.mxu0 0.0
    %5017 = vmatmul.mubr.f32.gmra.mrb[0].mxu0 %v4880
    %v5018 = vpop.f32.mrb[0].mxu0
    %v5019 = vadd.f32 %v1784, %v5018
    %v5020 = vpop.f32.mrb[0].mxu0
    %5021 = vdwg.mxu0
    %5022 = vmatprep.subr.mxu0 0.0
    %5023 = vmatpush1.msra.mxu0 %v1857
    %5024 = vmatprep.subr.mxu0 0.0
    %5025 = vmatpush1.msra.mxu0 %v1858
    %5026 = vmatprep.subr.mxu0 0.0
    %5027 = vmatpush1.msra.mxu0 %v1859
    %5028 = vmatprep.subr.mxu0 0.0
    %5029 = vmatpush1.msra.mxu0 %v1860
    %5030 = vmatprep.subr.mxu0 0.0
    %5031 = vmatpush1.msra.mxu0 0.0
    %5032 = vmatprep.subr.mxu0 0.0
    %5033 = vmatpush1.msra.mxu0 0.0
    %5034 = vmatprep.subr.mxu0 0.0
    %5035 = vmatpush1.msra.mxu0 0.0
    %5036 = vmatprep.subr.mxu0 0.0
    %5037 = vmatpush1.msra.mxu0 0.0
    %5038 = vmatprep.subr.mxu0 0.0
    %5039 = vmatpush1.msra.mxu0 0.0
    %5040 = vmatprep.subr.mxu0 0.0
    %5041 = vmatpush1.msra.mxu0 0.0
    %5042 = vmatprep.subr.mxu0 0.0
    %5043 = vmatpush1.msra.mxu0 0.0
    %5044 = vmatprep.subr.mxu0 0.0
    %5045 = vmatpush1.msra.mxu0 0.0
    %5046 = vmatprep.subr.mxu0 0.0
    %5047 = vmatpush1.msra.mxu0 0.0
    %5048 = vmatprep.subr.mxu0 0.0
    %5049 = vmatpush1.msra.mxu0 0.0
    %5050 = vmatprep.subr.mxu0 0.0
    %5051 = vmatpush1.msra.mxu0 0.0
    %5052 = vmatprep.subr.mxu0 0.0
    %5053 = vmatpush1.msra.mxu0 0.0
    %5054 = vmatprep.subr.mxu0 0.0
    %5055 = vmatpush1.msra.mxu0 0.0
    %5056 = vmatprep.subr.mxu0 0.0
    %5057 = vmatpush1.msra.mxu0 0.0
    %5058 = vmatprep.subr.mxu0 0.0
    %5059 = vmatpush1.msra.mxu0 0.0
    %5060 = vmatprep.subr.mxu0 0.0
    %5061 = vmatpush1.msra.mxu0 0.0
    %5062 = vmatprep.subr.mxu0 0.0
    %5063 = vmatpush1.msra.mxu0 0.0
    %5064 = vmatprep.subr.mxu0 0.0
    %5065 = vmatpush1.msra.mxu0 0.0
    %5066 = vmatprep.subr.mxu0 0.0
    %5067 = vmatpush1.msra.mxu0 0.0
    %5068 = vmatprep.subr.mxu0 0.0
    %5069 = vmatpush1.msra.mxu0 0.0
    %5070 = vmatprep.subr.mxu0 0.0
    %5071 = vmatpush1.msra.mxu0 0.0
    %5072 = vmatprep.subr.mxu0 0.0
    %5073 = vmatpush1.msra.mxu0 0.0
    %5074 = vmatprep.subr.mxu0 0.0
    %5075 = vmatpush1.msra.mxu0 0.0
    %5076 = vmatprep.subr.mxu0 0.0
    %5077 = vmatpush1.msra.mxu0 0.0
    %5078 = vmatprep.subr.mxu0 0.0
    %5079 = vmatpush1.msra.mxu0 0.0
    %5080 = vmatprep.subr.mxu0 0.0
    %5081 = vmatpush1.msra.mxu0 0.0
    %5082 = vmatprep.subr.mxu0 0.0
    %5083 = vmatpush1.msra.mxu0 0.0
    %5084 = vmatprep.subr.mxu0 0.0
    %5085 = vmatpush1.msra.mxu0 0.0
    %5086 = vmatprep.mubr.f32.mxu0 0.0
    %5087 = vmatmul.mubr.f32.gmra.mrb[0].mxu0 %v4880
    %v5088 = vpop.f32.mrb[0].mxu0
    %v5089 = vadd.f32 %v1867, %v5088
    %v5090 = vpop.f32.mrb[0].mxu0
    %5091 = vdwg.mxu0
    %v5093 = vrot.slane %v4949, 6
    %v5095 = vadd.f32 %v1494, %v5093
    %v5096 = vxor.u32 %v5095, 2147483648
    %v5097 = vmul.f32 %v5096, 1.442695
    %v5098 = vpow.pop %v5097
    %v5099 = vadd.f32 %v5098, 1.0
    %v5100 = vrcp.pop %v5099
    %v5101 = vmul.f32 1.0, %v5100
    %v5103 = vrot.slane %v5019, 6
    %v5105 = vadd.f32 %v1590, %v5103
    %v5106 = vxor.u32 %v5105, 2147483648
    %v5107 = vmul.f32 %v5106, 1.442695
    %v5108 = vpow.pop %v5107
    %v5109 = vadd.f32 %v5108, 1.0
    %v5110 = vrcp.pop %v5109
    %v5111 = vmul.f32 1.0, %v5110
    %v5113 = vrot.slane %v5089, 6
    %v5115 = vmul.f32 %v5101, %v5113
    %v5116 = vadd.f32 %v1686, %v5115
    %v5117 = vtanh.pop %v5116
    %v5118 = vsub.f32 1.0, %v5111
    %v5119 = vmul.f32 %v5118, %v5117
    %v5120 = vrot.slane %v4878, 6
    %v5122 = vmul.f32 %v5111, %v5120
    %v5123 = vadd.f32 %v5119, %v5122
    %v5125 = vrot.slane %v5123, 2
    %v5126 = vsel %vm191, %v5125, 0
    %5128 = vmatprep.subr.mxu0 0.0
    %5129 = vmatpush1.msra.mxu0 %v1689
    %5130 = vmatprep.subr.mxu0 0.0
    %5131 = vmatpush1.msra.mxu0 %v1690
    %5132 = vmatprep.subr.mxu0 0.0
    %5133 = vmatpush1.msra.mxu0 %v1691
    %5134 = vmatprep.subr.mxu0 0.0
    %5135 = vmatpush1.msra.mxu0 %v1692
    %5136 = vmatprep.subr.mxu0 0.0
    %5137 = vmatpush1.msra.mxu0 0.0
    %5138 = vmatprep.subr.mxu0 0.0
    %5139 = vmatpush1.msra.mxu0 0.0
    %5140 = vmatprep.subr.mxu0 0.0
    %5141 = vmatpush1.msra.mxu0 0.0
    %5142 = vmatprep.subr.mxu0 0.0
    %5143 = vmatpush1.msra.mxu0 0.0
    %5144 = vmatprep.subr.mxu0 0.0
    %5145 = vmatpush1.msra.mxu0 0.0
    %5146 = vmatprep.subr.mxu0 0.0
    %5147 = vmatpush1.msra.mxu0 0.0
    %5148 = vmatprep.subr.mxu0 0.0
    %5149 = vmatpush1.msra.mxu0 0.0
    %5150 = vmatprep.subr.mxu0 0.0
    %5151 = vmatpush1.msra.mxu0 0.0
    %5152 = vmatprep.subr.mxu0 0.0
    %5153 = vmatpush1.msra.mxu0 0.0
    %5154 = vmatprep.subr.mxu0 0.0
    %5155 = vmatpush1.msra.mxu0 0.0
    %5156 = vmatprep.subr.mxu0 0.0
    %5157 = vmatpush1.msra.mxu0 0.0
    %5158 = vmatprep.subr.mxu0 0.0
    %5159 = vmatpush1.msra.mxu0 0.0
    %5160 = vmatprep.subr.mxu0 0.0
    %5161 = vmatpush1.msra.mxu0 0.0
    %5162 = vmatprep.subr.mxu0 0.0
    %5163 = vmatpush1.msra.mxu0 0.0
    %5164 = vmatprep.subr.mxu0 0.0
    %5165 = vmatpush1.msra.mxu0 0.0
    %5166 = vmatprep.subr.mxu0 0.0
    %5167 = vmatpush1.msra.mxu0 0.0
    %5168 = vmatprep.subr.mxu0 0.0
    %5169 = vmatpush1.msra.mxu0 0.0
    %5170 = vmatprep.subr.mxu0 0.0
    %5171 = vmatpush1.msra.mxu0 0.0
    %5172 = vmatprep.subr.mxu0 0.0
    %5173 = vmatpush1.msra.mxu0 0.0
    %5174 = vmatprep.subr.mxu0 0.0
    %5175 = vmatpush1.msra.mxu0 0.0
    %5176 = vmatprep.subr.mxu0 0.0
    %5177 = vmatpush1.msra.mxu0 0.0
    %5178 = vmatprep.subr.mxu0 0.0
    %5179 = vmatpush1.msra.mxu0 0.0
    %5180 = vmatprep.subr.mxu0 0.0
    %5181 = vmatpush1.msra.mxu0 0.0
    %5182 = vmatprep.subr.mxu0 0.0
    %5183 = vmatpush1.msra.mxu0 0.0
    %5184 = vmatprep.subr.mxu0 0.0
    %5185 = vmatpush1.msra.mxu0 0.0
    %5186 = vmatprep.subr.mxu0 0.0
    %5187 = vmatpush1.msra.mxu0 0.0
    %5188 = vmatprep.subr.mxu0 0.0
    %5189 = vmatpush1.msra.mxu0 0.0
    %5190 = vmatprep.subr.mxu0 0.0
    %5191 = vmatpush1.msra.mxu0 0.0
    %5192 = vmatprep.mubr.f32.mxu0 0.0
    %5193 = vmatmul.mubr.f32.gmra.mrb[0].mxu0 %v5126
    %v5194 = vpop.f32.mrb[0].mxu0
    %v5195 = vadd.f32 %v1698, %v5194
    %v5196 = vpop.f32.mrb[0].mxu0
    %5197 = vdwg.mxu0
    %5198 = vmatprep.subr.mxu0 0.0
    %5199 = vmatpush1.msra.mxu0 %v1774
    %5200 = vmatprep.subr.mxu0 0.0
    %5201 = vmatpush1.msra.mxu0 %v1775
    %5202 = vmatprep.subr.mxu0 0.0
    %5203 = vmatpush1.msra.mxu0 %v1776
    %5204 = vmatprep.subr.mxu0 0.0
    %5205 = vmatpush1.msra.mxu0 %v1777
    %5206 = vmatprep.subr.mxu0 0.0
    %5207 = vmatpush1.msra.mxu0 0.0
    %5208 = vmatprep.subr.mxu0 0.0
    %5209 = vmatpush1.msra.mxu0 0.0
    %5210 = vmatprep.subr.mxu0 0.0
    %5211 = vmatpush1.msra.mxu0 0.0
    %5212 = vmatprep.subr.mxu0 0.0
    %5213 = vmatpush1.msra.mxu0 0.0
    %5214 = vmatprep.subr.mxu0 0.0
    %5215 = vmatpush1.msra.mxu0 0.0
    %5216 = vmatprep.subr.mxu0 0.0
    %5217 = vmatpush1.msra.mxu0 0.0
    %5218 = vmatprep.subr.mxu0 0.0
    %5219 = vmatpush1.msra.mxu0 0.0
    %5220 = vmatprep.subr.mxu0 0.0
    %5221 = vmatpush1.msra.mxu0 0.0
    %5222 = vmatprep.subr.mxu0 0.0
    %5223 = vmatpush1.msra.mxu0 0.0
    %5224 = vmatprep.subr.mxu0 0.0
    %5225 = vmatpush1.msra.mxu0 0.0
    %5226 = vmatprep.subr.mxu0 0.0
    %5227 = vmatpush1.msra.mxu0 0.0
    %5228 = vmatprep.subr.mxu0 0.0
    %5229 = vmatpush1.msra.mxu0 0.0
    %5230 = vmatprep.subr.mxu0 0.0
    %5231 = vmatpush1.msra.mxu0 0.0
    %5232 = vmatprep.subr.mxu0 0.0
    %5233 = vmatpush1.msra.mxu0 0.0
    %5234 = vmatprep.subr.mxu0 0.0
    %5235 = vmatpush1.msra.mxu0 0.0
    %5236 = vmatprep.subr.mxu0 0.0
    %5237 = vmatpush1.msra.mxu0 0.0
    %5238 = vmatprep.subr.mxu0 0.0
    %5239 = vmatpush1.msra.mxu0 0.0
    %5240 = vmatprep.subr.mxu0 0.0
    %5241 = vmatpush1.msra.mxu0 0.0
    %5242 = vmatprep.subr.mxu0 0.0
    %5243 = vmatpush1.msra.mxu0 0.0
    %5244 = vmatprep.subr.mxu0 0.0
    %5245 = vmatpush1.msra.mxu0 0.0
    %5246 = vmatprep.subr.mxu0 0.0
    %5247 = vmatpush1.msra.mxu0 0.0
    %5248 = vmatprep.subr.mxu0 0.0
    %5249 = vmatpush1.msra.mxu0 0.0
    %5250 = vmatprep.subr.mxu0 0.0
    %5251 = vmatpush1.msra.mxu0 0.0
    %5252 = vmatprep.subr.mxu0 0.0
    %5253 = vmatpush1.msra.mxu0 0.0
    %5254 = vmatprep.subr.mxu0 0.0
    %5255 = vmatpush1.msra.mxu0 0.0
    %5256 = vmatprep.subr.mxu0 0.0
    %5257 = vmatpush1.msra.mxu0 0.0
    %5258 = vmatprep.subr.mxu0 0.0
    %5259 = vmatpush1.msra.mxu0 0.0
    %5260 = vmatprep.subr.mxu0 0.0
    %5261 = vmatpush1.msra.mxu0 0.0
    %5262 = vmatprep.mubr.f32.mxu0 0.0
    %5263 = vmatmul.mubr.f32.gmra.mrb[0].mxu0 %v5126
    %v5264 = vpop.f32.mrb[0].mxu0
    %v5265 = vadd.f32 %v1784, %v5264
    %v5266 = vpop.f32.mrb[0].mxu0
    %5267 = vdwg.mxu0
    %5268 = vmatprep.subr.mxu0 0.0
    %5269 = vmatpush1.msra.mxu0 %v1857
    %5270 = vmatprep.subr.mxu0 0.0
    %5271 = vmatpush1.msra.mxu0 %v1858
    %5272 = vmatprep.subr.mxu0 0.0
    %5273 = vmatpush1.msra.mxu0 %v1859
    %5274 = vmatprep.subr.mxu0 0.0
    %5275 = vmatpush1.msra.mxu0 %v1860
    %5276 = vmatprep.subr.mxu0 0.0
    %5277 = vmatpush1.msra.mxu0 0.0
    %5278 = vmatprep.subr.mxu0 0.0
    %5279 = vmatpush1.msra.mxu0 0.0
    %5280 = vmatprep.subr.mxu0 0.0
    %5281 = vmatpush1.msra.mxu0 0.0
    %5282 = vmatprep.subr.mxu0 0.0
    %5283 = vmatpush1.msra.mxu0 0.0
    %5284 = vmatprep.subr.mxu0 0.0
    %5285 = vmatpush1.msra.mxu0 0.0
    %5286 = vmatprep.subr.mxu0 0.0
    %5287 = vmatpush1.msra.mxu0 0.0
    %5288 = vmatprep.subr.mxu0 0.0
    %5289 = vmatpush1.msra.mxu0 0.0
    %5290 = vmatprep.subr.mxu0 0.0
    %5291 = vmatpush1.msra.mxu0 0.0
    %5292 = vmatprep.subr.mxu0 0.0
    %5293 = vmatpush1.msra.mxu0 0.0
    %5294 = vmatprep.subr.mxu0 0.0
    %5295 = vmatpush1.msra.mxu0 0.0
    %5296 = vmatprep.subr.mxu0 0.0
    %5297 = vmatpush1.msra.mxu0 0.0
    %5298 = vmatprep.subr.mxu0 0.0
    %5299 = vmatpush1.msra.mxu0 0.0
    %5300 = vmatprep.subr.mxu0 0.0
    %5301 = vmatpush1.msra.mxu0 0.0
    %5302 = vmatprep.subr.mxu0 0.0
    %5303 = vmatpush1.msra.mxu0 0.0
    %5304 = vmatprep.subr.mxu0 0.0
    %5305 = vmatpush1.msra.mxu0 0.0
    %5306 = vmatprep.subr.mxu0 0.0
    %5307 = vmatpush1.msra.mxu0 0.0
    %5308 = vmatprep.subr.mxu0 0.0
    %5309 = vmatpush1.msra.mxu0 0.0
    %5310 = vmatprep.subr.mxu0 0.0
    %5311 = vmatpush1.msra.mxu0 0.0
    %5312 = vmatprep.subr.mxu0 0.0
    %5313 = vmatpush1.msra.mxu0 0.0
    %5314 = vmatprep.subr.mxu0 0.0
    %5315 = vmatpush1.msra.mxu0 0.0
    %5316 = vmatprep.subr.mxu0 0.0
    %5317 = vmatpush1.msra.mxu0 0.0
    %5318 = vmatprep.subr.mxu0 0.0
    %5319 = vmatpush1.msra.mxu0 0.0
    %5320 = vmatprep.subr.mxu0 0.0
    %5321 = vmatpush1.msra.mxu0 0.0
    %5322 = vmatprep.subr.mxu0 0.0
    %5323 = vmatpush1.msra.mxu0 0.0
    %5324 = vmatprep.subr.mxu0 0.0
    %5325 = vmatpush1.msra.mxu0 0.0
    %5326 = vmatprep.subr.mxu0 0.0
    %5327 = vmatpush1.msra.mxu0 0.0
    %5328 = vmatprep.subr.mxu0 0.0
    %5329 = vmatpush1.msra.mxu0 0.0
    %5330 = vmatprep.subr.mxu0 0.0
    %5331 = vmatpush1.msra.mxu0 0.0
    %5332 = vmatprep.mubr.f32.mxu0 0.0
    %5333 = vmatmul.mubr.f32.gmra.mrb[0].mxu0 %v5126
    %v5334 = vpop.f32.mrb[0].mxu0
    %v5335 = vadd.f32 %v1867, %v5334
    %v5336 = vpop.f32.mrb[0].mxu0
    %5337 = vdwg.mxu0
    %v5339 = vrot.slane %v5195, 4
    %v5341 = vadd.f32 %v1494, %v5339
    %v5342 = vxor.u32 %v5341, 2147483648
    %v5343 = vmul.f32 %v5342, 1.442695
    %v5344 = vpow.pop %v5343
    %v5345 = vadd.f32 %v5344, 1.0
    %v5346 = vrcp.pop %v5345
    %v5347 = vmul.f32 1.0, %v5346
    %v5349 = vrot.slane %v5265, 4
    %v5351 = vadd.f32 %v1590, %v5349
    %v5352 = vxor.u32 %v5351, 2147483648
    %v5353 = vmul.f32 %v5352, 1.442695
    %v5354 = vpow.pop %v5353
    %v5355 = vadd.f32 %v5354, 1.0
    %v5356 = vrcp.pop %v5355
    %v5357 = vmul.f32 1.0, %v5356
    %v5359 = vrot.slane %v5335, 4
    %v5361 = vmul.f32 %v5347, %v5359
    %v5362 = vadd.f32 %v1686, %v5361
    %v5363 = vtanh.pop %v5362
    %v5364 = vsub.f32 1.0, %v5357
    %v5365 = vmul.f32 %v5364, %v5363
    %v5366 = vrot.slane %v5123, 6
    %v5368 = vmul.f32 %v5357, %v5366
    %v5369 = vadd.f32 %v5365, %v5368
    %v5371 = vrot.slane %v5369, 4
    %v5372 = vsel %vm191, %v5371, 0
    %5374 = vmatprep.subr.mxu0 0.0
    %5375 = vmatpush1.msra.mxu0 %v1689
    %5376 = vmatprep.subr.mxu0 0.0
    %5377 = vmatpush1.msra.mxu0 %v1690
    %5378 = vmatprep.subr.mxu0 0.0
    %5379 = vmatpush1.msra.mxu0 %v1691
    %5380 = vmatprep.subr.mxu0 0.0
    %5381 = vmatpush1.msra.mxu0 %v1692
    %5382 = vmatprep.subr.mxu0 0.0
    %5383 = vmatpush1.msra.mxu0 0.0
    %5384 = vmatprep.subr.mxu0 0.0
    %5385 = vmatpush1.msra.mxu0 0.0
    %5386 = vmatprep.subr.mxu0 0.0
    %5387 = vmatpush1.msra.mxu0 0.0
    %5388 = vmatprep.subr.mxu0 0.0
    %5389 = vmatpush1.msra.mxu0 0.0
    %5390 = vmatprep.subr.mxu0 0.0
    %5391 = vmatpush1.msra.mxu0 0.0
    %5392 = vmatprep.subr.mxu0 0.0
    %5393 = vmatpush1.msra.mxu0 0.0
    %5394 = vmatprep.subr.mxu0 0.0
    %5395 = vmatpush1.msra.mxu0 0.0
    %5396 = vmatprep.subr.mxu0 0.0
    %5397 = vmatpush1.msra.mxu0 0.0
    %5398 = vmatprep.subr.mxu0 0.0
    %5399 = vmatpush1.msra.mxu0 0.0
    %5400 = vmatprep.subr.mxu0 0.0
    %5401 = vmatpush1.msra.mxu0 0.0
    %5402 = vmatprep.subr.mxu0 0.0
    %5403 = vmatpush1.msra.mxu0 0.0
    %5404 = vmatprep.subr.mxu0 0.0
    %5405 = vmatpush1.msra.mxu0 0.0
    %5406 = vmatprep.subr.mxu0 0.0
    %5407 = vmatpush1.msra.mxu0 0.0
    %5408 = vmatprep.subr.mxu0 0.0
    %5409 = vmatpush1.msra.mxu0 0.0
    %5410 = vmatprep.subr.mxu0 0.0
    %5411 = vmatpush1.msra.mxu0 0.0
    %5412 = vmatprep.subr.mxu0 0.0
    %5413 = vmatpush1.msra.mxu0 0.0
    %5414 = vmatprep.subr.mxu0 0.0
    %5415 = vmatpush1.msra.mxu0 0.0
    %5416 = vmatprep.subr.mxu0 0.0
    %5417 = vmatpush1.msra.mxu0 0.0
    %5418 = vmatprep.subr.mxu0 0.0
    %5419 = vmatpush1.msra.mxu0 0.0
    %5420 = vmatprep.subr.mxu0 0.0
    %5421 = vmatpush1.msra.mxu0 0.0
    %5422 = vmatprep.subr.mxu0 0.0
    %5423 = vmatpush1.msra.mxu0 0.0
    %5424 = vmatprep.subr.mxu0 0.0
    %5425 = vmatpush1.msra.mxu0 0.0
    %5426 = vmatprep.subr.mxu0 0.0
    %5427 = vmatpush1.msra.mxu0 0.0
    %5428 = vmatprep.subr.mxu0 0.0
    %5429 = vmatpush1.msra.mxu0 0.0
    %5430 = vmatprep.subr.mxu0 0.0
    %5431 = vmatpush1.msra.mxu0 0.0
    %5432 = vmatprep.subr.mxu0 0.0
    %5433 = vmatpush1.msra.mxu0 0.0
    %5434 = vmatprep.subr.mxu0 0.0
    %5435 = vmatpush1.msra.mxu0 0.0
    %5436 = vmatprep.subr.mxu0 0.0
    %5437 = vmatpush1.msra.mxu0 0.0
    %5438 = vmatprep.mubr.f32.mxu0 0.0
    %5439 = vmatmul.mubr.f32.gmra.mrb[0].mxu0 %v5372
    %v5440 = vpop.f32.mrb[0].mxu0
    %v5441 = vadd.f32 %v1698, %v5440
    %v5442 = vpop.f32.mrb[0].mxu0
    %5443 = vdwg.mxu0
    %5444 = vmatprep.subr.mxu0 0.0
    %5445 = vmatpush1.msra.mxu0 %v1774
    %5446 = vmatprep.subr.mxu0 0.0
    %5447 = vmatpush1.msra.mxu0 %v1775
    %5448 = vmatprep.subr.mxu0 0.0
    %5449 = vmatpush1.msra.mxu0 %v1776
    %5450 = vmatprep.subr.mxu0 0.0
    %5451 = vmatpush1.msra.mxu0 %v1777
    %5452 = vmatprep.subr.mxu0 0.0
    %5453 = vmatpush1.msra.mxu0 0.0
    %5454 = vmatprep.subr.mxu0 0.0
    %5455 = vmatpush1.msra.mxu0 0.0
    %5456 = vmatprep.subr.mxu0 0.0
    %5457 = vmatpush1.msra.mxu0 0.0
    %5458 = vmatprep.subr.mxu0 0.0
    %5459 = vmatpush1.msra.mxu0 0.0
    %5460 = vmatprep.subr.mxu0 0.0
    %5461 = vmatpush1.msra.mxu0 0.0
    %5462 = vmatprep.subr.mxu0 0.0
    %5463 = vmatpush1.msra.mxu0 0.0
    %5464 = vmatprep.subr.mxu0 0.0
    %5465 = vmatpush1.msra.mxu0 0.0
    %5466 = vmatprep.subr.mxu0 0.0
    %5467 = vmatpush1.msra.mxu0 0.0
    %5468 = vmatprep.subr.mxu0 0.0
    %5469 = vmatpush1.msra.mxu0 0.0
    %5470 = vmatprep.subr.mxu0 0.0
    %5471 = vmatpush1.msra.mxu0 0.0
    %5472 = vmatprep.subr.mxu0 0.0
    %5473 = vmatpush1.msra.mxu0 0.0
    %5474 = vmatprep.subr.mxu0 0.0
    %5475 = vmatpush1.msra.mxu0 0.0
    %5476 = vmatprep.subr.mxu0 0.0
    %5477 = vmatpush1.msra.mxu0 0.0
    %5478 = vmatprep.subr.mxu0 0.0
    %5479 = vmatpush1.msra.mxu0 0.0
    %5480 = vmatprep.subr.mxu0 0.0
    %5481 = vmatpush1.msra.mxu0 0.0
    %5482 = vmatprep.subr.mxu0 0.0
    %5483 = vmatpush1.msra.mxu0 0.0
    %5484 = vmatprep.subr.mxu0 0.0
    %5485 = vmatpush1.msra.mxu0 0.0
    %5486 = vmatprep.subr.mxu0 0.0
    %5487 = vmatpush1.msra.mxu0 0.0
    %5488 = vmatprep.subr.mxu0 0.0
    %5489 = vmatpush1.msra.mxu0 0.0
    %5490 = vmatprep.subr.mxu0 0.0
    %5491 = vmatpush1.msra.mxu0 0.0
    %5492 = vmatprep.subr.mxu0 0.0
    %5493 = vmatpush1.msra.mxu0 0.0
    %5494 = vmatprep.subr.mxu0 0.0
    %5495 = vmatpush1.msra.mxu0 0.0
    %5496 = vmatprep.subr.mxu0 0.0
    %5497 = vmatpush1.msra.mxu0 0.0
    %5498 = vmatprep.subr.mxu0 0.0
    %5499 = vmatpush1.msra.mxu0 0.0
    %5500 = vmatprep.subr.mxu0 0.0
    %5501 = vmatpush1.msra.mxu0 0.0
    %5502 = vmatprep.subr.mxu0 0.0
    %5503 = vmatpush1.msra.mxu0 0.0
    %5504 = vmatprep.subr.mxu0 0.0
    %5505 = vmatpush1.msra.mxu0 0.0
    %5506 = vmatprep.subr.mxu0 0.0
    %5507 = vmatpush1.msra.mxu0 0.0
    %5508 = vmatprep.mubr.f32.mxu0 0.0
    %5509 = vmatmul.mubr.f32.gmra.mrb[0].mxu0 %v5372
    %v5510 = vpop.f32.mrb[0].mxu0
    %v5511 = vadd.f32 %v1784, %v5510
    %v5512 = vpop.f32.mrb[0].mxu0
    %5513 = vdwg.mxu0
    %5514 = vmatprep.subr.mxu0 0.0
    %5515 = vmatpush1.msra.mxu0 %v1857
    %5516 = vmatprep.subr.mxu0 0.0
    %5517 = vmatpush1.msra.mxu0 %v1858
    %5518 = vmatprep.subr.mxu0 0.0
    %5519 = vmatpush1.msra.mxu0 %v1859
    %5520 = vmatprep.subr.mxu0 0.0
    %5521 = vmatpush1.msra.mxu0 %v1860
    %5522 = vmatprep.subr.mxu0 0.0
    %5523 = vmatpush1.msra.mxu0 0.0
    %5524 = vmatprep.subr.mxu0 0.0
    %5525 = vmatpush1.msra.mxu0 0.0
    %5526 = vmatprep.subr.mxu0 0.0
    %5527 = vmatpush1.msra.mxu0 0.0
    %5528 = vmatprep.subr.mxu0 0.0
    %5529 = vmatpush1.msra.mxu0 0.0
    %5530 = vmatprep.subr.mxu0 0.0
    %5531 = vmatpush1.msra.mxu0 0.0
    %5532 = vmatprep.subr.mxu0 0.0
    %5533 = vmatpush1.msra.mxu0 0.0
    %5534 = vmatprep.subr.mxu0 0.0
    %5535 = vmatpush1.msra.mxu0 0.0
    %5536 = vmatprep.subr.mxu0 0.0
    %5537 = vmatpush1.msra.mxu0 0.0
    %5538 = vmatprep.subr.mxu0 0.0
    %5539 = vmatpush1.msra.mxu0 0.0
    %5540 = vmatprep.subr.mxu0 0.0
    %5541 = vmatpush1.msra.mxu0 0.0
    %5542 = vmatprep.subr.mxu0 0.0
    %5543 = vmatpush1.msra.mxu0 0.0
    %5544 = vmatprep.subr.mxu0 0.0
    %5545 = vmatpush1.msra.mxu0 0.0
    %5546 = vmatprep.subr.mxu0 0.0
    %5547 = vmatpush1.msra.mxu0 0.0
    %5548 = vmatprep.subr.mxu0 0.0
    %5549 = vmatpush1.msra.mxu0 0.0
    %5550 = vmatprep.subr.mxu0 0.0
    %5551 = vmatpush1.msra.mxu0 0.0
    %5552 = vmatprep.subr.mxu0 0.0
    %5553 = vmatpush1.msra.mxu0 0.0
    %5554 = vmatprep.subr.mxu0 0.0
    %5555 = vmatpush1.msra.mxu0 0.0
    %5556 = vmatprep.subr.mxu0 0.0
    %5557 = vmatpush1.msra.mxu0 0.0
    %5558 = vmatprep.subr.mxu0 0.0
    %5559 = vmatpush1.msra.mxu0 0.0
    %5560 = vmatprep.subr.mxu0 0.0
    %5561 = vmatpush1.msra.mxu0 0.0
    %5562 = vmatprep.subr.mxu0 0.0
    %5563 = vmatpush1.msra.mxu0 0.0
    %5564 = vmatprep.subr.mxu0 0.0
    %5565 = vmatpush1.msra.mxu0 0.0
    %5566 = vmatprep.subr.mxu0 0.0
    %5567 = vmatpush1.msra.mxu0 0.0
    %5568 = vmatprep.subr.mxu0 0.0
    %5569 = vmatpush1.msra.mxu0 0.0
    %5570 = vmatprep.subr.mxu0 0.0
    %5571 = vmatpush1.msra.mxu0 0.0
    %5572 = vmatprep.subr.mxu0 0.0
    %5573 = vmatpush1.msra.mxu0 0.0
    %5574 = vmatprep.subr.mxu0 0.0
    %5575 = vmatpush1.msra.mxu0 0.0
    %5576 = vmatprep.subr.mxu0 0.0
    %5577 = vmatpush1.msra.mxu0 0.0
    %5578 = vmatprep.mubr.f32.mxu0 0.0
    %5579 = vmatmul.mubr.f32.gmra.mrb[0].mxu0 %v5372
    %v5580 = vpop.f32.mrb[0].mxu0
    %v5581 = vadd.f32 %v1867, %v5580
    %v5582 = vpop.f32.mrb[0].mxu0
    %5583 = vdwg.mxu0
    %v5585 = vrot.slane %v5441, 2
    %v5587 = vadd.f32 %v1494, %v5585
    %v5588 = vxor.u32 %v5587, 2147483648
    %v5589 = vmul.f32 %v5588, 1.442695
    %v5590 = vpow.pop %v5589
    %v5591 = vadd.f32 %v5590, 1.0
    %v5592 = vrcp.pop %v5591
    %v5593 = vmul.f32 1.0, %v5592
    %v5595 = vrot.slane %v5511, 2
    %v5597 = vadd.f32 %v1590, %v5595
    %v5598 = vxor.u32 %v5597, 2147483648
    %v5599 = vmul.f32 %v5598, 1.442695
    %v5600 = vpow.pop %v5599
    %v5601 = vadd.f32 %v5600, 1.0
    %v5602 = vrcp.pop %v5601
    %v5603 = vmul.f32 1.0, %v5602
    %v5605 = vrot.slane %v5581, 2
    %v5607 = vmul.f32 %v5593, %v5605
    %v5608 = vadd.f32 %v1686, %v5607
    %v5609 = vtanh.pop %v5608
    %v5610 = vsub.f32 1.0, %v5603
    %v5611 = vmul.f32 %v5610, %v5609
    %v5612 = vrot.slane %v5369, 6
    %v5614 = vmul.f32 %v5603, %v5612
    %v5615 = vadd.f32 %v5611, %v5614
    %v5616 = vld [vmem:[#allocation9] sm:$0xff]
    %v5617 = vld [vmem:[#allocation9 + $0x8] sm:$0xff]
    %v5618 = vld [vmem:[#allocation9 + $0x10] sm:$0xff]
    %v5619 = vld [vmem:[#allocation9 + $0x18] sm:$0xff]
    %v5620 = vld [vmem:[#allocation10] sm:$0x1]
    %v5622 = vlaneseq
    %v5623 = vshrl.u32 %v5622, 7
    %v5624 = vsub.s32 0, %v5623
    %v5625 = vrot.slane %v5620, %v5624
    %v5628 = vrot.slane %v5615, 6
    %v5629 = vsel %vm191, %v5628, 0
    %5631 = vmatprep.subr.mxu0 0.0
    %5632 = vmatpush1.msra.mxu0 %v5616
    %5633 = vmatprep.subr.mxu0 0.0
    %5634 = vmatpush1.msra.mxu0 %v5617
    %5635 = vmatprep.subr.mxu0 0.0
    %5636 = vmatpush1.msra.mxu0 %v5618
    %5637 = vmatprep.subr.mxu0 0.0
    %5638 = vmatpush1.msra.mxu0 %v5619
    %5639 = vmatprep.subr.mxu0 0.0
    %5640 = vmatpush1.msra.mxu0 0.0
    %5641 = vmatprep.subr.mxu0 0.0
    %5642 = vmatpush1.msra.mxu0 0.0
    %5643 = vmatprep.subr.mxu0 0.0
    %5644 = vmatpush1.msra.mxu0 0.0
    %5645 = vmatprep.subr.mxu0 0.0
    %5646 = vmatpush1.msra.mxu0 0.0
    %5647 = vmatprep.subr.mxu0 0.0
    %5648 = vmatpush1.msra.mxu0 0.0
    %5649 = vmatprep.subr.mxu0 0.0
    %5650 = vmatpush1.msra.mxu0 0.0
    %5651 = vmatprep.subr.mxu0 0.0
    %5652 = vmatpush1.msra.mxu0 0.0
    %5653 = vmatprep.subr.mxu0 0.0
    %5654 = vmatpush1.msra.mxu0 0.0
    %5655 = vmatprep.subr.mxu0 0.0
    %5656 = vmatpush1.msra.mxu0 0.0
    %5657 = vmatprep.subr.mxu0 0.0
    %5658 = vmatpush1.msra.mxu0 0.0
    %5659 = vmatprep.subr.mxu0 0.0
    %5660 = vmatpush1.msra.mxu0 0.0
    %5661 = vmatprep.subr.mxu0 0.0
    %5662 = vmatpush1.msra.mxu0 0.0
    %5663 = vmatprep.subr.mxu0 0.0
    %5664 = vmatpush1.msra.mxu0 0.0
    %5665 = vmatprep.subr.mxu0 0.0
    %5666 = vmatpush1.msra.mxu0 0.0
    %5667 = vmatprep.subr.mxu0 0.0
    %5668 = vmatpush1.msra.mxu0 0.0
    %5669 = vmatprep.subr.mxu0 0.0
    %5670 = vmatpush1.msra.mxu0 0.0
    %5671 = vmatprep.subr.mxu0 0.0
    %5672 = vmatpush1.msra.mxu0 0.0
    %5673 = vmatprep.subr.mxu0 0.0
    %5674 = vmatpush1.msra.mxu0 0.0
    %5675 = vmatprep.subr.mxu0 0.0
    %5676 = vmatpush1.msra.mxu0 0.0
    %5677 = vmatprep.subr.mxu0 0.0
    %5678 = vmatpush1.msra.mxu0 0.0
    %5679 = vmatprep.subr.mxu0 0.0
    %5680 = vmatpush1.msra.mxu0 0.0
    %5681 = vmatprep.subr.mxu0 0.0
    %5682 = vmatpush1.msra.mxu0 0.0
    %5683 = vmatprep.subr.mxu0 0.0
    %5684 = vmatpush1.msra.mxu0 0.0
    %5685 = vmatprep.subr.mxu0 0.0
    %5686 = vmatpush1.msra.mxu0 0.0
    %5687 = vmatprep.subr.mxu0 0.0
    %5688 = vmatpush1.msra.mxu0 0.0
    %5689 = vmatprep.subr.mxu0 0.0
    %5690 = vmatpush1.msra.mxu0 0.0
    %5691 = vmatprep.subr.mxu0 0.0
    %5692 = vmatpush1.msra.mxu0 0.0
    %5693 = vmatprep.subr.mxu0 0.0
    %5694 = vmatpush1.msra.mxu0 0.0
    %5695 = vmatprep.mubr.f32.mxu0 0.0
    %5696 = vmatmul.mubr.f32.gmra.mrb[0].mxu0 %v5629
    %v5697 = vpop.f32.mrb[0].mxu0
    %v5698 = vadd.f32 %v5625, %v5697
    %v5699 = vpop.f32.mrb[0].mxu0
    %5700 = vdwg.mxu0
    %v5701 = vmax.f32 %v5698, 0.0
    %v5702 = vld [vmem:[#allocation12] sm:$0xff]
    %v5703 = vld [vmem:[#allocation12 + $0x8] sm:$0xff]
    %v5704 = vld [vmem:[#allocation12 + $0x10] sm:$0xff]
    %v5705 = vld [vmem:[#allocation12 + $0x18] sm:$0xff]
    %v5706 = vld [vmem:[#allocation13] sm:$0x1]
    %v5708 = vlaneseq
    %v5709 = vshrl.u32 %v5708, 7
    %v5710 = vsub.s32 0, %v5709
    %v5711 = vrot.slane %v5706, %v5710
    %v5714 = vsel %vm191, %v5701, 0
    %5716 = vmatprep.subr.mxu0 0.0
    %5717 = vmatpush1.msra.mxu0 %v5702
    %5718 = vmatprep.subr.mxu0 0.0
    %5719 = vmatpush1.msra.mxu0 %v5703
    %5720 = vmatprep.subr.mxu0 0.0
    %5721 = vmatpush1.msra.mxu0 %v5704
    %5722 = vmatprep.subr.mxu0 0.0
    %5723 = vmatpush1.msra.mxu0 %v5705
    %5724 = vmatprep.subr.mxu0 0.0
    %5725 = vmatpush1.msra.mxu0 0.0
    %5726 = vmatprep.subr.mxu0 0.0
    %5727 = vmatpush1.msra.mxu0 0.0
    %5728 = vmatprep.subr.mxu0 0.0
    %5729 = vmatpush1.msra.mxu0 0.0
    %5730 = vmatprep.subr.mxu0 0.0
    %5731 = vmatpush1.msra.mxu0 0.0
    %5732 = vmatprep.subr.mxu0 0.0
    %5733 = vmatpush1.msra.mxu0 0.0
    %5734 = vmatprep.subr.mxu0 0.0
    %5735 = vmatpush1.msra.mxu0 0.0
    %5736 = vmatprep.subr.mxu0 0.0
    %5737 = vmatpush1.msra.mxu0 0.0
    %5738 = vmatprep.subr.mxu0 0.0
    %5739 = vmatpush1.msra.mxu0 0.0
    %5740 = vmatprep.subr.mxu0 0.0
    %5741 = vmatpush1.msra.mxu0 0.0
    %5742 = vmatprep.subr.mxu0 0.0
    %5743 = vmatpush1.msra.mxu0 0.0
    %5744 = vmatprep.subr.mxu0 0.0
    %5745 = vmatpush1.msra.mxu0 0.0
    %5746 = vmatprep.subr.mxu0 0.0
    %5747 = vmatpush1.msra.mxu0 0.0
    %5748 = vmatprep.subr.mxu0 0.0
    %5749 = vmatpush1.msra.mxu0 0.0
    %5750 = vmatprep.subr.mxu0 0.0
    %5751 = vmatpush1.msra.mxu0 0.0
    %5752 = vmatprep.subr.mxu0 0.0
    %5753 = vmatpush1.msra.mxu0 0.0
    %5754 = vmatprep.subr.mxu0 0.0
    %5755 = vmatpush1.msra.mxu0 0.0
    %5756 = vmatprep.subr.mxu0 0.0
    %5757 = vmatpush1.msra.mxu0 0.0
    %5758 = vmatprep.subr.mxu0 0.0
    %5759 = vmatpush1.msra.mxu0 0.0
    %5760 = vmatprep.subr.mxu0 0.0
    %5761 = vmatpush1.msra.mxu0 0.0
    %5762 = vmatprep.subr.mxu0 0.0
    %5763 = vmatpush1.msra.mxu0 0.0
    %5764 = vmatprep.subr.mxu0 0.0
    %5765 = vmatpush1.msra.mxu0 0.0
    %5766 = vmatprep.subr.mxu0 0.0
    %5767 = vmatpush1.msra.mxu0 0.0
    %5768 = vmatprep.subr.mxu0 0.0
    %5769 = vmatpush1.msra.mxu0 0.0
    %5770 = vmatprep.subr.mxu0 0.0
    %5771 = vmatpush1.msra.mxu0 0.0
    %5772 = vmatprep.subr.mxu0 0.0
    %5773 = vmatpush1.msra.mxu0 0.0
    %5774 = vmatprep.subr.mxu0 0.0
    %5775 = vmatpush1.msra.mxu0 0.0
    %5776 = vmatprep.subr.mxu0 0.0
    %5777 = vmatpush1.msra.mxu0 0.0
    %5778 = vmatprep.subr.mxu0 0.0
    %5779 = vmatpush1.msra.mxu0 0.0
    %5780 = vmatprep.mubr.f32.mxu0 0.0
    %5781 = vmatmul.mubr.f32.gmra.mrb[0].mxu0 %v5714
    %v5782 = vpop.f32.mrb[0].mxu0
    %v5783 = vadd.f32 %v5711, %v5782
    %v5784 = vpop.f32.mrb[0].mxu0
    %5785 = vdwg.mxu0
    %v5786 = vmax.f32 %v5783, 0.0
    %v5787 = vld [vmem:[#allocation15] sm:$0xff]
    %v5788 = vld [vmem:[#allocation15 + $0x8] sm:$0xff]
    %v5789 = vld [vmem:[#allocation15 + $0x10] sm:$0xff]
    %v5790 = vld [vmem:[#allocation15 + $0x18] sm:$0xff]
    %v5791 = vld [vmem:[#allocation16] sm:$0x1]
    %v5793 = vlaneseq
    %v5794 = vshrl.u32 %v5793, 7
    %v5795 = vsub.s32 0, %v5794
    %v5796 = vrot.slane %v5791, %v5795
    %v5799 = vsel %vm191, %v5786, 0
    %5801 = vmatprep.subr.mxu0 0.0
    %5802 = vmatpush1.msra.mxu0 %v5787
    %5803 = vmatprep.subr.mxu0 0.0
    %5804 = vmatpush1.msra.mxu0 %v5788
    %5805 = vmatprep.subr.mxu0 0.0
    %5806 = vmatpush1.msra.mxu0 %v5789
    %5807 = vmatprep.subr.mxu0 0.0
    %5808 = vmatpush1.msra.mxu0 %v5790
    %5809 = vmatprep.subr.mxu0 0.0
    %5810 = vmatpush1.msra.mxu0 0.0
    %5811 = vmatprep.subr.mxu0 0.0
    %5812 = vmatpush1.msra.mxu0 0.0
    %5813 = vmatprep.subr.mxu0 0.0
    %5814 = vmatpush1.msra.mxu0 0.0
    %5815 = vmatprep.subr.mxu0 0.0
    %5816 = vmatpush1.msra.mxu0 0.0
    %5817 = vmatprep.subr.mxu0 0.0
    %5818 = vmatpush1.msra.mxu0 0.0
    %5819 = vmatprep.subr.mxu0 0.0
    %5820 = vmatpush1.msra.mxu0 0.0
    %5821 = vmatprep.subr.mxu0 0.0
    %5822 = vmatpush1.msra.mxu0 0.0
    %5823 = vmatprep.subr.mxu0 0.0
    %5824 = vmatpush1.msra.mxu0 0.0
    %5825 = vmatprep.subr.mxu0 0.0
    %5826 = vmatpush1.msra.mxu0 0.0
    %5827 = vmatprep.subr.mxu0 0.0
    %5828 = vmatpush1.msra.mxu0 0.0
    %5829 = vmatprep.subr.mxu0 0.0
    %5830 = vmatpush1.msra.mxu0 0.0
    %5831 = vmatprep.subr.mxu0 0.0
    %5832 = vmatpush1.msra.mxu0 0.0
    %5833 = vmatprep.subr.mxu0 0.0
    %5834 = vmatpush1.msra.mxu0 0.0
    %5835 = vmatprep.subr.mxu0 0.0
    %5836 = vmatpush1.msra.mxu0 0.0
    %5837 = vmatprep.subr.mxu0 0.0
    %5838 = vmatpush1.msra.mxu0 0.0
    %5839 = vmatprep.subr.mxu0 0.0
    %5840 = vmatpush1.msra.mxu0 0.0
    %5841 = vmatprep.subr.mxu0 0.0
    %5842 = vmatpush1.msra.mxu0 0.0
    %5843 = vmatprep.subr.mxu0 0.0
    %5844 = vmatpush1.msra.mxu0 0.0
    %5845 = vmatprep.subr.mxu0 0.0
    %5846 = vmatpush1.msra.mxu0 0.0
    %5847 = vmatprep.subr.mxu0 0.0
    %5848 = vmatpush1.msra.mxu0 0.0
    %5849 = vmatprep.subr.mxu0 0.0
    %5850 = vmatpush1.msra.mxu0 0.0
    %5851 = vmatprep.subr.mxu0 0.0
    %5852 = vmatpush1.msra.mxu0 0.0
    %5853 = vmatprep.subr.mxu0 0.0
    %5854 = vmatpush1.msra.mxu0 0.0
    %5855 = vmatprep.subr.mxu0 0.0
    %5856 = vmatpush1.msra.mxu0 0.0
    %5857 = vmatprep.subr.mxu0 0.0
    %5858 = vmatpush1.msra.mxu0 0.0
    %5859 = vmatprep.subr.mxu0 0.0
    %5860 = vmatpush1.msra.mxu0 0.0
    %5861 = vmatprep.subr.mxu0 0.0
    %5862 = vmatpush1.msra.mxu0 0.0
    %5863 = vmatprep.subr.mxu0 0.0
    %5864 = vmatpush1.msra.mxu0 0.0
    %5865 = vmatprep.mubr.f32.mxu0 0.0
    %5866 = vmatmul.mubr.f32.gmra.mrb[0].mxu0 %v5799
    %v5867 = vpop.f32.mrb[0].mxu0
    %v5868 = vadd.f32 %v5796, %v5867
    %v5869 = vpop.f32.mrb[0].mxu0
    %5870 = vdwg.mxu0
    %v5871 = vlaneseq
    %v5872 = vand.u32 %v5871, 127
    %vm5873 = vcmp.lt.s32.totalorder %v5872, 3
    %vm5874 = vcmp.ge.s32.totalorder %v5872, 9
    %vm5875 = vcmp.lt.s32.totalorder %v5872, 15
    %vm5876 = vmand %vm5874, %vm5875
    %v5877 = vsel %vm5873, %v5868, -1e+30
    %vm5878 = vcmask 1041408
    %v5879 = vsel %vm5878, %v5877, -inf
    %5880 = vmax.xlane.f32.xlu0 %v5879
    %v5881 = vpop.xlane.xlu0 %5880
    %v5882 = vsub.f32 %v5868, %v5881
    %v5883 = vmul.f32 %v5882, 1.442695
    %v5884 = vpow.pop %v5883
    %v5885 = vsel %vm5873, %v5884, 0.0
    %v5886 = vsel %vm5878, %v5885, 0.0
    %5887 = vadd.xlane.f32.xlu0 %v5886
    %v5888 = vpop.xlane.xlu0 %5887
    %v5889 = vrcp.pop %v5888
    %v5890 = vmul.f32 %v5885, %v5889
    %v5891 = vsel %vm5876, %v5868, 0.0
    %v5892 = vmul.f32 %v5891, 1.442695
    %v5893 = vpow.pop %v5892
    %v5894 = vsel %vm5876, %v5893, %v5868
    %v5895 = vsel %vm5873, %v5890, %v5894
    %5896 = vst [vmem:[%s16] sm:$0x3] %v5895
    // Predicated region
    $region106: #{dmdnn_forward.1} parent=1 // pred_check
      _
    $region107: #{dmdnn_forward.1} parent=1 // pred_check_branch
      %5898 = sbr.rel (0) target = $region109
    $region108: #{dmdnn_forward.1} parent=1 // pred_region
      _
    $region109: #{dmdnn_forward.1} parent=1 // pred_fallthru
      _
    // Predicated region
    $region110: #{dmdnn_forward.1} parent=1 // pred_check
      _
    $region111: #{dmdnn_forward.1} parent=1 // pred_check_branch
      %5900 = sbr.rel (0) target = $region113
    $region112: #{dmdnn_forward.1} parent=1 // pred_region
      _
    $region113: #{dmdnn_forward.1} parent=1 // pred_fallthru
      _
    %5901 = vsyncpa [#allocation3], 1
    %5902 = vsyncpa [#allocation5], 1
    %5903 = vsyncpa [#allocation8], 1
    %5904 = vsyncpa [#allocation11], 1
    %5905 = vsyncpa [#allocation14], 1
    %5906 = vsyncpa [#allocation17], 1

</llo_original>
